<compile_context>
chip_gen: v6e
topology: v6e:2x2x1
jax: 0.10.0
libtpu: 0.0.40
codegen_flags: <defaults>
</compile_context>

<pallas_src>
import functools
from math import sqrt

import jax
import jax.numpy as jnp
from jax import lax
from jax.experimental import pallas as pl
from jax.experimental.pallas import tpu as pltpu


# -----------------------------------------------------------------------------
# Fused Pallas kernel: conv1 + bn1 + relu + maxpool + layer1 (2 BasicBlocks)
# -----------------------------------------------------------------------------
def _fused_resnet_kernel(patches_ref, w1_ref, wl_ref, b_ref, out_ref,
                         pool_pad, pad_a, pad_b, *, hp, wp, cout):
    sp = hp * wp

    # ---- conv1 as one MXU matmul (bf16 operands, BN scale pre-folded) ----------
    y1 = jnp.dot(patches_ref[0], w1_ref[...], preferred_element_type=jnp.float32)
    y1 = jnp.maximum(y1 + b_ref[0:1, :], 0.0)                 # (4*sp, cout) f32

    # ---- fused maxpool 3x3 / stride 2 / pad 1 ---------------------------------
    # Row chunk q of y1 holds conv1 output at (2m + q//2, 2n + q%2), m<hp, n<wp.
    # Stage each chunk into a zero-padded VMEM scratch so every window tap is a
    # plain static slice (zero padding is a safe lower bound post-ReLU).
    pool_pad[...] = jnp.zeros_like(pool_pad)
    for q in range(4):
        base = q * (hp + 1)
        pool_pad[base + 1:base + 1 + hp, 1:wp + 1, :] = (
            y1[q * sp:(q + 1) * sp].reshape(hp, wp, cout))

    def tap(q, a, b):  # phase q; a/b == 0 means the (m-1)/(n-1) shifted view
        base = q * (hp + 1)
        return pool_pad[base + a:base + a + hp, b:b + wp, :]

    pooled = tap(0, 1, 1)
    for t in ((1, 1, 1), (1, 1, 0), (2, 1, 1), (3, 1, 1), (3, 1, 0),
              (2, 0, 1), (3, 0, 1), (3, 0, 0)):
        pooled = jnp.maximum(pooled, tap(*t))                 # (hp, wp, cout)

    # ---- layer1: two BasicBlocks, activations stay in VMEM --------------------
    pad_a[...] = jnp.zeros_like(pad_a)
    pad_b[...] = jnp.zeros_like(pad_b)
    pad_a[1:hp + 1, 1:wp + 1, :] = pooled

    def conv3x3(src_ref, conv_idx, bias_row, residual=None):
        # 3x3/s1/p1 conv as 9 accumulated matmuls over shifted views (K=64).
        acc = jnp.zeros((sp, cout), jnp.float32)
        for di in range(3):
            for dj in range(3):
                t = src_ref[di:di + hp, dj:dj + wp, :]
                t = t.reshape(sp, cout).astype(jnp.bfloat16)
                acc = acc + jnp.dot(t, wl_ref[conv_idx * 9 + di * 3 + dj],
                                    preferred_element_type=jnp.float32)
        y = acc + b_ref[bias_row:bias_row + 1, :]
        if residual is not None:
            y = y + residual
        return jnp.maximum(y, 0.0)

    # BasicBlock 1
    ident = pooled.reshape(sp, cout)
    h = conv3x3(pad_a, 0, 1)
    pad_b[1:hp + 1, 1:wp + 1, :] = h.reshape(hp, wp, cout)
    y = conv3x3(pad_b, 1, 2, residual=ident)
    pad_a[1:hp + 1, 1:wp + 1, :] = y.reshape(hp, wp, cout)

    # BasicBlock 2
    ident = y
    h = conv3x3(pad_a, 2, 3)
    pad_b[1:hp + 1, 1:wp + 1, :] = h.reshape(hp, wp, cout)
    y = conv3x3(pad_b, 3, 4, residual=ident)

    out_ref[0] = y                                            # (sp, cout) f32


# -----------------------------------------------------------------------------
# Wrapper-side glue: conv1 im2col (phase-ordered), BN folding, weight packing
# -----------------------------------------------------------------------------
def _im2col_conv1_phased(x_nhwc, k, stride, pad):
    """7x7/2 patches, rows ordered (row-parity, col-parity, coarse y, coarse x)."""
    n, h, w, c = x_nhwc.shape
    xp = jnp.pad(x_nhwc, ((0, 0), (pad, pad), (pad, pad), (0, 0)))
    ho = (h + 2 * pad - k) // stride + 1
    wo = (w + 2 * pad - k) // stride + 1
    taps = []
    for i in range(k):
        for j in range(k):
            taps.append(lax.slice(
                xp, (0, i, j, 0),
                (n, i + stride * (ho - 1) + 1, j + stride * (wo - 1) + 1, c),
                (1, stride, stride, 1)))                      # (n, ho, wo, c)
    pat = jnp.stack(taps, axis=3).reshape(n, ho, wo, k * k * c)
    assert ho % 2 == 0 and wo % 2 == 0, "phase-decomposed maxpool needs even conv1 output"
    hp, wp = ho // 2, wo // 2
    pat = pat.reshape(n, hp, 2, wp, 2, k * k * c)
    pat = pat.transpose(0, 2, 4, 1, 3, 5).reshape(n, 4 * hp * wp, k * k * c)
    return pat, (hp, wp)


def _fold_bn(gamma, beta, mean, var, eps=1e-5):
    scale = gamma / jnp.sqrt(var + eps)
    return scale, beta - mean * scale


def _prep_kernel_params(params):
    """Fold BN scale into weights, reshape for the kernel, cast MXU operands to bf16."""
    s1, b1 = _fold_bn(*params["bn1"])
    w1 = jnp.transpose(params["conv1_w"], (2, 3, 1, 0)).reshape(-1, 64)  # (147, 64)
    w1 = (w1 * s1[None, :]).astype(jnp.bfloat16)

    wl, biases = [], [b1]
    for blk in params["layer1"]:
        for wname, bnname in (("conv1_w", "bn1"), ("conv2_w", "bn2")):
            s, b = _fold_bn(*blk[bnname])
            w = blk[wname] * s[:, None, None, None]                      # fold into Cout
            wl.append(jnp.transpose(w, (2, 3, 1, 0)).reshape(9, 64, 64)) # (tap, Cin, Cout)
            biases.append(b)
    wl = jnp.concatenate(wl, axis=0).astype(jnp.bfloat16)                # (36, 64, 64)
    biases = jnp.stack(biases, axis=0).astype(jnp.float32)               # (5, 64)
    return w1, wl, biases


def tiny_resnet18_forward(x_nchw, params):
    cout = 64
    x = jnp.transpose(x_nchw, (0, 2, 3, 1)).astype(jnp.float32)          # NHWC
    n = x.shape[0]

    patches, (hp, wp) = _im2col_conv1_phased(x, k=7, stride=2, pad=3)
    patches = patches.astype(jnp.bfloat16)                               # (n, 4*sp, 147)
    k1 = patches.shape[-1]
    sp = hp * wp

    w1, wl, biases = _prep_kernel_params(params)

    kernel = functools.partial(_fused_resnet_kernel, hp=hp, wp=wp, cout=cout)
    out = pl.pallas_call(
        kernel,
        grid=(n,),
        in_specs=[
            pl.BlockSpec((1, 4 * sp, k1), lambda i: (i, 0, 0)),
            pl.BlockSpec((k1, cout), lambda i: (0, 0)),
            pl.BlockSpec((36, cout, cout), lambda i: (0, 0, 0)),
            pl.BlockSpec((5, cout), lambda i: (0, 0)),
        ],
        out_specs=pl.BlockSpec((1, sp, cout), lambda i: (i, 0, 0)),
        out_shape=jax.ShapeDtypeStruct((n, sp, cout), jnp.float32),
        scratch_shapes=[
            pltpu.VMEM((4 * (hp + 1), wp + 1, cout), jnp.float32),  # maxpool staging
            pltpu.VMEM((hp + 2, wp + 2, cout), jnp.float32),        # padded activation A
            pltpu.VMEM((hp + 2, wp + 2, cout), jnp.float32),        # padded activation B
        ],
        compiler_params=pltpu.CompilerParams(
            dimension_semantics=("parallel",)),                     # both v7x TCs busy
    )(patches, w1, wl, biases)

    return jnp.transpose(out.reshape(n, hp, wp, cout), (0, 3, 1, 2))     # NCHW


# -----------------------------------------------------------------------------
# Parameter construction (deterministic, synthetic) and pure-XLA reference
# -----------------------------------------------------------------------------
def make_params(key):
    keys = iter(jax.random.split(key, 64))

    def conv_w(co, ci, k):
        return jax.random.normal(next(keys), (co, ci, k, k), jnp.float32) / sqrt(ci * k * k)

    def bn(c):
        gamma = 1.0 + 0.1 * jax.random.normal(next(keys), (c,), jnp.float32)
        beta = 0.1 * jax.random.normal(next(keys), (c,), jnp.float32)
        mean = 0.1 * jax.random.normal(next(keys), (c,), jnp.float32)
        var = jnp.abs(1.0 + 0.1 * jax.random.normal(next(keys), (c,), jnp.float32))
        return gamma, beta, mean, var

    params = {"conv1_w": conv_w(64, 3, 7), "bn1": bn(64), "layer1": []}
    for _ in range(2):
        params["layer1"].append(
            {"conv1_w": conv_w(64, 64, 3), "bn1": bn(64),
             "conv2_w": conv_w(64, 64, 3), "bn2": bn(64)})
    return params


def _reference_forward(x_nchw, params):
    """Pure-XLA reference of the same pipeline (for numerical cross-check)."""
    def conv(x, w_oihw, stride, pad):
        w = jnp.transpose(w_oihw, (2, 3, 1, 0))                          # HWIO
        return lax.conv_general_dilated(
            x, w, (stride, stride), ((pad, pad), (pad, pad)),
            dimension_numbers=("NHWC", "HWIO", "NHWC"))

    def bn(x, p, eps=1e-5):
        gamma, beta, mean, var = p
        return (x - mean) * (gamma / jnp.sqrt(var + eps)) + beta

    x = jnp.transpose(x_nchw, (0, 2, 3, 1)).astype(jnp.float32)
    y = jax.nn.relu(bn(conv(x, params["conv1_w"], 2, 3), params["bn1"]))
    y = lax.reduce_window(y, -jnp.inf, lax.max, (1, 3, 3, 1), (1, 2, 2, 1),
                          ((0, 0), (1, 1), (1, 1), (0, 0)))
    for blk in params["layer1"]:
        idn = y
        h = jax.nn.relu(bn(conv(y, blk["conv1_w"], 1, 1), blk["bn1"]))
        h = bn(conv(h, blk["conv2_w"], 1, 1), blk["bn2"])
        y = jax.nn.relu(h + idn)
    return jnp.transpose(y, (0, 3, 1, 2))


# -----------------------------------------------------------------------------
if __name__ == "__main__":
    key = jax.random.PRNGKey(0)
    pkey, xkey = jax.random.split(key)

    params = make_params(pkey)
    # ResNet-18 stem needs 3 input channels and two stride-2 stages -> 32x32 input.
    x = jax.random.normal(xkey, (2, 3, 32, 32), jnp.float32)             # NCHW

    fwd = jax.jit(tiny_resnet18_forward)
    out = jax.block_until_ready(fwd(x, params))

    assert out.shape == (2, 64, 8, 8), out.shape
    assert jnp.isfinite(out).all()

    ref = jax.block_until_ready(jax.jit(_reference_forward)(x, params))
    assert ref.shape == out.shape
    assert jnp.allclose(out, ref, atol=0.1, rtol=0.05), (
        float(jnp.max(jnp.abs(out - ref))))

    print("KERNEL_OK")
</pallas_src>

<mosaic_0001>
module attributes {stable_mosaic.version = 11 : i64} {
  func.func @_fused_resnet_kernel(%arg0: i32, %arg1: memref<1x256x147xbf16, #tpu.memory_space<vmem>>, %arg2: memref<147x64xbf16, #tpu.memory_space<vmem>>, %arg3: memref<36x64x64xbf16, #tpu.memory_space<vmem>>, %arg4: memref<5x64xf32, #tpu.memory_space<vmem>>, %arg5: memref<1x64x64xf32, #tpu.memory_space<vmem>>, %arg6: memref<36x9x64xf32, #tpu.memory_space<vmem>>, %arg7: memref<10x10x64xf32, #tpu.memory_space<vmem>>, %arg8: memref<10x10x64xf32, #tpu.memory_space<vmem>>) attributes {dimension_semantics = [#tpu.dimension_semantics<parallel>], iteration_bounds = array<i64: 2>, scalar_prefetch = 0 : i64, scratch_operands = 3 : i64, tpu.core_type = #tpu.core_type<tc>, window_params = [{transform_indices = @transform_0, window_bounds = array<i64: 1, 256, 147>}, {pipeline_mode = #tpu.pipeline_mode<synchronous>, transform_indices = @transform_1, window_bounds = array<i64: 147, 64>}, {pipeline_mode = #tpu.pipeline_mode<synchronous>, transform_indices = @transform_2, window_bounds = array<i64: 36, 64, 64>}, {pipeline_mode = #tpu.pipeline_mode<synchronous>, transform_indices = @transform_3, window_bounds = array<i64: 5, 64>}, {transform_indices = @transform_4, window_bounds = array<i64: 1, 64, 64>}]} {
    %c0 = arith.constant 0 : index
    %c0_0 = arith.constant 0 : index
    %c0_1 = arith.constant 0 : index
    %0 = vector.load %arg1[%c0, %c0_0, %c0_1] : memref<1x256x147xbf16, #tpu.memory_space<vmem>>, vector<1x256x147xbf16>
    %1 = vector.shape_cast %0 : vector<1x256x147xbf16> to vector<256x147xbf16>
    %c0_2 = arith.constant 0 : index
    %c0_3 = arith.constant 0 : index
    %2 = vector.load %arg2[%c0_2, %c0_3] : memref<147x64xbf16, #tpu.memory_space<vmem>>, vector<147x64xbf16>
    %cst = arith.constant dense<0.000000e+00> : vector<256x64xf32>
    %3 = tpu.matmul %1, %2, %cst {dimension_numbers = #tpu.dot_dimension_numbers<[1], [0], [0], [1], [0, 0, 1, 1], [], []>} : vector<256x147xbf16>, vector<147x64xbf16>, vector<256x64xf32> -> vector<256x64xf32>
    %c0_4 = arith.constant 0 : index
    %c0_5 = arith.constant 0 : index
    %4 = vector.load %arg4[%c0_4, %c0_5] : memref<5x64xf32, #tpu.memory_space<vmem>>, vector<1x64xf32>
    %5 = vector.broadcast %4 : vector<1x64xf32> to vector<256x64xf32>
    %6 = arith.addf %3, %5 : vector<256x64xf32>
    %cst_6 = arith.constant 0.000000e+00 : f32
    %7 = vector.broadcast %cst_6 : f32 to vector<256x64xf32>
    %8 = arith.maximumf %6, %7 : vector<256x64xf32>
    %cst_7 = arith.constant 0.000000e+00 : f32
    %9 = vector.broadcast %cst_7 : f32 to vector<36x9x64xf32>
    %c0_8 = arith.constant 0 : index
    %c0_9 = arith.constant 0 : index
    %c0_10 = arith.constant 0 : index
    %10 = vector.load %arg6[%c0_8, %c0_9, %c0_10] : memref<36x9x64xf32, #tpu.memory_space<vmem>>, vector<36x9x64xf32>
    tpu.vector_store %arg6[%c0_8, %c0_9, %c0_10], %9 {strides = array<i32>} : memref<36x9x64xf32, #tpu.memory_space<vmem>>, vector<36x9x64xf32>,
    %11 = vector.extract_strided_slice %8 {offsets = [0, 0], sizes = [64, 64], strides = [1, 1]} : vector<256x64xf32> to vector<64x64xf32>
    %12 = vector.shape_cast %11 : vector<64x64xf32> to vector<8x8x64xf32>
    %c1 = arith.constant 1 : index
    %c1_11 = arith.constant 1 : index
    %c0_12 = arith.constant 0 : index
    %13 = vector.load %arg6[%c1, %c1_11, %c0_12] : memref<36x9x64xf32, #tpu.memory_space<vmem>>, vector<8x8x64xf32>
    tpu.vector_store %arg6[%c1, %c1_11, %c0_12], %12 {strides = array<i32>} : memref<36x9x64xf32, #tpu.memory_space<vmem>>, vector<8x8x64xf32>,
    %14 = vector.extract_strided_slice %8 {offsets = [64, 0], sizes = [64, 64], strides = [1, 1]} : vector<256x64xf32> to vector<64x64xf32>
    %15 = vector.shape_cast %14 : vector<64x64xf32> to vector<8x8x64xf32>
    %c10 = arith.constant 10 : index
    %c1_13 = arith.constant 1 : index
    %c0_14 = arith.constant 0 : index
    %16 = vector.load %arg6[%c10, %c1_13, %c0_14] : memref<36x9x64xf32, #tpu.memory_space<vmem>>, vector<8x8x64xf32>
    tpu.vector_store %arg6[%c10, %c1_13, %c0_14], %15 {strides = array<i32>} : memref<36x9x64xf32, #tpu.memory_space<vmem>>, vector<8x8x64xf32>,
    %17 = vector.extract_strided_slice %8 {offsets = [128, 0], sizes = [64, 64], strides = [1, 1]} : vector<256x64xf32> to vector<64x64xf32>
    %18 = vector.shape_cast %17 : vector<64x64xf32> to vector<8x8x64xf32>
    %c19 = arith.constant 19 : index
    %c1_15 = arith.constant 1 : index
    %c0_16 = arith.constant 0 : index
    %19 = vector.load %arg6[%c19, %c1_15, %c0_16] : memref<36x9x64xf32, #tpu.memory_space<vmem>>, vector<8x8x64xf32>
    tpu.vector_store %arg6[%c19, %c1_15, %c0_16], %18 {strides = array<i32>} : memref<36x9x64xf32, #tpu.memory_space<vmem>>, vector<8x8x64xf32>,
    %20 = vector.extract_strided_slice %8 {offsets = [192, 0], sizes = [64, 64], strides = [1, 1]} : vector<256x64xf32> to vector<64x64xf32>
    %21 = vector.shape_cast %20 : vector<64x64xf32> to vector<8x8x64xf32>
    %c28 = arith.constant 28 : index
    %c1_17 = arith.constant 1 : index
    %c0_18 = arith.constant 0 : index
    %22 = vector.load %arg6[%c28, %c1_17, %c0_18] : memref<36x9x64xf32, #tpu.memory_space<vmem>>, vector<8x8x64xf32>
    tpu.vector_store %arg6[%c28, %c1_17, %c0_18], %21 {strides = array<i32>} : memref<36x9x64xf32, #tpu.memory_space<vmem>>, vector<8x8x64xf32>,
    %c1_19 = arith.constant 1 : index
    %c1_20 = arith.constant 1 : index
    %c0_21 = arith.constant 0 : index
    %23 = vector.load %arg6[%c1_19, %c1_20, %c0_21] : memref<36x9x64xf32, #tpu.memory_space<vmem>>, vector<8x8x64xf32>
    %c10_22 = arith.constant 10 : index
    %c1_23 = arith.constant 1 : index
    %c0_24 = arith.constant 0 : index
    %24 = vector.load %arg6[%c10_22, %c1_23, %c0_24] : memref<36x9x64xf32, #tpu.memory_space<vmem>>, vector<8x8x64xf32>
    %25 = arith.maximumf %23, %24 : vector<8x8x64xf32>
    %c10_25 = arith.constant 10 : index
    %c0_26 = arith.constant 0 : index
    %c0_27 = arith.constant 0 : index
    %26 = vector.load %arg6[%c10_25, %c0_26, %c0_27] : memref<36x9x64xf32, #tpu.memory_space<vmem>>, vector<8x8x64xf32>
    %27 = arith.maximumf %25, %26 : vector<8x8x64xf32>
    %c19_28 = arith.constant 19 : index
    %c1_29 = arith.constant 1 : index
    %c0_30 = arith.constant 0 : index
    %28 = vector.load %arg6[%c19_28, %c1_29, %c0_30] : memref<36x9x64xf32, #tpu.memory_space<vmem>>, vector<8x8x64xf32>
    %29 = arith.maximumf %27, %28 : vector<8x8x64xf32>
    %c28_31 = arith.constant 28 : index
    %c1_32 = arith.constant 1 : index
    %c0_33 = arith.constant 0 : index
    %30 = vector.load %arg6[%c28_31, %c1_32, %c0_33] : memref<36x9x64xf32, #tpu.memory_space<vmem>>, vector<8x8x64xf32>
    %31 = arith.maximumf %29, %30 : vector<8x8x64xf32>
    %c28_34 = arith.constant 28 : index
    %c0_35 = arith.constant 0 : index
    %c0_36 = arith.constant 0 : index
    %32 = vector.load %arg6[%c28_34, %c0_35, %c0_36] : memref<36x9x64xf32, #tpu.memory_space<vmem>>, vector<8x8x64xf32>
    %33 = arith.maximumf %31, %32 : vector<8x8x64xf32>
    %c18 = arith.constant 18 : index
    %c1_37 = arith.constant 1 : index
    %c0_38 = arith.constant 0 : index
    %34 = vector.load %arg6[%c18, %c1_37, %c0_38] : memref<36x9x64xf32, #tpu.memory_space<vmem>>, vector<8x8x64xf32>
    %35 = arith.maximumf %33, %34 : vector<8x8x64xf32>
    %c27 = arith.constant 27 : index
    %c1_39 = arith.constant 1 : index
    %c0_40 = arith.constant 0 : index
    %36 = vector.load %arg6[%c27, %c1_39, %c0_40] : memref<36x9x64xf32, #tpu.memory_space<vmem>>, vector<8x8x64xf32>
    %37 = arith.maximumf %35, %36 : vector<8x8x64xf32>
    %c27_41 = arith.constant 27 : index
    %c0_42 = arith.constant 0 : index
    %c0_43 = arith.constant 0 : index
    %38 = vector.load %arg6[%c27_41, %c0_42, %c0_43] : memref<36x9x64xf32, #tpu.memory_space<vmem>>, vector<8x8x64xf32>
    %39 = arith.maximumf %37, %38 : vector<8x8x64xf32>
    %cst_44 = arith.constant 0.000000e+00 : f32
    %40 = vector.broadcast %cst_44 : f32 to vector<10x10x64xf32>
    %c0_45 = arith.constant 0 : index
    %c0_46 = arith.constant 0 : index
    %c0_47 = arith.constant 0 : index
    %41 = vector.load %arg7[%c0_45, %c0_46, %c0_47] : memref<10x10x64xf32, #tpu.memory_space<vmem>>, vector<10x10x64xf32>
    tpu.vector_store %arg7[%c0_45, %c0_46, %c0_47], %40 {strides = array<i32>} : memref<10x10x64xf32, #tpu.memory_space<vmem>>, vector<10x10x64xf32>,
    %cst_48 = arith.constant 0.000000e+00 : f32
    %42 = vector.broadcast %cst_48 : f32 to vector<10x10x64xf32>
    %c0_49 = arith.constant 0 : index
    %c0_50 = arith.constant 0 : index
    %c0_51 = arith.constant 0 : index
    %43 = vector.load %arg8[%c0_49, %c0_50, %c0_51] : memref<10x10x64xf32, #tpu.memory_space<vmem>>, vector<10x10x64xf32>
    tpu.vector_store %arg8[%c0_49, %c0_50, %c0_51], %42 {strides = array<i32>} : memref<10x10x64xf32, #tpu.memory_space<vmem>>, vector<10x10x64xf32>,
    %c1_52 = arith.constant 1 : index
    %c1_53 = arith.constant 1 : index
    %c0_54 = arith.constant 0 : index
    %44 = vector.load %arg7[%c1_52, %c1_53, %c0_54] : memref<10x10x64xf32, #tpu.memory_space<vmem>>, vector<8x8x64xf32>
    tpu.vector_store %arg7[%c1_52, %c1_53, %c0_54], %39 {strides = array<i32>} : memref<10x10x64xf32, #tpu.memory_space<vmem>>, vector<8x8x64xf32>,
    %45 = vector.shape_cast %39 : vector<8x8x64xf32> to vector<64x64xf32>
    %cst_55 = arith.constant 0.000000e+00 : f32
    %46 = vector.broadcast %cst_55 : f32 to vector<64x64xf32>
    %c0_56 = arith.constant 0 : index
    %c0_57 = arith.constant 0 : index
    %c0_58 = arith.constant 0 : index
    %47 = vector.load %arg7[%c0_56, %c0_57, %c0_58] : memref<10x10x64xf32, #tpu.memory_space<vmem>>, vector<8x8x64xf32>
    %48 = vector.shape_cast %47 : vector<8x8x64xf32> to vector<64x64xf32>
    %49 = arith.truncf %48 : vector<64x64xf32> to vector<64x64xbf16>
    %c0_59 = arith.constant 0 : index
    %c0_60 = arith.constant 0 : index
    %c0_61 = arith.constant 0 : index
    %50 = vector.load %arg3[%c0_59, %c0_60, %c0_61] : memref<36x64x64xbf16, #tpu.memory_space<vmem>>, vector<1x64x64xbf16>
    %51 = vector.shape_cast %50 : vector<1x64x64xbf16> to vector<64x64xbf16>
    %cst_62 = arith.constant dense<0.000000e+00> : vector<64x64xf32>
    %52 = tpu.matmul %49, %51, %cst_62 {dimension_numbers = #tpu.dot_dimension_numbers<[1], [0], [0], [1], [0, 0, 1, 1], [], []>} : vector<64x64xbf16>, vector<64x64xbf16>, vector<64x64xf32> -> vector<64x64xf32>
    %53 = arith.addf %46, %52 : vector<64x64xf32>
    %c0_63 = arith.constant 0 : index
    %c1_64 = arith.constant 1 : index
    %c0_65 = arith.constant 0 : index
    %54 = vector.load %arg7[%c0_63, %c1_64, %c0_65] : memref<10x10x64xf32, #tpu.memory_space<vmem>>, vector<8x8x64xf32>
    %55 = vector.shape_cast %54 : vector<8x8x64xf32> to vector<64x64xf32>
    %56 = arith.truncf %55 : vector<64x64xf32> to vector<64x64xbf16>
    %c1_66 = arith.constant 1 : index
    %c0_67 = arith.constant 0 : index
    %c0_68 = arith.constant 0 : index
    %57 = vector.load %arg3[%c1_66, %c0_67, %c0_68] : memref<36x64x64xbf16, #tpu.memory_space<vmem>>, vector<1x64x64xbf16>
    %58 = vector.shape_cast %57 : vector<1x64x64xbf16> to vector<64x64xbf16>
    %cst_69 = arith.constant dense<0.000000e+00> : vector<64x64xf32>
    %59 = tpu.matmul %56, %58, %cst_69 {dimension_numbers = #tpu.dot_dimension_numbers<[1], [0], [0], [1], [0, 0, 1, 1], [], []>} : vector<64x64xbf16>, vector<64x64xbf16>, vector<64x64xf32> -> vector<64x64xf32>
    %60 = arith.addf %53, %59 : vector<64x64xf32>
    %c0_70 = arith.constant 0 : index
    %c2 = arith.constant 2 : index
    %c0_71 = arith.constant 0 : index
    %61 = vector.load %arg7[%c0_70, %c2, %c0_71] : memref<10x10x64xf32, #tpu.memory_space<vmem>>, vector<8x8x64xf32>
    %62 = vector.shape_cast %61 : vector<8x8x64xf32> to vector<64x64xf32>
    %63 = arith.truncf %62 : vector<64x64xf32> to vector<64x64xbf16>
    %c2_72 = arith.constant 2 : index
    %c0_73 = arith.constant 0 : index
    %c0_74 = arith.constant 0 : index
    %64 = vector.load %arg3[%c2_72, %c0_73, %c0_74] : memref<36x64x64xbf16, #tpu.memory_space<vmem>>, vector<1x64x64xbf16>
    %65 = vector.shape_cast %64 : vector<1x64x64xbf16> to vector<64x64xbf16>
    %cst_75 = arith.constant dense<0.000000e+00> : vector<64x64xf32>
    %66 = tpu.matmul %63, %65, %cst_75 {dimension_numbers = #tpu.dot_dimension_numbers<[1], [0], [0], [1], [0, 0, 1, 1], [], []>} : vector<64x64xbf16>, vector<64x64xbf16>, vector<64x64xf32> -> vector<64x64xf32>
    %67 = arith.addf %60, %66 : vector<64x64xf32>
    %c1_76 = arith.constant 1 : index
    %c0_77 = arith.constant 0 : index
    %c0_78 = arith.constant 0 : index
    %68 = vector.load %arg7[%c1_76, %c0_77, %c0_78] : memref<10x10x64xf32, #tpu.memory_space<vmem>>, vector<8x8x64xf32>
    %69 = vector.shape_cast %68 : vector<8x8x64xf32> to vector<64x64xf32>
    %70 = arith.truncf %69 : vector<64x64xf32> to vector<64x64xbf16>
    %c3 = arith.constant 3 : index
    %c0_79 = arith.constant 0 : index
    %c0_80 = arith.constant 0 : index
    %71 = vector.load %arg3[%c3, %c0_79, %c0_80] : memref<36x64x64xbf16, #tpu.memory_space<vmem>>, vector<1x64x64xbf16>
    %72 = vector.shape_cast %71 : vector<1x64x64xbf16> to vector<64x64xbf16>
    %cst_81 = arith.constant dense<0.000000e+00> : vector<64x64xf32>
    %73 = tpu.matmul %70, %72, %cst_81 {dimension_numbers = #tpu.dot_dimension_numbers<[1], [0], [0], [1], [0, 0, 1, 1], [], []>} : vector<64x64xbf16>, vector<64x64xbf16>, vector<64x64xf32> -> vector<64x64xf32>
    %74 = arith.addf %67, %73 : vector<64x64xf32>
    %c1_82 = arith.constant 1 : index
    %c1_83 = arith.constant 1 : index
    %c0_84 = arith.constant 0 : index
    %75 = vector.load %arg7[%c1_82, %c1_83, %c0_84] : memref<10x10x64xf32, #tpu.memory_space<vmem>>, vector<8x8x64xf32>
    %76 = vector.shape_cast %75 : vector<8x8x64xf32> to vector<64x64xf32>
    %77 = arith.truncf %76 : vector<64x64xf32> to vector<64x64xbf16>
    %c4 = arith.constant 4 : index
    %c0_85 = arith.constant 0 : index
    %c0_86 = arith.constant 0 : index
    %78 = vector.load %arg3[%c4, %c0_85, %c0_86] : memref<36x64x64xbf16, #tpu.memory_space<vmem>>, vector<1x64x64xbf16>
    %79 = vector.shape_cast %78 : vector<1x64x64xbf16> to vector<64x64xbf16>
    %cst_87 = arith.constant dense<0.000000e+00> : vector<64x64xf32>
    %80 = tpu.matmul %77, %79, %cst_87 {dimension_numbers = #tpu.dot_dimension_numbers<[1], [0], [0], [1], [0, 0, 1, 1], [], []>} : vector<64x64xbf16>, vector<64x64xbf16>, vector<64x64xf32> -> vector<64x64xf32>
    %81 = arith.addf %74, %80 : vector<64x64xf32>
    %c1_88 = arith.constant 1 : index
    %c2_89 = arith.constant 2 : index
    %c0_90 = arith.constant 0 : index
    %82 = vector.load %arg7[%c1_88, %c2_89, %c0_90] : memref<10x10x64xf32, #tpu.memory_space<vmem>>, vector<8x8x64xf32>
    %83 = vector.shape_cast %82 : vector<8x8x64xf32> to vector<64x64xf32>
    %84 = arith.truncf %83 : vector<64x64xf32> to vector<64x64xbf16>
    %c5 = arith.constant 5 : index
    %c0_91 = arith.constant 0 : index
    %c0_92 = arith.constant 0 : index
    %85 = vector.load %arg3[%c5, %c0_91, %c0_92] : memref<36x64x64xbf16, #tpu.memory_space<vmem>>, vector<1x64x64xbf16>
    %86 = vector.shape_cast %85 : vector<1x64x64xbf16> to vector<64x64xbf16>
    %cst_93 = arith.constant dense<0.000000e+00> : vector<64x64xf32>
    %87 = tpu.matmul %84, %86, %cst_93 {dimension_numbers = #tpu.dot_dimension_numbers<[1], [0], [0], [1], [0, 0, 1, 1], [], []>} : vector<64x64xbf16>, vector<64x64xbf16>, vector<64x64xf32> -> vector<64x64xf32>
    %88 = arith.addf %81, %87 : vector<64x64xf32>
    %c2_94 = arith.constant 2 : index
    %c0_95 = arith.constant 0 : index
    %c0_96 = arith.constant 0 : index
    %89 = vector.load %arg7[%c2_94, %c0_95, %c0_96] : memref<10x10x64xf32, #tpu.memory_space<vmem>>, vector<8x8x64xf32>
    %90 = vector.shape_cast %89 : vector<8x8x64xf32> to vector<64x64xf32>
    %91 = arith.truncf %90 : vector<64x64xf32> to vector<64x64xbf16>
    %c6 = arith.constant 6 : index
    %c0_97 = arith.constant 0 : index
    %c0_98 = arith.constant 0 : index
    %92 = vector.load %arg3[%c6, %c0_97, %c0_98] : memref<36x64x64xbf16, #tpu.memory_space<vmem>>, vector<1x64x64xbf16>
    %93 = vector.shape_cast %92 : vector<1x64x64xbf16> to vector<64x64xbf16>
    %cst_99 = arith.constant dense<0.000000e+00> : vector<64x64xf32>
    %94 = tpu.matmul %91, %93, %cst_99 {dimension_numbers = #tpu.dot_dimension_numbers<[1], [0], [0], [1], [0, 0, 1, 1], [], []>} : vector<64x64xbf16>, vector<64x64xbf16>, vector<64x64xf32> -> vector<64x64xf32>
    %95 = arith.addf %88, %94 : vector<64x64xf32>
    %c2_100 = arith.constant 2 : index
    %c1_101 = arith.constant 1 : index
    %c0_102 = arith.constant 0 : index
    %96 = vector.load %arg7[%c2_100, %c1_101, %c0_102] : memref<10x10x64xf32, #tpu.memory_space<vmem>>, vector<8x8x64xf32>
    %97 = vector.shape_cast %96 : vector<8x8x64xf32> to vector<64x64xf32>
    %98 = arith.truncf %97 : vector<64x64xf32> to vector<64x64xbf16>
    %c7 = arith.constant 7 : index
    %c0_103 = arith.constant 0 : index
    %c0_104 = arith.constant 0 : index
    %99 = vector.load %arg3[%c7, %c0_103, %c0_104] : memref<36x64x64xbf16, #tpu.memory_space<vmem>>, vector<1x64x64xbf16>
    %100 = vector.shape_cast %99 : vector<1x64x64xbf16> to vector<64x64xbf16>
    %cst_105 = arith.constant dense<0.000000e+00> : vector<64x64xf32>
    %101 = tpu.matmul %98, %100, %cst_105 {dimension_numbers = #tpu.dot_dimension_numbers<[1], [0], [0], [1], [0, 0, 1, 1], [], []>} : vector<64x64xbf16>, vector<64x64xbf16>, vector<64x64xf32> -> vector<64x64xf32>
    %102 = arith.addf %95, %101 : vector<64x64xf32>
    %c2_106 = arith.constant 2 : index
    %c2_107 = arith.constant 2 : index
    %c0_108 = arith.constant 0 : index
    %103 = vector.load %arg7[%c2_106, %c2_107, %c0_108] : memref<10x10x64xf32, #tpu.memory_space<vmem>>, vector<8x8x64xf32>
    %104 = vector.shape_cast %103 : vector<8x8x64xf32> to vector<64x64xf32>
    %105 = arith.truncf %104 : vector<64x64xf32> to vector<64x64xbf16>
    %c8 = arith.constant 8 : index
    %c0_109 = arith.constant 0 : index
    %c0_110 = arith.constant 0 : index
    %106 = vector.load %arg3[%c8, %c0_109, %c0_110] : memref<36x64x64xbf16, #tpu.memory_space<vmem>>, vector<1x64x64xbf16>
    %107 = vector.shape_cast %106 : vector<1x64x64xbf16> to vector<64x64xbf16>
    %cst_111 = arith.constant dense<0.000000e+00> : vector<64x64xf32>
    %108 = tpu.matmul %105, %107, %cst_111 {dimension_numbers = #tpu.dot_dimension_numbers<[1], [0], [0], [1], [0, 0, 1, 1], [], []>} : vector<64x64xbf16>, vector<64x64xbf16>, vector<64x64xf32> -> vector<64x64xf32>
    %109 = arith.addf %102, %108 : vector<64x64xf32>
    %c1_112 = arith.constant 1 : index
    %c0_113 = arith.constant 0 : index
    %110 = vector.load %arg4[%c1_112, %c0_113] : memref<5x64xf32, #tpu.memory_space<vmem>>, vector<1x64xf32>
    %111 = vector.broadcast %110 : vector<1x64xf32> to vector<64x64xf32>
    %112 = arith.addf %109, %111 : vector<64x64xf32>
    %cst_114 = arith.constant 0.000000e+00 : f32
    %113 = vector.broadcast %cst_114 : f32 to vector<64x64xf32>
    %114 = arith.maximumf %112, %113 : vector<64x64xf32>
    %115 = vector.shape_cast %114 : vector<64x64xf32> to vector<8x8x64xf32>
    %c1_115 = arith.constant 1 : index
    %c1_116 = arith.constant 1 : index
    %c0_117 = arith.constant 0 : index
    %116 = vector.load %arg8[%c1_115, %c1_116, %c0_117] : memref<10x10x64xf32, #tpu.memory_space<vmem>>, vector<8x8x64xf32>
    tpu.vector_store %arg8[%c1_115, %c1_116, %c0_117], %115 {strides = array<i32>} : memref<10x10x64xf32, #tpu.memory_space<vmem>>, vector<8x8x64xf32>,
    %cst_118 = arith.constant 0.000000e+00 : f32
    %117 = vector.broadcast %cst_118 : f32 to vector<64x64xf32>
    %c0_119 = arith.constant 0 : index
    %c0_120 = arith.constant 0 : index
    %c0_121 = arith.constant 0 : index
    %118 = vector.load %arg8[%c0_119, %c0_120, %c0_121] : memref<10x10x64xf32, #tpu.memory_space<vmem>>, vector<8x8x64xf32>
    %119 = vector.shape_cast %118 : vector<8x8x64xf32> to vector<64x64xf32>
    %120 = arith.truncf %119 : vector<64x64xf32> to vector<64x64xbf16>
    %c9 = arith.constant 9 : index
    %c0_122 = arith.constant 0 : index
    %c0_123 = arith.constant 0 : index
    %121 = vector.load %arg3[%c9, %c0_122, %c0_123] : memref<36x64x64xbf16, #tpu.memory_space<vmem>>, vector<1x64x64xbf16>
    %122 = vector.shape_cast %121 : vector<1x64x64xbf16> to vector<64x64xbf16>
    %cst_124 = arith.constant dense<0.000000e+00> : vector<64x64xf32>
    %123 = tpu.matmul %120, %122, %cst_124 {dimension_numbers = #tpu.dot_dimension_numbers<[1], [0], [0], [1], [0, 0, 1, 1], [], []>} : vector<64x64xbf16>, vector<64x64xbf16>, vector<64x64xf32> -> vector<64x64xf32>
    %124 = arith.addf %117, %123 : vector<64x64xf32>
    %c0_125 = arith.constant 0 : index
    %c1_126 = arith.constant 1 : index
    %c0_127 = arith.constant 0 : index
    %125 = vector.load %arg8[%c0_125, %c1_126, %c0_127] : memref<10x10x64xf32, #tpu.memory_space<vmem>>, vector<8x8x64xf32>
    %126 = vector.shape_cast %125 : vector<8x8x64xf32> to vector<64x64xf32>
    %127 = arith.truncf %126 : vector<64x64xf32> to vector<64x64xbf16>
    %c10_128 = arith.constant 10 : index
    %c0_129 = arith.constant 0 : index
    %c0_130 = arith.constant 0 : index
    %128 = vector.load %arg3[%c10_128, %c0_129, %c0_130] : memref<36x64x64xbf16, #tpu.memory_space<vmem>>, vector<1x64x64xbf16>
    %129 = vector.shape_cast %128 : vector<1x64x64xbf16> to vector<64x64xbf16>
    %cst_131 = arith.constant dense<0.000000e+00> : vector<64x64xf32>
    %130 = tpu.matmul %127, %129, %cst_131 {dimension_numbers = #tpu.dot_dimension_numbers<[1], [0], [0], [1], [0, 0, 1, 1], [], []>} : vector<64x64xbf16>, vector<64x64xbf16>, vector<64x64xf32> -> vector<64x64xf32>
    %131 = arith.addf %124, %130 : vector<64x64xf32>
    %c0_132 = arith.constant 0 : index
    %c2_133 = arith.constant 2 : index
    %c0_134 = arith.constant 0 : index
    %132 = vector.load %arg8[%c0_132, %c2_133, %c0_134] : memref<10x10x64xf32, #tpu.memory_space<vmem>>, vector<8x8x64xf32>
    %133 = vector.shape_cast %132 : vector<8x8x64xf32> to vector<64x64xf32>
    %134 = arith.truncf %133 : vector<64x64xf32> to vector<64x64xbf16>
    %c11 = arith.constant 11 : index
    %c0_135 = arith.constant 0 : index
    %c0_136 = arith.constant 0 : index
    %135 = vector.load %arg3[%c11, %c0_135, %c0_136] : memref<36x64x64xbf16, #tpu.memory_space<vmem>>, vector<1x64x64xbf16>
    %136 = vector.shape_cast %135 : vector<1x64x64xbf16> to vector<64x64xbf16>
    %cst_137 = arith.constant dense<0.000000e+00> : vector<64x64xf32>
    %137 = tpu.matmul %134, %136, %cst_137 {dimension_numbers = #tpu.dot_dimension_numbers<[1], [0], [0], [1], [0, 0, 1, 1], [], []>} : vector<64x64xbf16>, vector<64x64xbf16>, vector<64x64xf32> -> vector<64x64xf32>
    %138 = arith.addf %131, %137 : vector<64x64xf32>
    %c1_138 = arith.constant 1 : index
    %c0_139 = arith.constant 0 : index
    %c0_140 = arith.constant 0 : index
    %139 = vector.load %arg8[%c1_138, %c0_139, %c0_140] : memref<10x10x64xf32, #tpu.memory_space<vmem>>, vector<8x8x64xf32>
    %140 = vector.shape_cast %139 : vector<8x8x64xf32> to vector<64x64xf32>
    %141 = arith.truncf %140 : vector<64x64xf32> to vector<64x64xbf16>
    %c12 = arith.constant 12 : index
    %c0_141 = arith.constant 0 : index
    %c0_142 = arith.constant 0 : index
    %142 = vector.load %arg3[%c12, %c0_141, %c0_142] : memref<36x64x64xbf16, #tpu.memory_space<vmem>>, vector<1x64x64xbf16>
    %143 = vector.shape_cast %142 : vector<1x64x64xbf16> to vector<64x64xbf16>
    %cst_143 = arith.constant dense<0.000000e+00> : vector<64x64xf32>
    %144 = tpu.matmul %141, %143, %cst_143 {dimension_numbers = #tpu.dot_dimension_numbers<[1], [0], [0], [1], [0, 0, 1, 1], [], []>} : vector<64x64xbf16>, vector<64x64xbf16>, vector<64x64xf32> -> vector<64x64xf32>
    %145 = arith.addf %138, %144 : vector<64x64xf32>
    %c1_144 = arith.constant 1 : index
    %c1_145 = arith.constant 1 : index
    %c0_146 = arith.constant 0 : index
    %146 = vector.load %arg8[%c1_144, %c1_145, %c0_146] : memref<10x10x64xf32, #tpu.memory_space<vmem>>, vector<8x8x64xf32>
    %147 = vector.shape_cast %146 : vector<8x8x64xf32> to vector<64x64xf32>
    %148 = arith.truncf %147 : vector<64x64xf32> to vector<64x64xbf16>
    %c13 = arith.constant 13 : index
    %c0_147 = arith.constant 0 : index
    %c0_148 = arith.constant 0 : index
    %149 = vector.load %arg3[%c13, %c0_147, %c0_148] : memref<36x64x64xbf16, #tpu.memory_space<vmem>>, vector<1x64x64xbf16>
    %150 = vector.shape_cast %149 : vector<1x64x64xbf16> to vector<64x64xbf16>
    %cst_149 = arith.constant dense<0.000000e+00> : vector<64x64xf32>
    %151 = tpu.matmul %148, %150, %cst_149 {dimension_numbers = #tpu.dot_dimension_numbers<[1], [0], [0], [1], [0, 0, 1, 1], [], []>} : vector<64x64xbf16>, vector<64x64xbf16>, vector<64x64xf32> -> vector<64x64xf32>
    %152 = arith.addf %145, %151 : vector<64x64xf32>
    %c1_150 = arith.constant 1 : index
    %c2_151 = arith.constant 2 : index
    %c0_152 = arith.constant 0 : index
    %153 = vector.load %arg8[%c1_150, %c2_151, %c0_152] : memref<10x10x64xf32, #tpu.memory_space<vmem>>, vector<8x8x64xf32>
    %154 = vector.shape_cast %153 : vector<8x8x64xf32> to vector<64x64xf32>
    %155 = arith.truncf %154 : vector<64x64xf32> to vector<64x64xbf16>
    %c14 = arith.constant 14 : index
    %c0_153 = arith.constant 0 : index
    %c0_154 = arith.constant 0 : index
    %156 = vector.load %arg3[%c14, %c0_153, %c0_154] : memref<36x64x64xbf16, #tpu.memory_space<vmem>>, vector<1x64x64xbf16>
    %157 = vector.shape_cast %156 : vector<1x64x64xbf16> to vector<64x64xbf16>
    %cst_155 = arith.constant dense<0.000000e+00> : vector<64x64xf32>
    %158 = tpu.matmul %155, %157, %cst_155 {dimension_numbers = #tpu.dot_dimension_numbers<[1], [0], [0], [1], [0, 0, 1, 1], [], []>} : vector<64x64xbf16>, vector<64x64xbf16>, vector<64x64xf32> -> vector<64x64xf32>
    %159 = arith.addf %152, %158 : vector<64x64xf32>
    %c2_156 = arith.constant 2 : index
    %c0_157 = arith.constant 0 : index
    %c0_158 = arith.constant 0 : index
    %160 = vector.load %arg8[%c2_156, %c0_157, %c0_158] : memref<10x10x64xf32, #tpu.memory_space<vmem>>, vector<8x8x64xf32>
    %161 = vector.shape_cast %160 : vector<8x8x64xf32> to vector<64x64xf32>
    %162 = arith.truncf %161 : vector<64x64xf32> to vector<64x64xbf16>
    %c15 = arith.constant 15 : index
    %c0_159 = arith.constant 0 : index
    %c0_160 = arith.constant 0 : index
    %163 = vector.load %arg3[%c15, %c0_159, %c0_160] : memref<36x64x64xbf16, #tpu.memory_space<vmem>>, vector<1x64x64xbf16>
    %164 = vector.shape_cast %163 : vector<1x64x64xbf16> to vector<64x64xbf16>
    %cst_161 = arith.constant dense<0.000000e+00> : vector<64x64xf32>
    %165 = tpu.matmul %162, %164, %cst_161 {dimension_numbers = #tpu.dot_dimension_numbers<[1], [0], [0], [1], [0, 0, 1, 1], [], []>} : vector<64x64xbf16>, vector<64x64xbf16>, vector<64x64xf32> -> vector<64x64xf32>
    %166 = arith.addf %159, %165 : vector<64x64xf32>
    %c2_162 = arith.constant 2 : index
    %c1_163 = arith.constant 1 : index
    %c0_164 = arith.constant 0 : index
    %167 = vector.load %arg8[%c2_162, %c1_163, %c0_164] : memref<10x10x64xf32, #tpu.memory_space<vmem>>, vector<8x8x64xf32>
    %168 = vector.shape_cast %167 : vector<8x8x64xf32> to vector<64x64xf32>
    %169 = arith.truncf %168 : vector<64x64xf32> to vector<64x64xbf16>
    %c16 = arith.constant 16 : index
    %c0_165 = arith.constant 0 : index
    %c0_166 = arith.constant 0 : index
    %170 = vector.load %arg3[%c16, %c0_165, %c0_166] : memref<36x64x64xbf16, #tpu.memory_space<vmem>>, vector<1x64x64xbf16>
    %171 = vector.shape_cast %170 : vector<1x64x64xbf16> to vector<64x64xbf16>
    %cst_167 = arith.constant dense<0.000000e+00> : vector<64x64xf32>
    %172 = tpu.matmul %169, %171, %cst_167 {dimension_numbers = #tpu.dot_dimension_numbers<[1], [0], [0], [1], [0, 0, 1, 1], [], []>} : vector<64x64xbf16>, vector<64x64xbf16>, vector<64x64xf32> -> vector<64x64xf32>
    %173 = arith.addf %166, %172 : vector<64x64xf32>
    %c2_168 = arith.constant 2 : index
    %c2_169 = arith.constant 2 : index
    %c0_170 = arith.constant 0 : index
    %174 = vector.load %arg8[%c2_168, %c2_169, %c0_170] : memref<10x10x64xf32, #tpu.memory_space<vmem>>, vector<8x8x64xf32>
    %175 = vector.shape_cast %174 : vector<8x8x64xf32> to vector<64x64xf32>
    %176 = arith.truncf %175 : vector<64x64xf32> to vector<64x64xbf16>
    %c17 = arith.constant 17 : index
    %c0_171 = arith.constant 0 : index
    %c0_172 = arith.constant 0 : index
    %177 = vector.load %arg3[%c17, %c0_171, %c0_172] : memref<36x64x64xbf16, #tpu.memory_space<vmem>>, vector<1x64x64xbf16>
    %178 = vector.shape_cast %177 : vector<1x64x64xbf16> to vector<64x64xbf16>
    %cst_173 = arith.constant dense<0.000000e+00> : vector<64x64xf32>
    %179 = tpu.matmul %176, %178, %cst_173 {dimension_numbers = #tpu.dot_dimension_numbers<[1], [0], [0], [1], [0, 0, 1, 1], [], []>} : vector<64x64xbf16>, vector<64x64xbf16>, vector<64x64xf32> -> vector<64x64xf32>
    %180 = arith.addf %173, %179 : vector<64x64xf32>
    %c2_174 = arith.constant 2 : index
    %c0_175 = arith.constant 0 : index
    %181 = vector.load %arg4[%c2_174, %c0_175] : memref<5x64xf32, #tpu.memory_space<vmem>>, vector<1x64xf32>
    %182 = vector.broadcast %181 : vector<1x64xf32> to vector<64x64xf32>
    %183 = arith.addf %180, %182 : vector<64x64xf32>
    %184 = arith.addf %183, %45 : vector<64x64xf32>
    %cst_176 = arith.constant 0.000000e+00 : f32
    %185 = vector.broadcast %cst_176 : f32 to vector<64x64xf32>
    %186 = arith.maximumf %184, %185 : vector<64x64xf32>
    %187 = vector.shape_cast %186 : vector<64x64xf32> to vector<8x8x64xf32>
    %c1_177 = arith.constant 1 : index
    %c1_178 = arith.constant 1 : index
    %c0_179 = arith.constant 0 : index
    %188 = vector.load %arg7[%c1_177, %c1_178, %c0_179] : memref<10x10x64xf32, #tpu.memory_space<vmem>>, vector<8x8x64xf32>
    tpu.vector_store %arg7[%c1_177, %c1_178, %c0_179], %187 {strides = array<i32>} : memref<10x10x64xf32, #tpu.memory_space<vmem>>, vector<8x8x64xf32>,
    %cst_180 = arith.constant 0.000000e+00 : f32
    %189 = vector.broadcast %cst_180 : f32 to vector<64x64xf32>
    %c0_181 = arith.constant 0 : index
    %c0_182 = arith.constant 0 : index
    %c0_183 = arith.constant 0 : index
    %190 = vector.load %arg7[%c0_181, %c0_182, %c0_183] : memref<10x10x64xf32, #tpu.memory_space<vmem>>, vector<8x8x64xf32>
    %191 = vector.shape_cast %190 : vector<8x8x64xf32> to vector<64x64xf32>
    %192 = arith.truncf %191 : vector<64x64xf32> to vector<64x64xbf16>
    %c18_184 = arith.constant 18 : index
    %c0_185 = arith.constant 0 : index
    %c0_186 = arith.constant 0 : index
    %193 = vector.load %arg3[%c18_184, %c0_185, %c0_186] : memref<36x64x64xbf16, #tpu.memory_space<vmem>>, vector<1x64x64xbf16>
    %194 = vector.shape_cast %193 : vector<1x64x64xbf16> to vector<64x64xbf16>
    %cst_187 = arith.constant dense<0.000000e+00> : vector<64x64xf32>
    %195 = tpu.matmul %192, %194, %cst_187 {dimension_numbers = #tpu.dot_dimension_numbers<[1], [0], [0], [1], [0, 0, 1, 1], [], []>} : vector<64x64xbf16>, vector<64x64xbf16>, vector<64x64xf32> -> vector<64x64xf32>
    %196 = arith.addf %189, %195 : vector<64x64xf32>
    %c0_188 = arith.constant 0 : index
    %c1_189 = arith.constant 1 : index
    %c0_190 = arith.constant 0 : index
    %197 = vector.load %arg7[%c0_188, %c1_189, %c0_190] : memref<10x10x64xf32, #tpu.memory_space<vmem>>, vector<8x8x64xf32>
    %198 = vector.shape_cast %197 : vector<8x8x64xf32> to vector<64x64xf32>
    %199 = arith.truncf %198 : vector<64x64xf32> to vector<64x64xbf16>
    %c19_191 = arith.constant 19 : index
    %c0_192 = arith.constant 0 : index
    %c0_193 = arith.constant 0 : index
    %200 = vector.load %arg3[%c19_191, %c0_192, %c0_193] : memref<36x64x64xbf16, #tpu.memory_space<vmem>>, vector<1x64x64xbf16>
    %201 = vector.shape_cast %200 : vector<1x64x64xbf16> to vector<64x64xbf16>
    %cst_194 = arith.constant dense<0.000000e+00> : vector<64x64xf32>
    %202 = tpu.matmul %199, %201, %cst_194 {dimension_numbers = #tpu.dot_dimension_numbers<[1], [0], [0], [1], [0, 0, 1, 1], [], []>} : vector<64x64xbf16>, vector<64x64xbf16>, vector<64x64xf32> -> vector<64x64xf32>
    %203 = arith.addf %196, %202 : vector<64x64xf32>
    %c0_195 = arith.constant 0 : index
    %c2_196 = arith.constant 2 : index
    %c0_197 = arith.constant 0 : index
    %204 = vector.load %arg7[%c0_195, %c2_196, %c0_197] : memref<10x10x64xf32, #tpu.memory_space<vmem>>, vector<8x8x64xf32>
    %205 = vector.shape_cast %204 : vector<8x8x64xf32> to vector<64x64xf32>
    %206 = arith.truncf %205 : vector<64x64xf32> to vector<64x64xbf16>
    %c20 = arith.constant 20 : index
    %c0_198 = arith.constant 0 : index
    %c0_199 = arith.constant 0 : index
    %207 = vector.load %arg3[%c20, %c0_198, %c0_199] : memref<36x64x64xbf16, #tpu.memory_space<vmem>>, vector<1x64x64xbf16>
    %208 = vector.shape_cast %207 : vector<1x64x64xbf16> to vector<64x64xbf16>
    %cst_200 = arith.constant dense<0.000000e+00> : vector<64x64xf32>
    %209 = tpu.matmul %206, %208, %cst_200 {dimension_numbers = #tpu.dot_dimension_numbers<[1], [0], [0], [1], [0, 0, 1, 1], [], []>} : vector<64x64xbf16>, vector<64x64xbf16>, vector<64x64xf32> -> vector<64x64xf32>
    %210 = arith.addf %203, %209 : vector<64x64xf32>
    %c1_201 = arith.constant 1 : index
    %c0_202 = arith.constant 0 : index
    %c0_203 = arith.constant 0 : index
    %211 = vector.load %arg7[%c1_201, %c0_202, %c0_203] : memref<10x10x64xf32, #tpu.memory_space<vmem>>, vector<8x8x64xf32>
    %212 = vector.shape_cast %211 : vector<8x8x64xf32> to vector<64x64xf32>
    %213 = arith.truncf %212 : vector<64x64xf32> to vector<64x64xbf16>
    %c21 = arith.constant 21 : index
    %c0_204 = arith.constant 0 : index
    %c0_205 = arith.constant 0 : index
    %214 = vector.load %arg3[%c21, %c0_204, %c0_205] : memref<36x64x64xbf16, #tpu.memory_space<vmem>>, vector<1x64x64xbf16>
    %215 = vector.shape_cast %214 : vector<1x64x64xbf16> to vector<64x64xbf16>
    %cst_206 = arith.constant dense<0.000000e+00> : vector<64x64xf32>
    %216 = tpu.matmul %213, %215, %cst_206 {dimension_numbers = #tpu.dot_dimension_numbers<[1], [0], [0], [1], [0, 0, 1, 1], [], []>} : vector<64x64xbf16>, vector<64x64xbf16>, vector<64x64xf32> -> vector<64x64xf32>
    %217 = arith.addf %210, %216 : vector<64x64xf32>
    %c1_207 = arith.constant 1 : index
    %c1_208 = arith.constant 1 : index
    %c0_209 = arith.constant 0 : index
    %218 = vector.load %arg7[%c1_207, %c1_208, %c0_209] : memref<10x10x64xf32, #tpu.memory_space<vmem>>, vector<8x8x64xf32>
    %219 = vector.shape_cast %218 : vector<8x8x64xf32> to vector<64x64xf32>
    %220 = arith.truncf %219 : vector<64x64xf32> to vector<64x64xbf16>
    %c22 = arith.constant 22 : index
    %c0_210 = arith.constant 0 : index
    %c0_211 = arith.constant 0 : index
    %221 = vector.load %arg3[%c22, %c0_210, %c0_211] : memref<36x64x64xbf16, #tpu.memory_space<vmem>>, vector<1x64x64xbf16>
    %222 = vector.shape_cast %221 : vector<1x64x64xbf16> to vector<64x64xbf16>
    %cst_212 = arith.constant dense<0.000000e+00> : vector<64x64xf32>
    %223 = tpu.matmul %220, %222, %cst_212 {dimension_numbers = #tpu.dot_dimension_numbers<[1], [0], [0], [1], [0, 0, 1, 1], [], []>} : vector<64x64xbf16>, vector<64x64xbf16>, vector<64x64xf32> -> vector<64x64xf32>
    %224 = arith.addf %217, %223 : vector<64x64xf32>
    %c1_213 = arith.constant 1 : index
    %c2_214 = arith.constant 2 : index
    %c0_215 = arith.constant 0 : index
    %225 = vector.load %arg7[%c1_213, %c2_214, %c0_215] : memref<10x10x64xf32, #tpu.memory_space<vmem>>, vector<8x8x64xf32>
    %226 = vector.shape_cast %225 : vector<8x8x64xf32> to vector<64x64xf32>
    %227 = arith.truncf %226 : vector<64x64xf32> to vector<64x64xbf16>
    %c23 = arith.constant 23 : index
    %c0_216 = arith.constant 0 : index
    %c0_217 = arith.constant 0 : index
    %228 = vector.load %arg3[%c23, %c0_216, %c0_217] : memref<36x64x64xbf16, #tpu.memory_space<vmem>>, vector<1x64x64xbf16>
    %229 = vector.shape_cast %228 : vector<1x64x64xbf16> to vector<64x64xbf16>
    %cst_218 = arith.constant dense<0.000000e+00> : vector<64x64xf32>
    %230 = tpu.matmul %227, %229, %cst_218 {dimension_numbers = #tpu.dot_dimension_numbers<[1], [0], [0], [1], [0, 0, 1, 1], [], []>} : vector<64x64xbf16>, vector<64x64xbf16>, vector<64x64xf32> -> vector<64x64xf32>
    %231 = arith.addf %224, %230 : vector<64x64xf32>
    %c2_219 = arith.constant 2 : index
    %c0_220 = arith.constant 0 : index
    %c0_221 = arith.constant 0 : index
    %232 = vector.load %arg7[%c2_219, %c0_220, %c0_221] : memref<10x10x64xf32, #tpu.memory_space<vmem>>, vector<8x8x64xf32>
    %233 = vector.shape_cast %232 : vector<8x8x64xf32> to vector<64x64xf32>
    %234 = arith.truncf %233 : vector<64x64xf32> to vector<64x64xbf16>
    %c24 = arith.constant 24 : index
    %c0_222 = arith.constant 0 : index
    %c0_223 = arith.constant 0 : index
    %235 = vector.load %arg3[%c24, %c0_222, %c0_223] : memref<36x64x64xbf16, #tpu.memory_space<vmem>>, vector<1x64x64xbf16>
    %236 = vector.shape_cast %235 : vector<1x64x64xbf16> to vector<64x64xbf16>
    %cst_224 = arith.constant dense<0.000000e+00> : vector<64x64xf32>
    %237 = tpu.matmul %234, %236, %cst_224 {dimension_numbers = #tpu.dot_dimension_numbers<[1], [0], [0], [1], [0, 0, 1, 1], [], []>} : vector<64x64xbf16>, vector<64x64xbf16>, vector<64x64xf32> -> vector<64x64xf32>
    %238 = arith.addf %231, %237 : vector<64x64xf32>
    %c2_225 = arith.constant 2 : index
    %c1_226 = arith.constant 1 : index
    %c0_227 = arith.constant 0 : index
    %239 = vector.load %arg7[%c2_225, %c1_226, %c0_227] : memref<10x10x64xf32, #tpu.memory_space<vmem>>, vector<8x8x64xf32>
    %240 = vector.shape_cast %239 : vector<8x8x64xf32> to vector<64x64xf32>
    %241 = arith.truncf %240 : vector<64x64xf32> to vector<64x64xbf16>
    %c25 = arith.constant 25 : index
    %c0_228 = arith.constant 0 : index
    %c0_229 = arith.constant 0 : index
    %242 = vector.load %arg3[%c25, %c0_228, %c0_229] : memref<36x64x64xbf16, #tpu.memory_space<vmem>>, vector<1x64x64xbf16>
    %243 = vector.shape_cast %242 : vector<1x64x64xbf16> to vector<64x64xbf16>
    %cst_230 = arith.constant dense<0.000000e+00> : vector<64x64xf32>
    %244 = tpu.matmul %241, %243, %cst_230 {dimension_numbers = #tpu.dot_dimension_numbers<[1], [0], [0], [1], [0, 0, 1, 1], [], []>} : vector<64x64xbf16>, vector<64x64xbf16>, vector<64x64xf32> -> vector<64x64xf32>
    %245 = arith.addf %238, %244 : vector<64x64xf32>
    %c2_231 = arith.constant 2 : index
    %c2_232 = arith.constant 2 : index
    %c0_233 = arith.constant 0 : index
    %246 = vector.load %arg7[%c2_231, %c2_232, %c0_233] : memref<10x10x64xf32, #tpu.memory_space<vmem>>, vector<8x8x64xf32>
    %247 = vector.shape_cast %246 : vector<8x8x64xf32> to vector<64x64xf32>
    %248 = arith.truncf %247 : vector<64x64xf32> to vector<64x64xbf16>
    %c26 = arith.constant 26 : index
    %c0_234 = arith.constant 0 : index
    %c0_235 = arith.constant 0 : index
    %249 = vector.load %arg3[%c26, %c0_234, %c0_235] : memref<36x64x64xbf16, #tpu.memory_space<vmem>>, vector<1x64x64xbf16>
    %250 = vector.shape_cast %249 : vector<1x64x64xbf16> to vector<64x64xbf16>
    %cst_236 = arith.constant dense<0.000000e+00> : vector<64x64xf32>
    %251 = tpu.matmul %248, %250, %cst_236 {dimension_numbers = #tpu.dot_dimension_numbers<[1], [0], [0], [1], [0, 0, 1, 1], [], []>} : vector<64x64xbf16>, vector<64x64xbf16>, vector<64x64xf32> -> vector<64x64xf32>
    %252 = arith.addf %245, %251 : vector<64x64xf32>
    %c3_237 = arith.constant 3 : index
    %c0_238 = arith.constant 0 : index
    %253 = vector.load %arg4[%c3_237, %c0_238] : memref<5x64xf32, #tpu.memory_space<vmem>>, vector<1x64xf32>
    %254 = vector.broadcast %253 : vector<1x64xf32> to vector<64x64xf32>
    %255 = arith.addf %252, %254 : vector<64x64xf32>
    %cst_239 = arith.constant 0.000000e+00 : f32
    %256 = vector.broadcast %cst_239 : f32 to vector<64x64xf32>
    %257 = arith.maximumf %255, %256 : vector<64x64xf32>
    %258 = vector.shape_cast %257 : vector<64x64xf32> to vector<8x8x64xf32>
    %c1_240 = arith.constant 1 : index
    %c1_241 = arith.constant 1 : index
    %c0_242 = arith.constant 0 : index
    %259 = vector.load %arg8[%c1_240, %c1_241, %c0_242] : memref<10x10x64xf32, #tpu.memory_space<vmem>>, vector<8x8x64xf32>
    tpu.vector_store %arg8[%c1_240, %c1_241, %c0_242], %258 {strides = array<i32>} : memref<10x10x64xf32, #tpu.memory_space<vmem>>, vector<8x8x64xf32>,
    %cst_243 = arith.constant 0.000000e+00 : f32
    %260 = vector.broadcast %cst_243 : f32 to vector<64x64xf32>
    %c0_244 = arith.constant 0 : index
    %c0_245 = arith.constant 0 : index
    %c0_246 = arith.constant 0 : index
    %261 = vector.load %arg8[%c0_244, %c0_245, %c0_246] : memref<10x10x64xf32, #tpu.memory_space<vmem>>, vector<8x8x64xf32>
    %262 = vector.shape_cast %261 : vector<8x8x64xf32> to vector<64x64xf32>
    %263 = arith.truncf %262 : vector<64x64xf32> to vector<64x64xbf16>
    %c27_247 = arith.constant 27 : index
    %c0_248 = arith.constant 0 : index
    %c0_249 = arith.constant 0 : index
    %264 = vector.load %arg3[%c27_247, %c0_248, %c0_249] : memref<36x64x64xbf16, #tpu.memory_space<vmem>>, vector<1x64x64xbf16>
    %265 = vector.shape_cast %264 : vector<1x64x64xbf16> to vector<64x64xbf16>
    %cst_250 = arith.constant dense<0.000000e+00> : vector<64x64xf32>
    %266 = tpu.matmul %263, %265, %cst_250 {dimension_numbers = #tpu.dot_dimension_numbers<[1], [0], [0], [1], [0, 0, 1, 1], [], []>} : vector<64x64xbf16>, vector<64x64xbf16>, vector<64x64xf32> -> vector<64x64xf32>
    %267 = arith.addf %260, %266 : vector<64x64xf32>
    %c0_251 = arith.constant 0 : index
    %c1_252 = arith.constant 1 : index
    %c0_253 = arith.constant 0 : index
    %268 = vector.load %arg8[%c0_251, %c1_252, %c0_253] : memref<10x10x64xf32, #tpu.memory_space<vmem>>, vector<8x8x64xf32>
    %269 = vector.shape_cast %268 : vector<8x8x64xf32> to vector<64x64xf32>
    %270 = arith.truncf %269 : vector<64x64xf32> to vector<64x64xbf16>
    %c28_254 = arith.constant 28 : index
    %c0_255 = arith.constant 0 : index
    %c0_256 = arith.constant 0 : index
    %271 = vector.load %arg3[%c28_254, %c0_255, %c0_256] : memref<36x64x64xbf16, #tpu.memory_space<vmem>>, vector<1x64x64xbf16>
    %272 = vector.shape_cast %271 : vector<1x64x64xbf16> to vector<64x64xbf16>
    %cst_257 = arith.constant dense<0.000000e+00> : vector<64x64xf32>
    %273 = tpu.matmul %270, %272, %cst_257 {dimension_numbers = #tpu.dot_dimension_numbers<[1], [0], [0], [1], [0, 0, 1, 1], [], []>} : vector<64x64xbf16>, vector<64x64xbf16>, vector<64x64xf32> -> vector<64x64xf32>
    %274 = arith.addf %267, %273 : vector<64x64xf32>
    %c0_258 = arith.constant 0 : index
    %c2_259 = arith.constant 2 : index
    %c0_260 = arith.constant 0 : index
    %275 = vector.load %arg8[%c0_258, %c2_259, %c0_260] : memref<10x10x64xf32, #tpu.memory_space<vmem>>, vector<8x8x64xf32>
    %276 = vector.shape_cast %275 : vector<8x8x64xf32> to vector<64x64xf32>
    %277 = arith.truncf %276 : vector<64x64xf32> to vector<64x64xbf16>
    %c29 = arith.constant 29 : index
    %c0_261 = arith.constant 0 : index
    %c0_262 = arith.constant 0 : index
    %278 = vector.load %arg3[%c29, %c0_261, %c0_262] : memref<36x64x64xbf16, #tpu.memory_space<vmem>>, vector<1x64x64xbf16>
    %279 = vector.shape_cast %278 : vector<1x64x64xbf16> to vector<64x64xbf16>
    %cst_263 = arith.constant dense<0.000000e+00> : vector<64x64xf32>
    %280 = tpu.matmul %277, %279, %cst_263 {dimension_numbers = #tpu.dot_dimension_numbers<[1], [0], [0], [1], [0, 0, 1, 1], [], []>} : vector<64x64xbf16>, vector<64x64xbf16>, vector<64x64xf32> -> vector<64x64xf32>
    %281 = arith.addf %274, %280 : vector<64x64xf32>
    %c1_264 = arith.constant 1 : index
    %c0_265 = arith.constant 0 : index
    %c0_266 = arith.constant 0 : index
    %282 = vector.load %arg8[%c1_264, %c0_265, %c0_266] : memref<10x10x64xf32, #tpu.memory_space<vmem>>, vector<8x8x64xf32>
    %283 = vector.shape_cast %282 : vector<8x8x64xf32> to vector<64x64xf32>
    %284 = arith.truncf %283 : vector<64x64xf32> to vector<64x64xbf16>
    %c30 = arith.constant 30 : index
    %c0_267 = arith.constant 0 : index
    %c0_268 = arith.constant 0 : index
    %285 = vector.load %arg3[%c30, %c0_267, %c0_268] : memref<36x64x64xbf16, #tpu.memory_space<vmem>>, vector<1x64x64xbf16>
    %286 = vector.shape_cast %285 : vector<1x64x64xbf16> to vector<64x64xbf16>
    %cst_269 = arith.constant dense<0.000000e+00> : vector<64x64xf32>
    %287 = tpu.matmul %284, %286, %cst_269 {dimension_numbers = #tpu.dot_dimension_numbers<[1], [0], [0], [1], [0, 0, 1, 1], [], []>} : vector<64x64xbf16>, vector<64x64xbf16>, vector<64x64xf32> -> vector<64x64xf32>
    %288 = arith.addf %281, %287 : vector<64x64xf32>
    %c1_270 = arith.constant 1 : index
    %c1_271 = arith.constant 1 : index
    %c0_272 = arith.constant 0 : index
    %289 = vector.load %arg8[%c1_270, %c1_271, %c0_272] : memref<10x10x64xf32, #tpu.memory_space<vmem>>, vector<8x8x64xf32>
    %290 = vector.shape_cast %289 : vector<8x8x64xf32> to vector<64x64xf32>
    %291 = arith.truncf %290 : vector<64x64xf32> to vector<64x64xbf16>
    %c31 = arith.constant 31 : index
    %c0_273 = arith.constant 0 : index
    %c0_274 = arith.constant 0 : index
    %292 = vector.load %arg3[%c31, %c0_273, %c0_274] : memref<36x64x64xbf16, #tpu.memory_space<vmem>>, vector<1x64x64xbf16>
    %293 = vector.shape_cast %292 : vector<1x64x64xbf16> to vector<64x64xbf16>
    %cst_275 = arith.constant dense<0.000000e+00> : vector<64x64xf32>
    %294 = tpu.matmul %291, %293, %cst_275 {dimension_numbers = #tpu.dot_dimension_numbers<[1], [0], [0], [1], [0, 0, 1, 1], [], []>} : vector<64x64xbf16>, vector<64x64xbf16>, vector<64x64xf32> -> vector<64x64xf32>
    %295 = arith.addf %288, %294 : vector<64x64xf32>
    %c1_276 = arith.constant 1 : index
    %c2_277 = arith.constant 2 : index
    %c0_278 = arith.constant 0 : index
    %296 = vector.load %arg8[%c1_276, %c2_277, %c0_278] : memref<10x10x64xf32, #tpu.memory_space<vmem>>, vector<8x8x64xf32>
    %297 = vector.shape_cast %296 : vector<8x8x64xf32> to vector<64x64xf32>
    %298 = arith.truncf %297 : vector<64x64xf32> to vector<64x64xbf16>
    %c32 = arith.constant 32 : index
    %c0_279 = arith.constant 0 : index
    %c0_280 = arith.constant 0 : index
    %299 = vector.load %arg3[%c32, %c0_279, %c0_280] : memref<36x64x64xbf16, #tpu.memory_space<vmem>>, vector<1x64x64xbf16>
    %300 = vector.shape_cast %299 : vector<1x64x64xbf16> to vector<64x64xbf16>
    %cst_281 = arith.constant dense<0.000000e+00> : vector<64x64xf32>
    %301 = tpu.matmul %298, %300, %cst_281 {dimension_numbers = #tpu.dot_dimension_numbers<[1], [0], [0], [1], [0, 0, 1, 1], [], []>} : vector<64x64xbf16>, vector<64x64xbf16>, vector<64x64xf32> -> vector<64x64xf32>
    %302 = arith.addf %295, %301 : vector<64x64xf32>
    %c2_282 = arith.constant 2 : index
    %c0_283 = arith.constant 0 : index
    %c0_284 = arith.constant 0 : index
    %303 = vector.load %arg8[%c2_282, %c0_283, %c0_284] : memref<10x10x64xf32, #tpu.memory_space<vmem>>, vector<8x8x64xf32>
    %304 = vector.shape_cast %303 : vector<8x8x64xf32> to vector<64x64xf32>
    %305 = arith.truncf %304 : vector<64x64xf32> to vector<64x64xbf16>
    %c33 = arith.constant 33 : index
    %c0_285 = arith.constant 0 : index
    %c0_286 = arith.constant 0 : index
    %306 = vector.load %arg3[%c33, %c0_285, %c0_286] : memref<36x64x64xbf16, #tpu.memory_space<vmem>>, vector<1x64x64xbf16>
    %307 = vector.shape_cast %306 : vector<1x64x64xbf16> to vector<64x64xbf16>
    %cst_287 = arith.constant dense<0.000000e+00> : vector<64x64xf32>
    %308 = tpu.matmul %305, %307, %cst_287 {dimension_numbers = #tpu.dot_dimension_numbers<[1], [0], [0], [1], [0, 0, 1, 1], [], []>} : vector<64x64xbf16>, vector<64x64xbf16>, vector<64x64xf32> -> vector<64x64xf32>
    %309 = arith.addf %302, %308 : vector<64x64xf32>
    %c2_288 = arith.constant 2 : index
    %c1_289 = arith.constant 1 : index
    %c0_290 = arith.constant 0 : index
    %310 = vector.load %arg8[%c2_288, %c1_289, %c0_290] : memref<10x10x64xf32, #tpu.memory_space<vmem>>, vector<8x8x64xf32>
    %311 = vector.shape_cast %310 : vector<8x8x64xf32> to vector<64x64xf32>
    %312 = arith.truncf %311 : vector<64x64xf32> to vector<64x64xbf16>
    %c34 = arith.constant 34 : index
    %c0_291 = arith.constant 0 : index
    %c0_292 = arith.constant 0 : index
    %313 = vector.load %arg3[%c34, %c0_291, %c0_292] : memref<36x64x64xbf16, #tpu.memory_space<vmem>>, vector<1x64x64xbf16>
    %314 = vector.shape_cast %313 : vector<1x64x64xbf16> to vector<64x64xbf16>
    %cst_293 = arith.constant dense<0.000000e+00> : vector<64x64xf32>
    %315 = tpu.matmul %312, %314, %cst_293 {dimension_numbers = #tpu.dot_dimension_numbers<[1], [0], [0], [1], [0, 0, 1, 1], [], []>} : vector<64x64xbf16>, vector<64x64xbf16>, vector<64x64xf32> -> vector<64x64xf32>
    %316 = arith.addf %309, %315 : vector<64x64xf32>
    %c2_294 = arith.constant 2 : index
    %c2_295 = arith.constant 2 : index
    %c0_296 = arith.constant 0 : index
    %317 = vector.load %arg8[%c2_294, %c2_295, %c0_296] : memref<10x10x64xf32, #tpu.memory_space<vmem>>, vector<8x8x64xf32>
    %318 = vector.shape_cast %317 : vector<8x8x64xf32> to vector<64x64xf32>
    %319 = arith.truncf %318 : vector<64x64xf32> to vector<64x64xbf16>
    %c35 = arith.constant 35 : index
    %c0_297 = arith.constant 0 : index
    %c0_298 = arith.constant 0 : index
    %320 = vector.load %arg3[%c35, %c0_297, %c0_298] : memref<36x64x64xbf16, #tpu.memory_space<vmem>>, vector<1x64x64xbf16>
    %321 = vector.shape_cast %320 : vector<1x64x64xbf16> to vector<64x64xbf16>
    %cst_299 = arith.constant dense<0.000000e+00> : vector<64x64xf32>
    %322 = tpu.matmul %319, %321, %cst_299 {dimension_numbers = #tpu.dot_dimension_numbers<[1], [0], [0], [1], [0, 0, 1, 1], [], []>} : vector<64x64xbf16>, vector<64x64xbf16>, vector<64x64xf32> -> vector<64x64xf32>
    %323 = arith.addf %316, %322 : vector<64x64xf32>
    %c4_300 = arith.constant 4 : index
    %c0_301 = arith.constant 0 : index
    %324 = vector.load %arg4[%c4_300, %c0_301] : memref<5x64xf32, #tpu.memory_space<vmem>>, vector<1x64xf32>
    %325 = vector.broadcast %324 : vector<1x64xf32> to vector<64x64xf32>
    %326 = arith.addf %323, %325 : vector<64x64xf32>
    %327 = arith.addf %326, %186 : vector<64x64xf32>
    %cst_302 = arith.constant 0.000000e+00 : f32
    %328 = vector.broadcast %cst_302 : f32 to vector<64x64xf32>
    %329 = arith.maximumf %327, %328 : vector<64x64xf32>
    %c0_303 = arith.constant 0 : index
    %c0_304 = arith.constant 0 : index
    %c0_305 = arith.constant 0 : index
    %330 = vector.load %arg5[%c0_303, %c0_304, %c0_305] : memref<1x64x64xf32, #tpu.memory_space<vmem>>, vector<1x64x64xf32>
    %331 = vector.shape_cast %330 : vector<1x64x64xf32> to vector<64x64xf32>
    %332 = vector.shape_cast %329 : vector<64x64xf32> to vector<1x64x64xf32>
    tpu.vector_store %arg5[%c0_303, %c0_304, %c0_305], %332 {strides = array<i32>} : memref<1x64x64xf32, #tpu.memory_space<vmem>>, vector<1x64x64xf32>,
    return
  }
  func.func @transform_0(%arg0: i32) -> (i32, i32, i32) {
    %c0_i32 = arith.constant 0 : i32
    %c0_i32_0 = arith.constant 0 : i32
    %c0_i32_1 = arith.constant 0 : i32
    return %arg0, %c0_i32, %c0_i32_0 : i32, i32, i32
  }
  func.func @transform_1(%arg0: i32) -> (i32, i32) {
    %c0_i32 = arith.constant 0 : i32
    %c0_i32_0 = arith.constant 0 : i32
    %c0_i32_1 = arith.constant 0 : i32
    return %c0_i32, %c0_i32_0 : i32, i32
  }
  func.func @transform_2(%arg0: i32) -> (i32, i32, i32) {
    %c0_i32 = arith.constant 0 : i32
    %c0_i32_0 = arith.constant 0 : i32
    %c0_i32_1 = arith.constant 0 : i32
    %c0_i32_2 = arith.constant 0 : i32
    return %c0_i32, %c0_i32_0, %c0_i32_1 : i32, i32, i32
  }
  func.func @transform_3(%arg0: i32) -> (i32, i32) {
    %c0_i32 = arith.constant 0 : i32
    %c0_i32_0 = arith.constant 0 : i32
    %c0_i32_1 = arith.constant 0 : i32
    return %c0_i32, %c0_i32_0 : i32, i32
  }
  func.func @transform_4(%arg0: i32) -> (i32, i32, i32) {
    %c0_i32 = arith.constant 0 : i32
    %c0_i32_0 = arith.constant 0 : i32
    %c0_i32_1 = arith.constant 0 : i32
    return %arg0, %c0_i32, %c0_i32_0 : i32, i32, i32
  }
}

</mosaic_0001>

<llo_original>
// kernel: tiny_resnet18_forward.1
$region0: #{tiny_resnet18_forward.1}
  #allocation0 [shape = 'u32[]', space=smem, size = 0x4, offset = 0x4, fixed_abs, tag = 'smem constant byte address 0x4 - core index']
  #allocation1 [shape = 'u32[144,128]{1,0:T(1,128)}', space=vmem, size = 0x12000, scoped, tag = 'internal scratch']
  #allocation2 [shape = 'f32[36,9,64]{2,1,0:T(8,128)}', space=vmem, size = 0x48000, scoped, tag = 'scratch operand']
  #allocation3 [shape = 'f32[10,10,64]{2,1,0:T(8,128)}', space=vmem, size = 0x14000, scoped, tag = 'scratch operand']
  #allocation4 [shape = 'f32[10,10,64]{2,1,0:T(8,128)}', space=vmem, size = 0x14000, scoped, tag = 'scratch operand']
  %s0 = inlined_call_operand.vmem [shape: bf16[2,256,147], index: 0, kind: input, shape index: {}]
  %s1 = inlined_call_operand.vmem [shape: bf16[147,64], index: 1, kind: input, shape index: {}]
  %s2 = inlined_call_operand.vmem [shape: bf16[36,64,64], index: 2, kind: input, shape index: {}]
  %s3 = inlined_call_operand.vmem [shape: f32[5,64], index: 3, kind: input, shape index: {}]
  %s4 = inlined_call_operand.hbm [shape: f32[2,64,64], index: 4, kind: output, shape index: {}]
  %s5 = sld [smem:[#allocation0]]
  $region49: #{tiny_resnet18_forward.1} parent=0
    _
  %s7 = ssub.s32 1, %s5
  %s8 = scalar_select 0, %s7, %s5
  $region1: #{tiny_resnet18_forward.1} parent=0
    #allocation5 [shape = 'u8[65536]{0}', space=vmem, size = 0x10000, scoped, tag = 'output window, operand 0']
    #allocation6 [shape = 's32[2]{0}', space=sflag, size = 0x8, scoped, tag = 'scoped memory for tiny_resnet18_forward.1']
    %9 = vsyncpa [#allocation6], 0
    %s10 = scalar_lea.sflag [#allocation6], 1
    %11 = vsyncpa %s10, 0
    loop: start=0, step=1, limit=4
    $region2: #{tiny_resnet18_forward.1} parent=1 // loop_pre_header
      _
    $region3: #{tiny_resnet18_forward.1} parent=1 // loop_header
      %s13 = sphi 0, %s17
      %p14 = scmp.ge.s32.totalorder %s13, 4
      %s23 = sphi 0, %s25
      %s26 = sphi 0, %s23
      %s27 = sphi 0, %s26
      %s43 = sphi 0, %s27
      %s47 = sphi 0, %s47
      %s49 = sphi 0, %s47
      %s50 = sphi 0, %s49
      %s64 = sphi 0, %s50
      %s68 = sphi 0, %s68
      %s70 = sphi 0, %s68
      %s71 = sphi 0, %s70
      %s85 = sphi 0, %s71
      %s89 = sphi 0, %s89
      %s91 = sphi 0, %s89
      %s92 = sphi 0, %s91
      %s106 = sphi 0, %s92
      %s112 = sphi 0, %s114
      %s115 = sphi 0, %s112
      %s116 = sphi 0, %s115
      %s132 = sphi 0, %s116
    $region4: #{tiny_resnet18_forward.1} parent=1 // loop_header_branch
      %16 = sbr.rel (%p14) target = $region8
    $region5: #{tiny_resnet18_forward.1} parent=1 // loop_body
      %s18 = ssub.s32 %s13, 1
      %s19 = ssub.s32 %s13, 2
      %s20 = sadd.s32 %s13, 1
      %s21 = ssub.s32 %s13, %s20
      %p22 = scmp.eq.s32.totalorder %s21, 0
      %s24 = sadd.s32 %s23, 1
      %s25 = scalar_select %p22, %s23, %s24
      %p28 = pneg %p22
      %p29 = scmp.eq.s32.totalorder %s13, 1
      %p30 = por %p28, %p29
      %p31 = scmp.ne.s32.totalorder %s23, %s26
      %p32 = scmp.eq.s32.totalorder %s13, 0
      %p33 = por %p31, %p32
      %p34 = scmp.ne.s32.totalorder %s23, %s26
      %p35 = scmp.eq.s32.totalorder %s18, 1
      %p36 = por %p34, %p35
      %p37 = scmp.ne.s32.totalorder %s26, %s27
      %p38 = scmp.eq.s32.totalorder %s18, 0
      %p39 = por %p37, %p38
      %p40 = scmp.ne.s32.totalorder %s26, %s27
      %p41 = scmp.eq.s32.totalorder %s19, 1
      %p42 = por %p40, %p41
      %p44 = scmp.ne.s32.totalorder %s27, %s43
      %p45 = scmp.eq.s32.totalorder %s19, 0
      %p46 = por %p44, %p45
      %s48 = sadd.s32 %s47, 1
      %p51 = scmp.eq.s32.totalorder %s13, 1
      %p52 = scmp.ne.s32.totalorder %s47, %s49
      %p53 = scmp.eq.s32.totalorder %s13, 0
      %p54 = por %p52, %p53
      %p55 = scmp.ne.s32.totalorder %s47, %s49
      %p56 = scmp.eq.s32.totalorder %s18, 1
      %p57 = por %p55, %p56
      %p58 = scmp.ne.s32.totalorder %s49, %s50
      %p59 = scmp.eq.s32.totalorder %s18, 0
      %p60 = por %p58, %p59
      %p61 = scmp.ne.s32.totalorder %s49, %s50
      %p62 = scmp.eq.s32.totalorder %s19, 1
      %p63 = por %p61, %p62
      %p65 = scmp.ne.s32.totalorder %s50, %s64
      %p66 = scmp.eq.s32.totalorder %s19, 0
      %p67 = por %p65, %p66
      %s69 = sadd.s32 %s68, 1
      %p72 = scmp.eq.s32.totalorder %s13, 1
      %p73 = scmp.ne.s32.totalorder %s68, %s70
      %p74 = scmp.eq.s32.totalorder %s13, 0
      %p75 = por %p73, %p74
      %p76 = scmp.ne.s32.totalorder %s68, %s70
      %p77 = scmp.eq.s32.totalorder %s18, 1
      %p78 = por %p76, %p77
      %p79 = scmp.ne.s32.totalorder %s70, %s71
      %p80 = scmp.eq.s32.totalorder %s18, 0
      %p81 = por %p79, %p80
      %p82 = scmp.ne.s32.totalorder %s70, %s71
      %p83 = scmp.eq.s32.totalorder %s19, 1
      %p84 = por %p82, %p83
      %p86 = scmp.ne.s32.totalorder %s71, %s85
      %p87 = scmp.eq.s32.totalorder %s19, 0
      %p88 = por %p86, %p87
      %s90 = sadd.s32 %s89, 1
      %p93 = scmp.eq.s32.totalorder %s13, 1
      %p94 = scmp.ne.s32.totalorder %s89, %s91
      %p95 = scmp.eq.s32.totalorder %s13, 0
      %p96 = por %p94, %p95
      %p97 = scmp.ne.s32.totalorder %s89, %s91
      %p98 = scmp.eq.s32.totalorder %s18, 1
      %p99 = por %p97, %p98
      %p100 = scmp.ne.s32.totalorder %s91, %s92
      %p101 = scmp.eq.s32.totalorder %s18, 0
      %p102 = por %p100, %p101
      %p103 = scmp.ne.s32.totalorder %s91, %s92
      %p104 = scmp.eq.s32.totalorder %s19, 1
      %p105 = por %p103, %p104
      %p107 = scmp.ne.s32.totalorder %s92, %s106
      %p108 = scmp.eq.s32.totalorder %s19, 0
      %p109 = por %p107, %p108
      %s110 = ssub.s32 %s13, %s20
      %p111 = scmp.eq.s32.totalorder %s110, 0
      %s113 = sadd.s32 %s112, 1
      %s114 = scalar_select %p111, %s112, %s113
      %p117 = pneg %p111
      %p118 = scmp.eq.s32.totalorder %s13, 1
      %p119 = por %p117, %p118
      %p120 = scmp.ne.s32.totalorder %s112, %s115
      %p121 = scmp.eq.s32.totalorder %s13, 0
      %p122 = por %p120, %p121
      %p123 = scmp.ne.s32.totalorder %s112, %s115
      %p124 = scmp.eq.s32.totalorder %s18, 1
      %p125 = por %p123, %p124
      %p126 = scmp.ne.s32.totalorder %s115, %s116
      %p127 = scmp.eq.s32.totalorder %s18, 0
      %p128 = por %p126, %p127
      %p129 = scmp.ne.s32.totalorder %s115, %s116
      %p130 = scmp.eq.s32.totalorder %s19, 1
      %p131 = por %p129, %p130
      %p133 = scmp.ne.s32.totalorder %s116, %s132
      %p134 = scmp.eq.s32.totalorder %s19, 0
      %p135 = por %p133, %p134
      %p136 = scmp.le.s32.totalorder 1, %s13
      %p137 = scmp.lt.s32.totalorder %s13, 3
      %p138 = pnand %p136, %p137
      %p139 = pneg %p138
      // Predicated region
      $region9: #{tiny_resnet18_forward.1} parent=5 // pred_check
        _
      $region10: #{tiny_resnet18_forward.1} parent=5 // pred_check_branch
        %141 = sbr.rel (%p138) target = $region12
      $region11: #{tiny_resnet18_forward.1} parent=5 // pred_region
        %s142 = ssub.s32 %s13, 1
        // Predicated region
        $region13: #{tiny_resnet18_forward.1} parent=11 // pred_check
          %p143 = pneg %p60
        $region14: #{tiny_resnet18_forward.1} parent=11 // pred_check_branch
          %145 = sbr.rel (%p143) target = $region16
        $region15: #{tiny_resnet18_forward.1} parent=11 // pred_region
          _
        $region16: #{tiny_resnet18_forward.1} parent=11 // pred_fallthru
          _
        // Predicated region
        $region17: #{tiny_resnet18_forward.1} parent=11 // pred_check
          %p146 = pneg %p81
        $region18: #{tiny_resnet18_forward.1} parent=11 // pred_check_branch
          %148 = sbr.rel (%p146) target = $region20
        $region19: #{tiny_resnet18_forward.1} parent=11 // pred_region
          _
        $region20: #{tiny_resnet18_forward.1} parent=11 // pred_fallthru
          _
        // Predicated region
        $region21: #{tiny_resnet18_forward.1} parent=11 // pred_check
          %p149 = pneg %p102
        $region22: #{tiny_resnet18_forward.1} parent=11 // pred_check_branch
          %151 = sbr.rel (%p149) target = $region24
        $region23: #{tiny_resnet18_forward.1} parent=11 // pred_region
          _
        $region24: #{tiny_resnet18_forward.1} parent=11 // pred_fallthru
          _
      $region12: #{tiny_resnet18_forward.1} parent=5 // pred_fallthru
        _
      %p152 = scmp.lt.s32.totalorder %s13, 2
      // Predicated region
      $region25: #{tiny_resnet18_forward.1} parent=5 // pred_check
        %p153 = pneg %p152
      $region26: #{tiny_resnet18_forward.1} parent=5 // pred_check_branch
        %155 = sbr.rel (%p153) target = $region28
      $region27: #{tiny_resnet18_forward.1} parent=5 // pred_region
        // Predicated region
        $region29: #{tiny_resnet18_forward.1} parent=27 // pred_check
          %p156 = pneg %p33
        $region30: #{tiny_resnet18_forward.1} parent=27 // pred_check_branch
          %158 = sbr.rel (%p156) target = $region32
        $region31: #{tiny_resnet18_forward.1} parent=27 // pred_region
          %p159 = scmp.lt.s32.totalorder %s13, 1
          %s160 = scalar_select %p159, %s13, 1
          %s161 = smul.addr %s160, 64
          %s162 = smul.addr %s161, 4
          %s163 = scalar_lea.vmem %s0, %s162
        $region32: #{tiny_resnet18_forward.1} parent=27 // pred_fallthru
          _
      $region28: #{tiny_resnet18_forward.1} parent=5 // pred_fallthru
        _
      %p164 = scmp.le.s32.totalorder 1, %s13
      %p165 = scmp.lt.s32.totalorder %s13, 3
      %p166 = pnand %p164, %p165
      %p167 = pneg %p166
      // Predicated region
      $region33: #{tiny_resnet18_forward.1} parent=5 // pred_check
        _
      $region34: #{tiny_resnet18_forward.1} parent=5 // pred_check_branch
        %169 = sbr.rel (%p166) target = $region36
      $region35: #{tiny_resnet18_forward.1} parent=5 // pred_region
        %s170 = ssub.s32 %s13, 1
        %p171 = scmp.lt.s32.totalorder %s18, 1
        %s172 = scalar_select %p171, %s18, 1
        %s173 = smul.addr %s172, 64
        %s174 = smul.addr %s173, 4
        %s175 = scalar_lea.vmem %s0, %s174
        %p176 = pneg %p39
        %p177 = pneg %p36
        %p178 = pneg %p60
        %p179 = pneg %p57
        %p180 = pneg %p81
        %p181 = pneg %p78
        %p182 = pneg %p102
        %p183 = pneg %p99
        %p184 = pneg %p128
        %p185 = pneg %p125
        %s186 = sand.u32 %s115, 1
        %s187 = scalar_lea.sflag [#allocation6], %s186
        %s188 = sand.u32 %s115, 1
        %s189 = smul.addr %s188, 64
        %s190 = scalar_lea.vmem [#allocation5], %s189
        %p191 = scmp.lt.s32.totalorder %s18, 1
        %s192 = scalar_select %p191, %s18, 1
        %s193 = smul.addr %s192, 64
        %s194 = smul.addr %s193, 4
        %s195 = scalar_lea.vmem %s0, %s194
        %v197 = vld [vmem:[%s195] sm:$0xff]
        %v198 = vld [vmem:[%s195 + $0x8] sm:$0xff]
        %v199 = vld [vmem:[%s195 + $0x10] sm:$0xff]
        %v200 = vld [vmem:[%s195 + $0x18] sm:$0xff]
        %v201 = vld [vmem:[%s195 + $0x20] sm:$0xff]
        %v202 = vld [vmem:[%s195 + $0x28] sm:$0xff]
        %v203 = vld [vmem:[%s195 + $0x30] sm:$0xff]
        %v204 = vld [vmem:[%s195 + $0x38] sm:$0xff]
        %v205 = vld [vmem:[%s195 + $0x40] sm:$0xff]
        %v206 = vld [vmem:[%s195 + $0x48] sm:$0xff]
        %v207 = vld [vmem:[%s195 + $0x50] sm:$0xff]
        %v208 = vld [vmem:[%s195 + $0x58] sm:$0xff]
        %v209 = vld [vmem:[%s195 + $0x60] sm:$0xff]
        %v210 = vld [vmem:[%s195 + $0x68] sm:$0xff]
        %v211 = vld [vmem:[%s195 + $0x70] sm:$0xff]
        %v212 = vld [vmem:[%s195 + $0x78] sm:$0xff]
        %v213 = vld [vmem:[%s195 + $0x80] sm:$0xff]
        %v214 = vld [vmem:[%s195 + $0x88] sm:$0xff]
        %v215 = vld [vmem:[%s195 + $0x90] sm:$0xff]
        %v216 = vld [vmem:[%s195 + $0x98] sm:$0xff]
        %v217 = vld [vmem:[%s195 + $0xa0] sm:$0xff]
        %v218 = vld [vmem:[%s195 + $0xa8] sm:$0xff]
        %v219 = vld [vmem:[%s195 + $0xb0] sm:$0xff]
        %v220 = vld [vmem:[%s195 + $0xb8] sm:$0xff]
        %v221 = vld [vmem:[%s195 + $0xc0] sm:$0xff]
        %v222 = vld [vmem:[%s195 + $0xc8] sm:$0xff]
        %v223 = vld [vmem:[%s195 + $0xd0] sm:$0xff]
        %v224 = vld [vmem:[%s195 + $0xd8] sm:$0xff]
        %v225 = vld [vmem:[%s195 + $0xe0] sm:$0xff]
        %v226 = vld [vmem:[%s195 + $0xe8] sm:$0xff]
        %v227 = vld [vmem:[%s195 + $0xf0] sm:$0xff]
        %v228 = vld [vmem:[%s195 + $0xf8] sm:$0xff]
        %v229 = vld [vmem:[%s1] sm:$0xf]
        %v230 = vld [vmem:[%s1 + $0x4] sm:$0xf]
        %v231 = vld [vmem:[%s1 + $0x8] sm:$0xf]
        %v232 = vld [vmem:[%s1 + $0xc] sm:$0xf]
        %v233 = vld [vmem:[%s1 + $0x10] sm:$0xf]
        %v234 = vld [vmem:[%s1 + $0x14] sm:$0xf]
        %v235 = vld [vmem:[%s1 + $0x18] sm:$0xf]
        %v236 = vld [vmem:[%s1 + $0x1c] sm:$0xf]
        %v237 = vld [vmem:[%s1 + $0x20] sm:$0xf]
        %v238 = vld [vmem:[%s1 + $0x24] sm:$0xf]
        %v239 = vld [vmem:[%s1 + $0x28] sm:$0xf]
        %v240 = vld [vmem:[%s1 + $0x2c] sm:$0xf]
        %v241 = vld [vmem:[%s1 + $0x30] sm:$0xf]
        %v242 = vld [vmem:[%s1 + $0x34] sm:$0xf]
        %v243 = vld [vmem:[%s1 + $0x38] sm:$0xf]
        %v244 = vld [vmem:[%s1 + $0x3c] sm:$0xf]
        %v245 = vld [vmem:[%s1 + $0x40] sm:$0xf]
        %v246 = vld [vmem:[%s1 + $0x44] sm:$0xf]
        %v247 = vld [vmem:[%s1 + $0x48] sm:$0x3]
        %v248 = vld [vmem:[%s3] sm:$0x1]
        %v249 = vlaneseq
        %v250 = vshrl.u32 %v249, 7
        %v251 = vsub.s32 0, %v250
        %v252 = vrot.slane %v248, %v251
        %v285 = vunpack.c.l.b16 %v197
        %v286 = vunpack.c.h.b16 %v197
        %v287 = vunpack.c.l.b16 %v198
        %v288 = vunpack.c.h.b16 %v198
        %v289 = vunpack.c.l.b16 %v199
        %v290 = vunpack.c.h.b16 %v199
        %v291 = vunpack.c.l.b16 %v200
        %v292 = vunpack.c.h.b16 %v200
        %v293 = vunpack.c.l.b16 %v201
        %v294 = vunpack.c.h.b16 %v201
        %v295 = vunpack.c.l.b16 %v202
        %v296 = vunpack.c.h.b16 %v202
        %v297 = vunpack.c.l.b16 %v203
        %v298 = vunpack.c.h.b16 %v203
        %v299 = vunpack.c.l.b16 %v204
        %v300 = vunpack.c.h.b16 %v204
        %v301 = vunpack.c.l.b16 %v205
        %v302 = vunpack.c.h.b16 %v205
        %v303 = vunpack.c.l.b16 %v206
        %v304 = vunpack.c.h.b16 %v206
        %v305 = vunpack.c.l.b16 %v207
        %v306 = vunpack.c.h.b16 %v207
        %v307 = vunpack.c.l.b16 %v208
        %v308 = vunpack.c.h.b16 %v208
        %v309 = vunpack.c.l.b16 %v209
        %v310 = vunpack.c.h.b16 %v209
        %v311 = vunpack.c.l.b16 %v210
        %v312 = vunpack.c.h.b16 %v210
        %v313 = vunpack.c.l.b16 %v211
        %v314 = vunpack.c.h.b16 %v211
        %v315 = vunpack.c.l.b16 %v212
        %v316 = vunpack.c.h.b16 %v212
        %v317 = vunpack.c.l.b16 %v213
        %v318 = vunpack.c.h.b16 %v213
        %v319 = vunpack.c.l.b16 %v214
        %v320 = vunpack.c.h.b16 %v214
        %v321 = vunpack.c.l.b16 %v215
        %v322 = vunpack.c.h.b16 %v215
        %v323 = vunpack.c.l.b16 %v216
        %v324 = vunpack.c.h.b16 %v216
        %v325 = vunpack.c.l.b16 %v217
        %v326 = vunpack.c.h.b16 %v217
        %v327 = vunpack.c.l.b16 %v218
        %v328 = vunpack.c.h.b16 %v218
        %v329 = vunpack.c.l.b16 %v219
        %v330 = vunpack.c.h.b16 %v219
        %v331 = vunpack.c.l.b16 %v220
        %v332 = vunpack.c.h.b16 %v220
        %v333 = vunpack.c.l.b16 %v221
        %v334 = vunpack.c.h.b16 %v221
        %v335 = vunpack.c.l.b16 %v222
        %v336 = vunpack.c.h.b16 %v222
        %v337 = vunpack.c.l.b16 %v223
        %v338 = vunpack.c.h.b16 %v223
        %v339 = vunpack.c.l.b16 %v224
        %v340 = vunpack.c.h.b16 %v224
        %v341 = vunpack.c.l.b16 %v225
        %v342 = vunpack.c.h.b16 %v225
        %v343 = vunpack.c.l.b16 %v226
        %v344 = vunpack.c.h.b16 %v226
        %v345 = vunpack.c.l.b16 %v227
        %v346 = vunpack.c.h.b16 %v227
        %v347 = vunpack.c.l.b16 %v228
        %v348 = vunpack.c.h.b16 %v228
        %v349 = vpack.c.b16 %v287, %v285
        %v350 = vpack.c.b16 %v288, %v286
        %v351 = vpack.c.b16 %v291, %v289
        %v352 = vpack.c.b16 %v292, %v290
        %v353 = vpack.c.b16 %v295, %v293
        %v354 = vpack.c.b16 %v296, %v294
        %v355 = vpack.c.b16 %v299, %v297
        %v356 = vpack.c.b16 %v300, %v298
        %v357 = vpack.c.b16 %v303, %v301
        %v358 = vpack.c.b16 %v304, %v302
        %v359 = vpack.c.b16 %v307, %v305
        %v360 = vpack.c.b16 %v308, %v306
        %v361 = vpack.c.b16 %v311, %v309
        %v362 = vpack.c.b16 %v312, %v310
        %v363 = vpack.c.b16 %v315, %v313
        %v364 = vpack.c.b16 %v316, %v314
        %v365 = vpack.c.b16 %v319, %v317
        %v366 = vpack.c.b16 %v320, %v318
        %v367 = vpack.c.b16 %v323, %v321
        %v368 = vpack.c.b16 %v324, %v322
        %v369 = vpack.c.b16 %v327, %v325
        %v370 = vpack.c.b16 %v328, %v326
        %v371 = vpack.c.b16 %v331, %v329
        %v372 = vpack.c.b16 %v332, %v330
        %v373 = vpack.c.b16 %v335, %v333
        %v374 = vpack.c.b16 %v336, %v334
        %v375 = vpack.c.b16 %v339, %v337
        %v376 = vpack.c.b16 %v340, %v338
        %v377 = vpack.c.b16 %v343, %v341
        %v378 = vpack.c.b16 %v344, %v342
        %v379 = vpack.c.b16 %v347, %v345
        %v380 = vpack.c.b16 %v348, %v346
        %v416 = vunpack.c.l.b16 %v229
        %v417 = vunpack.c.l.b16 %v230
        %v418 = vunpack.c.l.b16 %v231
        %v419 = vunpack.c.l.b16 %v232
        %v420 = vunpack.c.l.b16 %v233
        %v421 = vunpack.c.l.b16 %v234
        %v422 = vunpack.c.l.b16 %v235
        %v423 = vunpack.c.l.b16 %v236
        %v424 = vunpack.c.l.b16 %v237
        %v425 = vunpack.c.l.b16 %v238
        %v426 = vunpack.c.l.b16 %v239
        %v427 = vunpack.c.l.b16 %v240
        %v428 = vunpack.c.l.b16 %v241
        %v429 = vunpack.c.l.b16 %v242
        %v430 = vunpack.c.l.b16 %v243
        %v431 = vunpack.c.l.b16 %v244
        %v432 = vunpack.c.l.b16 %v245
        %v433 = vunpack.c.l.b16 %v246
        %v434 = vunpack.c.l.b16 %v247
        %v435 = vpack.c.b16 %v417, %v416
        %v436 = vpack.c.b16 %v419, %v418
        %v437 = vpack.c.b16 %v421, %v420
        %v438 = vpack.c.b16 %v423, %v422
        %v439 = vpack.c.b16 %v425, %v424
        %v440 = vpack.c.b16 %v427, %v426
        %v441 = vpack.c.b16 %v429, %v428
        %v442 = vpack.c.b16 %v431, %v430
        %v443 = vpack.c.b16 %v433, %v432
        %v444 = vpack.c.b16 %v434, %v434
        %vm454 = vcmask 154624
        %v456 = vsel %vm454, %v350, 0
        %v459 = vsel %vm454, %v352, 0
        %v462 = vsel %vm454, %v354, 0
        %v465 = vsel %vm454, %v356, 0
        %v468 = vsel %vm454, %v358, 0
        %v471 = vsel %vm454, %v360, 0
        %v474 = vsel %vm454, %v362, 0
        %v477 = vsel %vm454, %v364, 0
        %v480 = vsel %vm454, %v366, 0
        %v483 = vsel %vm454, %v368, 0
        %v486 = vsel %vm454, %v370, 0
        %v489 = vsel %vm454, %v372, 0
        %v492 = vsel %vm454, %v374, 0
        %v495 = vsel %vm454, %v376, 0
        %v498 = vsel %vm454, %v378, 0
        %v501 = vsel %vm454, %v380, 0
        %vm503 = vcmask 1040384
        %vm504 = vcmask 1041408
        %v505 = vsel %vm503, 4294967295, 65535
        %v506 = vsel %vm504, %v505, 0
        %v508 = vand.u32 %v444, %v506
        %510 = vmatprep.subr.bf16.mxu0 0
        %511 = vmatpush1.bf16.msra.mxu0 %v442
        %512 = vmatprep.subr.bf16.mxu0 0
        %513 = vmatpush1.bf16.msra.mxu0 %v441
        %514 = vmatprep.subr.bf16.mxu0 0
        %515 = vmatpush1.bf16.msra.mxu0 %v440
        %516 = vmatprep.subr.bf16.mxu0 0
        %517 = vmatpush1.bf16.msra.mxu0 %v439
        %518 = vmatprep.subr.bf16.mxu0 0
        %519 = vmatpush1.bf16.msra.mxu0 %v438
        %520 = vmatprep.subr.bf16.mxu0 0
        %521 = vmatpush1.bf16.msra.mxu0 %v437
        %522 = vmatprep.subr.bf16.mxu0 0
        %523 = vmatpush1.bf16.msra.mxu0 %v436
        %524 = vmatprep.subr.bf16.mxu0 0
        %525 = vmatpush1.bf16.msra.mxu0 %v435
        %526 = vmatprep.subr.bf16.mxu0 0
        %527 = vmatpush2.bf16.msra.mxu0 0
        %528 = vmatprep.subr.bf16.mxu0 0
        %529 = vmatpush2.bf16.msra.mxu0 0
        %530 = vmatprep.subr.bf16.mxu0 0
        %531 = vmatpush2.bf16.msra.mxu0 0
        %532 = vmatprep.subr.bf16.mxu0 0
        %533 = vmatpush2.bf16.msra.mxu0 0
        %534 = vmatprep.subr.bf16.mxu0 0
        %535 = vmatpush2.bf16.msra.mxu0 0
        %536 = vmatprep.subr.bf16.mxu0 0
        %537 = vmatpush2.bf16.msra.mxu0 0
        %538 = vmatprep.subr.bf16.mxu0 0
        %539 = vmatpush2.bf16.msra.mxu0 %v508
        %540 = vmatprep.subr.bf16.mxu0 0
        %541 = vmatpush2.bf16.msra.mxu0 %v443
        %542 = vmatprep.mubr.bf16.mxu0 %v456
        %543 = vmatmul.mubr.bf16.gmra.mxu0 %v349
        %v544 = vpop.f32.mrf.mxu0
        %v545 = vadd.f32 %v252, %v544
        %v546 = vpop.f32.mrf.mxu0
        %v547 = vpop.f32.mrf.mxu0
        %v548 = vadd.f32 %v252, %v547
        %v549 = vpop.f32.mrf.mxu0
        %550 = vmatprep.mubr.bf16.mxu0 %v459
        %551 = vmatmul.mubr.bf16.gmra.mxu0 %v351
        %v552 = vpop.f32.mrf.mxu0
        %v553 = vadd.f32 %v252, %v552
        %v554 = vpop.f32.mrf.mxu0
        %v555 = vpop.f32.mrf.mxu0
        %v556 = vadd.f32 %v252, %v555
        %v557 = vpop.f32.mrf.mxu0
        %558 = vmatprep.mubr.bf16.mxu0 %v462
        %559 = vmatmul.mubr.bf16.gmra.mxu0 %v353
        %v560 = vpop.f32.mrf.mxu0
        %v561 = vadd.f32 %v252, %v560
        %v562 = vpop.f32.mrf.mxu0
        %v563 = vpop.f32.mrf.mxu0
        %v564 = vadd.f32 %v252, %v563
        %v565 = vpop.f32.mrf.mxu0
        %566 = vmatprep.mubr.bf16.mxu0 %v465
        %567 = vmatmul.mubr.bf16.gmra.mxu0 %v355
        %v568 = vpop.f32.mrf.mxu0
        %v569 = vadd.f32 %v252, %v568
        %v570 = vpop.f32.mrf.mxu0
        %v571 = vpop.f32.mrf.mxu0
        %v572 = vadd.f32 %v252, %v571
        %v573 = vpop.f32.mrf.mxu0
        %574 = vmatprep.mubr.bf16.mxu0 %v468
        %575 = vmatmul.mubr.bf16.gmra.mxu0 %v357
        %v576 = vpop.f32.mrf.mxu0
        %v577 = vadd.f32 %v252, %v576
        %v578 = vpop.f32.mrf.mxu0
        %v579 = vpop.f32.mrf.mxu0
        %v580 = vadd.f32 %v252, %v579
        %v581 = vpop.f32.mrf.mxu0
        %582 = vmatprep.mubr.bf16.mxu0 %v471
        %583 = vmatmul.mubr.bf16.gmra.mxu0 %v359
        %v584 = vpop.f32.mrf.mxu0
        %v585 = vadd.f32 %v252, %v584
        %v586 = vpop.f32.mrf.mxu0
        %v587 = vpop.f32.mrf.mxu0
        %v588 = vadd.f32 %v252, %v587
        %v589 = vpop.f32.mrf.mxu0
        %590 = vmatprep.mubr.bf16.mxu0 %v474
        %591 = vmatmul.mubr.bf16.gmra.mxu0 %v361
        %v592 = vpop.f32.mrf.mxu0
        %v593 = vadd.f32 %v252, %v592
        %v594 = vpop.f32.mrf.mxu0
        %v595 = vpop.f32.mrf.mxu0
        %v596 = vadd.f32 %v252, %v595
        %v597 = vpop.f32.mrf.mxu0
        %598 = vmatprep.mubr.bf16.mxu0 %v477
        %599 = vmatmul.mubr.bf16.gmra.mxu0 %v363
        %v600 = vpop.f32.mrf.mxu0
        %v601 = vadd.f32 %v252, %v600
        %v602 = vpop.f32.mrf.mxu0
        %v603 = vpop.f32.mrf.mxu0
        %v604 = vadd.f32 %v252, %v603
        %v605 = vpop.f32.mrf.mxu0
        %606 = vmatprep.mubr.bf16.mxu0 %v480
        %607 = vmatmul.mubr.bf16.gmra.mxu0 %v365
        %v608 = vpop.f32.mrf.mxu0
        %v609 = vadd.f32 %v252, %v608
        %v610 = vpop.f32.mrf.mxu0
        %v611 = vpop.f32.mrf.mxu0
        %v612 = vadd.f32 %v252, %v611
        %v613 = vpop.f32.mrf.mxu0
        %614 = vmatprep.mubr.bf16.mxu0 %v483
        %615 = vmatmul.mubr.bf16.gmra.mxu0 %v367
        %v616 = vpop.f32.mrf.mxu0
        %v617 = vadd.f32 %v252, %v616
        %v618 = vpop.f32.mrf.mxu0
        %v619 = vpop.f32.mrf.mxu0
        %v620 = vadd.f32 %v252, %v619
        %v621 = vpop.f32.mrf.mxu0
        %622 = vmatprep.mubr.bf16.mxu0 %v486
        %623 = vmatmul.mubr.bf16.gmra.mxu0 %v369
        %v624 = vpop.f32.mrf.mxu0
        %v625 = vadd.f32 %v252, %v624
        %v626 = vpop.f32.mrf.mxu0
        %v627 = vpop.f32.mrf.mxu0
        %v628 = vadd.f32 %v252, %v627
        %v629 = vpop.f32.mrf.mxu0
        %630 = vmatprep.mubr.bf16.mxu0 %v489
        %631 = vmatmul.mubr.bf16.gmra.mxu0 %v371
        %v632 = vpop.f32.mrf.mxu0
        %v633 = vadd.f32 %v252, %v632
        %v634 = vpop.f32.mrf.mxu0
        %v635 = vpop.f32.mrf.mxu0
        %v636 = vadd.f32 %v252, %v635
        %v637 = vpop.f32.mrf.mxu0
        %638 = vmatprep.mubr.bf16.mxu0 %v492
        %639 = vmatmul.mubr.bf16.gmra.mxu0 %v373
        %v640 = vpop.f32.mrf.mxu0
        %v641 = vadd.f32 %v252, %v640
        %v642 = vpop.f32.mrf.mxu0
        %v643 = vpop.f32.mrf.mxu0
        %v644 = vadd.f32 %v252, %v643
        %v645 = vpop.f32.mrf.mxu0
        %646 = vmatprep.mubr.bf16.mxu0 %v495
        %647 = vmatmul.mubr.bf16.gmra.mxu0 %v375
        %v648 = vpop.f32.mrf.mxu0
        %v649 = vadd.f32 %v252, %v648
        %v650 = vpop.f32.mrf.mxu0
        %v651 = vpop.f32.mrf.mxu0
        %v652 = vadd.f32 %v252, %v651
        %v653 = vpop.f32.mrf.mxu0
        %654 = vmatprep.mubr.bf16.mxu0 %v498
        %655 = vmatmul.mubr.bf16.gmra.mxu0 %v377
        %v656 = vpop.f32.mrf.mxu0
        %v657 = vadd.f32 %v252, %v656
        %v658 = vpop.f32.mrf.mxu0
        %v659 = vpop.f32.mrf.mxu0
        %v660 = vadd.f32 %v252, %v659
        %v661 = vpop.f32.mrf.mxu0
        %662 = vmatprep.mubr.bf16.mxu0 %v501
        %663 = vmatmul.mubr.bf16.gmra.mxu0 %v379
        %v664 = vpop.f32.mrf.mxu0
        %v665 = vadd.f32 %v252, %v664
        %v666 = vpop.f32.mrf.mxu0
        %v667 = vpop.f32.mrf.mxu0
        %v668 = vadd.f32 %v252, %v667
        %v669 = vpop.f32.mrf.mxu0
        %670 = vdwg.mxu0
        %v671 = vmax.f32 %v545, 0.0
        %v672 = vmax.f32 %v548, 0.0
        %v673 = vmax.f32 %v553, 0.0
        %v674 = vmax.f32 %v556, 0.0
        %v675 = vmax.f32 %v561, 0.0
        %v676 = vmax.f32 %v564, 0.0
        %v677 = vmax.f32 %v569, 0.0
        %v678 = vmax.f32 %v572, 0.0
        %v679 = vmax.f32 %v577, 0.0
        %v680 = vmax.f32 %v580, 0.0
        %v681 = vmax.f32 %v585, 0.0
        %v682 = vmax.f32 %v588, 0.0
        %v683 = vmax.f32 %v593, 0.0
        %v684 = vmax.f32 %v596, 0.0
        %v685 = vmax.f32 %v601, 0.0
        %v686 = vmax.f32 %v604, 0.0
        %v687 = vmax.f32 %v609, 0.0
        %v688 = vmax.f32 %v612, 0.0
        %v689 = vmax.f32 %v617, 0.0
        %v690 = vmax.f32 %v620, 0.0
        %v691 = vmax.f32 %v625, 0.0
        %v692 = vmax.f32 %v628, 0.0
        %v693 = vmax.f32 %v633, 0.0
        %v694 = vmax.f32 %v636, 0.0
        %v695 = vmax.f32 %v641, 0.0
        %v696 = vmax.f32 %v644, 0.0
        %v697 = vmax.f32 %v649, 0.0
        %v698 = vmax.f32 %v652, 0.0
        %v699 = vmax.f32 %v657, 0.0
        %v700 = vmax.f32 %v660, 0.0
        %v701 = vmax.f32 %v665, 0.0
        %v702 = vmax.f32 %v668, 0.0
        %vm703 = vcmask 523264
        %704 = vst.msk [vmem:[#allocation2] sm:$0xff] %vm703, 0.0
        %vm705 = vcmask 516096
        %706 = vst.msk [vmem:[#allocation2 + $0x8] sm:$0x1] %vm705, 0.0
        %707 = vst.msk [vmem:[#allocation2 + $0x10] sm:$0xff] %vm703, 0.0
        %708 = vst.msk [vmem:[#allocation2 + $0x18] sm:$0x1] %vm705, 0.0
        %709 = vst.msk [vmem:[#allocation2 + $0x20] sm:$0xff] %vm703, 0.0
        %710 = vst.msk [vmem:[#allocation2 + $0x28] sm:$0x1] %vm705, 0.0
        %711 = vst.msk [vmem:[#allocation2 + $0x30] sm:$0xff] %vm703, 0.0
        %712 = vst.msk [vmem:[#allocation2 + $0x38] sm:$0x1] %vm705, 0.0
        %713 = vst.msk [vmem:[#allocation2 + $0x40] sm:$0xff] %vm703, 0.0
        %714 = vst.msk [vmem:[#allocation2 + $0x48] sm:$0x1] %vm705, 0.0
        %715 = vst.msk [vmem:[#allocation2 + $0x50] sm:$0xff] %vm703, 0.0
        %716 = vst.msk [vmem:[#allocation2 + $0x58] sm:$0x1] %vm705, 0.0
        %717 = vst.msk [vmem:[#allocation2 + $0x60] sm:$0xff] %vm703, 0.0
        %718 = vst.msk [vmem:[#allocation2 + $0x68] sm:$0x1] %vm705, 0.0
        %719 = vst.msk [vmem:[#allocation2 + $0x70] sm:$0xff] %vm703, 0.0
        %720 = vst.msk [vmem:[#allocation2 + $0x78] sm:$0x1] %vm705, 0.0
        %721 = vst.msk [vmem:[#allocation2 + $0x80] sm:$0xff] %vm703, 0.0
        %722 = vst.msk [vmem:[#allocation2 + $0x88] sm:$0x1] %vm705, 0.0
        %723 = vst.msk [vmem:[#allocation2 + $0x90] sm:$0xff] %vm703, 0.0
        %724 = vst.msk [vmem:[#allocation2 + $0x98] sm:$0x1] %vm705, 0.0
        %725 = vst.msk [vmem:[#allocation2 + $0xa0] sm:$0xff] %vm703, 0.0
        %726 = vst.msk [vmem:[#allocation2 + $0xa8] sm:$0x1] %vm705, 0.0
        %727 = vst.msk [vmem:[#allocation2 + $0xb0] sm:$0xff] %vm703, 0.0
        %728 = vst.msk [vmem:[#allocation2 + $0xb8] sm:$0x1] %vm705, 0.0
        %729 = vst.msk [vmem:[#allocation2 + $0xc0] sm:$0xff] %vm703, 0.0
        %730 = vst.msk [vmem:[#allocation2 + $0xc8] sm:$0x1] %vm705, 0.0
        %731 = vst.msk [vmem:[#allocation2 + $0xd0] sm:$0xff] %vm703, 0.0
        %732 = vst.msk [vmem:[#allocation2 + $0xd8] sm:$0x1] %vm705, 0.0
        %733 = vst.msk [vmem:[#allocation2 + $0xe0] sm:$0xff] %vm703, 0.0
        %734 = vst.msk [vmem:[#allocation2 + $0xe8] sm:$0x1] %vm705, 0.0
        %735 = vst.msk [vmem:[#allocation2 + $0xf0] sm:$0xff] %vm703, 0.0
        %736 = vst.msk [vmem:[#allocation2 + $0xf8] sm:$0x1] %vm705, 0.0
        %737 = vst.msk [vmem:[#allocation2 + $0x100] sm:$0xff] %vm703, 0.0
        %738 = vst.msk [vmem:[#allocation2 + $0x108] sm:$0x1] %vm705, 0.0
        %739 = vst.msk [vmem:[#allocation2 + $0x110] sm:$0xff] %vm703, 0.0
        %740 = vst.msk [vmem:[#allocation2 + $0x118] sm:$0x1] %vm705, 0.0
        %741 = vst.msk [vmem:[#allocation2 + $0x120] sm:$0xff] %vm703, 0.0
        %742 = vst.msk [vmem:[#allocation2 + $0x128] sm:$0x1] %vm705, 0.0
        %743 = vst.msk [vmem:[#allocation2 + $0x130] sm:$0xff] %vm703, 0.0
        %744 = vst.msk [vmem:[#allocation2 + $0x138] sm:$0x1] %vm705, 0.0
        %745 = vst.msk [vmem:[#allocation2 + $0x140] sm:$0xff] %vm703, 0.0
        %746 = vst.msk [vmem:[#allocation2 + $0x148] sm:$0x1] %vm705, 0.0
        %747 = vst.msk [vmem:[#allocation2 + $0x150] sm:$0xff] %vm703, 0.0
        %748 = vst.msk [vmem:[#allocation2 + $0x158] sm:$0x1] %vm705, 0.0
        %749 = vst.msk [vmem:[#allocation2 + $0x160] sm:$0xff] %vm703, 0.0
        %750 = vst.msk [vmem:[#allocation2 + $0x168] sm:$0x1] %vm705, 0.0
        %751 = vst.msk [vmem:[#allocation2 + $0x170] sm:$0xff] %vm703, 0.0
        %752 = vst.msk [vmem:[#allocation2 + $0x178] sm:$0x1] %vm705, 0.0
        %753 = vst.msk [vmem:[#allocation2 + $0x180] sm:$0xff] %vm703, 0.0
        %754 = vst.msk [vmem:[#allocation2 + $0x188] sm:$0x1] %vm705, 0.0
        %755 = vst.msk [vmem:[#allocation2 + $0x190] sm:$0xff] %vm703, 0.0
        %756 = vst.msk [vmem:[#allocation2 + $0x198] sm:$0x1] %vm705, 0.0
        %757 = vst.msk [vmem:[#allocation2 + $0x1a0] sm:$0xff] %vm703, 0.0
        %758 = vst.msk [vmem:[#allocation2 + $0x1a8] sm:$0x1] %vm705, 0.0
        %759 = vst.msk [vmem:[#allocation2 + $0x1b0] sm:$0xff] %vm703, 0.0
        %760 = vst.msk [vmem:[#allocation2 + $0x1b8] sm:$0x1] %vm705, 0.0
        %761 = vst.msk [vmem:[#allocation2 + $0x1c0] sm:$0xff] %vm703, 0.0
        %762 = vst.msk [vmem:[#allocation2 + $0x1c8] sm:$0x1] %vm705, 0.0
        %763 = vst.msk [vmem:[#allocation2 + $0x1d0] sm:$0xff] %vm703, 0.0
        %764 = vst.msk [vmem:[#allocation2 + $0x1d8] sm:$0x1] %vm705, 0.0
        %765 = vst.msk [vmem:[#allocation2 + $0x1e0] sm:$0xff] %vm703, 0.0
        %766 = vst.msk [vmem:[#allocation2 + $0x1e8] sm:$0x1] %vm705, 0.0
        %767 = vst.msk [vmem:[#allocation2 + $0x1f0] sm:$0xff] %vm703, 0.0
        %768 = vst.msk [vmem:[#allocation2 + $0x1f8] sm:$0x1] %vm705, 0.0
        %769 = vst.msk [vmem:[#allocation2 + $0x200] sm:$0xff] %vm703, 0.0
        %770 = vst.msk [vmem:[#allocation2 + $0x208] sm:$0x1] %vm705, 0.0
        %771 = vst.msk [vmem:[#allocation2 + $0x210] sm:$0xff] %vm703, 0.0
        %772 = vst.msk [vmem:[#allocation2 + $0x218] sm:$0x1] %vm705, 0.0
        %773 = vst.msk [vmem:[#allocation2 + $0x220] sm:$0xff] %vm703, 0.0
        %774 = vst.msk [vmem:[#allocation2 + $0x228] sm:$0x1] %vm705, 0.0
        %775 = vst.msk [vmem:[#allocation2 + $0x230] sm:$0xff] %vm703, 0.0
        %776 = vst.msk [vmem:[#allocation2 + $0x238] sm:$0x1] %vm705, 0.0
        %s777 = scalar_lea.vmem [#allocation2], 16
        %778 = vst.msk [vmem:[%s777 + $0x1] sm:$0xff] %vm703, %v671
        %779 = vst.msk [vmem:[%s777 + $0x11] sm:$0xff] %vm703, %v672
        %780 = vst.msk [vmem:[%s777 + $0x21] sm:$0xff] %vm703, %v673
        %781 = vst.msk [vmem:[%s777 + $0x31] sm:$0xff] %vm703, %v674
        %782 = vst.msk [vmem:[%s777 + $0x41] sm:$0xff] %vm703, %v675
        %783 = vst.msk [vmem:[%s777 + $0x51] sm:$0xff] %vm703, %v676
        %784 = vst.msk [vmem:[%s777 + $0x61] sm:$0xff] %vm703, %v677
        %785 = vst.msk [vmem:[%s777 + $0x71] sm:$0xff] %vm703, %v678
        %s786 = scalar_lea.vmem [#allocation2], 160
        %787 = vst.msk [vmem:[%s786 + $0x1] sm:$0xff] %vm703, %v679
        %788 = vst.msk [vmem:[%s786 + $0x11] sm:$0xff] %vm703, %v680
        %789 = vst.msk [vmem:[%s786 + $0x21] sm:$0xff] %vm703, %v681
        %790 = vst.msk [vmem:[%s786 + $0x31] sm:$0xff] %vm703, %v682
        %791 = vst.msk [vmem:[%s786 + $0x41] sm:$0xff] %vm703, %v683
        %792 = vst.msk [vmem:[%s786 + $0x51] sm:$0xff] %vm703, %v684
        %793 = vst.msk [vmem:[%s786 + $0x61] sm:$0xff] %vm703, %v685
        %794 = vst.msk [vmem:[%s786 + $0x71] sm:$0xff] %vm703, %v686
        %s795 = scalar_lea.vmem [#allocation2], 304
        %796 = vst.msk [vmem:[%s795 + $0x1] sm:$0xff] %vm703, %v687
        %797 = vst.msk [vmem:[%s795 + $0x11] sm:$0xff] %vm703, %v688
        %798 = vst.msk [vmem:[%s795 + $0x21] sm:$0xff] %vm703, %v689
        %799 = vst.msk [vmem:[%s795 + $0x31] sm:$0xff] %vm703, %v690
        %800 = vst.msk [vmem:[%s795 + $0x41] sm:$0xff] %vm703, %v691
        %801 = vst.msk [vmem:[%s795 + $0x51] sm:$0xff] %vm703, %v692
        %802 = vst.msk [vmem:[%s795 + $0x61] sm:$0xff] %vm703, %v693
        %803 = vst.msk [vmem:[%s795 + $0x71] sm:$0xff] %vm703, %v694
        %s804 = scalar_lea.vmem [#allocation2], 448
        %805 = vst.msk [vmem:[%s804 + $0x1] sm:$0xff] %vm703, %v695
        %806 = vst.msk [vmem:[%s804 + $0x11] sm:$0xff] %vm703, %v696
        %807 = vst.msk [vmem:[%s804 + $0x21] sm:$0xff] %vm703, %v697
        %808 = vst.msk [vmem:[%s804 + $0x31] sm:$0xff] %vm703, %v698
        %809 = vst.msk [vmem:[%s804 + $0x41] sm:$0xff] %vm703, %v699
        %810 = vst.msk [vmem:[%s804 + $0x51] sm:$0xff] %vm703, %v700
        %811 = vst.msk [vmem:[%s804 + $0x61] sm:$0xff] %vm703, %v701
        %812 = vst.msk [vmem:[%s804 + $0x71] sm:$0xff] %vm703, %v702
        %v813 = vld [vmem:[%s777 + $0x1] sm:$0xff]
        %v814 = vld [vmem:[%s777 + $0x11] sm:$0xff]
        %v815 = vld [vmem:[%s777 + $0x21] sm:$0xff]
        %v816 = vld [vmem:[%s777 + $0x31] sm:$0xff]
        %v817 = vld [vmem:[%s777 + $0x41] sm:$0xff]
        %v818 = vld [vmem:[%s777 + $0x51] sm:$0xff]
        %v819 = vld [vmem:[%s777 + $0x61] sm:$0xff]
        %v820 = vld [vmem:[%s777 + $0x71] sm:$0xff]
        %v821 = vld [vmem:[%s786 + $0x1] sm:$0xff]
        %v822 = vld [vmem:[%s786 + $0x11] sm:$0xff]
        %v823 = vld [vmem:[%s786 + $0x21] sm:$0xff]
        %v824 = vld [vmem:[%s786 + $0x31] sm:$0xff]
        %v825 = vld [vmem:[%s786 + $0x41] sm:$0xff]
        %v826 = vld [vmem:[%s786 + $0x51] sm:$0xff]
        %v827 = vld [vmem:[%s786 + $0x61] sm:$0xff]
        %v828 = vld [vmem:[%s786 + $0x71] sm:$0xff]
        %v829 = vmax.f32 %v813, %v821
        %v830 = vmax.f32 %v814, %v822
        %v831 = vmax.f32 %v815, %v823
        %v832 = vmax.f32 %v816, %v824
        %v833 = vmax.f32 %v817, %v825
        %v834 = vmax.f32 %v818, %v826
        %v835 = vmax.f32 %v819, %v827
        %v836 = vmax.f32 %v820, %v828
        %v837 = vld [vmem:[%s786] sm:$0xff]
        %v838 = vld [vmem:[%s786 + $0x10] sm:$0xff]
        %v839 = vld [vmem:[%s786 + $0x20] sm:$0xff]
        %v840 = vld [vmem:[%s786 + $0x30] sm:$0xff]
        %v841 = vld [vmem:[%s786 + $0x40] sm:$0xff]
        %v842 = vld [vmem:[%s786 + $0x50] sm:$0xff]
        %v843 = vld [vmem:[%s786 + $0x60] sm:$0xff]
        %v844 = vld [vmem:[%s786 + $0x70] sm:$0xff]
        %v845 = vmax.f32 %v829, %v837
        %v846 = vmax.f32 %v830, %v838
        %v847 = vmax.f32 %v831, %v839
        %v848 = vmax.f32 %v832, %v840
        %v849 = vmax.f32 %v833, %v841
        %v850 = vmax.f32 %v834, %v842
        %v851 = vmax.f32 %v835, %v843
        %v852 = vmax.f32 %v836, %v844
        %v853 = vld [vmem:[%s795 + $0x1] sm:$0xff]
        %v854 = vld [vmem:[%s795 + $0x11] sm:$0xff]
        %v855 = vld [vmem:[%s795 + $0x21] sm:$0xff]
        %v856 = vld [vmem:[%s795 + $0x31] sm:$0xff]
        %v857 = vld [vmem:[%s795 + $0x41] sm:$0xff]
        %v858 = vld [vmem:[%s795 + $0x51] sm:$0xff]
        %v859 = vld [vmem:[%s795 + $0x61] sm:$0xff]
        %v860 = vld [vmem:[%s795 + $0x71] sm:$0xff]
        %v861 = vmax.f32 %v845, %v853
        %v862 = vmax.f32 %v846, %v854
        %v863 = vmax.f32 %v847, %v855
        %v864 = vmax.f32 %v848, %v856
        %v865 = vmax.f32 %v849, %v857
        %v866 = vmax.f32 %v850, %v858
        %v867 = vmax.f32 %v851, %v859
        %v868 = vmax.f32 %v852, %v860
        %v869 = vld [vmem:[%s804 + $0x1] sm:$0xff]
        %v870 = vld [vmem:[%s804 + $0x11] sm:$0xff]
        %v871 = vld [vmem:[%s804 + $0x21] sm:$0xff]
        %v872 = vld [vmem:[%s804 + $0x31] sm:$0xff]
        %v873 = vld [vmem:[%s804 + $0x41] sm:$0xff]
        %v874 = vld [vmem:[%s804 + $0x51] sm:$0xff]
        %v875 = vld [vmem:[%s804 + $0x61] sm:$0xff]
        %v876 = vld [vmem:[%s804 + $0x71] sm:$0xff]
        %v877 = vmax.f32 %v861, %v869
        %v878 = vmax.f32 %v862, %v870
        %v879 = vmax.f32 %v863, %v871
        %v880 = vmax.f32 %v864, %v872
        %v881 = vmax.f32 %v865, %v873
        %v882 = vmax.f32 %v866, %v874
        %v883 = vmax.f32 %v867, %v875
        %v884 = vmax.f32 %v868, %v876
        %v885 = vld [vmem:[%s804] sm:$0xff]
        %v886 = vld [vmem:[%s804 + $0x10] sm:$0xff]
        %v887 = vld [vmem:[%s804 + $0x20] sm:$0xff]
        %v888 = vld [vmem:[%s804 + $0x30] sm:$0xff]
        %v889 = vld [vmem:[%s804 + $0x40] sm:$0xff]
        %v890 = vld [vmem:[%s804 + $0x50] sm:$0xff]
        %v891 = vld [vmem:[%s804 + $0x60] sm:$0xff]
        %v892 = vld [vmem:[%s804 + $0x70] sm:$0xff]
        %v893 = vmax.f32 %v877, %v885
        %v894 = vmax.f32 %v878, %v886
        %v895 = vmax.f32 %v879, %v887
        %v896 = vmax.f32 %v880, %v888
        %v897 = vmax.f32 %v881, %v889
        %v898 = vmax.f32 %v882, %v890
        %v899 = vmax.f32 %v883, %v891
        %v900 = vmax.f32 %v884, %v892
        %s901 = scalar_lea.vmem [#allocation2], 288
        %v902 = vld [vmem:[%s901 + $0x1] sm:$0xff]
        %v903 = vld [vmem:[%s901 + $0x11] sm:$0xff]
        %v904 = vld [vmem:[%s901 + $0x21] sm:$0xff]
        %v905 = vld [vmem:[%s901 + $0x31] sm:$0xff]
        %v906 = vld [vmem:[%s901 + $0x41] sm:$0xff]
        %v907 = vld [vmem:[%s901 + $0x51] sm:$0xff]
        %v908 = vld [vmem:[%s901 + $0x61] sm:$0xff]
        %v909 = vld [vmem:[%s901 + $0x71] sm:$0xff]
        %v910 = vmax.f32 %v893, %v902
        %v911 = vmax.f32 %v894, %v903
        %v912 = vmax.f32 %v895, %v904
        %v913 = vmax.f32 %v896, %v905
        %v914 = vmax.f32 %v897, %v906
        %v915 = vmax.f32 %v898, %v907
        %v916 = vmax.f32 %v899, %v908
        %v917 = vmax.f32 %v900, %v909
        %s918 = scalar_lea.vmem [#allocation2], 432
        %v919 = vld [vmem:[%s918 + $0x1] sm:$0xff]
        %v920 = vld [vmem:[%s918 + $0x11] sm:$0xff]
        %v921 = vld [vmem:[%s918 + $0x21] sm:$0xff]
        %v922 = vld [vmem:[%s918 + $0x31] sm:$0xff]
        %v923 = vld [vmem:[%s918 + $0x41] sm:$0xff]
        %v924 = vld [vmem:[%s918 + $0x51] sm:$0xff]
        %v925 = vld [vmem:[%s918 + $0x61] sm:$0xff]
        %v926 = vld [vmem:[%s918 + $0x71] sm:$0xff]
        %v927 = vmax.f32 %v910, %v919
        %v928 = vmax.f32 %v911, %v920
        %v929 = vmax.f32 %v912, %v921
        %v930 = vmax.f32 %v913, %v922
        %v931 = vmax.f32 %v914, %v923
        %v932 = vmax.f32 %v915, %v924
        %v933 = vmax.f32 %v916, %v925
        %v934 = vmax.f32 %v917, %v926
        %v935 = vld [vmem:[%s918] sm:$0xff]
        %v936 = vld [vmem:[%s918 + $0x10] sm:$0xff]
        %v937 = vld [vmem:[%s918 + $0x20] sm:$0xff]
        %v938 = vld [vmem:[%s918 + $0x30] sm:$0xff]
        %v939 = vld [vmem:[%s918 + $0x40] sm:$0xff]
        %v940 = vld [vmem:[%s918 + $0x50] sm:$0xff]
        %v941 = vld [vmem:[%s918 + $0x60] sm:$0xff]
        %v942 = vld [vmem:[%s918 + $0x70] sm:$0xff]
        %v943 = vmax.f32 %v927, %v935
        %v944 = vmax.f32 %v928, %v936
        %v945 = vmax.f32 %v929, %v937
        %v946 = vmax.f32 %v930, %v938
        %v947 = vmax.f32 %v931, %v939
        %v948 = vmax.f32 %v932, %v940
        %v949 = vmax.f32 %v933, %v941
        %v950 = vmax.f32 %v934, %v942
        %951 = vst.msk [vmem:[#allocation3] sm:$0xff] %vm703, 0.0
        %vm952 = vcmask 517120
        %953 = vst.msk [vmem:[#allocation3 + $0x8] sm:$0x3] %vm952, 0.0
        %954 = vst.msk [vmem:[#allocation3 + $0x10] sm:$0xff] %vm703, 0.0
        %955 = vst.msk [vmem:[#allocation3 + $0x18] sm:$0x3] %vm952, 0.0
        %956 = vst.msk [vmem:[#allocation3 + $0x20] sm:$0xff] %vm703, 0.0
        %957 = vst.msk [vmem:[#allocation3 + $0x28] sm:$0x3] %vm952, 0.0
        %958 = vst.msk [vmem:[#allocation3 + $0x30] sm:$0xff] %vm703, 0.0
        %959 = vst.msk [vmem:[#allocation3 + $0x38] sm:$0x3] %vm952, 0.0
        %960 = vst.msk [vmem:[#allocation3 + $0x40] sm:$0xff] %vm703, 0.0
        %961 = vst.msk [vmem:[#allocation3 + $0x48] sm:$0x3] %vm952, 0.0
        %962 = vst.msk [vmem:[#allocation3 + $0x50] sm:$0xff] %vm703, 0.0
        %963 = vst.msk [vmem:[#allocation3 + $0x58] sm:$0x3] %vm952, 0.0
        %964 = vst.msk [vmem:[#allocation3 + $0x60] sm:$0xff] %vm703, 0.0
        %965 = vst.msk [vmem:[#allocation3 + $0x68] sm:$0x3] %vm952, 0.0
        %966 = vst.msk [vmem:[#allocation3 + $0x70] sm:$0xff] %vm703, 0.0
        %967 = vst.msk [vmem:[#allocation3 + $0x78] sm:$0x3] %vm952, 0.0
        %968 = vst.msk [vmem:[#allocation3 + $0x80] sm:$0xff] %vm703, 0.0
        %969 = vst.msk [vmem:[#allocation3 + $0x88] sm:$0x3] %vm952, 0.0
        %970 = vst.msk [vmem:[#allocation3 + $0x90] sm:$0xff] %vm703, 0.0
        %971 = vst.msk [vmem:[#allocation3 + $0x98] sm:$0x3] %vm952, 0.0
        %972 = vst.msk [vmem:[#allocation4] sm:$0xff] %vm703, 0.0
        %973 = vst.msk [vmem:[#allocation4 + $0x8] sm:$0x3] %vm952, 0.0
        %974 = vst.msk [vmem:[#allocation4 + $0x10] sm:$0xff] %vm703, 0.0
        %975 = vst.msk [vmem:[#allocation4 + $0x18] sm:$0x3] %vm952, 0.0
        %976 = vst.msk [vmem:[#allocation4 + $0x20] sm:$0xff] %vm703, 0.0
        %977 = vst.msk [vmem:[#allocation4 + $0x28] sm:$0x3] %vm952, 0.0
        %978 = vst.msk [vmem:[#allocation4 + $0x30] sm:$0xff] %vm703, 0.0
        %979 = vst.msk [vmem:[#allocation4 + $0x38] sm:$0x3] %vm952, 0.0
        %980 = vst.msk [vmem:[#allocation4 + $0x40] sm:$0xff] %vm703, 0.0
        %981 = vst.msk [vmem:[#allocation4 + $0x48] sm:$0x3] %vm952, 0.0
        %982 = vst.msk [vmem:[#allocation4 + $0x50] sm:$0xff] %vm703, 0.0
        %983 = vst.msk [vmem:[#allocation4 + $0x58] sm:$0x3] %vm952, 0.0
        %984 = vst.msk [vmem:[#allocation4 + $0x60] sm:$0xff] %vm703, 0.0
        %985 = vst.msk [vmem:[#allocation4 + $0x68] sm:$0x3] %vm952, 0.0
        %986 = vst.msk [vmem:[#allocation4 + $0x70] sm:$0xff] %vm703, 0.0
        %987 = vst.msk [vmem:[#allocation4 + $0x78] sm:$0x3] %vm952, 0.0
        %988 = vst.msk [vmem:[#allocation4 + $0x80] sm:$0xff] %vm703, 0.0
        %989 = vst.msk [vmem:[#allocation4 + $0x88] sm:$0x3] %vm952, 0.0
        %990 = vst.msk [vmem:[#allocation4 + $0x90] sm:$0xff] %vm703, 0.0
        %991 = vst.msk [vmem:[#allocation4 + $0x98] sm:$0x3] %vm952, 0.0
        %s992 = scalar_lea.vmem [#allocation3], 16
        %993 = vst.msk [vmem:[%s992 + $0x1] sm:$0xff] %vm703, %v943
        %994 = vst.msk [vmem:[%s992 + $0x11] sm:$0xff] %vm703, %v944
        %995 = vst.msk [vmem:[%s992 + $0x21] sm:$0xff] %vm703, %v945
        %996 = vst.msk [vmem:[%s992 + $0x31] sm:$0xff] %vm703, %v946
        %997 = vst.msk [vmem:[%s992 + $0x41] sm:$0xff] %vm703, %v947
        %998 = vst.msk [vmem:[%s992 + $0x51] sm:$0xff] %vm703, %v948
        %999 = vst.msk [vmem:[%s992 + $0x61] sm:$0xff] %vm703, %v949
        %1000 = vst.msk [vmem:[%s992 + $0x71] sm:$0xff] %vm703, %v950
        %v1001 = vld [vmem:[#allocation3] sm:$0xff]
        %v1002 = vld [vmem:[#allocation3 + $0x10] sm:$0xff]
        %v1003 = vld [vmem:[#allocation3 + $0x20] sm:$0xff]
        %v1004 = vld [vmem:[#allocation3 + $0x30] sm:$0xff]
        %v1005 = vld [vmem:[#allocation3 + $0x40] sm:$0xff]
        %v1006 = vld [vmem:[#allocation3 + $0x50] sm:$0xff]
        %v1007 = vld [vmem:[#allocation3 + $0x60] sm:$0xff]
        %v1008 = vld [vmem:[#allocation3 + $0x70] sm:$0xff]
        %v1009 = vpack.c.bf16 %v1002, %v1001
        %v1010 = vpack.c.bf16 %v1004, %v1003
        %v1011 = vpack.c.bf16 %v1006, %v1005
        %v1012 = vpack.c.bf16 %v1008, %v1007
        %v1013 = vld [vmem:[%s2] sm:$0xf]
        %v1014 = vld [vmem:[%s2 + $0x4] sm:$0xf]
        %v1015 = vld [vmem:[%s2 + $0x8] sm:$0xf]
        %v1016 = vld [vmem:[%s2 + $0xc] sm:$0xf]
        %v1017 = vld [vmem:[%s2 + $0x10] sm:$0xf]
        %v1018 = vld [vmem:[%s2 + $0x14] sm:$0xf]
        %v1019 = vld [vmem:[%s2 + $0x18] sm:$0xf]
        %v1020 = vld [vmem:[%s2 + $0x1c] sm:$0xf]
        %v1021 = vld [vmem:[#allocation3 + $0x1] sm:$0xff]
        %v1022 = vld [vmem:[#allocation3 + $0x11] sm:$0xff]
        %v1023 = vld [vmem:[#allocation3 + $0x21] sm:$0xff]
        %v1024 = vld [vmem:[#allocation3 + $0x31] sm:$0xff]
        %v1025 = vld [vmem:[#allocation3 + $0x41] sm:$0xff]
        %v1026 = vld [vmem:[#allocation3 + $0x51] sm:$0xff]
        %v1027 = vld [vmem:[#allocation3 + $0x61] sm:$0xff]
        %v1028 = vld [vmem:[#allocation3 + $0x71] sm:$0xff]
        %v1029 = vpack.c.bf16 %v1022, %v1021
        %v1030 = vpack.c.bf16 %v1024, %v1023
        %v1031 = vpack.c.bf16 %v1026, %v1025
        %v1032 = vpack.c.bf16 %v1028, %v1027
        %s1033 = scalar_lea.vmem %s2, 32
        %v1034 = vld [vmem:[%s1033] sm:$0xf]
        %v1035 = vld [vmem:[%s1033 + $0x4] sm:$0xf]
        %v1036 = vld [vmem:[%s1033 + $0x8] sm:$0xf]
        %v1037 = vld [vmem:[%s1033 + $0xc] sm:$0xf]
        %v1038 = vld [vmem:[%s1033 + $0x10] sm:$0xf]
        %v1039 = vld [vmem:[%s1033 + $0x14] sm:$0xf]
        %v1040 = vld [vmem:[%s1033 + $0x18] sm:$0xf]
        %v1041 = vld [vmem:[%s1033 + $0x1c] sm:$0xf]
        %v1050 = vunpack.c.l.b16 %v1034
        %v1051 = vunpack.c.l.b16 %v1035
        %v1052 = vunpack.c.l.b16 %v1036
        %v1053 = vunpack.c.l.b16 %v1037
        %v1054 = vunpack.c.l.b16 %v1038
        %v1055 = vunpack.c.l.b16 %v1039
        %v1056 = vunpack.c.l.b16 %v1040
        %v1057 = vunpack.c.l.b16 %v1041
        %v1058 = vpack.c.b16 %v1051, %v1050
        %v1059 = vpack.c.b16 %v1053, %v1052
        %v1060 = vpack.c.b16 %v1055, %v1054
        %v1061 = vpack.c.b16 %v1057, %v1056
        %v1067 = vsel %vm703, %v1029, 0
        %v1070 = vsel %vm703, %v1030, 0
        %v1073 = vsel %vm703, %v1031, 0
        %v1076 = vsel %vm703, %v1032, 0
        %1078 = vmatprep.subr.bf16.mxu0 0
        %1079 = vmatpush1.bf16.msra.mxu0 0
        %1080 = vmatprep.subr.bf16.mxu0 0
        %1081 = vmatpush1.bf16.msra.mxu0 0
        %1082 = vmatprep.subr.bf16.mxu0 0
        %1083 = vmatpush1.bf16.msra.mxu0 0
        %1084 = vmatprep.subr.bf16.mxu0 0
        %1085 = vmatpush1.bf16.msra.mxu0 0
        %1086 = vmatprep.subr.bf16.mxu0 0
        %1087 = vmatpush1.bf16.msra.mxu0 %v1061
        %1088 = vmatprep.subr.bf16.mxu0 0
        %1089 = vmatpush1.bf16.msra.mxu0 %v1060
        %1090 = vmatprep.subr.bf16.mxu0 0
        %1091 = vmatpush1.bf16.msra.mxu0 %v1059
        %1092 = vmatprep.subr.bf16.mxu0 0
        %1093 = vmatpush1.bf16.msra.mxu0 %v1058
        %1094 = vmatprep.subr.bf16.mxu0 0
        %1095 = vmatpush2.bf16.msra.mxu0 0
        %1096 = vmatprep.subr.bf16.mxu0 0
        %1097 = vmatpush2.bf16.msra.mxu0 0
        %1098 = vmatprep.subr.bf16.mxu0 0
        %1099 = vmatpush2.bf16.msra.mxu0 0
        %1100 = vmatprep.subr.bf16.mxu0 0
        %1101 = vmatpush2.bf16.msra.mxu0 0
        %1102 = vmatprep.subr.bf16.mxu0 0
        %1103 = vmatpush2.bf16.msra.mxu0 0
        %1104 = vmatprep.subr.bf16.mxu0 0
        %1105 = vmatpush2.bf16.msra.mxu0 0
        %1106 = vmatprep.subr.bf16.mxu0 0
        %1107 = vmatpush2.bf16.msra.mxu0 0
        %1108 = vmatprep.subr.bf16.mxu0 0
        %1109 = vmatpush2.bf16.msra.mxu0 0
        %1110 = vmatprep.mubr.bf16.mxu0 0
        %1111 = vmatmul.mubr.bf16.gmra.mxu0 %v1067
        %v1112 = vpop.f32.mrf.mxu0
        %v1113 = vadd.f32 0.0, %v1112
        %v1114 = vpop.f32.mrf.mxu0
        %v1115 = vpop.f32.mrf.mxu0
        %v1116 = vadd.f32 0.0, %v1115
        %v1117 = vpop.f32.mrf.mxu0
        %1118 = vmatprep.mubr.bf16.mxu0 0
        %1119 = vmatmul.mubr.bf16.gmra.mxu0 %v1070
        %v1120 = vpop.f32.mrf.mxu0
        %v1121 = vadd.f32 0.0, %v1120
        %v1122 = vpop.f32.mrf.mxu0
        %v1123 = vpop.f32.mrf.mxu0
        %v1124 = vadd.f32 0.0, %v1123
        %v1125 = vpop.f32.mrf.mxu0
        %1126 = vmatprep.mubr.bf16.mxu0 0
        %1127 = vmatmul.mubr.bf16.gmra.mxu0 %v1073
        %v1128 = vpop.f32.mrf.mxu0
        %v1129 = vadd.f32 0.0, %v1128
        %v1130 = vpop.f32.mrf.mxu0
        %v1131 = vpop.f32.mrf.mxu0
        %v1132 = vadd.f32 0.0, %v1131
        %v1133 = vpop.f32.mrf.mxu0
        %1134 = vmatprep.mubr.bf16.mxu0 0
        %1135 = vmatmul.mubr.bf16.gmra.mxu0 %v1076
        %v1136 = vpop.f32.mrf.mxu0
        %v1137 = vadd.f32 0.0, %v1136
        %v1138 = vpop.f32.mrf.mxu0
        %v1139 = vpop.f32.mrf.mxu0
        %v1140 = vadd.f32 0.0, %v1139
        %v1141 = vpop.f32.mrf.mxu0
        %1142 = vdwg.mxu0
        %v1151 = vunpack.c.l.b16 %v1013
        %v1152 = vunpack.c.l.b16 %v1014
        %v1153 = vunpack.c.l.b16 %v1015
        %v1154 = vunpack.c.l.b16 %v1016
        %v1155 = vunpack.c.l.b16 %v1017
        %v1156 = vunpack.c.l.b16 %v1018
        %v1157 = vunpack.c.l.b16 %v1019
        %v1158 = vunpack.c.l.b16 %v1020
        %v1159 = vpack.c.b16 %v1152, %v1151
        %v1160 = vpack.c.b16 %v1154, %v1153
        %v1161 = vpack.c.b16 %v1156, %v1155
        %v1162 = vpack.c.b16 %v1158, %v1157
        %v1168 = vsel %vm703, %v1009, 0
        %v1171 = vsel %vm703, %v1010, 0
        %v1174 = vsel %vm703, %v1011, 0
        %v1177 = vsel %vm703, %v1012, 0
        %1179 = vmatprep.subr.bf16.mxu0 0
        %1180 = vmatpush1.bf16.msra.mxu0 0
        %1181 = vmatprep.subr.bf16.mxu0 0
        %1182 = vmatpush1.bf16.msra.mxu0 0
        %1183 = vmatprep.subr.bf16.mxu0 0
        %1184 = vmatpush1.bf16.msra.mxu0 0
        %1185 = vmatprep.subr.bf16.mxu0 0
        %1186 = vmatpush1.bf16.msra.mxu0 0
        %1187 = vmatprep.subr.bf16.mxu0 0
        %1188 = vmatpush1.bf16.msra.mxu0 %v1162
        %1189 = vmatprep.subr.bf16.mxu0 0
        %1190 = vmatpush1.bf16.msra.mxu0 %v1161
        %1191 = vmatprep.subr.bf16.mxu0 0
        %1192 = vmatpush1.bf16.msra.mxu0 %v1160
        %1193 = vmatprep.subr.bf16.mxu0 0
        %1194 = vmatpush1.bf16.msra.mxu0 %v1159
        %1195 = vmatprep.subr.bf16.mxu0 0
        %1196 = vmatpush2.bf16.msra.mxu0 0
        %1197 = vmatprep.subr.bf16.mxu0 0
        %1198 = vmatpush2.bf16.msra.mxu0 0
        %1199 = vmatprep.subr.bf16.mxu0 0
        %1200 = vmatpush2.bf16.msra.mxu0 0
        %1201 = vmatprep.subr.bf16.mxu0 0
        %1202 = vmatpush2.bf16.msra.mxu0 0
        %1203 = vmatprep.subr.bf16.mxu0 0
        %1204 = vmatpush2.bf16.msra.mxu0 0
        %1205 = vmatprep.subr.bf16.mxu0 0
        %1206 = vmatpush2.bf16.msra.mxu0 0
        %1207 = vmatprep.subr.bf16.mxu0 0
        %1208 = vmatpush2.bf16.msra.mxu0 0
        %1209 = vmatprep.subr.bf16.mxu0 0
        %1210 = vmatpush2.bf16.msra.mxu0 0
        %1211 = vmatprep.mubr.bf16.mxu0 0
        %1212 = vmatmul.mubr.bf16.gmra.mxu0 %v1168
        %v1213 = vpop.f32.mrf.mxu0
        %v1214 = vadd.f32 %v1113, %v1213
        %v1215 = vpop.f32.mrf.mxu0
        %v1216 = vpop.f32.mrf.mxu0
        %v1217 = vadd.f32 %v1116, %v1216
        %v1218 = vpop.f32.mrf.mxu0
        %1219 = vmatprep.mubr.bf16.mxu0 0
        %1220 = vmatmul.mubr.bf16.gmra.mxu0 %v1171
        %v1221 = vpop.f32.mrf.mxu0
        %v1222 = vadd.f32 %v1121, %v1221
        %v1223 = vpop.f32.mrf.mxu0
        %v1224 = vpop.f32.mrf.mxu0
        %v1225 = vadd.f32 %v1124, %v1224
        %v1226 = vpop.f32.mrf.mxu0
        %1227 = vmatprep.mubr.bf16.mxu0 0
        %1228 = vmatmul.mubr.bf16.gmra.mxu0 %v1174
        %v1229 = vpop.f32.mrf.mxu0
        %v1230 = vadd.f32 %v1129, %v1229
        %v1231 = vpop.f32.mrf.mxu0
        %v1232 = vpop.f32.mrf.mxu0
        %v1233 = vadd.f32 %v1132, %v1232
        %v1234 = vpop.f32.mrf.mxu0
        %1235 = vmatprep.mubr.bf16.mxu0 0
        %1236 = vmatmul.mubr.bf16.gmra.mxu0 %v1177
        %v1237 = vpop.f32.mrf.mxu0
        %v1238 = vadd.f32 %v1137, %v1237
        %v1239 = vpop.f32.mrf.mxu0
        %v1240 = vpop.f32.mrf.mxu0
        %v1241 = vadd.f32 %v1140, %v1240
        %v1242 = vpop.f32.mrf.mxu0
        %1243 = vdwg.mxu0
        %v1244 = vld [vmem:[#allocation3 + $0x2] sm:$0xff]
        %v1245 = vld [vmem:[#allocation3 + $0x12] sm:$0xff]
        %v1246 = vld [vmem:[#allocation3 + $0x22] sm:$0xff]
        %v1247 = vld [vmem:[#allocation3 + $0x32] sm:$0xff]
        %v1248 = vld [vmem:[#allocation3 + $0x42] sm:$0xff]
        %v1249 = vld [vmem:[#allocation3 + $0x52] sm:$0xff]
        %v1250 = vld [vmem:[#allocation3 + $0x62] sm:$0xff]
        %v1251 = vld [vmem:[#allocation3 + $0x72] sm:$0xff]
        %v1252 = vpack.c.bf16 %v1245, %v1244
        %v1253 = vpack.c.bf16 %v1247, %v1246
        %v1254 = vpack.c.bf16 %v1249, %v1248
        %v1255 = vpack.c.bf16 %v1251, %v1250
        %s1256 = scalar_lea.vmem %s2, 64
        %v1257 = vld [vmem:[%s1256] sm:$0xf]
        %v1258 = vld [vmem:[%s1256 + $0x4] sm:$0xf]
        %v1259 = vld [vmem:[%s1256 + $0x8] sm:$0xf]
        %v1260 = vld [vmem:[%s1256 + $0xc] sm:$0xf]
        %v1261 = vld [vmem:[%s1256 + $0x10] sm:$0xf]
        %v1262 = vld [vmem:[%s1256 + $0x14] sm:$0xf]
        %v1263 = vld [vmem:[%s1256 + $0x18] sm:$0xf]
        %v1264 = vld [vmem:[%s1256 + $0x1c] sm:$0xf]
        %v1273 = vunpack.c.l.b16 %v1257
        %v1274 = vunpack.c.l.b16 %v1258
        %v1275 = vunpack.c.l.b16 %v1259
        %v1276 = vunpack.c.l.b16 %v1260
        %v1277 = vunpack.c.l.b16 %v1261
        %v1278 = vunpack.c.l.b16 %v1262
        %v1279 = vunpack.c.l.b16 %v1263
        %v1280 = vunpack.c.l.b16 %v1264
        %v1281 = vpack.c.b16 %v1274, %v1273
        %v1282 = vpack.c.b16 %v1276, %v1275
        %v1283 = vpack.c.b16 %v1278, %v1277
        %v1284 = vpack.c.b16 %v1280, %v1279
        %v1290 = vsel %vm703, %v1252, 0
        %v1293 = vsel %vm703, %v1253, 0
        %v1296 = vsel %vm703, %v1254, 0
        %v1299 = vsel %vm703, %v1255, 0
        %1301 = vmatprep.subr.bf16.mxu0 0
        %1302 = vmatpush1.bf16.msra.mxu0 0
        %1303 = vmatprep.subr.bf16.mxu0 0
        %1304 = vmatpush1.bf16.msra.mxu0 0
        %1305 = vmatprep.subr.bf16.mxu0 0
        %1306 = vmatpush1.bf16.msra.mxu0 0
        %1307 = vmatprep.subr.bf16.mxu0 0
        %1308 = vmatpush1.bf16.msra.mxu0 0
        %1309 = vmatprep.subr.bf16.mxu0 0
        %1310 = vmatpush1.bf16.msra.mxu0 %v1284
        %1311 = vmatprep.subr.bf16.mxu0 0
        %1312 = vmatpush1.bf16.msra.mxu0 %v1283
        %1313 = vmatprep.subr.bf16.mxu0 0
        %1314 = vmatpush1.bf16.msra.mxu0 %v1282
        %1315 = vmatprep.subr.bf16.mxu0 0
        %1316 = vmatpush1.bf16.msra.mxu0 %v1281
        %1317 = vmatprep.subr.bf16.mxu0 0
        %1318 = vmatpush2.bf16.msra.mxu0 0
        %1319 = vmatprep.subr.bf16.mxu0 0
        %1320 = vmatpush2.bf16.msra.mxu0 0
        %1321 = vmatprep.subr.bf16.mxu0 0
        %1322 = vmatpush2.bf16.msra.mxu0 0
        %1323 = vmatprep.subr.bf16.mxu0 0
        %1324 = vmatpush2.bf16.msra.mxu0 0
        %1325 = vmatprep.subr.bf16.mxu0 0
        %1326 = vmatpush2.bf16.msra.mxu0 0
        %1327 = vmatprep.subr.bf16.mxu0 0
        %1328 = vmatpush2.bf16.msra.mxu0 0
        %1329 = vmatprep.subr.bf16.mxu0 0
        %1330 = vmatpush2.bf16.msra.mxu0 0
        %1331 = vmatprep.subr.bf16.mxu0 0
        %1332 = vmatpush2.bf16.msra.mxu0 0
        %1333 = vmatprep.mubr.bf16.mxu0 0
        %1334 = vmatmul.mubr.bf16.gmra.mxu0 %v1290
        %v1335 = vpop.f32.mrf.mxu0
        %v1336 = vadd.f32 0.0, %v1335
        %v1337 = vpop.f32.mrf.mxu0
        %v1338 = vpop.f32.mrf.mxu0
        %v1339 = vadd.f32 0.0, %v1338
        %v1340 = vpop.f32.mrf.mxu0
        %1341 = vmatprep.mubr.bf16.mxu0 0
        %1342 = vmatmul.mubr.bf16.gmra.mxu0 %v1293
        %v1343 = vpop.f32.mrf.mxu0
        %v1344 = vadd.f32 0.0, %v1343
        %v1345 = vpop.f32.mrf.mxu0
        %v1346 = vpop.f32.mrf.mxu0
        %v1347 = vadd.f32 0.0, %v1346
        %v1348 = vpop.f32.mrf.mxu0
        %1349 = vmatprep.mubr.bf16.mxu0 0
        %1350 = vmatmul.mubr.bf16.gmra.mxu0 %v1296
        %v1351 = vpop.f32.mrf.mxu0
        %v1352 = vadd.f32 0.0, %v1351
        %v1353 = vpop.f32.mrf.mxu0
        %v1354 = vpop.f32.mrf.mxu0
        %v1355 = vadd.f32 0.0, %v1354
        %v1356 = vpop.f32.mrf.mxu0
        %1357 = vmatprep.mubr.bf16.mxu0 0
        %1358 = vmatmul.mubr.bf16.gmra.mxu0 %v1299
        %v1359 = vpop.f32.mrf.mxu0
        %v1360 = vadd.f32 0.0, %v1359
        %v1361 = vpop.f32.mrf.mxu0
        %v1362 = vpop.f32.mrf.mxu0
        %v1363 = vadd.f32 0.0, %v1362
        %v1364 = vpop.f32.mrf.mxu0
        %1365 = vdwg.mxu0
        %v1366 = vadd.f32 %v1214, %v1336
        %v1367 = vadd.f32 %v1217, %v1339
        %v1368 = vadd.f32 %v1222, %v1344
        %v1369 = vadd.f32 %v1225, %v1347
        %v1370 = vadd.f32 %v1230, %v1352
        %v1371 = vadd.f32 %v1233, %v1355
        %v1372 = vadd.f32 %v1238, %v1360
        %v1373 = vadd.f32 %v1241, %v1363
        %v1374 = vld [vmem:[%s992] sm:$0xff]
        %v1375 = vld [vmem:[%s992 + $0x10] sm:$0xff]
        %v1376 = vld [vmem:[%s992 + $0x20] sm:$0xff]
        %v1377 = vld [vmem:[%s992 + $0x30] sm:$0xff]
        %v1378 = vld [vmem:[%s992 + $0x40] sm:$0xff]
        %v1379 = vld [vmem:[%s992 + $0x50] sm:$0xff]
        %v1380 = vld [vmem:[%s992 + $0x60] sm:$0xff]
        %v1381 = vld [vmem:[%s992 + $0x70] sm:$0xff]
        %v1382 = vpack.c.bf16 %v1375, %v1374
        %v1383 = vpack.c.bf16 %v1377, %v1376
        %v1384 = vpack.c.bf16 %v1379, %v1378
        %v1385 = vpack.c.bf16 %v1381, %v1380
        %s1386 = scalar_lea.vmem %s2, 96
        %v1387 = vld [vmem:[%s1386] sm:$0xf]
        %v1388 = vld [vmem:[%s1386 + $0x4] sm:$0xf]
        %v1389 = vld [vmem:[%s1386 + $0x8] sm:$0xf]
        %v1390 = vld [vmem:[%s1386 + $0xc] sm:$0xf]
        %v1391 = vld [vmem:[%s1386 + $0x10] sm:$0xf]
        %v1392 = vld [vmem:[%s1386 + $0x14] sm:$0xf]
        %v1393 = vld [vmem:[%s1386 + $0x18] sm:$0xf]
        %v1394 = vld [vmem:[%s1386 + $0x1c] sm:$0xf]
        %v1403 = vunpack.c.l.b16 %v1387
        %v1404 = vunpack.c.l.b16 %v1388
        %v1405 = vunpack.c.l.b16 %v1389
        %v1406 = vunpack.c.l.b16 %v1390
        %v1407 = vunpack.c.l.b16 %v1391
        %v1408 = vunpack.c.l.b16 %v1392
        %v1409 = vunpack.c.l.b16 %v1393
        %v1410 = vunpack.c.l.b16 %v1394
        %v1411 = vpack.c.b16 %v1404, %v1403
        %v1412 = vpack.c.b16 %v1406, %v1405
        %v1413 = vpack.c.b16 %v1408, %v1407
        %v1414 = vpack.c.b16 %v1410, %v1409
        %v1420 = vsel %vm703, %v1382, 0
        %v1423 = vsel %vm703, %v1383, 0
        %v1426 = vsel %vm703, %v1384, 0
        %v1429 = vsel %vm703, %v1385, 0
        %1431 = vmatprep.subr.bf16.mxu0 0
        %1432 = vmatpush1.bf16.msra.mxu0 0
        %1433 = vmatprep.subr.bf16.mxu0 0
        %1434 = vmatpush1.bf16.msra.mxu0 0
        %1435 = vmatprep.subr.bf16.mxu0 0
        %1436 = vmatpush1.bf16.msra.mxu0 0
        %1437 = vmatprep.subr.bf16.mxu0 0
        %1438 = vmatpush1.bf16.msra.mxu0 0
        %1439 = vmatprep.subr.bf16.mxu0 0
        %1440 = vmatpush1.bf16.msra.mxu0 %v1414
        %1441 = vmatprep.subr.bf16.mxu0 0
        %1442 = vmatpush1.bf16.msra.mxu0 %v1413
        %1443 = vmatprep.subr.bf16.mxu0 0
        %1444 = vmatpush1.bf16.msra.mxu0 %v1412
        %1445 = vmatprep.subr.bf16.mxu0 0
        %1446 = vmatpush1.bf16.msra.mxu0 %v1411
        %1447 = vmatprep.subr.bf16.mxu0 0
        %1448 = vmatpush2.bf16.msra.mxu0 0
        %1449 = vmatprep.subr.bf16.mxu0 0
        %1450 = vmatpush2.bf16.msra.mxu0 0
        %1451 = vmatprep.subr.bf16.mxu0 0
        %1452 = vmatpush2.bf16.msra.mxu0 0
        %1453 = vmatprep.subr.bf16.mxu0 0
        %1454 = vmatpush2.bf16.msra.mxu0 0
        %1455 = vmatprep.subr.bf16.mxu0 0
        %1456 = vmatpush2.bf16.msra.mxu0 0
        %1457 = vmatprep.subr.bf16.mxu0 0
        %1458 = vmatpush2.bf16.msra.mxu0 0
        %1459 = vmatprep.subr.bf16.mxu0 0
        %1460 = vmatpush2.bf16.msra.mxu0 0
        %1461 = vmatprep.subr.bf16.mxu0 0
        %1462 = vmatpush2.bf16.msra.mxu0 0
        %1463 = vmatprep.mubr.bf16.mxu0 0
        %1464 = vmatmul.mubr.bf16.gmra.mxu0 %v1420
        %v1465 = vpop.f32.mrf.mxu0
        %v1466 = vadd.f32 0.0, %v1465
        %v1467 = vpop.f32.mrf.mxu0
        %v1468 = vpop.f32.mrf.mxu0
        %v1469 = vadd.f32 0.0, %v1468
        %v1470 = vpop.f32.mrf.mxu0
        %1471 = vmatprep.mubr.bf16.mxu0 0
        %1472 = vmatmul.mubr.bf16.gmra.mxu0 %v1423
        %v1473 = vpop.f32.mrf.mxu0
        %v1474 = vadd.f32 0.0, %v1473
        %v1475 = vpop.f32.mrf.mxu0
        %v1476 = vpop.f32.mrf.mxu0
        %v1477 = vadd.f32 0.0, %v1476
        %v1478 = vpop.f32.mrf.mxu0
        %1479 = vmatprep.mubr.bf16.mxu0 0
        %1480 = vmatmul.mubr.bf16.gmra.mxu0 %v1426
        %v1481 = vpop.f32.mrf.mxu0
        %v1482 = vadd.f32 0.0, %v1481
        %v1483 = vpop.f32.mrf.mxu0
        %v1484 = vpop.f32.mrf.mxu0
        %v1485 = vadd.f32 0.0, %v1484
        %v1486 = vpop.f32.mrf.mxu0
        %1487 = vmatprep.mubr.bf16.mxu0 0
        %1488 = vmatmul.mubr.bf16.gmra.mxu0 %v1429
        %v1489 = vpop.f32.mrf.mxu0
        %v1490 = vadd.f32 0.0, %v1489
        %v1491 = vpop.f32.mrf.mxu0
        %v1492 = vpop.f32.mrf.mxu0
        %v1493 = vadd.f32 0.0, %v1492
        %v1494 = vpop.f32.mrf.mxu0
        %1495 = vdwg.mxu0
        %v1496 = vadd.f32 %v1366, %v1466
        %v1497 = vadd.f32 %v1367, %v1469
        %v1498 = vadd.f32 %v1368, %v1474
        %v1499 = vadd.f32 %v1369, %v1477
        %v1500 = vadd.f32 %v1370, %v1482
        %v1501 = vadd.f32 %v1371, %v1485
        %v1502 = vadd.f32 %v1372, %v1490
        %v1503 = vadd.f32 %v1373, %v1493
        %v1504 = vld [vmem:[%s992 + $0x1] sm:$0xff]
        %v1505 = vld [vmem:[%s992 + $0x11] sm:$0xff]
        %v1506 = vld [vmem:[%s992 + $0x21] sm:$0xff]
        %v1507 = vld [vmem:[%s992 + $0x31] sm:$0xff]
        %v1508 = vld [vmem:[%s992 + $0x41] sm:$0xff]
        %v1509 = vld [vmem:[%s992 + $0x51] sm:$0xff]
        %v1510 = vld [vmem:[%s992 + $0x61] sm:$0xff]
        %v1511 = vld [vmem:[%s992 + $0x71] sm:$0xff]
        %v1512 = vpack.c.bf16 %v1505, %v1504
        %v1513 = vpack.c.bf16 %v1507, %v1506
        %v1514 = vpack.c.bf16 %v1509, %v1508
        %v1515 = vpack.c.bf16 %v1511, %v1510
        %s1516 = scalar_lea.vmem %s2, 128
        %v1517 = vld [vmem:[%s1516] sm:$0xf]
        %v1518 = vld [vmem:[%s1516 + $0x4] sm:$0xf]
        %v1519 = vld [vmem:[%s1516 + $0x8] sm:$0xf]
        %v1520 = vld [vmem:[%s1516 + $0xc] sm:$0xf]
        %v1521 = vld [vmem:[%s1516 + $0x10] sm:$0xf]
        %v1522 = vld [vmem:[%s1516 + $0x14] sm:$0xf]
        %v1523 = vld [vmem:[%s1516 + $0x18] sm:$0xf]
        %v1524 = vld [vmem:[%s1516 + $0x1c] sm:$0xf]
        %v1533 = vunpack.c.l.b16 %v1517
        %v1534 = vunpack.c.l.b16 %v1518
        %v1535 = vunpack.c.l.b16 %v1519
        %v1536 = vunpack.c.l.b16 %v1520
        %v1537 = vunpack.c.l.b16 %v1521
        %v1538 = vunpack.c.l.b16 %v1522
        %v1539 = vunpack.c.l.b16 %v1523
        %v1540 = vunpack.c.l.b16 %v1524
        %v1541 = vpack.c.b16 %v1534, %v1533
        %v1542 = vpack.c.b16 %v1536, %v1535
        %v1543 = vpack.c.b16 %v1538, %v1537
        %v1544 = vpack.c.b16 %v1540, %v1539
        %v1550 = vsel %vm703, %v1512, 0
        %v1553 = vsel %vm703, %v1513, 0
        %v1556 = vsel %vm703, %v1514, 0
        %v1559 = vsel %vm703, %v1515, 0
        %1561 = vmatprep.subr.bf16.mxu0 0
        %1562 = vmatpush1.bf16.msra.mxu0 0
        %1563 = vmatprep.subr.bf16.mxu0 0
        %1564 = vmatpush1.bf16.msra.mxu0 0
        %1565 = vmatprep.subr.bf16.mxu0 0
        %1566 = vmatpush1.bf16.msra.mxu0 0
        %1567 = vmatprep.subr.bf16.mxu0 0
        %1568 = vmatpush1.bf16.msra.mxu0 0
        %1569 = vmatprep.subr.bf16.mxu0 0
        %1570 = vmatpush1.bf16.msra.mxu0 %v1544
        %1571 = vmatprep.subr.bf16.mxu0 0
        %1572 = vmatpush1.bf16.msra.mxu0 %v1543
        %1573 = vmatprep.subr.bf16.mxu0 0
        %1574 = vmatpush1.bf16.msra.mxu0 %v1542
        %1575 = vmatprep.subr.bf16.mxu0 0
        %1576 = vmatpush1.bf16.msra.mxu0 %v1541
        %1577 = vmatprep.subr.bf16.mxu0 0
        %1578 = vmatpush2.bf16.msra.mxu0 0
        %1579 = vmatprep.subr.bf16.mxu0 0
        %1580 = vmatpush2.bf16.msra.mxu0 0
        %1581 = vmatprep.subr.bf16.mxu0 0
        %1582 = vmatpush2.bf16.msra.mxu0 0
        %1583 = vmatprep.subr.bf16.mxu0 0
        %1584 = vmatpush2.bf16.msra.mxu0 0
        %1585 = vmatprep.subr.bf16.mxu0 0
        %1586 = vmatpush2.bf16.msra.mxu0 0
        %1587 = vmatprep.subr.bf16.mxu0 0
        %1588 = vmatpush2.bf16.msra.mxu0 0
        %1589 = vmatprep.subr.bf16.mxu0 0
        %1590 = vmatpush2.bf16.msra.mxu0 0
        %1591 = vmatprep.subr.bf16.mxu0 0
        %1592 = vmatpush2.bf16.msra.mxu0 0
        %1593 = vmatprep.mubr.bf16.mxu0 0
        %1594 = vmatmul.mubr.bf16.gmra.mxu0 %v1550
        %v1595 = vpop.f32.mrf.mxu0
        %v1596 = vadd.f32 0.0, %v1595
        %v1597 = vpop.f32.mrf.mxu0
        %v1598 = vpop.f32.mrf.mxu0
        %v1599 = vadd.f32 0.0, %v1598
        %v1600 = vpop.f32.mrf.mxu0
        %1601 = vmatprep.mubr.bf16.mxu0 0
        %1602 = vmatmul.mubr.bf16.gmra.mxu0 %v1553
        %v1603 = vpop.f32.mrf.mxu0
        %v1604 = vadd.f32 0.0, %v1603
        %v1605 = vpop.f32.mrf.mxu0
        %v1606 = vpop.f32.mrf.mxu0
        %v1607 = vadd.f32 0.0, %v1606
        %v1608 = vpop.f32.mrf.mxu0
        %1609 = vmatprep.mubr.bf16.mxu0 0
        %1610 = vmatmul.mubr.bf16.gmra.mxu0 %v1556
        %v1611 = vpop.f32.mrf.mxu0
        %v1612 = vadd.f32 0.0, %v1611
        %v1613 = vpop.f32.mrf.mxu0
        %v1614 = vpop.f32.mrf.mxu0
        %v1615 = vadd.f32 0.0, %v1614
        %v1616 = vpop.f32.mrf.mxu0
        %1617 = vmatprep.mubr.bf16.mxu0 0
        %1618 = vmatmul.mubr.bf16.gmra.mxu0 %v1559
        %v1619 = vpop.f32.mrf.mxu0
        %v1620 = vadd.f32 0.0, %v1619
        %v1621 = vpop.f32.mrf.mxu0
        %v1622 = vpop.f32.mrf.mxu0
        %v1623 = vadd.f32 0.0, %v1622
        %v1624 = vpop.f32.mrf.mxu0
        %1625 = vdwg.mxu0
        %v1626 = vadd.f32 %v1496, %v1596
        %v1627 = vadd.f32 %v1497, %v1599
        %v1628 = vadd.f32 %v1498, %v1604
        %v1629 = vadd.f32 %v1499, %v1607
        %v1630 = vadd.f32 %v1500, %v1612
        %v1631 = vadd.f32 %v1501, %v1615
        %v1632 = vadd.f32 %v1502, %v1620
        %v1633 = vadd.f32 %v1503, %v1623
        %v1634 = vld [vmem:[%s992 + $0x2] sm:$0xff]
        %v1635 = vld [vmem:[%s992 + $0x12] sm:$0xff]
        %v1636 = vld [vmem:[%s992 + $0x22] sm:$0xff]
        %v1637 = vld [vmem:[%s992 + $0x32] sm:$0xff]
        %v1638 = vld [vmem:[%s992 + $0x42] sm:$0xff]
        %v1639 = vld [vmem:[%s992 + $0x52] sm:$0xff]
        %v1640 = vld [vmem:[%s992 + $0x62] sm:$0xff]
        %v1641 = vld [vmem:[%s992 + $0x72] sm:$0xff]
        %v1642 = vpack.c.bf16 %v1635, %v1634
        %v1643 = vpack.c.bf16 %v1637, %v1636
        %v1644 = vpack.c.bf16 %v1639, %v1638
        %v1645 = vpack.c.bf16 %v1641, %v1640
        %s1646 = scalar_lea.vmem %s2, 160
        %v1647 = vld [vmem:[%s1646] sm:$0xf]
        %v1648 = vld [vmem:[%s1646 + $0x4] sm:$0xf]
        %v1649 = vld [vmem:[%s1646 + $0x8] sm:$0xf]
        %v1650 = vld [vmem:[%s1646 + $0xc] sm:$0xf]
        %v1651 = vld [vmem:[%s1646 + $0x10] sm:$0xf]
        %v1652 = vld [vmem:[%s1646 + $0x14] sm:$0xf]
        %v1653 = vld [vmem:[%s1646 + $0x18] sm:$0xf]
        %v1654 = vld [vmem:[%s1646 + $0x1c] sm:$0xf]
        %v1663 = vunpack.c.l.b16 %v1647
        %v1664 = vunpack.c.l.b16 %v1648
        %v1665 = vunpack.c.l.b16 %v1649
        %v1666 = vunpack.c.l.b16 %v1650
        %v1667 = vunpack.c.l.b16 %v1651
        %v1668 = vunpack.c.l.b16 %v1652
        %v1669 = vunpack.c.l.b16 %v1653
        %v1670 = vunpack.c.l.b16 %v1654
        %v1671 = vpack.c.b16 %v1664, %v1663
        %v1672 = vpack.c.b16 %v1666, %v1665
        %v1673 = vpack.c.b16 %v1668, %v1667
        %v1674 = vpack.c.b16 %v1670, %v1669
        %v1680 = vsel %vm703, %v1642, 0
        %v1683 = vsel %vm703, %v1643, 0
        %v1686 = vsel %vm703, %v1644, 0
        %v1689 = vsel %vm703, %v1645, 0
        %1691 = vmatprep.subr.bf16.mxu0 0
        %1692 = vmatpush1.bf16.msra.mxu0 0
        %1693 = vmatprep.subr.bf16.mxu0 0
        %1694 = vmatpush1.bf16.msra.mxu0 0
        %1695 = vmatprep.subr.bf16.mxu0 0
        %1696 = vmatpush1.bf16.msra.mxu0 0
        %1697 = vmatprep.subr.bf16.mxu0 0
        %1698 = vmatpush1.bf16.msra.mxu0 0
        %1699 = vmatprep.subr.bf16.mxu0 0
        %1700 = vmatpush1.bf16.msra.mxu0 %v1674
        %1701 = vmatprep.subr.bf16.mxu0 0
        %1702 = vmatpush1.bf16.msra.mxu0 %v1673
        %1703 = vmatprep.subr.bf16.mxu0 0
        %1704 = vmatpush1.bf16.msra.mxu0 %v1672
        %1705 = vmatprep.subr.bf16.mxu0 0
        %1706 = vmatpush1.bf16.msra.mxu0 %v1671
        %1707 = vmatprep.subr.bf16.mxu0 0
        %1708 = vmatpush2.bf16.msra.mxu0 0
        %1709 = vmatprep.subr.bf16.mxu0 0
        %1710 = vmatpush2.bf16.msra.mxu0 0
        %1711 = vmatprep.subr.bf16.mxu0 0
        %1712 = vmatpush2.bf16.msra.mxu0 0
        %1713 = vmatprep.subr.bf16.mxu0 0
        %1714 = vmatpush2.bf16.msra.mxu0 0
        %1715 = vmatprep.subr.bf16.mxu0 0
        %1716 = vmatpush2.bf16.msra.mxu0 0
        %1717 = vmatprep.subr.bf16.mxu0 0
        %1718 = vmatpush2.bf16.msra.mxu0 0
        %1719 = vmatprep.subr.bf16.mxu0 0
        %1720 = vmatpush2.bf16.msra.mxu0 0
        %1721 = vmatprep.subr.bf16.mxu0 0
        %1722 = vmatpush2.bf16.msra.mxu0 0
        %1723 = vmatprep.mubr.bf16.mxu0 0
        %1724 = vmatmul.mubr.bf16.gmra.mxu0 %v1680
        %v1725 = vpop.f32.mrf.mxu0
        %v1726 = vadd.f32 0.0, %v1725
        %v1727 = vpop.f32.mrf.mxu0
        %v1728 = vpop.f32.mrf.mxu0
        %v1729 = vadd.f32 0.0, %v1728
        %v1730 = vpop.f32.mrf.mxu0
        %1731 = vmatprep.mubr.bf16.mxu0 0
        %1732 = vmatmul.mubr.bf16.gmra.mxu0 %v1683
        %v1733 = vpop.f32.mrf.mxu0
        %v1734 = vadd.f32 0.0, %v1733
        %v1735 = vpop.f32.mrf.mxu0
        %v1736 = vpop.f32.mrf.mxu0
        %v1737 = vadd.f32 0.0, %v1736
        %v1738 = vpop.f32.mrf.mxu0
        %1739 = vmatprep.mubr.bf16.mxu0 0
        %1740 = vmatmul.mubr.bf16.gmra.mxu0 %v1686
        %v1741 = vpop.f32.mrf.mxu0
        %v1742 = vadd.f32 0.0, %v1741
        %v1743 = vpop.f32.mrf.mxu0
        %v1744 = vpop.f32.mrf.mxu0
        %v1745 = vadd.f32 0.0, %v1744
        %v1746 = vpop.f32.mrf.mxu0
        %1747 = vmatprep.mubr.bf16.mxu0 0
        %1748 = vmatmul.mubr.bf16.gmra.mxu0 %v1689
        %v1749 = vpop.f32.mrf.mxu0
        %v1750 = vadd.f32 0.0, %v1749
        %v1751 = vpop.f32.mrf.mxu0
        %v1752 = vpop.f32.mrf.mxu0
        %v1753 = vadd.f32 0.0, %v1752
        %v1754 = vpop.f32.mrf.mxu0
        %1755 = vdwg.mxu0
        %v1756 = vadd.f32 %v1626, %v1726
        %v1757 = vadd.f32 %v1627, %v1729
        %v1758 = vadd.f32 %v1628, %v1734
        %v1759 = vadd.f32 %v1629, %v1737
        %v1760 = vadd.f32 %v1630, %v1742
        %v1761 = vadd.f32 %v1631, %v1745
        %v1762 = vadd.f32 %v1632, %v1750
        %v1763 = vadd.f32 %v1633, %v1753
        %s1764 = scalar_lea.vmem [#allocation3], 32
        %v1765 = vld [vmem:[%s1764] sm:$0xff]
        %v1766 = vld [vmem:[%s1764 + $0x10] sm:$0xff]
        %v1767 = vld [vmem:[%s1764 + $0x20] sm:$0xff]
        %v1768 = vld [vmem:[%s1764 + $0x30] sm:$0xff]
        %v1769 = vld [vmem:[%s1764 + $0x40] sm:$0xff]
        %v1770 = vld [vmem:[%s1764 + $0x50] sm:$0xff]
        %v1771 = vld [vmem:[%s1764 + $0x60] sm:$0xff]
        %v1772 = vld [vmem:[%s1764 + $0x70] sm:$0xff]
        %v1773 = vpack.c.bf16 %v1766, %v1765
        %v1774 = vpack.c.bf16 %v1768, %v1767
        %v1775 = vpack.c.bf16 %v1770, %v1769
        %v1776 = vpack.c.bf16 %v1772, %v1771
        %s1777 = scalar_lea.vmem %s2, 192
        %v1778 = vld [vmem:[%s1777] sm:$0xf]
        %v1779 = vld [vmem:[%s1777 + $0x4] sm:$0xf]
        %v1780 = vld [vmem:[%s1777 + $0x8] sm:$0xf]
        %v1781 = vld [vmem:[%s1777 + $0xc] sm:$0xf]
        %v1782 = vld [vmem:[%s1777 + $0x10] sm:$0xf]
        %v1783 = vld [vmem:[%s1777 + $0x14] sm:$0xf]
        %v1784 = vld [vmem:[%s1777 + $0x18] sm:$0xf]
        %v1785 = vld [vmem:[%s1777 + $0x1c] sm:$0xf]
        %v1794 = vunpack.c.l.b16 %v1778
        %v1795 = vunpack.c.l.b16 %v1779
        %v1796 = vunpack.c.l.b16 %v1780
        %v1797 = vunpack.c.l.b16 %v1781
        %v1798 = vunpack.c.l.b16 %v1782
        %v1799 = vunpack.c.l.b16 %v1783
        %v1800 = vunpack.c.l.b16 %v1784
        %v1801 = vunpack.c.l.b16 %v1785
        %v1802 = vpack.c.b16 %v1795, %v1794
        %v1803 = vpack.c.b16 %v1797, %v1796
        %v1804 = vpack.c.b16 %v1799, %v1798
        %v1805 = vpack.c.b16 %v1801, %v1800
        %v1811 = vsel %vm703, %v1773, 0
        %v1814 = vsel %vm703, %v1774, 0
        %v1817 = vsel %vm703, %v1775, 0
        %v1820 = vsel %vm703, %v1776, 0
        %1822 = vmatprep.subr.bf16.mxu0 0
        %1823 = vmatpush1.bf16.msra.mxu0 0
        %1824 = vmatprep.subr.bf16.mxu0 0
        %1825 = vmatpush1.bf16.msra.mxu0 0
        %1826 = vmatprep.subr.bf16.mxu0 0
        %1827 = vmatpush1.bf16.msra.mxu0 0
        %1828 = vmatprep.subr.bf16.mxu0 0
        %1829 = vmatpush1.bf16.msra.mxu0 0
        %1830 = vmatprep.subr.bf16.mxu0 0
        %1831 = vmatpush1.bf16.msra.mxu0 %v1805
        %1832 = vmatprep.subr.bf16.mxu0 0
        %1833 = vmatpush1.bf16.msra.mxu0 %v1804
        %1834 = vmatprep.subr.bf16.mxu0 0
        %1835 = vmatpush1.bf16.msra.mxu0 %v1803
        %1836 = vmatprep.subr.bf16.mxu0 0
        %1837 = vmatpush1.bf16.msra.mxu0 %v1802
        %1838 = vmatprep.subr.bf16.mxu0 0
        %1839 = vmatpush2.bf16.msra.mxu0 0
        %1840 = vmatprep.subr.bf16.mxu0 0
        %1841 = vmatpush2.bf16.msra.mxu0 0
        %1842 = vmatprep.subr.bf16.mxu0 0
        %1843 = vmatpush2.bf16.msra.mxu0 0
        %1844 = vmatprep.subr.bf16.mxu0 0
        %1845 = vmatpush2.bf16.msra.mxu0 0
        %1846 = vmatprep.subr.bf16.mxu0 0
        %1847 = vmatpush2.bf16.msra.mxu0 0
        %1848 = vmatprep.subr.bf16.mxu0 0
        %1849 = vmatpush2.bf16.msra.mxu0 0
        %1850 = vmatprep.subr.bf16.mxu0 0
        %1851 = vmatpush2.bf16.msra.mxu0 0
        %1852 = vmatprep.subr.bf16.mxu0 0
        %1853 = vmatpush2.bf16.msra.mxu0 0
        %1854 = vmatprep.mubr.bf16.mxu0 0
        %1855 = vmatmul.mubr.bf16.gmra.mxu0 %v1811
        %v1856 = vpop.f32.mrf.mxu0
        %v1857 = vadd.f32 0.0, %v1856
        %v1858 = vpop.f32.mrf.mxu0
        %v1859 = vpop.f32.mrf.mxu0
        %v1860 = vadd.f32 0.0, %v1859
        %v1861 = vpop.f32.mrf.mxu0
        %1862 = vmatprep.mubr.bf16.mxu0 0
        %1863 = vmatmul.mubr.bf16.gmra.mxu0 %v1814
        %v1864 = vpop.f32.mrf.mxu0
        %v1865 = vadd.f32 0.0, %v1864
        %v1866 = vpop.f32.mrf.mxu0
        %v1867 = vpop.f32.mrf.mxu0
        %v1868 = vadd.f32 0.0, %v1867
        %v1869 = vpop.f32.mrf.mxu0
        %1870 = vmatprep.mubr.bf16.mxu0 0
        %1871 = vmatmul.mubr.bf16.gmra.mxu0 %v1817
        %v1872 = vpop.f32.mrf.mxu0
        %v1873 = vadd.f32 0.0, %v1872
        %v1874 = vpop.f32.mrf.mxu0
        %v1875 = vpop.f32.mrf.mxu0
        %v1876 = vadd.f32 0.0, %v1875
        %v1877 = vpop.f32.mrf.mxu0
        %1878 = vmatprep.mubr.bf16.mxu0 0
        %1879 = vmatmul.mubr.bf16.gmra.mxu0 %v1820
        %v1880 = vpop.f32.mrf.mxu0
        %v1881 = vadd.f32 0.0, %v1880
        %v1882 = vpop.f32.mrf.mxu0
        %v1883 = vpop.f32.mrf.mxu0
        %v1884 = vadd.f32 0.0, %v1883
        %v1885 = vpop.f32.mrf.mxu0
        %1886 = vdwg.mxu0
        %v1887 = vadd.f32 %v1756, %v1857
        %v1888 = vadd.f32 %v1757, %v1860
        %v1889 = vadd.f32 %v1758, %v1865
        %v1890 = vadd.f32 %v1759, %v1868
        %v1891 = vadd.f32 %v1760, %v1873
        %v1892 = vadd.f32 %v1761, %v1876
        %v1893 = vadd.f32 %v1762, %v1881
        %v1894 = vadd.f32 %v1763, %v1884
        %v1895 = vld [vmem:[%s1764 + $0x1] sm:$0xff]
        %v1896 = vld [vmem:[%s1764 + $0x11] sm:$0xff]
        %v1897 = vld [vmem:[%s1764 + $0x21] sm:$0xff]
        %v1898 = vld [vmem:[%s1764 + $0x31] sm:$0xff]
        %v1899 = vld [vmem:[%s1764 + $0x41] sm:$0xff]
        %v1900 = vld [vmem:[%s1764 + $0x51] sm:$0xff]
        %v1901 = vld [vmem:[%s1764 + $0x61] sm:$0xff]
        %v1902 = vld [vmem:[%s1764 + $0x71] sm:$0xff]
        %v1903 = vpack.c.bf16 %v1896, %v1895
        %v1904 = vpack.c.bf16 %v1898, %v1897
        %v1905 = vpack.c.bf16 %v1900, %v1899
        %v1906 = vpack.c.bf16 %v1902, %v1901
        %s1907 = scalar_lea.vmem %s2, 224
        %v1908 = vld [vmem:[%s1907] sm:$0xf]
        %v1909 = vld [vmem:[%s1907 + $0x4] sm:$0xf]
        %v1910 = vld [vmem:[%s1907 + $0x8] sm:$0xf]
        %v1911 = vld [vmem:[%s1907 + $0xc] sm:$0xf]
        %v1912 = vld [vmem:[%s1907 + $0x10] sm:$0xf]
        %v1913 = vld [vmem:[%s1907 + $0x14] sm:$0xf]
        %v1914 = vld [vmem:[%s1907 + $0x18] sm:$0xf]
        %v1915 = vld [vmem:[%s1907 + $0x1c] sm:$0xf]
        %v1924 = vunpack.c.l.b16 %v1908
        %v1925 = vunpack.c.l.b16 %v1909
        %v1926 = vunpack.c.l.b16 %v1910
        %v1927 = vunpack.c.l.b16 %v1911
        %v1928 = vunpack.c.l.b16 %v1912
        %v1929 = vunpack.c.l.b16 %v1913
        %v1930 = vunpack.c.l.b16 %v1914
        %v1931 = vunpack.c.l.b16 %v1915
        %v1932 = vpack.c.b16 %v1925, %v1924
        %v1933 = vpack.c.b16 %v1927, %v1926
        %v1934 = vpack.c.b16 %v1929, %v1928
        %v1935 = vpack.c.b16 %v1931, %v1930
        %v1941 = vsel %vm703, %v1903, 0
        %v1944 = vsel %vm703, %v1904, 0
        %v1947 = vsel %vm703, %v1905, 0
        %v1950 = vsel %vm703, %v1906, 0
        %1952 = vmatprep.subr.bf16.mxu0 0
        %1953 = vmatpush1.bf16.msra.mxu0 0
        %1954 = vmatprep.subr.bf16.mxu0 0
        %1955 = vmatpush1.bf16.msra.mxu0 0
        %1956 = vmatprep.subr.bf16.mxu0 0
        %1957 = vmatpush1.bf16.msra.mxu0 0
        %1958 = vmatprep.subr.bf16.mxu0 0
        %1959 = vmatpush1.bf16.msra.mxu0 0
        %1960 = vmatprep.subr.bf16.mxu0 0
        %1961 = vmatpush1.bf16.msra.mxu0 %v1935
        %1962 = vmatprep.subr.bf16.mxu0 0
        %1963 = vmatpush1.bf16.msra.mxu0 %v1934
        %1964 = vmatprep.subr.bf16.mxu0 0
        %1965 = vmatpush1.bf16.msra.mxu0 %v1933
        %1966 = vmatprep.subr.bf16.mxu0 0
        %1967 = vmatpush1.bf16.msra.mxu0 %v1932
        %1968 = vmatprep.subr.bf16.mxu0 0
        %1969 = vmatpush2.bf16.msra.mxu0 0
        %1970 = vmatprep.subr.bf16.mxu0 0
        %1971 = vmatpush2.bf16.msra.mxu0 0
        %1972 = vmatprep.subr.bf16.mxu0 0
        %1973 = vmatpush2.bf16.msra.mxu0 0
        %1974 = vmatprep.subr.bf16.mxu0 0
        %1975 = vmatpush2.bf16.msra.mxu0 0
        %1976 = vmatprep.subr.bf16.mxu0 0
        %1977 = vmatpush2.bf16.msra.mxu0 0
        %1978 = vmatprep.subr.bf16.mxu0 0
        %1979 = vmatpush2.bf16.msra.mxu0 0
        %1980 = vmatprep.subr.bf16.mxu0 0
        %1981 = vmatpush2.bf16.msra.mxu0 0
        %1982 = vmatprep.subr.bf16.mxu0 0
        %1983 = vmatpush2.bf16.msra.mxu0 0
        %1984 = vmatprep.mubr.bf16.mxu0 0
        %1985 = vmatmul.mubr.bf16.gmra.mxu0 %v1941
        %v1986 = vpop.f32.mrf.mxu0
        %v1987 = vadd.f32 0.0, %v1986
        %v1988 = vpop.f32.mrf.mxu0
        %v1989 = vpop.f32.mrf.mxu0
        %v1990 = vadd.f32 0.0, %v1989
        %v1991 = vpop.f32.mrf.mxu0
        %1992 = vmatprep.mubr.bf16.mxu0 0
        %1993 = vmatmul.mubr.bf16.gmra.mxu0 %v1944
        %v1994 = vpop.f32.mrf.mxu0
        %v1995 = vadd.f32 0.0, %v1994
        %v1996 = vpop.f32.mrf.mxu0
        %v1997 = vpop.f32.mrf.mxu0
        %v1998 = vadd.f32 0.0, %v1997
        %v1999 = vpop.f32.mrf.mxu0
        %2000 = vmatprep.mubr.bf16.mxu0 0
        %2001 = vmatmul.mubr.bf16.gmra.mxu0 %v1947
        %v2002 = vpop.f32.mrf.mxu0
        %v2003 = vadd.f32 0.0, %v2002
        %v2004 = vpop.f32.mrf.mxu0
        %v2005 = vpop.f32.mrf.mxu0
        %v2006 = vadd.f32 0.0, %v2005
        %v2007 = vpop.f32.mrf.mxu0
        %2008 = vmatprep.mubr.bf16.mxu0 0
        %2009 = vmatmul.mubr.bf16.gmra.mxu0 %v1950
        %v2010 = vpop.f32.mrf.mxu0
        %v2011 = vadd.f32 0.0, %v2010
        %v2012 = vpop.f32.mrf.mxu0
        %v2013 = vpop.f32.mrf.mxu0
        %v2014 = vadd.f32 0.0, %v2013
        %v2015 = vpop.f32.mrf.mxu0
        %2016 = vdwg.mxu0
        %v2017 = vadd.f32 %v1887, %v1987
        %v2018 = vadd.f32 %v1888, %v1990
        %v2019 = vadd.f32 %v1889, %v1995
        %v2020 = vadd.f32 %v1890, %v1998
        %v2021 = vadd.f32 %v1891, %v2003
        %v2022 = vadd.f32 %v1892, %v2006
        %v2023 = vadd.f32 %v1893, %v2011
        %v2024 = vadd.f32 %v1894, %v2014
        %v2025 = vld [vmem:[%s1764 + $0x2] sm:$0xff]
        %v2026 = vld [vmem:[%s1764 + $0x12] sm:$0xff]
        %v2027 = vld [vmem:[%s1764 + $0x22] sm:$0xff]
        %v2028 = vld [vmem:[%s1764 + $0x32] sm:$0xff]
        %v2029 = vld [vmem:[%s1764 + $0x42] sm:$0xff]
        %v2030 = vld [vmem:[%s1764 + $0x52] sm:$0xff]
        %v2031 = vld [vmem:[%s1764 + $0x62] sm:$0xff]
        %v2032 = vld [vmem:[%s1764 + $0x72] sm:$0xff]
        %v2033 = vpack.c.bf16 %v2026, %v2025
        %v2034 = vpack.c.bf16 %v2028, %v2027
        %v2035 = vpack.c.bf16 %v2030, %v2029
        %v2036 = vpack.c.bf16 %v2032, %v2031
        %s2037 = scalar_lea.vmem %s2, 256
        %v2038 = vld [vmem:[%s2037] sm:$0xf]
        %v2039 = vld [vmem:[%s2037 + $0x4] sm:$0xf]
        %v2040 = vld [vmem:[%s2037 + $0x8] sm:$0xf]
        %v2041 = vld [vmem:[%s2037 + $0xc] sm:$0xf]
        %v2042 = vld [vmem:[%s2037 + $0x10] sm:$0xf]
        %v2043 = vld [vmem:[%s2037 + $0x14] sm:$0xf]
        %v2044 = vld [vmem:[%s2037 + $0x18] sm:$0xf]
        %v2045 = vld [vmem:[%s2037 + $0x1c] sm:$0xf]
        %v2054 = vunpack.c.l.b16 %v2038
        %v2055 = vunpack.c.l.b16 %v2039
        %v2056 = vunpack.c.l.b16 %v2040
        %v2057 = vunpack.c.l.b16 %v2041
        %v2058 = vunpack.c.l.b16 %v2042
        %v2059 = vunpack.c.l.b16 %v2043
        %v2060 = vunpack.c.l.b16 %v2044
        %v2061 = vunpack.c.l.b16 %v2045
        %v2062 = vpack.c.b16 %v2055, %v2054
        %v2063 = vpack.c.b16 %v2057, %v2056
        %v2064 = vpack.c.b16 %v2059, %v2058
        %v2065 = vpack.c.b16 %v2061, %v2060
        %v2071 = vsel %vm703, %v2033, 0
        %v2074 = vsel %vm703, %v2034, 0
        %v2077 = vsel %vm703, %v2035, 0
        %v2080 = vsel %vm703, %v2036, 0
        %2082 = vmatprep.subr.bf16.mxu0 0
        %2083 = vmatpush1.bf16.msra.mxu0 0
        %2084 = vmatprep.subr.bf16.mxu0 0
        %2085 = vmatpush1.bf16.msra.mxu0 0
        %2086 = vmatprep.subr.bf16.mxu0 0
        %2087 = vmatpush1.bf16.msra.mxu0 0
        %2088 = vmatprep.subr.bf16.mxu0 0
        %2089 = vmatpush1.bf16.msra.mxu0 0
        %2090 = vmatprep.subr.bf16.mxu0 0
        %2091 = vmatpush1.bf16.msra.mxu0 %v2065
        %2092 = vmatprep.subr.bf16.mxu0 0
        %2093 = vmatpush1.bf16.msra.mxu0 %v2064
        %2094 = vmatprep.subr.bf16.mxu0 0
        %2095 = vmatpush1.bf16.msra.mxu0 %v2063
        %2096 = vmatprep.subr.bf16.mxu0 0
        %2097 = vmatpush1.bf16.msra.mxu0 %v2062
        %2098 = vmatprep.subr.bf16.mxu0 0
        %2099 = vmatpush2.bf16.msra.mxu0 0
        %2100 = vmatprep.subr.bf16.mxu0 0
        %2101 = vmatpush2.bf16.msra.mxu0 0
        %2102 = vmatprep.subr.bf16.mxu0 0
        %2103 = vmatpush2.bf16.msra.mxu0 0
        %2104 = vmatprep.subr.bf16.mxu0 0
        %2105 = vmatpush2.bf16.msra.mxu0 0
        %2106 = vmatprep.subr.bf16.mxu0 0
        %2107 = vmatpush2.bf16.msra.mxu0 0
        %2108 = vmatprep.subr.bf16.mxu0 0
        %2109 = vmatpush2.bf16.msra.mxu0 0
        %2110 = vmatprep.subr.bf16.mxu0 0
        %2111 = vmatpush2.bf16.msra.mxu0 0
        %2112 = vmatprep.subr.bf16.mxu0 0
        %2113 = vmatpush2.bf16.msra.mxu0 0
        %2114 = vmatprep.mubr.bf16.mxu0 0
        %2115 = vmatmul.mubr.bf16.gmra.mxu0 %v2071
        %v2116 = vpop.f32.mrf.mxu0
        %v2117 = vadd.f32 0.0, %v2116
        %v2118 = vpop.f32.mrf.mxu0
        %v2119 = vpop.f32.mrf.mxu0
        %v2120 = vadd.f32 0.0, %v2119
        %v2121 = vpop.f32.mrf.mxu0
        %2122 = vmatprep.mubr.bf16.mxu0 0
        %2123 = vmatmul.mubr.bf16.gmra.mxu0 %v2074
        %v2124 = vpop.f32.mrf.mxu0
        %v2125 = vadd.f32 0.0, %v2124
        %v2126 = vpop.f32.mrf.mxu0
        %v2127 = vpop.f32.mrf.mxu0
        %v2128 = vadd.f32 0.0, %v2127
        %v2129 = vpop.f32.mrf.mxu0
        %2130 = vmatprep.mubr.bf16.mxu0 0
        %2131 = vmatmul.mubr.bf16.gmra.mxu0 %v2077
        %v2132 = vpop.f32.mrf.mxu0
        %v2133 = vadd.f32 0.0, %v2132
        %v2134 = vpop.f32.mrf.mxu0
        %v2135 = vpop.f32.mrf.mxu0
        %v2136 = vadd.f32 0.0, %v2135
        %v2137 = vpop.f32.mrf.mxu0
        %2138 = vmatprep.mubr.bf16.mxu0 0
        %2139 = vmatmul.mubr.bf16.gmra.mxu0 %v2080
        %v2140 = vpop.f32.mrf.mxu0
        %v2141 = vadd.f32 0.0, %v2140
        %v2142 = vpop.f32.mrf.mxu0
        %v2143 = vpop.f32.mrf.mxu0
        %v2144 = vadd.f32 0.0, %v2143
        %v2145 = vpop.f32.mrf.mxu0
        %2146 = vdwg.mxu0
        %v2147 = vadd.f32 %v2017, %v2117
        %v2148 = vadd.f32 %v2018, %v2120
        %v2149 = vadd.f32 %v2019, %v2125
        %v2150 = vadd.f32 %v2020, %v2128
        %v2151 = vadd.f32 %v2021, %v2133
        %v2152 = vadd.f32 %v2022, %v2136
        %v2153 = vadd.f32 %v2023, %v2141
        %v2154 = vadd.f32 %v2024, %v2144
        %v2155 = vld [vmem:[%s3 + $0x1] sm:$0x1]
        %v2156 = vlaneseq
        %v2157 = vshrl.u32 %v2156, 7
        %v2158 = vsub.s32 0, %v2157
        %v2159 = vrot.slane %v2155, %v2158
        %v2160 = vadd.f32 %v2147, %v2159
        %v2161 = vadd.f32 %v2148, %v2159
        %v2162 = vadd.f32 %v2149, %v2159
        %v2163 = vadd.f32 %v2150, %v2159
        %v2164 = vadd.f32 %v2151, %v2159
        %v2165 = vadd.f32 %v2152, %v2159
        %v2166 = vadd.f32 %v2153, %v2159
        %v2167 = vadd.f32 %v2154, %v2159
        %v2168 = vmax.f32 %v2160, 0.0
        %v2169 = vmax.f32 %v2161, 0.0
        %v2170 = vmax.f32 %v2162, 0.0
        %v2171 = vmax.f32 %v2163, 0.0
        %v2172 = vmax.f32 %v2164, 0.0
        %v2173 = vmax.f32 %v2165, 0.0
        %v2174 = vmax.f32 %v2166, 0.0
        %v2175 = vmax.f32 %v2167, 0.0
        %s2176 = scalar_lea.vmem [#allocation4], 16
        %2177 = vst.msk [vmem:[%s2176 + $0x1] sm:$0xff] %vm703, %v2168
        %2178 = vst.msk [vmem:[%s2176 + $0x11] sm:$0xff] %vm703, %v2169
        %2179 = vst.msk [vmem:[%s2176 + $0x21] sm:$0xff] %vm703, %v2170
        %2180 = vst.msk [vmem:[%s2176 + $0x31] sm:$0xff] %vm703, %v2171
        %2181 = vst.msk [vmem:[%s2176 + $0x41] sm:$0xff] %vm703, %v2172
        %2182 = vst.msk [vmem:[%s2176 + $0x51] sm:$0xff] %vm703, %v2173
        %2183 = vst.msk [vmem:[%s2176 + $0x61] sm:$0xff] %vm703, %v2174
        %2184 = vst.msk [vmem:[%s2176 + $0x71] sm:$0xff] %vm703, %v2175
        %v2185 = vld [vmem:[#allocation4] sm:$0xff]
        %v2186 = vld [vmem:[#allocation4 + $0x10] sm:$0xff]
        %v2187 = vld [vmem:[#allocation4 + $0x20] sm:$0xff]
        %v2188 = vld [vmem:[#allocation4 + $0x30] sm:$0xff]
        %v2189 = vld [vmem:[#allocation4 + $0x40] sm:$0xff]
        %v2190 = vld [vmem:[#allocation4 + $0x50] sm:$0xff]
        %v2191 = vld [vmem:[#allocation4 + $0x60] sm:$0xff]
        %v2192 = vld [vmem:[#allocation4 + $0x70] sm:$0xff]
        %v2193 = vpack.c.bf16 %v2186, %v2185
        %v2194 = vpack.c.bf16 %v2188, %v2187
        %v2195 = vpack.c.bf16 %v2190, %v2189
        %v2196 = vpack.c.bf16 %v2192, %v2191
        %s2197 = scalar_lea.vmem %s2, 288
        %v2198 = vld [vmem:[%s2197] sm:$0xf]
        %v2199 = vld [vmem:[%s2197 + $0x4] sm:$0xf]
        %v2200 = vld [vmem:[%s2197 + $0x8] sm:$0xf]
        %v2201 = vld [vmem:[%s2197 + $0xc] sm:$0xf]
        %v2202 = vld [vmem:[%s2197 + $0x10] sm:$0xf]
        %v2203 = vld [vmem:[%s2197 + $0x14] sm:$0xf]
        %v2204 = vld [vmem:[%s2197 + $0x18] sm:$0xf]
        %v2205 = vld [vmem:[%s2197 + $0x1c] sm:$0xf]
        %v2206 = vld [vmem:[#allocation4 + $0x1] sm:$0xff]
        %v2207 = vld [vmem:[#allocation4 + $0x11] sm:$0xff]
        %v2208 = vld [vmem:[#allocation4 + $0x21] sm:$0xff]
        %v2209 = vld [vmem:[#allocation4 + $0x31] sm:$0xff]
        %v2210 = vld [vmem:[#allocation4 + $0x41] sm:$0xff]
        %v2211 = vld [vmem:[#allocation4 + $0x51] sm:$0xff]
        %v2212 = vld [vmem:[#allocation4 + $0x61] sm:$0xff]
        %v2213 = vld [vmem:[#allocation4 + $0x71] sm:$0xff]
        %v2214 = vpack.c.bf16 %v2207, %v2206
        %v2215 = vpack.c.bf16 %v2209, %v2208
        %v2216 = vpack.c.bf16 %v2211, %v2210
        %v2217 = vpack.c.bf16 %v2213, %v2212
        %s2218 = scalar_lea.vmem %s2, 320
        %v2219 = vld [vmem:[%s2218] sm:$0xf]
        %v2220 = vld [vmem:[%s2218 + $0x4] sm:$0xf]
        %v2221 = vld [vmem:[%s2218 + $0x8] sm:$0xf]
        %v2222 = vld [vmem:[%s2218 + $0xc] sm:$0xf]
        %v2223 = vld [vmem:[%s2218 + $0x10] sm:$0xf]
        %v2224 = vld [vmem:[%s2218 + $0x14] sm:$0xf]
        %v2225 = vld [vmem:[%s2218 + $0x18] sm:$0xf]
        %v2226 = vld [vmem:[%s2218 + $0x1c] sm:$0xf]
        %v2235 = vunpack.c.l.b16 %v2219
        %v2236 = vunpack.c.l.b16 %v2220
        %v2237 = vunpack.c.l.b16 %v2221
        %v2238 = vunpack.c.l.b16 %v2222
        %v2239 = vunpack.c.l.b16 %v2223
        %v2240 = vunpack.c.l.b16 %v2224
        %v2241 = vunpack.c.l.b16 %v2225
        %v2242 = vunpack.c.l.b16 %v2226
        %v2243 = vpack.c.b16 %v2236, %v2235
        %v2244 = vpack.c.b16 %v2238, %v2237
        %v2245 = vpack.c.b16 %v2240, %v2239
        %v2246 = vpack.c.b16 %v2242, %v2241
        %v2252 = vsel %vm703, %v2214, 0
        %v2255 = vsel %vm703, %v2215, 0
        %v2258 = vsel %vm703, %v2216, 0
        %v2261 = vsel %vm703, %v2217, 0
        %2263 = vmatprep.subr.bf16.mxu0 0
        %2264 = vmatpush1.bf16.msra.mxu0 0
        %2265 = vmatprep.subr.bf16.mxu0 0
        %2266 = vmatpush1.bf16.msra.mxu0 0
        %2267 = vmatprep.subr.bf16.mxu0 0
        %2268 = vmatpush1.bf16.msra.mxu0 0
        %2269 = vmatprep.subr.bf16.mxu0 0
        %2270 = vmatpush1.bf16.msra.mxu0 0
        %2271 = vmatprep.subr.bf16.mxu0 0
        %2272 = vmatpush1.bf16.msra.mxu0 %v2246
        %2273 = vmatprep.subr.bf16.mxu0 0
        %2274 = vmatpush1.bf16.msra.mxu0 %v2245
        %2275 = vmatprep.subr.bf16.mxu0 0
        %2276 = vmatpush1.bf16.msra.mxu0 %v2244
        %2277 = vmatprep.subr.bf16.mxu0 0
        %2278 = vmatpush1.bf16.msra.mxu0 %v2243
        %2279 = vmatprep.subr.bf16.mxu0 0
        %2280 = vmatpush2.bf16.msra.mxu0 0
        %2281 = vmatprep.subr.bf16.mxu0 0
        %2282 = vmatpush2.bf16.msra.mxu0 0
        %2283 = vmatprep.subr.bf16.mxu0 0
        %2284 = vmatpush2.bf16.msra.mxu0 0
        %2285 = vmatprep.subr.bf16.mxu0 0
        %2286 = vmatpush2.bf16.msra.mxu0 0
        %2287 = vmatprep.subr.bf16.mxu0 0
        %2288 = vmatpush2.bf16.msra.mxu0 0
        %2289 = vmatprep.subr.bf16.mxu0 0
        %2290 = vmatpush2.bf16.msra.mxu0 0
        %2291 = vmatprep.subr.bf16.mxu0 0
        %2292 = vmatpush2.bf16.msra.mxu0 0
        %2293 = vmatprep.subr.bf16.mxu0 0
        %2294 = vmatpush2.bf16.msra.mxu0 0
        %2295 = vmatprep.mubr.bf16.mxu0 0
        %2296 = vmatmul.mubr.bf16.gmra.mxu0 %v2252
        %v2297 = vpop.f32.mrf.mxu0
        %v2298 = vadd.f32 0.0, %v2297
        %v2299 = vpop.f32.mrf.mxu0
        %v2300 = vpop.f32.mrf.mxu0
        %v2301 = vadd.f32 0.0, %v2300
        %v2302 = vpop.f32.mrf.mxu0
        %2303 = vmatprep.mubr.bf16.mxu0 0
        %2304 = vmatmul.mubr.bf16.gmra.mxu0 %v2255
        %v2305 = vpop.f32.mrf.mxu0
        %v2306 = vadd.f32 0.0, %v2305
        %v2307 = vpop.f32.mrf.mxu0
        %v2308 = vpop.f32.mrf.mxu0
        %v2309 = vadd.f32 0.0, %v2308
        %v2310 = vpop.f32.mrf.mxu0
        %2311 = vmatprep.mubr.bf16.mxu0 0
        %2312 = vmatmul.mubr.bf16.gmra.mxu0 %v2258
        %v2313 = vpop.f32.mrf.mxu0
        %v2314 = vadd.f32 0.0, %v2313
        %v2315 = vpop.f32.mrf.mxu0
        %v2316 = vpop.f32.mrf.mxu0
        %v2317 = vadd.f32 0.0, %v2316
        %v2318 = vpop.f32.mrf.mxu0
        %2319 = vmatprep.mubr.bf16.mxu0 0
        %2320 = vmatmul.mubr.bf16.gmra.mxu0 %v2261
        %v2321 = vpop.f32.mrf.mxu0
        %v2322 = vadd.f32 0.0, %v2321
        %v2323 = vpop.f32.mrf.mxu0
        %v2324 = vpop.f32.mrf.mxu0
        %v2325 = vadd.f32 0.0, %v2324
        %v2326 = vpop.f32.mrf.mxu0
        %2327 = vdwg.mxu0
        %v2336 = vunpack.c.l.b16 %v2198
        %v2337 = vunpack.c.l.b16 %v2199
        %v2338 = vunpack.c.l.b16 %v2200
        %v2339 = vunpack.c.l.b16 %v2201
        %v2340 = vunpack.c.l.b16 %v2202
        %v2341 = vunpack.c.l.b16 %v2203
        %v2342 = vunpack.c.l.b16 %v2204
        %v2343 = vunpack.c.l.b16 %v2205
        %v2344 = vpack.c.b16 %v2337, %v2336
        %v2345 = vpack.c.b16 %v2339, %v2338
        %v2346 = vpack.c.b16 %v2341, %v2340
        %v2347 = vpack.c.b16 %v2343, %v2342
        %v2353 = vsel %vm703, %v2193, 0
        %v2356 = vsel %vm703, %v2194, 0
        %v2359 = vsel %vm703, %v2195, 0
        %v2362 = vsel %vm703, %v2196, 0
        %2364 = vmatprep.subr.bf16.mxu0 0
        %2365 = vmatpush1.bf16.msra.mxu0 0
        %2366 = vmatprep.subr.bf16.mxu0 0
        %2367 = vmatpush1.bf16.msra.mxu0 0
        %2368 = vmatprep.subr.bf16.mxu0 0
        %2369 = vmatpush1.bf16.msra.mxu0 0
        %2370 = vmatprep.subr.bf16.mxu0 0
        %2371 = vmatpush1.bf16.msra.mxu0 0
        %2372 = vmatprep.subr.bf16.mxu0 0
        %2373 = vmatpush1.bf16.msra.mxu0 %v2347
        %2374 = vmatprep.subr.bf16.mxu0 0
        %2375 = vmatpush1.bf16.msra.mxu0 %v2346
        %2376 = vmatprep.subr.bf16.mxu0 0
        %2377 = vmatpush1.bf16.msra.mxu0 %v2345
        %2378 = vmatprep.subr.bf16.mxu0 0
        %2379 = vmatpush1.bf16.msra.mxu0 %v2344
        %2380 = vmatprep.subr.bf16.mxu0 0
        %2381 = vmatpush2.bf16.msra.mxu0 0
        %2382 = vmatprep.subr.bf16.mxu0 0
        %2383 = vmatpush2.bf16.msra.mxu0 0
        %2384 = vmatprep.subr.bf16.mxu0 0
        %2385 = vmatpush2.bf16.msra.mxu0 0
        %2386 = vmatprep.subr.bf16.mxu0 0
        %2387 = vmatpush2.bf16.msra.mxu0 0
        %2388 = vmatprep.subr.bf16.mxu0 0
        %2389 = vmatpush2.bf16.msra.mxu0 0
        %2390 = vmatprep.subr.bf16.mxu0 0
        %2391 = vmatpush2.bf16.msra.mxu0 0
        %2392 = vmatprep.subr.bf16.mxu0 0
        %2393 = vmatpush2.bf16.msra.mxu0 0
        %2394 = vmatprep.subr.bf16.mxu0 0
        %2395 = vmatpush2.bf16.msra.mxu0 0
        %2396 = vmatprep.mubr.bf16.mxu0 0
        %2397 = vmatmul.mubr.bf16.gmra.mxu0 %v2353
        %v2398 = vpop.f32.mrf.mxu0
        %v2399 = vadd.f32 %v2298, %v2398
        %v2400 = vpop.f32.mrf.mxu0
        %v2401 = vpop.f32.mrf.mxu0
        %v2402 = vadd.f32 %v2301, %v2401
        %v2403 = vpop.f32.mrf.mxu0
        %2404 = vmatprep.mubr.bf16.mxu0 0
        %2405 = vmatmul.mubr.bf16.gmra.mxu0 %v2356
        %v2406 = vpop.f32.mrf.mxu0
        %v2407 = vadd.f32 %v2306, %v2406
        %v2408 = vpop.f32.mrf.mxu0
        %v2409 = vpop.f32.mrf.mxu0
        %v2410 = vadd.f32 %v2309, %v2409
        %v2411 = vpop.f32.mrf.mxu0
        %2412 = vmatprep.mubr.bf16.mxu0 0
        %2413 = vmatmul.mubr.bf16.gmra.mxu0 %v2359
        %v2414 = vpop.f32.mrf.mxu0
        %v2415 = vadd.f32 %v2314, %v2414
        %v2416 = vpop.f32.mrf.mxu0
        %v2417 = vpop.f32.mrf.mxu0
        %v2418 = vadd.f32 %v2317, %v2417
        %v2419 = vpop.f32.mrf.mxu0
        %2420 = vmatprep.mubr.bf16.mxu0 0
        %2421 = vmatmul.mubr.bf16.gmra.mxu0 %v2362
        %v2422 = vpop.f32.mrf.mxu0
        %v2423 = vadd.f32 %v2322, %v2422
        %v2424 = vpop.f32.mrf.mxu0
        %v2425 = vpop.f32.mrf.mxu0
        %v2426 = vadd.f32 %v2325, %v2425
        %v2427 = vpop.f32.mrf.mxu0
        %2428 = vdwg.mxu0
        %v2429 = vld [vmem:[#allocation4 + $0x2] sm:$0xff]
        %v2430 = vld [vmem:[#allocation4 + $0x12] sm:$0xff]
        %v2431 = vld [vmem:[#allocation4 + $0x22] sm:$0xff]
        %v2432 = vld [vmem:[#allocation4 + $0x32] sm:$0xff]
        %v2433 = vld [vmem:[#allocation4 + $0x42] sm:$0xff]
        %v2434 = vld [vmem:[#allocation4 + $0x52] sm:$0xff]
        %v2435 = vld [vmem:[#allocation4 + $0x62] sm:$0xff]
        %v2436 = vld [vmem:[#allocation4 + $0x72] sm:$0xff]
        %v2437 = vpack.c.bf16 %v2430, %v2429
        %v2438 = vpack.c.bf16 %v2432, %v2431
        %v2439 = vpack.c.bf16 %v2434, %v2433
        %v2440 = vpack.c.bf16 %v2436, %v2435
        %s2441 = scalar_lea.vmem %s2, 352
        %v2442 = vld [vmem:[%s2441] sm:$0xf]
        %v2443 = vld [vmem:[%s2441 + $0x4] sm:$0xf]
        %v2444 = vld [vmem:[%s2441 + $0x8] sm:$0xf]
        %v2445 = vld [vmem:[%s2441 + $0xc] sm:$0xf]
        %v2446 = vld [vmem:[%s2441 + $0x10] sm:$0xf]
        %v2447 = vld [vmem:[%s2441 + $0x14] sm:$0xf]
        %v2448 = vld [vmem:[%s2441 + $0x18] sm:$0xf]
        %v2449 = vld [vmem:[%s2441 + $0x1c] sm:$0xf]
        %v2458 = vunpack.c.l.b16 %v2442
        %v2459 = vunpack.c.l.b16 %v2443
        %v2460 = vunpack.c.l.b16 %v2444
        %v2461 = vunpack.c.l.b16 %v2445
        %v2462 = vunpack.c.l.b16 %v2446
        %v2463 = vunpack.c.l.b16 %v2447
        %v2464 = vunpack.c.l.b16 %v2448
        %v2465 = vunpack.c.l.b16 %v2449
        %v2466 = vpack.c.b16 %v2459, %v2458
        %v2467 = vpack.c.b16 %v2461, %v2460
        %v2468 = vpack.c.b16 %v2463, %v2462
        %v2469 = vpack.c.b16 %v2465, %v2464
        %v2475 = vsel %vm703, %v2437, 0
        %v2478 = vsel %vm703, %v2438, 0
        %v2481 = vsel %vm703, %v2439, 0
        %v2484 = vsel %vm703, %v2440, 0
        %2486 = vmatprep.subr.bf16.mxu0 0
        %2487 = vmatpush1.bf16.msra.mxu0 0
        %2488 = vmatprep.subr.bf16.mxu0 0
        %2489 = vmatpush1.bf16.msra.mxu0 0
        %2490 = vmatprep.subr.bf16.mxu0 0
        %2491 = vmatpush1.bf16.msra.mxu0 0
        %2492 = vmatprep.subr.bf16.mxu0 0
        %2493 = vmatpush1.bf16.msra.mxu0 0
        %2494 = vmatprep.subr.bf16.mxu0 0
        %2495 = vmatpush1.bf16.msra.mxu0 %v2469
        %2496 = vmatprep.subr.bf16.mxu0 0
        %2497 = vmatpush1.bf16.msra.mxu0 %v2468
        %2498 = vmatprep.subr.bf16.mxu0 0
        %2499 = vmatpush1.bf16.msra.mxu0 %v2467
        %2500 = vmatprep.subr.bf16.mxu0 0
        %2501 = vmatpush1.bf16.msra.mxu0 %v2466
        %2502 = vmatprep.subr.bf16.mxu0 0
        %2503 = vmatpush2.bf16.msra.mxu0 0
        %2504 = vmatprep.subr.bf16.mxu0 0
        %2505 = vmatpush2.bf16.msra.mxu0 0
        %2506 = vmatprep.subr.bf16.mxu0 0
        %2507 = vmatpush2.bf16.msra.mxu0 0
        %2508 = vmatprep.subr.bf16.mxu0 0
        %2509 = vmatpush2.bf16.msra.mxu0 0
        %2510 = vmatprep.subr.bf16.mxu0 0
        %2511 = vmatpush2.bf16.msra.mxu0 0
        %2512 = vmatprep.subr.bf16.mxu0 0
        %2513 = vmatpush2.bf16.msra.mxu0 0
        %2514 = vmatprep.subr.bf16.mxu0 0
        %2515 = vmatpush2.bf16.msra.mxu0 0
        %2516 = vmatprep.subr.bf16.mxu0 0
        %2517 = vmatpush2.bf16.msra.mxu0 0
        %2518 = vmatprep.mubr.bf16.mxu0 0
        %2519 = vmatmul.mubr.bf16.gmra.mxu0 %v2475
        %v2520 = vpop.f32.mrf.mxu0
        %v2521 = vadd.f32 0.0, %v2520
        %v2522 = vpop.f32.mrf.mxu0
        %v2523 = vpop.f32.mrf.mxu0
        %v2524 = vadd.f32 0.0, %v2523
        %v2525 = vpop.f32.mrf.mxu0
        %2526 = vmatprep.mubr.bf16.mxu0 0
        %2527 = vmatmul.mubr.bf16.gmra.mxu0 %v2478
        %v2528 = vpop.f32.mrf.mxu0
        %v2529 = vadd.f32 0.0, %v2528
        %v2530 = vpop.f32.mrf.mxu0
        %v2531 = vpop.f32.mrf.mxu0
        %v2532 = vadd.f32 0.0, %v2531
        %v2533 = vpop.f32.mrf.mxu0
        %2534 = vmatprep.mubr.bf16.mxu0 0
        %2535 = vmatmul.mubr.bf16.gmra.mxu0 %v2481
        %v2536 = vpop.f32.mrf.mxu0
        %v2537 = vadd.f32 0.0, %v2536
        %v2538 = vpop.f32.mrf.mxu0
        %v2539 = vpop.f32.mrf.mxu0
        %v2540 = vadd.f32 0.0, %v2539
        %v2541 = vpop.f32.mrf.mxu0
        %2542 = vmatprep.mubr.bf16.mxu0 0
        %2543 = vmatmul.mubr.bf16.gmra.mxu0 %v2484
        %v2544 = vpop.f32.mrf.mxu0
        %v2545 = vadd.f32 0.0, %v2544
        %v2546 = vpop.f32.mrf.mxu0
        %v2547 = vpop.f32.mrf.mxu0
        %v2548 = vadd.f32 0.0, %v2547
        %v2549 = vpop.f32.mrf.mxu0
        %2550 = vdwg.mxu0
        %v2551 = vadd.f32 %v2399, %v2521
        %v2552 = vadd.f32 %v2402, %v2524
        %v2553 = vadd.f32 %v2407, %v2529
        %v2554 = vadd.f32 %v2410, %v2532
        %v2555 = vadd.f32 %v2415, %v2537
        %v2556 = vadd.f32 %v2418, %v2540
        %v2557 = vadd.f32 %v2423, %v2545
        %v2558 = vadd.f32 %v2426, %v2548
        %v2559 = vld [vmem:[%s2176] sm:$0xff]
        %v2560 = vld [vmem:[%s2176 + $0x10] sm:$0xff]
        %v2561 = vld [vmem:[%s2176 + $0x20] sm:$0xff]
        %v2562 = vld [vmem:[%s2176 + $0x30] sm:$0xff]
        %v2563 = vld [vmem:[%s2176 + $0x40] sm:$0xff]
        %v2564 = vld [vmem:[%s2176 + $0x50] sm:$0xff]
        %v2565 = vld [vmem:[%s2176 + $0x60] sm:$0xff]
        %v2566 = vld [vmem:[%s2176 + $0x70] sm:$0xff]
        %v2567 = vpack.c.bf16 %v2560, %v2559
        %v2568 = vpack.c.bf16 %v2562, %v2561
        %v2569 = vpack.c.bf16 %v2564, %v2563
        %v2570 = vpack.c.bf16 %v2566, %v2565
        %s2571 = scalar_lea.vmem %s2, 384
        %v2572 = vld [vmem:[%s2571] sm:$0xf]
        %v2573 = vld [vmem:[%s2571 + $0x4] sm:$0xf]
        %v2574 = vld [vmem:[%s2571 + $0x8] sm:$0xf]
        %v2575 = vld [vmem:[%s2571 + $0xc] sm:$0xf]
        %v2576 = vld [vmem:[%s2571 + $0x10] sm:$0xf]
        %v2577 = vld [vmem:[%s2571 + $0x14] sm:$0xf]
        %v2578 = vld [vmem:[%s2571 + $0x18] sm:$0xf]
        %v2579 = vld [vmem:[%s2571 + $0x1c] sm:$0xf]
        %v2588 = vunpack.c.l.b16 %v2572
        %v2589 = vunpack.c.l.b16 %v2573
        %v2590 = vunpack.c.l.b16 %v2574
        %v2591 = vunpack.c.l.b16 %v2575
        %v2592 = vunpack.c.l.b16 %v2576
        %v2593 = vunpack.c.l.b16 %v2577
        %v2594 = vunpack.c.l.b16 %v2578
        %v2595 = vunpack.c.l.b16 %v2579
        %v2596 = vpack.c.b16 %v2589, %v2588
        %v2597 = vpack.c.b16 %v2591, %v2590
        %v2598 = vpack.c.b16 %v2593, %v2592
        %v2599 = vpack.c.b16 %v2595, %v2594
        %v2605 = vsel %vm703, %v2567, 0
        %v2608 = vsel %vm703, %v2568, 0
        %v2611 = vsel %vm703, %v2569, 0
        %v2614 = vsel %vm703, %v2570, 0
        %2616 = vmatprep.subr.bf16.mxu0 0
        %2617 = vmatpush1.bf16.msra.mxu0 0
        %2618 = vmatprep.subr.bf16.mxu0 0
        %2619 = vmatpush1.bf16.msra.mxu0 0
        %2620 = vmatprep.subr.bf16.mxu0 0
        %2621 = vmatpush1.bf16.msra.mxu0 0
        %2622 = vmatprep.subr.bf16.mxu0 0
        %2623 = vmatpush1.bf16.msra.mxu0 0
        %2624 = vmatprep.subr.bf16.mxu0 0
        %2625 = vmatpush1.bf16.msra.mxu0 %v2599
        %2626 = vmatprep.subr.bf16.mxu0 0
        %2627 = vmatpush1.bf16.msra.mxu0 %v2598
        %2628 = vmatprep.subr.bf16.mxu0 0
        %2629 = vmatpush1.bf16.msra.mxu0 %v2597
        %2630 = vmatprep.subr.bf16.mxu0 0
        %2631 = vmatpush1.bf16.msra.mxu0 %v2596
        %2632 = vmatprep.subr.bf16.mxu0 0
        %2633 = vmatpush2.bf16.msra.mxu0 0
        %2634 = vmatprep.subr.bf16.mxu0 0
        %2635 = vmatpush2.bf16.msra.mxu0 0
        %2636 = vmatprep.subr.bf16.mxu0 0
        %2637 = vmatpush2.bf16.msra.mxu0 0
        %2638 = vmatprep.subr.bf16.mxu0 0
        %2639 = vmatpush2.bf16.msra.mxu0 0
        %2640 = vmatprep.subr.bf16.mxu0 0
        %2641 = vmatpush2.bf16.msra.mxu0 0
        %2642 = vmatprep.subr.bf16.mxu0 0
        %2643 = vmatpush2.bf16.msra.mxu0 0
        %2644 = vmatprep.subr.bf16.mxu0 0
        %2645 = vmatpush2.bf16.msra.mxu0 0
        %2646 = vmatprep.subr.bf16.mxu0 0
        %2647 = vmatpush2.bf16.msra.mxu0 0
        %2648 = vmatprep.mubr.bf16.mxu0 0
        %2649 = vmatmul.mubr.bf16.gmra.mxu0 %v2605
        %v2650 = vpop.f32.mrf.mxu0
        %v2651 = vadd.f32 0.0, %v2650
        %v2652 = vpop.f32.mrf.mxu0
        %v2653 = vpop.f32.mrf.mxu0
        %v2654 = vadd.f32 0.0, %v2653
        %v2655 = vpop.f32.mrf.mxu0
        %2656 = vmatprep.mubr.bf16.mxu0 0
        %2657 = vmatmul.mubr.bf16.gmra.mxu0 %v2608
        %v2658 = vpop.f32.mrf.mxu0
        %v2659 = vadd.f32 0.0, %v2658
        %v2660 = vpop.f32.mrf.mxu0
        %v2661 = vpop.f32.mrf.mxu0
        %v2662 = vadd.f32 0.0, %v2661
        %v2663 = vpop.f32.mrf.mxu0
        %2664 = vmatprep.mubr.bf16.mxu0 0
        %2665 = vmatmul.mubr.bf16.gmra.mxu0 %v2611
        %v2666 = vpop.f32.mrf.mxu0
        %v2667 = vadd.f32 0.0, %v2666
        %v2668 = vpop.f32.mrf.mxu0
        %v2669 = vpop.f32.mrf.mxu0
        %v2670 = vadd.f32 0.0, %v2669
        %v2671 = vpop.f32.mrf.mxu0
        %2672 = vmatprep.mubr.bf16.mxu0 0
        %2673 = vmatmul.mubr.bf16.gmra.mxu0 %v2614
        %v2674 = vpop.f32.mrf.mxu0
        %v2675 = vadd.f32 0.0, %v2674
        %v2676 = vpop.f32.mrf.mxu0
        %v2677 = vpop.f32.mrf.mxu0
        %v2678 = vadd.f32 0.0, %v2677
        %v2679 = vpop.f32.mrf.mxu0
        %2680 = vdwg.mxu0
        %v2681 = vadd.f32 %v2551, %v2651
        %v2682 = vadd.f32 %v2552, %v2654
        %v2683 = vadd.f32 %v2553, %v2659
        %v2684 = vadd.f32 %v2554, %v2662
        %v2685 = vadd.f32 %v2555, %v2667
        %v2686 = vadd.f32 %v2556, %v2670
        %v2687 = vadd.f32 %v2557, %v2675
        %v2688 = vadd.f32 %v2558, %v2678
        %v2689 = vld [vmem:[%s2176 + $0x1] sm:$0xff]
        %v2690 = vld [vmem:[%s2176 + $0x11] sm:$0xff]
        %v2691 = vld [vmem:[%s2176 + $0x21] sm:$0xff]
        %v2692 = vld [vmem:[%s2176 + $0x31] sm:$0xff]
        %v2693 = vld [vmem:[%s2176 + $0x41] sm:$0xff]
        %v2694 = vld [vmem:[%s2176 + $0x51] sm:$0xff]
        %v2695 = vld [vmem:[%s2176 + $0x61] sm:$0xff]
        %v2696 = vld [vmem:[%s2176 + $0x71] sm:$0xff]
        %v2697 = vpack.c.bf16 %v2690, %v2689
        %v2698 = vpack.c.bf16 %v2692, %v2691
        %v2699 = vpack.c.bf16 %v2694, %v2693
        %v2700 = vpack.c.bf16 %v2696, %v2695
        %s2701 = scalar_lea.vmem %s2, 416
        %v2702 = vld [vmem:[%s2701] sm:$0xf]
        %v2703 = vld [vmem:[%s2701 + $0x4] sm:$0xf]
        %v2704 = vld [vmem:[%s2701 + $0x8] sm:$0xf]
        %v2705 = vld [vmem:[%s2701 + $0xc] sm:$0xf]
        %v2706 = vld [vmem:[%s2701 + $0x10] sm:$0xf]
        %v2707 = vld [vmem:[%s2701 + $0x14] sm:$0xf]
        %v2708 = vld [vmem:[%s2701 + $0x18] sm:$0xf]
        %v2709 = vld [vmem:[%s2701 + $0x1c] sm:$0xf]
        %v2718 = vunpack.c.l.b16 %v2702
        %v2719 = vunpack.c.l.b16 %v2703
        %v2720 = vunpack.c.l.b16 %v2704
        %v2721 = vunpack.c.l.b16 %v2705
        %v2722 = vunpack.c.l.b16 %v2706
        %v2723 = vunpack.c.l.b16 %v2707
        %v2724 = vunpack.c.l.b16 %v2708
        %v2725 = vunpack.c.l.b16 %v2709
        %v2726 = vpack.c.b16 %v2719, %v2718
        %v2727 = vpack.c.b16 %v2721, %v2720
        %v2728 = vpack.c.b16 %v2723, %v2722
        %v2729 = vpack.c.b16 %v2725, %v2724
        %v2735 = vsel %vm703, %v2697, 0
        %v2738 = vsel %vm703, %v2698, 0
        %v2741 = vsel %vm703, %v2699, 0
        %v2744 = vsel %vm703, %v2700, 0
        %2746 = vmatprep.subr.bf16.mxu0 0
        %2747 = vmatpush1.bf16.msra.mxu0 0
        %2748 = vmatprep.subr.bf16.mxu0 0
        %2749 = vmatpush1.bf16.msra.mxu0 0
        %2750 = vmatprep.subr.bf16.mxu0 0
        %2751 = vmatpush1.bf16.msra.mxu0 0
        %2752 = vmatprep.subr.bf16.mxu0 0
        %2753 = vmatpush1.bf16.msra.mxu0 0
        %2754 = vmatprep.subr.bf16.mxu0 0
        %2755 = vmatpush1.bf16.msra.mxu0 %v2729
        %2756 = vmatprep.subr.bf16.mxu0 0
        %2757 = vmatpush1.bf16.msra.mxu0 %v2728
        %2758 = vmatprep.subr.bf16.mxu0 0
        %2759 = vmatpush1.bf16.msra.mxu0 %v2727
        %2760 = vmatprep.subr.bf16.mxu0 0
        %2761 = vmatpush1.bf16.msra.mxu0 %v2726
        %2762 = vmatprep.subr.bf16.mxu0 0
        %2763 = vmatpush2.bf16.msra.mxu0 0
        %2764 = vmatprep.subr.bf16.mxu0 0
        %2765 = vmatpush2.bf16.msra.mxu0 0
        %2766 = vmatprep.subr.bf16.mxu0 0
        %2767 = vmatpush2.bf16.msra.mxu0 0
        %2768 = vmatprep.subr.bf16.mxu0 0
        %2769 = vmatpush2.bf16.msra.mxu0 0
        %2770 = vmatprep.subr.bf16.mxu0 0
        %2771 = vmatpush2.bf16.msra.mxu0 0
        %2772 = vmatprep.subr.bf16.mxu0 0
        %2773 = vmatpush2.bf16.msra.mxu0 0
        %2774 = vmatprep.subr.bf16.mxu0 0
        %2775 = vmatpush2.bf16.msra.mxu0 0
        %2776 = vmatprep.subr.bf16.mxu0 0
        %2777 = vmatpush2.bf16.msra.mxu0 0
        %2778 = vmatprep.mubr.bf16.mxu0 0
        %2779 = vmatmul.mubr.bf16.gmra.mxu0 %v2735
        %v2780 = vpop.f32.mrf.mxu0
        %v2781 = vadd.f32 0.0, %v2780
        %v2782 = vpop.f32.mrf.mxu0
        %v2783 = vpop.f32.mrf.mxu0
        %v2784 = vadd.f32 0.0, %v2783
        %v2785 = vpop.f32.mrf.mxu0
        %2786 = vmatprep.mubr.bf16.mxu0 0
        %2787 = vmatmul.mubr.bf16.gmra.mxu0 %v2738
        %v2788 = vpop.f32.mrf.mxu0
        %v2789 = vadd.f32 0.0, %v2788
        %v2790 = vpop.f32.mrf.mxu0
        %v2791 = vpop.f32.mrf.mxu0
        %v2792 = vadd.f32 0.0, %v2791
        %v2793 = vpop.f32.mrf.mxu0
        %2794 = vmatprep.mubr.bf16.mxu0 0
        %2795 = vmatmul.mubr.bf16.gmra.mxu0 %v2741
        %v2796 = vpop.f32.mrf.mxu0
        %v2797 = vadd.f32 0.0, %v2796
        %v2798 = vpop.f32.mrf.mxu0
        %v2799 = vpop.f32.mrf.mxu0
        %v2800 = vadd.f32 0.0, %v2799
        %v2801 = vpop.f32.mrf.mxu0
        %2802 = vmatprep.mubr.bf16.mxu0 0
        %2803 = vmatmul.mubr.bf16.gmra.mxu0 %v2744
        %v2804 = vpop.f32.mrf.mxu0
        %v2805 = vadd.f32 0.0, %v2804
        %v2806 = vpop.f32.mrf.mxu0
        %v2807 = vpop.f32.mrf.mxu0
        %v2808 = vadd.f32 0.0, %v2807
        %v2809 = vpop.f32.mrf.mxu0
        %2810 = vdwg.mxu0
        %v2811 = vadd.f32 %v2681, %v2781
        %v2812 = vadd.f32 %v2682, %v2784
        %v2813 = vadd.f32 %v2683, %v2789
        %v2814 = vadd.f32 %v2684, %v2792
        %v2815 = vadd.f32 %v2685, %v2797
        %v2816 = vadd.f32 %v2686, %v2800
        %v2817 = vadd.f32 %v2687, %v2805
        %v2818 = vadd.f32 %v2688, %v2808
        %v2819 = vld [vmem:[%s2176 + $0x2] sm:$0xff]
        %v2820 = vld [vmem:[%s2176 + $0x12] sm:$0xff]
        %v2821 = vld [vmem:[%s2176 + $0x22] sm:$0xff]
        %v2822 = vld [vmem:[%s2176 + $0x32] sm:$0xff]
        %v2823 = vld [vmem:[%s2176 + $0x42] sm:$0xff]
        %v2824 = vld [vmem:[%s2176 + $0x52] sm:$0xff]
        %v2825 = vld [vmem:[%s2176 + $0x62] sm:$0xff]
        %v2826 = vld [vmem:[%s2176 + $0x72] sm:$0xff]
        %v2827 = vpack.c.bf16 %v2820, %v2819
        %v2828 = vpack.c.bf16 %v2822, %v2821
        %v2829 = vpack.c.bf16 %v2824, %v2823
        %v2830 = vpack.c.bf16 %v2826, %v2825
        %s2831 = scalar_lea.vmem %s2, 448
        %v2832 = vld [vmem:[%s2831] sm:$0xf]
        %v2833 = vld [vmem:[%s2831 + $0x4] sm:$0xf]
        %v2834 = vld [vmem:[%s2831 + $0x8] sm:$0xf]
        %v2835 = vld [vmem:[%s2831 + $0xc] sm:$0xf]
        %v2836 = vld [vmem:[%s2831 + $0x10] sm:$0xf]
        %v2837 = vld [vmem:[%s2831 + $0x14] sm:$0xf]
        %v2838 = vld [vmem:[%s2831 + $0x18] sm:$0xf]
        %v2839 = vld [vmem:[%s2831 + $0x1c] sm:$0xf]
        %v2848 = vunpack.c.l.b16 %v2832
        %v2849 = vunpack.c.l.b16 %v2833
        %v2850 = vunpack.c.l.b16 %v2834
        %v2851 = vunpack.c.l.b16 %v2835
        %v2852 = vunpack.c.l.b16 %v2836
        %v2853 = vunpack.c.l.b16 %v2837
        %v2854 = vunpack.c.l.b16 %v2838
        %v2855 = vunpack.c.l.b16 %v2839
        %v2856 = vpack.c.b16 %v2849, %v2848
        %v2857 = vpack.c.b16 %v2851, %v2850
        %v2858 = vpack.c.b16 %v2853, %v2852
        %v2859 = vpack.c.b16 %v2855, %v2854
        %v2865 = vsel %vm703, %v2827, 0
        %v2868 = vsel %vm703, %v2828, 0
        %v2871 = vsel %vm703, %v2829, 0
        %v2874 = vsel %vm703, %v2830, 0
        %2876 = vmatprep.subr.bf16.mxu0 0
        %2877 = vmatpush1.bf16.msra.mxu0 0
        %2878 = vmatprep.subr.bf16.mxu0 0
        %2879 = vmatpush1.bf16.msra.mxu0 0
        %2880 = vmatprep.subr.bf16.mxu0 0
        %2881 = vmatpush1.bf16.msra.mxu0 0
        %2882 = vmatprep.subr.bf16.mxu0 0
        %2883 = vmatpush1.bf16.msra.mxu0 0
        %2884 = vmatprep.subr.bf16.mxu0 0
        %2885 = vmatpush1.bf16.msra.mxu0 %v2859
        %2886 = vmatprep.subr.bf16.mxu0 0
        %2887 = vmatpush1.bf16.msra.mxu0 %v2858
        %2888 = vmatprep.subr.bf16.mxu0 0
        %2889 = vmatpush1.bf16.msra.mxu0 %v2857
        %2890 = vmatprep.subr.bf16.mxu0 0
        %2891 = vmatpush1.bf16.msra.mxu0 %v2856
        %2892 = vmatprep.subr.bf16.mxu0 0
        %2893 = vmatpush2.bf16.msra.mxu0 0
        %2894 = vmatprep.subr.bf16.mxu0 0
        %2895 = vmatpush2.bf16.msra.mxu0 0
        %2896 = vmatprep.subr.bf16.mxu0 0
        %2897 = vmatpush2.bf16.msra.mxu0 0
        %2898 = vmatprep.subr.bf16.mxu0 0
        %2899 = vmatpush2.bf16.msra.mxu0 0
        %2900 = vmatprep.subr.bf16.mxu0 0
        %2901 = vmatpush2.bf16.msra.mxu0 0
        %2902 = vmatprep.subr.bf16.mxu0 0
        %2903 = vmatpush2.bf16.msra.mxu0 0
        %2904 = vmatprep.subr.bf16.mxu0 0
        %2905 = vmatpush2.bf16.msra.mxu0 0
        %2906 = vmatprep.subr.bf16.mxu0 0
        %2907 = vmatpush2.bf16.msra.mxu0 0
        %2908 = vmatprep.mubr.bf16.mxu0 0
        %2909 = vmatmul.mubr.bf16.gmra.mxu0 %v2865
        %v2910 = vpop.f32.mrf.mxu0
        %v2911 = vadd.f32 0.0, %v2910
        %v2912 = vpop.f32.mrf.mxu0
        %v2913 = vpop.f32.mrf.mxu0
        %v2914 = vadd.f32 0.0, %v2913
        %v2915 = vpop.f32.mrf.mxu0
        %2916 = vmatprep.mubr.bf16.mxu0 0
        %2917 = vmatmul.mubr.bf16.gmra.mxu0 %v2868
        %v2918 = vpop.f32.mrf.mxu0
        %v2919 = vadd.f32 0.0, %v2918
        %v2920 = vpop.f32.mrf.mxu0
        %v2921 = vpop.f32.mrf.mxu0
        %v2922 = vadd.f32 0.0, %v2921
        %v2923 = vpop.f32.mrf.mxu0
        %2924 = vmatprep.mubr.bf16.mxu0 0
        %2925 = vmatmul.mubr.bf16.gmra.mxu0 %v2871
        %v2926 = vpop.f32.mrf.mxu0
        %v2927 = vadd.f32 0.0, %v2926
        %v2928 = vpop.f32.mrf.mxu0
        %v2929 = vpop.f32.mrf.mxu0
        %v2930 = vadd.f32 0.0, %v2929
        %v2931 = vpop.f32.mrf.mxu0
        %2932 = vmatprep.mubr.bf16.mxu0 0
        %2933 = vmatmul.mubr.bf16.gmra.mxu0 %v2874
        %v2934 = vpop.f32.mrf.mxu0
        %v2935 = vadd.f32 0.0, %v2934
        %v2936 = vpop.f32.mrf.mxu0
        %v2937 = vpop.f32.mrf.mxu0
        %v2938 = vadd.f32 0.0, %v2937
        %v2939 = vpop.f32.mrf.mxu0
        %2940 = vdwg.mxu0
        %v2941 = vadd.f32 %v2811, %v2911
        %v2942 = vadd.f32 %v2812, %v2914
        %v2943 = vadd.f32 %v2813, %v2919
        %v2944 = vadd.f32 %v2814, %v2922
        %v2945 = vadd.f32 %v2815, %v2927
        %v2946 = vadd.f32 %v2816, %v2930
        %v2947 = vadd.f32 %v2817, %v2935
        %v2948 = vadd.f32 %v2818, %v2938
        %s2949 = scalar_lea.vmem [#allocation4], 32
        %v2950 = vld [vmem:[%s2949] sm:$0xff]
        %v2951 = vld [vmem:[%s2949 + $0x10] sm:$0xff]
        %v2952 = vld [vmem:[%s2949 + $0x20] sm:$0xff]
        %v2953 = vld [vmem:[%s2949 + $0x30] sm:$0xff]
        %v2954 = vld [vmem:[%s2949 + $0x40] sm:$0xff]
        %v2955 = vld [vmem:[%s2949 + $0x50] sm:$0xff]
        %v2956 = vld [vmem:[%s2949 + $0x60] sm:$0xff]
        %v2957 = vld [vmem:[%s2949 + $0x70] sm:$0xff]
        %v2958 = vpack.c.bf16 %v2951, %v2950
        %v2959 = vpack.c.bf16 %v2953, %v2952
        %v2960 = vpack.c.bf16 %v2955, %v2954
        %v2961 = vpack.c.bf16 %v2957, %v2956
        %s2962 = scalar_lea.vmem %s2, 480
        %v2963 = vld [vmem:[%s2962] sm:$0xf]
        %v2964 = vld [vmem:[%s2962 + $0x4] sm:$0xf]
        %v2965 = vld [vmem:[%s2962 + $0x8] sm:$0xf]
        %v2966 = vld [vmem:[%s2962 + $0xc] sm:$0xf]
        %v2967 = vld [vmem:[%s2962 + $0x10] sm:$0xf]
        %v2968 = vld [vmem:[%s2962 + $0x14] sm:$0xf]
        %v2969 = vld [vmem:[%s2962 + $0x18] sm:$0xf]
        %v2970 = vld [vmem:[%s2962 + $0x1c] sm:$0xf]
        %v2979 = vunpack.c.l.b16 %v2963
        %v2980 = vunpack.c.l.b16 %v2964
        %v2981 = vunpack.c.l.b16 %v2965
        %v2982 = vunpack.c.l.b16 %v2966
        %v2983 = vunpack.c.l.b16 %v2967
        %v2984 = vunpack.c.l.b16 %v2968
        %v2985 = vunpack.c.l.b16 %v2969
        %v2986 = vunpack.c.l.b16 %v2970
        %v2987 = vpack.c.b16 %v2980, %v2979
        %v2988 = vpack.c.b16 %v2982, %v2981
        %v2989 = vpack.c.b16 %v2984, %v2983
        %v2990 = vpack.c.b16 %v2986, %v2985
        %v2996 = vsel %vm703, %v2958, 0
        %v2999 = vsel %vm703, %v2959, 0
        %v3002 = vsel %vm703, %v2960, 0
        %v3005 = vsel %vm703, %v2961, 0
        %3007 = vmatprep.subr.bf16.mxu0 0
        %3008 = vmatpush1.bf16.msra.mxu0 0
        %3009 = vmatprep.subr.bf16.mxu0 0
        %3010 = vmatpush1.bf16.msra.mxu0 0
        %3011 = vmatprep.subr.bf16.mxu0 0
        %3012 = vmatpush1.bf16.msra.mxu0 0
        %3013 = vmatprep.subr.bf16.mxu0 0
        %3014 = vmatpush1.bf16.msra.mxu0 0
        %3015 = vmatprep.subr.bf16.mxu0 0
        %3016 = vmatpush1.bf16.msra.mxu0 %v2990
        %3017 = vmatprep.subr.bf16.mxu0 0
        %3018 = vmatpush1.bf16.msra.mxu0 %v2989
        %3019 = vmatprep.subr.bf16.mxu0 0
        %3020 = vmatpush1.bf16.msra.mxu0 %v2988
        %3021 = vmatprep.subr.bf16.mxu0 0
        %3022 = vmatpush1.bf16.msra.mxu0 %v2987
        %3023 = vmatprep.subr.bf16.mxu0 0
        %3024 = vmatpush2.bf16.msra.mxu0 0
        %3025 = vmatprep.subr.bf16.mxu0 0
        %3026 = vmatpush2.bf16.msra.mxu0 0
        %3027 = vmatprep.subr.bf16.mxu0 0
        %3028 = vmatpush2.bf16.msra.mxu0 0
        %3029 = vmatprep.subr.bf16.mxu0 0
        %3030 = vmatpush2.bf16.msra.mxu0 0
        %3031 = vmatprep.subr.bf16.mxu0 0
        %3032 = vmatpush2.bf16.msra.mxu0 0
        %3033 = vmatprep.subr.bf16.mxu0 0
        %3034 = vmatpush2.bf16.msra.mxu0 0
        %3035 = vmatprep.subr.bf16.mxu0 0
        %3036 = vmatpush2.bf16.msra.mxu0 0
        %3037 = vmatprep.subr.bf16.mxu0 0
        %3038 = vmatpush2.bf16.msra.mxu0 0
        %3039 = vmatprep.mubr.bf16.mxu0 0
        %3040 = vmatmul.mubr.bf16.gmra.mxu0 %v2996
        %v3041 = vpop.f32.mrf.mxu0
        %v3042 = vadd.f32 0.0, %v3041
        %v3043 = vpop.f32.mrf.mxu0
        %v3044 = vpop.f32.mrf.mxu0
        %v3045 = vadd.f32 0.0, %v3044
        %v3046 = vpop.f32.mrf.mxu0
        %3047 = vmatprep.mubr.bf16.mxu0 0
        %3048 = vmatmul.mubr.bf16.gmra.mxu0 %v2999
        %v3049 = vpop.f32.mrf.mxu0
        %v3050 = vadd.f32 0.0, %v3049
        %v3051 = vpop.f32.mrf.mxu0
        %v3052 = vpop.f32.mrf.mxu0
        %v3053 = vadd.f32 0.0, %v3052
        %v3054 = vpop.f32.mrf.mxu0
        %3055 = vmatprep.mubr.bf16.mxu0 0
        %3056 = vmatmul.mubr.bf16.gmra.mxu0 %v3002
        %v3057 = vpop.f32.mrf.mxu0
        %v3058 = vadd.f32 0.0, %v3057
        %v3059 = vpop.f32.mrf.mxu0
        %v3060 = vpop.f32.mrf.mxu0
        %v3061 = vadd.f32 0.0, %v3060
        %v3062 = vpop.f32.mrf.mxu0
        %3063 = vmatprep.mubr.bf16.mxu0 0
        %3064 = vmatmul.mubr.bf16.gmra.mxu0 %v3005
        %v3065 = vpop.f32.mrf.mxu0
        %v3066 = vadd.f32 0.0, %v3065
        %v3067 = vpop.f32.mrf.mxu0
        %v3068 = vpop.f32.mrf.mxu0
        %v3069 = vadd.f32 0.0, %v3068
        %v3070 = vpop.f32.mrf.mxu0
        %3071 = vdwg.mxu0
        %v3072 = vadd.f32 %v2941, %v3042
        %v3073 = vadd.f32 %v2942, %v3045
        %v3074 = vadd.f32 %v2943, %v3050
        %v3075 = vadd.f32 %v2944, %v3053
        %v3076 = vadd.f32 %v2945, %v3058
        %v3077 = vadd.f32 %v2946, %v3061
        %v3078 = vadd.f32 %v2947, %v3066
        %v3079 = vadd.f32 %v2948, %v3069
        %v3080 = vld [vmem:[%s2949 + $0x1] sm:$0xff]
        %v3081 = vld [vmem:[%s2949 + $0x11] sm:$0xff]
        %v3082 = vld [vmem:[%s2949 + $0x21] sm:$0xff]
        %v3083 = vld [vmem:[%s2949 + $0x31] sm:$0xff]
        %v3084 = vld [vmem:[%s2949 + $0x41] sm:$0xff]
        %v3085 = vld [vmem:[%s2949 + $0x51] sm:$0xff]
        %v3086 = vld [vmem:[%s2949 + $0x61] sm:$0xff]
        %v3087 = vld [vmem:[%s2949 + $0x71] sm:$0xff]
        %v3088 = vpack.c.bf16 %v3081, %v3080
        %v3089 = vpack.c.bf16 %v3083, %v3082
        %v3090 = vpack.c.bf16 %v3085, %v3084
        %v3091 = vpack.c.bf16 %v3087, %v3086
        %s3092 = scalar_lea.vmem %s2, 512
        %v3093 = vld [vmem:[%s3092] sm:$0xf]
        %v3094 = vld [vmem:[%s3092 + $0x4] sm:$0xf]
        %v3095 = vld [vmem:[%s3092 + $0x8] sm:$0xf]
        %v3096 = vld [vmem:[%s3092 + $0xc] sm:$0xf]
        %v3097 = vld [vmem:[%s3092 + $0x10] sm:$0xf]
        %v3098 = vld [vmem:[%s3092 + $0x14] sm:$0xf]
        %v3099 = vld [vmem:[%s3092 + $0x18] sm:$0xf]
        %v3100 = vld [vmem:[%s3092 + $0x1c] sm:$0xf]
        %v3109 = vunpack.c.l.b16 %v3093
        %v3110 = vunpack.c.l.b16 %v3094
        %v3111 = vunpack.c.l.b16 %v3095
        %v3112 = vunpack.c.l.b16 %v3096
        %v3113 = vunpack.c.l.b16 %v3097
        %v3114 = vunpack.c.l.b16 %v3098
        %v3115 = vunpack.c.l.b16 %v3099
        %v3116 = vunpack.c.l.b16 %v3100
        %v3117 = vpack.c.b16 %v3110, %v3109
        %v3118 = vpack.c.b16 %v3112, %v3111
        %v3119 = vpack.c.b16 %v3114, %v3113
        %v3120 = vpack.c.b16 %v3116, %v3115
        %v3126 = vsel %vm703, %v3088, 0
        %v3129 = vsel %vm703, %v3089, 0
        %v3132 = vsel %vm703, %v3090, 0
        %v3135 = vsel %vm703, %v3091, 0
        %3137 = vmatprep.subr.bf16.mxu0 0
        %3138 = vmatpush1.bf16.msra.mxu0 0
        %3139 = vmatprep.subr.bf16.mxu0 0
        %3140 = vmatpush1.bf16.msra.mxu0 0
        %3141 = vmatprep.subr.bf16.mxu0 0
        %3142 = vmatpush1.bf16.msra.mxu0 0
        %3143 = vmatprep.subr.bf16.mxu0 0
        %3144 = vmatpush1.bf16.msra.mxu0 0
        %3145 = vmatprep.subr.bf16.mxu0 0
        %3146 = vmatpush1.bf16.msra.mxu0 %v3120
        %3147 = vmatprep.subr.bf16.mxu0 0
        %3148 = vmatpush1.bf16.msra.mxu0 %v3119
        %3149 = vmatprep.subr.bf16.mxu0 0
        %3150 = vmatpush1.bf16.msra.mxu0 %v3118
        %3151 = vmatprep.subr.bf16.mxu0 0
        %3152 = vmatpush1.bf16.msra.mxu0 %v3117
        %3153 = vmatprep.subr.bf16.mxu0 0
        %3154 = vmatpush2.bf16.msra.mxu0 0
        %3155 = vmatprep.subr.bf16.mxu0 0
        %3156 = vmatpush2.bf16.msra.mxu0 0
        %3157 = vmatprep.subr.bf16.mxu0 0
        %3158 = vmatpush2.bf16.msra.mxu0 0
        %3159 = vmatprep.subr.bf16.mxu0 0
        %3160 = vmatpush2.bf16.msra.mxu0 0
        %3161 = vmatprep.subr.bf16.mxu0 0
        %3162 = vmatpush2.bf16.msra.mxu0 0
        %3163 = vmatprep.subr.bf16.mxu0 0
        %3164 = vmatpush2.bf16.msra.mxu0 0
        %3165 = vmatprep.subr.bf16.mxu0 0
        %3166 = vmatpush2.bf16.msra.mxu0 0
        %3167 = vmatprep.subr.bf16.mxu0 0
        %3168 = vmatpush2.bf16.msra.mxu0 0
        %3169 = vmatprep.mubr.bf16.mxu0 0
        %3170 = vmatmul.mubr.bf16.gmra.mxu0 %v3126
        %v3171 = vpop.f32.mrf.mxu0
        %v3172 = vadd.f32 0.0, %v3171
        %v3173 = vpop.f32.mrf.mxu0
        %v3174 = vpop.f32.mrf.mxu0
        %v3175 = vadd.f32 0.0, %v3174
        %v3176 = vpop.f32.mrf.mxu0
        %3177 = vmatprep.mubr.bf16.mxu0 0
        %3178 = vmatmul.mubr.bf16.gmra.mxu0 %v3129
        %v3179 = vpop.f32.mrf.mxu0
        %v3180 = vadd.f32 0.0, %v3179
        %v3181 = vpop.f32.mrf.mxu0
        %v3182 = vpop.f32.mrf.mxu0
        %v3183 = vadd.f32 0.0, %v3182
        %v3184 = vpop.f32.mrf.mxu0
        %3185 = vmatprep.mubr.bf16.mxu0 0
        %3186 = vmatmul.mubr.bf16.gmra.mxu0 %v3132
        %v3187 = vpop.f32.mrf.mxu0
        %v3188 = vadd.f32 0.0, %v3187
        %v3189 = vpop.f32.mrf.mxu0
        %v3190 = vpop.f32.mrf.mxu0
        %v3191 = vadd.f32 0.0, %v3190
        %v3192 = vpop.f32.mrf.mxu0
        %3193 = vmatprep.mubr.bf16.mxu0 0
        %3194 = vmatmul.mubr.bf16.gmra.mxu0 %v3135
        %v3195 = vpop.f32.mrf.mxu0
        %v3196 = vadd.f32 0.0, %v3195
        %v3197 = vpop.f32.mrf.mxu0
        %v3198 = vpop.f32.mrf.mxu0
        %v3199 = vadd.f32 0.0, %v3198
        %v3200 = vpop.f32.mrf.mxu0
        %3201 = vdwg.mxu0
        %v3202 = vadd.f32 %v3072, %v3172
        %v3203 = vadd.f32 %v3073, %v3175
        %v3204 = vadd.f32 %v3074, %v3180
        %v3205 = vadd.f32 %v3075, %v3183
        %v3206 = vadd.f32 %v3076, %v3188
        %v3207 = vadd.f32 %v3077, %v3191
        %v3208 = vadd.f32 %v3078, %v3196
        %v3209 = vadd.f32 %v3079, %v3199
        %v3210 = vld [vmem:[%s2949 + $0x2] sm:$0xff]
        %v3211 = vld [vmem:[%s2949 + $0x12] sm:$0xff]
        %v3212 = vld [vmem:[%s2949 + $0x22] sm:$0xff]
        %v3213 = vld [vmem:[%s2949 + $0x32] sm:$0xff]
        %v3214 = vld [vmem:[%s2949 + $0x42] sm:$0xff]
        %v3215 = vld [vmem:[%s2949 + $0x52] sm:$0xff]
        %v3216 = vld [vmem:[%s2949 + $0x62] sm:$0xff]
        %v3217 = vld [vmem:[%s2949 + $0x72] sm:$0xff]
        %v3218 = vpack.c.bf16 %v3211, %v3210
        %v3219 = vpack.c.bf16 %v3213, %v3212
        %v3220 = vpack.c.bf16 %v3215, %v3214
        %v3221 = vpack.c.bf16 %v3217, %v3216
        %s3222 = scalar_lea.vmem %s2, 544
        %v3223 = vld [vmem:[%s3222] sm:$0xf]
        %v3224 = vld [vmem:[%s3222 + $0x4] sm:$0xf]
        %v3225 = vld [vmem:[%s3222 + $0x8] sm:$0xf]
        %v3226 = vld [vmem:[%s3222 + $0xc] sm:$0xf]
        %v3227 = vld [vmem:[%s3222 + $0x10] sm:$0xf]
        %v3228 = vld [vmem:[%s3222 + $0x14] sm:$0xf]
        %v3229 = vld [vmem:[%s3222 + $0x18] sm:$0xf]
        %v3230 = vld [vmem:[%s3222 + $0x1c] sm:$0xf]
        %v3239 = vunpack.c.l.b16 %v3223
        %v3240 = vunpack.c.l.b16 %v3224
        %v3241 = vunpack.c.l.b16 %v3225
        %v3242 = vunpack.c.l.b16 %v3226
        %v3243 = vunpack.c.l.b16 %v3227
        %v3244 = vunpack.c.l.b16 %v3228
        %v3245 = vunpack.c.l.b16 %v3229
        %v3246 = vunpack.c.l.b16 %v3230
        %v3247 = vpack.c.b16 %v3240, %v3239
        %v3248 = vpack.c.b16 %v3242, %v3241
        %v3249 = vpack.c.b16 %v3244, %v3243
        %v3250 = vpack.c.b16 %v3246, %v3245
        %v3256 = vsel %vm703, %v3218, 0
        %v3259 = vsel %vm703, %v3219, 0
        %v3262 = vsel %vm703, %v3220, 0
        %v3265 = vsel %vm703, %v3221, 0
        %3267 = vmatprep.subr.bf16.mxu0 0
        %3268 = vmatpush1.bf16.msra.mxu0 0
        %3269 = vmatprep.subr.bf16.mxu0 0
        %3270 = vmatpush1.bf16.msra.mxu0 0
        %3271 = vmatprep.subr.bf16.mxu0 0
        %3272 = vmatpush1.bf16.msra.mxu0 0
        %3273 = vmatprep.subr.bf16.mxu0 0
        %3274 = vmatpush1.bf16.msra.mxu0 0
        %3275 = vmatprep.subr.bf16.mxu0 0
        %3276 = vmatpush1.bf16.msra.mxu0 %v3250
        %3277 = vmatprep.subr.bf16.mxu0 0
        %3278 = vmatpush1.bf16.msra.mxu0 %v3249
        %3279 = vmatprep.subr.bf16.mxu0 0
        %3280 = vmatpush1.bf16.msra.mxu0 %v3248
        %3281 = vmatprep.subr.bf16.mxu0 0
        %3282 = vmatpush1.bf16.msra.mxu0 %v3247
        %3283 = vmatprep.subr.bf16.mxu0 0
        %3284 = vmatpush2.bf16.msra.mxu0 0
        %3285 = vmatprep.subr.bf16.mxu0 0
        %3286 = vmatpush2.bf16.msra.mxu0 0
        %3287 = vmatprep.subr.bf16.mxu0 0
        %3288 = vmatpush2.bf16.msra.mxu0 0
        %3289 = vmatprep.subr.bf16.mxu0 0
        %3290 = vmatpush2.bf16.msra.mxu0 0
        %3291 = vmatprep.subr.bf16.mxu0 0
        %3292 = vmatpush2.bf16.msra.mxu0 0
        %3293 = vmatprep.subr.bf16.mxu0 0
        %3294 = vmatpush2.bf16.msra.mxu0 0
        %3295 = vmatprep.subr.bf16.mxu0 0
        %3296 = vmatpush2.bf16.msra.mxu0 0
        %3297 = vmatprep.subr.bf16.mxu0 0
        %3298 = vmatpush2.bf16.msra.mxu0 0
        %3299 = vmatprep.mubr.bf16.mxu0 0
        %3300 = vmatmul.mubr.bf16.gmra.mxu0 %v3256
        %v3301 = vpop.f32.mrf.mxu0
        %v3302 = vadd.f32 0.0, %v3301
        %v3303 = vpop.f32.mrf.mxu0
        %v3304 = vpop.f32.mrf.mxu0
        %v3305 = vadd.f32 0.0, %v3304
        %v3306 = vpop.f32.mrf.mxu0
        %3307 = vmatprep.mubr.bf16.mxu0 0
        %3308 = vmatmul.mubr.bf16.gmra.mxu0 %v3259
        %v3309 = vpop.f32.mrf.mxu0
        %v3310 = vadd.f32 0.0, %v3309
        %v3311 = vpop.f32.mrf.mxu0
        %v3312 = vpop.f32.mrf.mxu0
        %v3313 = vadd.f32 0.0, %v3312
        %v3314 = vpop.f32.mrf.mxu0
        %3315 = vmatprep.mubr.bf16.mxu0 0
        %3316 = vmatmul.mubr.bf16.gmra.mxu0 %v3262
        %v3317 = vpop.f32.mrf.mxu0
        %v3318 = vadd.f32 0.0, %v3317
        %v3319 = vpop.f32.mrf.mxu0
        %v3320 = vpop.f32.mrf.mxu0
        %v3321 = vadd.f32 0.0, %v3320
        %v3322 = vpop.f32.mrf.mxu0
        %3323 = vmatprep.mubr.bf16.mxu0 0
        %3324 = vmatmul.mubr.bf16.gmra.mxu0 %v3265
        %v3325 = vpop.f32.mrf.mxu0
        %v3326 = vadd.f32 0.0, %v3325
        %v3327 = vpop.f32.mrf.mxu0
        %v3328 = vpop.f32.mrf.mxu0
        %v3329 = vadd.f32 0.0, %v3328
        %v3330 = vpop.f32.mrf.mxu0
        %3331 = vdwg.mxu0
        %v3332 = vadd.f32 %v3202, %v3302
        %v3333 = vadd.f32 %v3203, %v3305
        %v3334 = vadd.f32 %v3204, %v3310
        %v3335 = vadd.f32 %v3205, %v3313
        %v3336 = vadd.f32 %v3206, %v3318
        %v3337 = vadd.f32 %v3207, %v3321
        %v3338 = vadd.f32 %v3208, %v3326
        %v3339 = vadd.f32 %v3209, %v3329
        %v3340 = vld [vmem:[%s3 + $0x2] sm:$0x1]
        %v3341 = vlaneseq
        %v3342 = vshrl.u32 %v3341, 7
        %v3343 = vsub.s32 0, %v3342
        %v3344 = vrot.slane %v3340, %v3343
        %v3345 = vadd.f32 %v3332, %v3344
        %v3346 = vadd.f32 %v3333, %v3344
        %v3347 = vadd.f32 %v3334, %v3344
        %v3348 = vadd.f32 %v3335, %v3344
        %v3349 = vadd.f32 %v3336, %v3344
        %v3350 = vadd.f32 %v3337, %v3344
        %v3351 = vadd.f32 %v3338, %v3344
        %v3352 = vadd.f32 %v3339, %v3344
        %v3353 = vadd.f32 %v3345, %v943
        %v3354 = vadd.f32 %v3346, %v944
        %v3355 = vadd.f32 %v3347, %v945
        %v3356 = vadd.f32 %v3348, %v946
        %v3357 = vadd.f32 %v3349, %v947
        %v3358 = vadd.f32 %v3350, %v948
        %v3359 = vadd.f32 %v3351, %v949
        %v3360 = vadd.f32 %v3352, %v950
        %v3361 = vmax.f32 %v3353, 0.0
        %v3362 = vmax.f32 %v3354, 0.0
        %v3363 = vmax.f32 %v3355, 0.0
        %v3364 = vmax.f32 %v3356, 0.0
        %v3365 = vmax.f32 %v3357, 0.0
        %v3366 = vmax.f32 %v3358, 0.0
        %v3367 = vmax.f32 %v3359, 0.0
        %v3368 = vmax.f32 %v3360, 0.0
        %3369 = vst.msk [vmem:[%s992 + $0x1] sm:$0xff] %vm703, %v3361
        %3370 = vst.msk [vmem:[%s992 + $0x11] sm:$0xff] %vm703, %v3362
        %3371 = vst.msk [vmem:[%s992 + $0x21] sm:$0xff] %vm703, %v3363
        %3372 = vst.msk [vmem:[%s992 + $0x31] sm:$0xff] %vm703, %v3364
        %3373 = vst.msk [vmem:[%s992 + $0x41] sm:$0xff] %vm703, %v3365
        %3374 = vst.msk [vmem:[%s992 + $0x51] sm:$0xff] %vm703, %v3366
        %3375 = vst.msk [vmem:[%s992 + $0x61] sm:$0xff] %vm703, %v3367
        %3376 = vst.msk [vmem:[%s992 + $0x71] sm:$0xff] %vm703, %v3368
        %v3377 = vld [vmem:[#allocation3] sm:$0xff]
        %v3378 = vld [vmem:[#allocation3 + $0x10] sm:$0xff]
        %v3379 = vld [vmem:[#allocation3 + $0x20] sm:$0xff]
        %v3380 = vld [vmem:[#allocation3 + $0x30] sm:$0xff]
        %v3381 = vld [vmem:[#allocation3 + $0x40] sm:$0xff]
        %v3382 = vld [vmem:[#allocation3 + $0x50] sm:$0xff]
        %v3383 = vld [vmem:[#allocation3 + $0x60] sm:$0xff]
        %v3384 = vld [vmem:[#allocation3 + $0x70] sm:$0xff]
        %v3385 = vpack.c.bf16 %v3378, %v3377
        %v3386 = vpack.c.bf16 %v3380, %v3379
        %v3387 = vpack.c.bf16 %v3382, %v3381
        %v3388 = vpack.c.bf16 %v3384, %v3383
        %s3389 = scalar_lea.vmem %s2, 576
        %v3390 = vld [vmem:[%s3389] sm:$0xf]
        %v3391 = vld [vmem:[%s3389 + $0x4] sm:$0xf]
        %v3392 = vld [vmem:[%s3389 + $0x8] sm:$0xf]
        %v3393 = vld [vmem:[%s3389 + $0xc] sm:$0xf]
        %v3394 = vld [vmem:[%s3389 + $0x10] sm:$0xf]
        %v3395 = vld [vmem:[%s3389 + $0x14] sm:$0xf]
        %v3396 = vld [vmem:[%s3389 + $0x18] sm:$0xf]
        %v3397 = vld [vmem:[%s3389 + $0x1c] sm:$0xf]
        %v3398 = vld [vmem:[#allocation3 + $0x1] sm:$0xff]
        %v3399 = vld [vmem:[#allocation3 + $0x11] sm:$0xff]
        %v3400 = vld [vmem:[#allocation3 + $0x21] sm:$0xff]
        %v3401 = vld [vmem:[#allocation3 + $0x31] sm:$0xff]
        %v3402 = vld [vmem:[#allocation3 + $0x41] sm:$0xff]
        %v3403 = vld [vmem:[#allocation3 + $0x51] sm:$0xff]
        %v3404 = vld [vmem:[#allocation3 + $0x61] sm:$0xff]
        %v3405 = vld [vmem:[#allocation3 + $0x71] sm:$0xff]
        %v3406 = vpack.c.bf16 %v3399, %v3398
        %v3407 = vpack.c.bf16 %v3401, %v3400
        %v3408 = vpack.c.bf16 %v3403, %v3402
        %v3409 = vpack.c.bf16 %v3405, %v3404
        %s3410 = scalar_lea.vmem %s2, 608
        %v3411 = vld [vmem:[%s3410] sm:$0xf]
        %v3412 = vld [vmem:[%s3410 + $0x4] sm:$0xf]
        %v3413 = vld [vmem:[%s3410 + $0x8] sm:$0xf]
        %v3414 = vld [vmem:[%s3410 + $0xc] sm:$0xf]
        %v3415 = vld [vmem:[%s3410 + $0x10] sm:$0xf]
        %v3416 = vld [vmem:[%s3410 + $0x14] sm:$0xf]
        %v3417 = vld [vmem:[%s3410 + $0x18] sm:$0xf]
        %v3418 = vld [vmem:[%s3410 + $0x1c] sm:$0xf]
        %v3427 = vunpack.c.l.b16 %v3411
        %v3428 = vunpack.c.l.b16 %v3412
        %v3429 = vunpack.c.l.b16 %v3413
        %v3430 = vunpack.c.l.b16 %v3414
        %v3431 = vunpack.c.l.b16 %v3415
        %v3432 = vunpack.c.l.b16 %v3416
        %v3433 = vunpack.c.l.b16 %v3417
        %v3434 = vunpack.c.l.b16 %v3418
        %v3435 = vpack.c.b16 %v3428, %v3427
        %v3436 = vpack.c.b16 %v3430, %v3429
        %v3437 = vpack.c.b16 %v3432, %v3431
        %v3438 = vpack.c.b16 %v3434, %v3433
        %v3444 = vsel %vm703, %v3406, 0
        %v3447 = vsel %vm703, %v3407, 0
        %v3450 = vsel %vm703, %v3408, 0
        %v3453 = vsel %vm703, %v3409, 0
        %3455 = vmatprep.subr.bf16.mxu0 0
        %3456 = vmatpush1.bf16.msra.mxu0 0
        %3457 = vmatprep.subr.bf16.mxu0 0
        %3458 = vmatpush1.bf16.msra.mxu0 0
        %3459 = vmatprep.subr.bf16.mxu0 0
        %3460 = vmatpush1.bf16.msra.mxu0 0
        %3461 = vmatprep.subr.bf16.mxu0 0
        %3462 = vmatpush1.bf16.msra.mxu0 0
        %3463 = vmatprep.subr.bf16.mxu0 0
        %3464 = vmatpush1.bf16.msra.mxu0 %v3438
        %3465 = vmatprep.subr.bf16.mxu0 0
        %3466 = vmatpush1.bf16.msra.mxu0 %v3437
        %3467 = vmatprep.subr.bf16.mxu0 0
        %3468 = vmatpush1.bf16.msra.mxu0 %v3436
        %3469 = vmatprep.subr.bf16.mxu0 0
        %3470 = vmatpush1.bf16.msra.mxu0 %v3435
        %3471 = vmatprep.subr.bf16.mxu0 0
        %3472 = vmatpush2.bf16.msra.mxu0 0
        %3473 = vmatprep.subr.bf16.mxu0 0
        %3474 = vmatpush2.bf16.msra.mxu0 0
        %3475 = vmatprep.subr.bf16.mxu0 0
        %3476 = vmatpush2.bf16.msra.mxu0 0
        %3477 = vmatprep.subr.bf16.mxu0 0
        %3478 = vmatpush2.bf16.msra.mxu0 0
        %3479 = vmatprep.subr.bf16.mxu0 0
        %3480 = vmatpush2.bf16.msra.mxu0 0
        %3481 = vmatprep.subr.bf16.mxu0 0
        %3482 = vmatpush2.bf16.msra.mxu0 0
        %3483 = vmatprep.subr.bf16.mxu0 0
        %3484 = vmatpush2.bf16.msra.mxu0 0
        %3485 = vmatprep.subr.bf16.mxu0 0
        %3486 = vmatpush2.bf16.msra.mxu0 0
        %3487 = vmatprep.mubr.bf16.mxu0 0
        %3488 = vmatmul.mubr.bf16.gmra.mxu0 %v3444
        %v3489 = vpop.f32.mrf.mxu0
        %v3490 = vadd.f32 0.0, %v3489
        %v3491 = vpop.f32.mrf.mxu0
        %v3492 = vpop.f32.mrf.mxu0
        %v3493 = vadd.f32 0.0, %v3492
        %v3494 = vpop.f32.mrf.mxu0
        %3495 = vmatprep.mubr.bf16.mxu0 0
        %3496 = vmatmul.mubr.bf16.gmra.mxu0 %v3447
        %v3497 = vpop.f32.mrf.mxu0
        %v3498 = vadd.f32 0.0, %v3497
        %v3499 = vpop.f32.mrf.mxu0
        %v3500 = vpop.f32.mrf.mxu0
        %v3501 = vadd.f32 0.0, %v3500
        %v3502 = vpop.f32.mrf.mxu0
        %3503 = vmatprep.mubr.bf16.mxu0 0
        %3504 = vmatmul.mubr.bf16.gmra.mxu0 %v3450
        %v3505 = vpop.f32.mrf.mxu0
        %v3506 = vadd.f32 0.0, %v3505
        %v3507 = vpop.f32.mrf.mxu0
        %v3508 = vpop.f32.mrf.mxu0
        %v3509 = vadd.f32 0.0, %v3508
        %v3510 = vpop.f32.mrf.mxu0
        %3511 = vmatprep.mubr.bf16.mxu0 0
        %3512 = vmatmul.mubr.bf16.gmra.mxu0 %v3453
        %v3513 = vpop.f32.mrf.mxu0
        %v3514 = vadd.f32 0.0, %v3513
        %v3515 = vpop.f32.mrf.mxu0
        %v3516 = vpop.f32.mrf.mxu0
        %v3517 = vadd.f32 0.0, %v3516
        %v3518 = vpop.f32.mrf.mxu0
        %3519 = vdwg.mxu0
        %v3528 = vunpack.c.l.b16 %v3390
        %v3529 = vunpack.c.l.b16 %v3391
        %v3530 = vunpack.c.l.b16 %v3392
        %v3531 = vunpack.c.l.b16 %v3393
        %v3532 = vunpack.c.l.b16 %v3394
        %v3533 = vunpack.c.l.b16 %v3395
        %v3534 = vunpack.c.l.b16 %v3396
        %v3535 = vunpack.c.l.b16 %v3397
        %v3536 = vpack.c.b16 %v3529, %v3528
        %v3537 = vpack.c.b16 %v3531, %v3530
        %v3538 = vpack.c.b16 %v3533, %v3532
        %v3539 = vpack.c.b16 %v3535, %v3534
        %v3545 = vsel %vm703, %v3385, 0
        %v3548 = vsel %vm703, %v3386, 0
        %v3551 = vsel %vm703, %v3387, 0
        %v3554 = vsel %vm703, %v3388, 0
        %3556 = vmatprep.subr.bf16.mxu0 0
        %3557 = vmatpush1.bf16.msra.mxu0 0
        %3558 = vmatprep.subr.bf16.mxu0 0
        %3559 = vmatpush1.bf16.msra.mxu0 0
        %3560 = vmatprep.subr.bf16.mxu0 0
        %3561 = vmatpush1.bf16.msra.mxu0 0
        %3562 = vmatprep.subr.bf16.mxu0 0
        %3563 = vmatpush1.bf16.msra.mxu0 0
        %3564 = vmatprep.subr.bf16.mxu0 0
        %3565 = vmatpush1.bf16.msra.mxu0 %v3539
        %3566 = vmatprep.subr.bf16.mxu0 0
        %3567 = vmatpush1.bf16.msra.mxu0 %v3538
        %3568 = vmatprep.subr.bf16.mxu0 0
        %3569 = vmatpush1.bf16.msra.mxu0 %v3537
        %3570 = vmatprep.subr.bf16.mxu0 0
        %3571 = vmatpush1.bf16.msra.mxu0 %v3536
        %3572 = vmatprep.subr.bf16.mxu0 0
        %3573 = vmatpush2.bf16.msra.mxu0 0
        %3574 = vmatprep.subr.bf16.mxu0 0
        %3575 = vmatpush2.bf16.msra.mxu0 0
        %3576 = vmatprep.subr.bf16.mxu0 0
        %3577 = vmatpush2.bf16.msra.mxu0 0
        %3578 = vmatprep.subr.bf16.mxu0 0
        %3579 = vmatpush2.bf16.msra.mxu0 0
        %3580 = vmatprep.subr.bf16.mxu0 0
        %3581 = vmatpush2.bf16.msra.mxu0 0
        %3582 = vmatprep.subr.bf16.mxu0 0
        %3583 = vmatpush2.bf16.msra.mxu0 0
        %3584 = vmatprep.subr.bf16.mxu0 0
        %3585 = vmatpush2.bf16.msra.mxu0 0
        %3586 = vmatprep.subr.bf16.mxu0 0
        %3587 = vmatpush2.bf16.msra.mxu0 0
        %3588 = vmatprep.mubr.bf16.mxu0 0
        %3589 = vmatmul.mubr.bf16.gmra.mxu0 %v3545
        %v3590 = vpop.f32.mrf.mxu0
        %v3591 = vadd.f32 %v3490, %v3590
        %v3592 = vpop.f32.mrf.mxu0
        %v3593 = vpop.f32.mrf.mxu0
        %v3594 = vadd.f32 %v3493, %v3593
        %v3595 = vpop.f32.mrf.mxu0
        %3596 = vmatprep.mubr.bf16.mxu0 0
        %3597 = vmatmul.mubr.bf16.gmra.mxu0 %v3548
        %v3598 = vpop.f32.mrf.mxu0
        %v3599 = vadd.f32 %v3498, %v3598
        %v3600 = vpop.f32.mrf.mxu0
        %v3601 = vpop.f32.mrf.mxu0
        %v3602 = vadd.f32 %v3501, %v3601
        %v3603 = vpop.f32.mrf.mxu0
        %3604 = vmatprep.mubr.bf16.mxu0 0
        %3605 = vmatmul.mubr.bf16.gmra.mxu0 %v3551
        %v3606 = vpop.f32.mrf.mxu0
        %v3607 = vadd.f32 %v3506, %v3606
        %v3608 = vpop.f32.mrf.mxu0
        %v3609 = vpop.f32.mrf.mxu0
        %v3610 = vadd.f32 %v3509, %v3609
        %v3611 = vpop.f32.mrf.mxu0
        %3612 = vmatprep.mubr.bf16.mxu0 0
        %3613 = vmatmul.mubr.bf16.gmra.mxu0 %v3554
        %v3614 = vpop.f32.mrf.mxu0
        %v3615 = vadd.f32 %v3514, %v3614
        %v3616 = vpop.f32.mrf.mxu0
        %v3617 = vpop.f32.mrf.mxu0
        %v3618 = vadd.f32 %v3517, %v3617
        %v3619 = vpop.f32.mrf.mxu0
        %3620 = vdwg.mxu0
        %v3621 = vld [vmem:[#allocation3 + $0x2] sm:$0xff]
        %v3622 = vld [vmem:[#allocation3 + $0x12] sm:$0xff]
        %v3623 = vld [vmem:[#allocation3 + $0x22] sm:$0xff]
        %v3624 = vld [vmem:[#allocation3 + $0x32] sm:$0xff]
        %v3625 = vld [vmem:[#allocation3 + $0x42] sm:$0xff]
        %v3626 = vld [vmem:[#allocation3 + $0x52] sm:$0xff]
        %v3627 = vld [vmem:[#allocation3 + $0x62] sm:$0xff]
        %v3628 = vld [vmem:[#allocation3 + $0x72] sm:$0xff]
        %v3629 = vpack.c.bf16 %v3622, %v3621
        %v3630 = vpack.c.bf16 %v3624, %v3623
        %v3631 = vpack.c.bf16 %v3626, %v3625
        %v3632 = vpack.c.bf16 %v3628, %v3627
        %s3633 = scalar_lea.vmem %s2, 640
        %v3634 = vld [vmem:[%s3633] sm:$0xf]
        %v3635 = vld [vmem:[%s3633 + $0x4] sm:$0xf]
        %v3636 = vld [vmem:[%s3633 + $0x8] sm:$0xf]
        %v3637 = vld [vmem:[%s3633 + $0xc] sm:$0xf]
        %v3638 = vld [vmem:[%s3633 + $0x10] sm:$0xf]
        %v3639 = vld [vmem:[%s3633 + $0x14] sm:$0xf]
        %v3640 = vld [vmem:[%s3633 + $0x18] sm:$0xf]
        %v3641 = vld [vmem:[%s3633 + $0x1c] sm:$0xf]
        %v3650 = vunpack.c.l.b16 %v3634
        %v3651 = vunpack.c.l.b16 %v3635
        %v3652 = vunpack.c.l.b16 %v3636
        %v3653 = vunpack.c.l.b16 %v3637
        %v3654 = vunpack.c.l.b16 %v3638
        %v3655 = vunpack.c.l.b16 %v3639
        %v3656 = vunpack.c.l.b16 %v3640
        %v3657 = vunpack.c.l.b16 %v3641
        %v3658 = vpack.c.b16 %v3651, %v3650
        %v3659 = vpack.c.b16 %v3653, %v3652
        %v3660 = vpack.c.b16 %v3655, %v3654
        %v3661 = vpack.c.b16 %v3657, %v3656
        %v3667 = vsel %vm703, %v3629, 0
        %v3670 = vsel %vm703, %v3630, 0
        %v3673 = vsel %vm703, %v3631, 0
        %v3676 = vsel %vm703, %v3632, 0
        %3678 = vmatprep.subr.bf16.mxu0 0
        %3679 = vmatpush1.bf16.msra.mxu0 0
        %3680 = vmatprep.subr.bf16.mxu0 0
        %3681 = vmatpush1.bf16.msra.mxu0 0
        %3682 = vmatprep.subr.bf16.mxu0 0
        %3683 = vmatpush1.bf16.msra.mxu0 0
        %3684 = vmatprep.subr.bf16.mxu0 0
        %3685 = vmatpush1.bf16.msra.mxu0 0
        %3686 = vmatprep.subr.bf16.mxu0 0
        %3687 = vmatpush1.bf16.msra.mxu0 %v3661
        %3688 = vmatprep.subr.bf16.mxu0 0
        %3689 = vmatpush1.bf16.msra.mxu0 %v3660
        %3690 = vmatprep.subr.bf16.mxu0 0
        %3691 = vmatpush1.bf16.msra.mxu0 %v3659
        %3692 = vmatprep.subr.bf16.mxu0 0
        %3693 = vmatpush1.bf16.msra.mxu0 %v3658
        %3694 = vmatprep.subr.bf16.mxu0 0
        %3695 = vmatpush2.bf16.msra.mxu0 0
        %3696 = vmatprep.subr.bf16.mxu0 0
        %3697 = vmatpush2.bf16.msra.mxu0 0
        %3698 = vmatprep.subr.bf16.mxu0 0
        %3699 = vmatpush2.bf16.msra.mxu0 0
        %3700 = vmatprep.subr.bf16.mxu0 0
        %3701 = vmatpush2.bf16.msra.mxu0 0
        %3702 = vmatprep.subr.bf16.mxu0 0
        %3703 = vmatpush2.bf16.msra.mxu0 0
        %3704 = vmatprep.subr.bf16.mxu0 0
        %3705 = vmatpush2.bf16.msra.mxu0 0
        %3706 = vmatprep.subr.bf16.mxu0 0
        %3707 = vmatpush2.bf16.msra.mxu0 0
        %3708 = vmatprep.subr.bf16.mxu0 0
        %3709 = vmatpush2.bf16.msra.mxu0 0
        %3710 = vmatprep.mubr.bf16.mxu0 0
        %3711 = vmatmul.mubr.bf16.gmra.mxu0 %v3667
        %v3712 = vpop.f32.mrf.mxu0
        %v3713 = vadd.f32 0.0, %v3712
        %v3714 = vpop.f32.mrf.mxu0
        %v3715 = vpop.f32.mrf.mxu0
        %v3716 = vadd.f32 0.0, %v3715
        %v3717 = vpop.f32.mrf.mxu0
        %3718 = vmatprep.mubr.bf16.mxu0 0
        %3719 = vmatmul.mubr.bf16.gmra.mxu0 %v3670
        %v3720 = vpop.f32.mrf.mxu0
        %v3721 = vadd.f32 0.0, %v3720
        %v3722 = vpop.f32.mrf.mxu0
        %v3723 = vpop.f32.mrf.mxu0
        %v3724 = vadd.f32 0.0, %v3723
        %v3725 = vpop.f32.mrf.mxu0
        %3726 = vmatprep.mubr.bf16.mxu0 0
        %3727 = vmatmul.mubr.bf16.gmra.mxu0 %v3673
        %v3728 = vpop.f32.mrf.mxu0
        %v3729 = vadd.f32 0.0, %v3728
        %v3730 = vpop.f32.mrf.mxu0
        %v3731 = vpop.f32.mrf.mxu0
        %v3732 = vadd.f32 0.0, %v3731
        %v3733 = vpop.f32.mrf.mxu0
        %3734 = vmatprep.mubr.bf16.mxu0 0
        %3735 = vmatmul.mubr.bf16.gmra.mxu0 %v3676
        %v3736 = vpop.f32.mrf.mxu0
        %v3737 = vadd.f32 0.0, %v3736
        %v3738 = vpop.f32.mrf.mxu0
        %v3739 = vpop.f32.mrf.mxu0
        %v3740 = vadd.f32 0.0, %v3739
        %v3741 = vpop.f32.mrf.mxu0
        %3742 = vdwg.mxu0
        %v3743 = vadd.f32 %v3591, %v3713
        %v3744 = vadd.f32 %v3594, %v3716
        %v3745 = vadd.f32 %v3599, %v3721
        %v3746 = vadd.f32 %v3602, %v3724
        %v3747 = vadd.f32 %v3607, %v3729
        %v3748 = vadd.f32 %v3610, %v3732
        %v3749 = vadd.f32 %v3615, %v3737
        %v3750 = vadd.f32 %v3618, %v3740
        %v3751 = vld [vmem:[%s992] sm:$0xff]
        %v3752 = vld [vmem:[%s992 + $0x10] sm:$0xff]
        %v3753 = vld [vmem:[%s992 + $0x20] sm:$0xff]
        %v3754 = vld [vmem:[%s992 + $0x30] sm:$0xff]
        %v3755 = vld [vmem:[%s992 + $0x40] sm:$0xff]
        %v3756 = vld [vmem:[%s992 + $0x50] sm:$0xff]
        %v3757 = vld [vmem:[%s992 + $0x60] sm:$0xff]
        %v3758 = vld [vmem:[%s992 + $0x70] sm:$0xff]
        %v3759 = vpack.c.bf16 %v3752, %v3751
        %v3760 = vpack.c.bf16 %v3754, %v3753
        %v3761 = vpack.c.bf16 %v3756, %v3755
        %v3762 = vpack.c.bf16 %v3758, %v3757
        %s3763 = scalar_lea.vmem %s2, 672
        %v3764 = vld [vmem:[%s3763] sm:$0xf]
        %v3765 = vld [vmem:[%s3763 + $0x4] sm:$0xf]
        %v3766 = vld [vmem:[%s3763 + $0x8] sm:$0xf]
        %v3767 = vld [vmem:[%s3763 + $0xc] sm:$0xf]
        %v3768 = vld [vmem:[%s3763 + $0x10] sm:$0xf]
        %v3769 = vld [vmem:[%s3763 + $0x14] sm:$0xf]
        %v3770 = vld [vmem:[%s3763 + $0x18] sm:$0xf]
        %v3771 = vld [vmem:[%s3763 + $0x1c] sm:$0xf]
        %v3780 = vunpack.c.l.b16 %v3764
        %v3781 = vunpack.c.l.b16 %v3765
        %v3782 = vunpack.c.l.b16 %v3766
        %v3783 = vunpack.c.l.b16 %v3767
        %v3784 = vunpack.c.l.b16 %v3768
        %v3785 = vunpack.c.l.b16 %v3769
        %v3786 = vunpack.c.l.b16 %v3770
        %v3787 = vunpack.c.l.b16 %v3771
        %v3788 = vpack.c.b16 %v3781, %v3780
        %v3789 = vpack.c.b16 %v3783, %v3782
        %v3790 = vpack.c.b16 %v3785, %v3784
        %v3791 = vpack.c.b16 %v3787, %v3786
        %v3797 = vsel %vm703, %v3759, 0
        %v3800 = vsel %vm703, %v3760, 0
        %v3803 = vsel %vm703, %v3761, 0
        %v3806 = vsel %vm703, %v3762, 0
        %3808 = vmatprep.subr.bf16.mxu0 0
        %3809 = vmatpush1.bf16.msra.mxu0 0
        %3810 = vmatprep.subr.bf16.mxu0 0
        %3811 = vmatpush1.bf16.msra.mxu0 0
        %3812 = vmatprep.subr.bf16.mxu0 0
        %3813 = vmatpush1.bf16.msra.mxu0 0
        %3814 = vmatprep.subr.bf16.mxu0 0
        %3815 = vmatpush1.bf16.msra.mxu0 0
        %3816 = vmatprep.subr.bf16.mxu0 0
        %3817 = vmatpush1.bf16.msra.mxu0 %v3791
        %3818 = vmatprep.subr.bf16.mxu0 0
        %3819 = vmatpush1.bf16.msra.mxu0 %v3790
        %3820 = vmatprep.subr.bf16.mxu0 0
        %3821 = vmatpush1.bf16.msra.mxu0 %v3789
        %3822 = vmatprep.subr.bf16.mxu0 0
        %3823 = vmatpush1.bf16.msra.mxu0 %v3788
        %3824 = vmatprep.subr.bf16.mxu0 0
        %3825 = vmatpush2.bf16.msra.mxu0 0
        %3826 = vmatprep.subr.bf16.mxu0 0
        %3827 = vmatpush2.bf16.msra.mxu0 0
        %3828 = vmatprep.subr.bf16.mxu0 0
        %3829 = vmatpush2.bf16.msra.mxu0 0
        %3830 = vmatprep.subr.bf16.mxu0 0
        %3831 = vmatpush2.bf16.msra.mxu0 0
        %3832 = vmatprep.subr.bf16.mxu0 0
        %3833 = vmatpush2.bf16.msra.mxu0 0
        %3834 = vmatprep.subr.bf16.mxu0 0
        %3835 = vmatpush2.bf16.msra.mxu0 0
        %3836 = vmatprep.subr.bf16.mxu0 0
        %3837 = vmatpush2.bf16.msra.mxu0 0
        %3838 = vmatprep.subr.bf16.mxu0 0
        %3839 = vmatpush2.bf16.msra.mxu0 0
        %3840 = vmatprep.mubr.bf16.mxu0 0
        %3841 = vmatmul.mubr.bf16.gmra.mxu0 %v3797
        %v3842 = vpop.f32.mrf.mxu0
        %v3843 = vadd.f32 0.0, %v3842
        %v3844 = vpop.f32.mrf.mxu0
        %v3845 = vpop.f32.mrf.mxu0
        %v3846 = vadd.f32 0.0, %v3845
        %v3847 = vpop.f32.mrf.mxu0
        %3848 = vmatprep.mubr.bf16.mxu0 0
        %3849 = vmatmul.mubr.bf16.gmra.mxu0 %v3800
        %v3850 = vpop.f32.mrf.mxu0
        %v3851 = vadd.f32 0.0, %v3850
        %v3852 = vpop.f32.mrf.mxu0
        %v3853 = vpop.f32.mrf.mxu0
        %v3854 = vadd.f32 0.0, %v3853
        %v3855 = vpop.f32.mrf.mxu0
        %3856 = vmatprep.mubr.bf16.mxu0 0
        %3857 = vmatmul.mubr.bf16.gmra.mxu0 %v3803
        %v3858 = vpop.f32.mrf.mxu0
        %v3859 = vadd.f32 0.0, %v3858
        %v3860 = vpop.f32.mrf.mxu0
        %v3861 = vpop.f32.mrf.mxu0
        %v3862 = vadd.f32 0.0, %v3861
        %v3863 = vpop.f32.mrf.mxu0
        %3864 = vmatprep.mubr.bf16.mxu0 0
        %3865 = vmatmul.mubr.bf16.gmra.mxu0 %v3806
        %v3866 = vpop.f32.mrf.mxu0
        %v3867 = vadd.f32 0.0, %v3866
        %v3868 = vpop.f32.mrf.mxu0
        %v3869 = vpop.f32.mrf.mxu0
        %v3870 = vadd.f32 0.0, %v3869
        %v3871 = vpop.f32.mrf.mxu0
        %3872 = vdwg.mxu0
        %v3873 = vadd.f32 %v3743, %v3843
        %v3874 = vadd.f32 %v3744, %v3846
        %v3875 = vadd.f32 %v3745, %v3851
        %v3876 = vadd.f32 %v3746, %v3854
        %v3877 = vadd.f32 %v3747, %v3859
        %v3878 = vadd.f32 %v3748, %v3862
        %v3879 = vadd.f32 %v3749, %v3867
        %v3880 = vadd.f32 %v3750, %v3870
        %v3881 = vld [vmem:[%s992 + $0x1] sm:$0xff]
        %v3882 = vld [vmem:[%s992 + $0x11] sm:$0xff]
        %v3883 = vld [vmem:[%s992 + $0x21] sm:$0xff]
        %v3884 = vld [vmem:[%s992 + $0x31] sm:$0xff]
        %v3885 = vld [vmem:[%s992 + $0x41] sm:$0xff]
        %v3886 = vld [vmem:[%s992 + $0x51] sm:$0xff]
        %v3887 = vld [vmem:[%s992 + $0x61] sm:$0xff]
        %v3888 = vld [vmem:[%s992 + $0x71] sm:$0xff]
        %v3889 = vpack.c.bf16 %v3882, %v3881
        %v3890 = vpack.c.bf16 %v3884, %v3883
        %v3891 = vpack.c.bf16 %v3886, %v3885
        %v3892 = vpack.c.bf16 %v3888, %v3887
        %s3893 = scalar_lea.vmem %s2, 704
        %v3894 = vld [vmem:[%s3893] sm:$0xf]
        %v3895 = vld [vmem:[%s3893 + $0x4] sm:$0xf]
        %v3896 = vld [vmem:[%s3893 + $0x8] sm:$0xf]
        %v3897 = vld [vmem:[%s3893 + $0xc] sm:$0xf]
        %v3898 = vld [vmem:[%s3893 + $0x10] sm:$0xf]
        %v3899 = vld [vmem:[%s3893 + $0x14] sm:$0xf]
        %v3900 = vld [vmem:[%s3893 + $0x18] sm:$0xf]
        %v3901 = vld [vmem:[%s3893 + $0x1c] sm:$0xf]
        %v3910 = vunpack.c.l.b16 %v3894
        %v3911 = vunpack.c.l.b16 %v3895
        %v3912 = vunpack.c.l.b16 %v3896
        %v3913 = vunpack.c.l.b16 %v3897
        %v3914 = vunpack.c.l.b16 %v3898
        %v3915 = vunpack.c.l.b16 %v3899
        %v3916 = vunpack.c.l.b16 %v3900
        %v3917 = vunpack.c.l.b16 %v3901
        %v3918 = vpack.c.b16 %v3911, %v3910
        %v3919 = vpack.c.b16 %v3913, %v3912
        %v3920 = vpack.c.b16 %v3915, %v3914
        %v3921 = vpack.c.b16 %v3917, %v3916
        %v3927 = vsel %vm703, %v3889, 0
        %v3930 = vsel %vm703, %v3890, 0
        %v3933 = vsel %vm703, %v3891, 0
        %v3936 = vsel %vm703, %v3892, 0
        %3938 = vmatprep.subr.bf16.mxu0 0
        %3939 = vmatpush1.bf16.msra.mxu0 0
        %3940 = vmatprep.subr.bf16.mxu0 0
        %3941 = vmatpush1.bf16.msra.mxu0 0
        %3942 = vmatprep.subr.bf16.mxu0 0
        %3943 = vmatpush1.bf16.msra.mxu0 0
        %3944 = vmatprep.subr.bf16.mxu0 0
        %3945 = vmatpush1.bf16.msra.mxu0 0
        %3946 = vmatprep.subr.bf16.mxu0 0
        %3947 = vmatpush1.bf16.msra.mxu0 %v3921
        %3948 = vmatprep.subr.bf16.mxu0 0
        %3949 = vmatpush1.bf16.msra.mxu0 %v3920
        %3950 = vmatprep.subr.bf16.mxu0 0
        %3951 = vmatpush1.bf16.msra.mxu0 %v3919
        %3952 = vmatprep.subr.bf16.mxu0 0
        %3953 = vmatpush1.bf16.msra.mxu0 %v3918
        %3954 = vmatprep.subr.bf16.mxu0 0
        %3955 = vmatpush2.bf16.msra.mxu0 0
        %3956 = vmatprep.subr.bf16.mxu0 0
        %3957 = vmatpush2.bf16.msra.mxu0 0
        %3958 = vmatprep.subr.bf16.mxu0 0
        %3959 = vmatpush2.bf16.msra.mxu0 0
        %3960 = vmatprep.subr.bf16.mxu0 0
        %3961 = vmatpush2.bf16.msra.mxu0 0
        %3962 = vmatprep.subr.bf16.mxu0 0
        %3963 = vmatpush2.bf16.msra.mxu0 0
        %3964 = vmatprep.subr.bf16.mxu0 0
        %3965 = vmatpush2.bf16.msra.mxu0 0
        %3966 = vmatprep.subr.bf16.mxu0 0
        %3967 = vmatpush2.bf16.msra.mxu0 0
        %3968 = vmatprep.subr.bf16.mxu0 0
        %3969 = vmatpush2.bf16.msra.mxu0 0
        %3970 = vmatprep.mubr.bf16.mxu0 0
        %3971 = vmatmul.mubr.bf16.gmra.mxu0 %v3927
        %v3972 = vpop.f32.mrf.mxu0
        %v3973 = vadd.f32 0.0, %v3972
        %v3974 = vpop.f32.mrf.mxu0
        %v3975 = vpop.f32.mrf.mxu0
        %v3976 = vadd.f32 0.0, %v3975
        %v3977 = vpop.f32.mrf.mxu0
        %3978 = vmatprep.mubr.bf16.mxu0 0
        %3979 = vmatmul.mubr.bf16.gmra.mxu0 %v3930
        %v3980 = vpop.f32.mrf.mxu0
        %v3981 = vadd.f32 0.0, %v3980
        %v3982 = vpop.f32.mrf.mxu0
        %v3983 = vpop.f32.mrf.mxu0
        %v3984 = vadd.f32 0.0, %v3983
        %v3985 = vpop.f32.mrf.mxu0
        %3986 = vmatprep.mubr.bf16.mxu0 0
        %3987 = vmatmul.mubr.bf16.gmra.mxu0 %v3933
        %v3988 = vpop.f32.mrf.mxu0
        %v3989 = vadd.f32 0.0, %v3988
        %v3990 = vpop.f32.mrf.mxu0
        %v3991 = vpop.f32.mrf.mxu0
        %v3992 = vadd.f32 0.0, %v3991
        %v3993 = vpop.f32.mrf.mxu0
        %3994 = vmatprep.mubr.bf16.mxu0 0
        %3995 = vmatmul.mubr.bf16.gmra.mxu0 %v3936
        %v3996 = vpop.f32.mrf.mxu0
        %v3997 = vadd.f32 0.0, %v3996
        %v3998 = vpop.f32.mrf.mxu0
        %v3999 = vpop.f32.mrf.mxu0
        %v4000 = vadd.f32 0.0, %v3999
        %v4001 = vpop.f32.mrf.mxu0
        %4002 = vdwg.mxu0
        %v4003 = vadd.f32 %v3873, %v3973
        %v4004 = vadd.f32 %v3874, %v3976
        %v4005 = vadd.f32 %v3875, %v3981
        %v4006 = vadd.f32 %v3876, %v3984
        %v4007 = vadd.f32 %v3877, %v3989
        %v4008 = vadd.f32 %v3878, %v3992
        %v4009 = vadd.f32 %v3879, %v3997
        %v4010 = vadd.f32 %v3880, %v4000
        %v4011 = vld [vmem:[%s992 + $0x2] sm:$0xff]
        %v4012 = vld [vmem:[%s992 + $0x12] sm:$0xff]
        %v4013 = vld [vmem:[%s992 + $0x22] sm:$0xff]
        %v4014 = vld [vmem:[%s992 + $0x32] sm:$0xff]
        %v4015 = vld [vmem:[%s992 + $0x42] sm:$0xff]
        %v4016 = vld [vmem:[%s992 + $0x52] sm:$0xff]
        %v4017 = vld [vmem:[%s992 + $0x62] sm:$0xff]
        %v4018 = vld [vmem:[%s992 + $0x72] sm:$0xff]
        %v4019 = vpack.c.bf16 %v4012, %v4011
        %v4020 = vpack.c.bf16 %v4014, %v4013
        %v4021 = vpack.c.bf16 %v4016, %v4015
        %v4022 = vpack.c.bf16 %v4018, %v4017
        %s4023 = scalar_lea.vmem %s2, 736
        %v4024 = vld [vmem:[%s4023] sm:$0xf]
        %v4025 = vld [vmem:[%s4023 + $0x4] sm:$0xf]
        %v4026 = vld [vmem:[%s4023 + $0x8] sm:$0xf]
        %v4027 = vld [vmem:[%s4023 + $0xc] sm:$0xf]
        %v4028 = vld [vmem:[%s4023 + $0x10] sm:$0xf]
        %v4029 = vld [vmem:[%s4023 + $0x14] sm:$0xf]
        %v4030 = vld [vmem:[%s4023 + $0x18] sm:$0xf]
        %v4031 = vld [vmem:[%s4023 + $0x1c] sm:$0xf]
        %v4040 = vunpack.c.l.b16 %v4024
        %v4041 = vunpack.c.l.b16 %v4025
        %v4042 = vunpack.c.l.b16 %v4026
        %v4043 = vunpack.c.l.b16 %v4027
        %v4044 = vunpack.c.l.b16 %v4028
        %v4045 = vunpack.c.l.b16 %v4029
        %v4046 = vunpack.c.l.b16 %v4030
        %v4047 = vunpack.c.l.b16 %v4031
        %v4048 = vpack.c.b16 %v4041, %v4040
        %v4049 = vpack.c.b16 %v4043, %v4042
        %v4050 = vpack.c.b16 %v4045, %v4044
        %v4051 = vpack.c.b16 %v4047, %v4046
        %v4057 = vsel %vm703, %v4019, 0
        %v4060 = vsel %vm703, %v4020, 0
        %v4063 = vsel %vm703, %v4021, 0
        %v4066 = vsel %vm703, %v4022, 0
        %4068 = vmatprep.subr.bf16.mxu0 0
        %4069 = vmatpush1.bf16.msra.mxu0 0
        %4070 = vmatprep.subr.bf16.mxu0 0
        %4071 = vmatpush1.bf16.msra.mxu0 0
        %4072 = vmatprep.subr.bf16.mxu0 0
        %4073 = vmatpush1.bf16.msra.mxu0 0
        %4074 = vmatprep.subr.bf16.mxu0 0
        %4075 = vmatpush1.bf16.msra.mxu0 0
        %4076 = vmatprep.subr.bf16.mxu0 0
        %4077 = vmatpush1.bf16.msra.mxu0 %v4051
        %4078 = vmatprep.subr.bf16.mxu0 0
        %4079 = vmatpush1.bf16.msra.mxu0 %v4050
        %4080 = vmatprep.subr.bf16.mxu0 0
        %4081 = vmatpush1.bf16.msra.mxu0 %v4049
        %4082 = vmatprep.subr.bf16.mxu0 0
        %4083 = vmatpush1.bf16.msra.mxu0 %v4048
        %4084 = vmatprep.subr.bf16.mxu0 0
        %4085 = vmatpush2.bf16.msra.mxu0 0
        %4086 = vmatprep.subr.bf16.mxu0 0
        %4087 = vmatpush2.bf16.msra.mxu0 0
        %4088 = vmatprep.subr.bf16.mxu0 0
        %4089 = vmatpush2.bf16.msra.mxu0 0
        %4090 = vmatprep.subr.bf16.mxu0 0
        %4091 = vmatpush2.bf16.msra.mxu0 0
        %4092 = vmatprep.subr.bf16.mxu0 0
        %4093 = vmatpush2.bf16.msra.mxu0 0
        %4094 = vmatprep.subr.bf16.mxu0 0
        %4095 = vmatpush2.bf16.msra.mxu0 0
        %4096 = vmatprep.subr.bf16.mxu0 0
        %4097 = vmatpush2.bf16.msra.mxu0 0
        %4098 = vmatprep.subr.bf16.mxu0 0
        %4099 = vmatpush2.bf16.msra.mxu0 0
        %4100 = vmatprep.mubr.bf16.mxu0 0
        %4101 = vmatmul.mubr.bf16.gmra.mxu0 %v4057
        %v4102 = vpop.f32.mrf.mxu0
        %v4103 = vadd.f32 0.0, %v4102
        %v4104 = vpop.f32.mrf.mxu0
        %v4105 = vpop.f32.mrf.mxu0
        %v4106 = vadd.f32 0.0, %v4105
        %v4107 = vpop.f32.mrf.mxu0
        %4108 = vmatprep.mubr.bf16.mxu0 0
        %4109 = vmatmul.mubr.bf16.gmra.mxu0 %v4060
        %v4110 = vpop.f32.mrf.mxu0
        %v4111 = vadd.f32 0.0, %v4110
        %v4112 = vpop.f32.mrf.mxu0
        %v4113 = vpop.f32.mrf.mxu0
        %v4114 = vadd.f32 0.0, %v4113
        %v4115 = vpop.f32.mrf.mxu0
        %4116 = vmatprep.mubr.bf16.mxu0 0
        %4117 = vmatmul.mubr.bf16.gmra.mxu0 %v4063
        %v4118 = vpop.f32.mrf.mxu0
        %v4119 = vadd.f32 0.0, %v4118
        %v4120 = vpop.f32.mrf.mxu0
        %v4121 = vpop.f32.mrf.mxu0
        %v4122 = vadd.f32 0.0, %v4121
        %v4123 = vpop.f32.mrf.mxu0
        %4124 = vmatprep.mubr.bf16.mxu0 0
        %4125 = vmatmul.mubr.bf16.gmra.mxu0 %v4066
        %v4126 = vpop.f32.mrf.mxu0
        %v4127 = vadd.f32 0.0, %v4126
        %v4128 = vpop.f32.mrf.mxu0
        %v4129 = vpop.f32.mrf.mxu0
        %v4130 = vadd.f32 0.0, %v4129
        %v4131 = vpop.f32.mrf.mxu0
        %4132 = vdwg.mxu0
        %v4133 = vadd.f32 %v4003, %v4103
        %v4134 = vadd.f32 %v4004, %v4106
        %v4135 = vadd.f32 %v4005, %v4111
        %v4136 = vadd.f32 %v4006, %v4114
        %v4137 = vadd.f32 %v4007, %v4119
        %v4138 = vadd.f32 %v4008, %v4122
        %v4139 = vadd.f32 %v4009, %v4127
        %v4140 = vadd.f32 %v4010, %v4130
        %v4141 = vld [vmem:[%s1764] sm:$0xff]
        %v4142 = vld [vmem:[%s1764 + $0x10] sm:$0xff]
        %v4143 = vld [vmem:[%s1764 + $0x20] sm:$0xff]
        %v4144 = vld [vmem:[%s1764 + $0x30] sm:$0xff]
        %v4145 = vld [vmem:[%s1764 + $0x40] sm:$0xff]
        %v4146 = vld [vmem:[%s1764 + $0x50] sm:$0xff]
        %v4147 = vld [vmem:[%s1764 + $0x60] sm:$0xff]
        %v4148 = vld [vmem:[%s1764 + $0x70] sm:$0xff]
        %v4149 = vpack.c.bf16 %v4142, %v4141
        %v4150 = vpack.c.bf16 %v4144, %v4143
        %v4151 = vpack.c.bf16 %v4146, %v4145
        %v4152 = vpack.c.bf16 %v4148, %v4147
        %s4153 = scalar_lea.vmem %s2, 768
        %v4154 = vld [vmem:[%s4153] sm:$0xf]
        %v4155 = vld [vmem:[%s4153 + $0x4] sm:$0xf]
        %v4156 = vld [vmem:[%s4153 + $0x8] sm:$0xf]
        %v4157 = vld [vmem:[%s4153 + $0xc] sm:$0xf]
        %v4158 = vld [vmem:[%s4153 + $0x10] sm:$0xf]
        %v4159 = vld [vmem:[%s4153 + $0x14] sm:$0xf]
        %v4160 = vld [vmem:[%s4153 + $0x18] sm:$0xf]
        %v4161 = vld [vmem:[%s4153 + $0x1c] sm:$0xf]
        %v4170 = vunpack.c.l.b16 %v4154
        %v4171 = vunpack.c.l.b16 %v4155
        %v4172 = vunpack.c.l.b16 %v4156
        %v4173 = vunpack.c.l.b16 %v4157
        %v4174 = vunpack.c.l.b16 %v4158
        %v4175 = vunpack.c.l.b16 %v4159
        %v4176 = vunpack.c.l.b16 %v4160
        %v4177 = vunpack.c.l.b16 %v4161
        %v4178 = vpack.c.b16 %v4171, %v4170
        %v4179 = vpack.c.b16 %v4173, %v4172
        %v4180 = vpack.c.b16 %v4175, %v4174
        %v4181 = vpack.c.b16 %v4177, %v4176
        %v4187 = vsel %vm703, %v4149, 0
        %v4190 = vsel %vm703, %v4150, 0
        %v4193 = vsel %vm703, %v4151, 0
        %v4196 = vsel %vm703, %v4152, 0
        %4198 = vmatprep.subr.bf16.mxu0 0
        %4199 = vmatpush1.bf16.msra.mxu0 0
        %4200 = vmatprep.subr.bf16.mxu0 0
        %4201 = vmatpush1.bf16.msra.mxu0 0
        %4202 = vmatprep.subr.bf16.mxu0 0
        %4203 = vmatpush1.bf16.msra.mxu0 0
        %4204 = vmatprep.subr.bf16.mxu0 0
        %4205 = vmatpush1.bf16.msra.mxu0 0
        %4206 = vmatprep.subr.bf16.mxu0 0
        %4207 = vmatpush1.bf16.msra.mxu0 %v4181
        %4208 = vmatprep.subr.bf16.mxu0 0
        %4209 = vmatpush1.bf16.msra.mxu0 %v4180
        %4210 = vmatprep.subr.bf16.mxu0 0
        %4211 = vmatpush1.bf16.msra.mxu0 %v4179
        %4212 = vmatprep.subr.bf16.mxu0 0
        %4213 = vmatpush1.bf16.msra.mxu0 %v4178
        %4214 = vmatprep.subr.bf16.mxu0 0
        %4215 = vmatpush2.bf16.msra.mxu0 0
        %4216 = vmatprep.subr.bf16.mxu0 0
        %4217 = vmatpush2.bf16.msra.mxu0 0
        %4218 = vmatprep.subr.bf16.mxu0 0
        %4219 = vmatpush2.bf16.msra.mxu0 0
        %4220 = vmatprep.subr.bf16.mxu0 0
        %4221 = vmatpush2.bf16.msra.mxu0 0
        %4222 = vmatprep.subr.bf16.mxu0 0
        %4223 = vmatpush2.bf16.msra.mxu0 0
        %4224 = vmatprep.subr.bf16.mxu0 0
        %4225 = vmatpush2.bf16.msra.mxu0 0
        %4226 = vmatprep.subr.bf16.mxu0 0
        %4227 = vmatpush2.bf16.msra.mxu0 0
        %4228 = vmatprep.subr.bf16.mxu0 0
        %4229 = vmatpush2.bf16.msra.mxu0 0
        %4230 = vmatprep.mubr.bf16.mxu0 0
        %4231 = vmatmul.mubr.bf16.gmra.mxu0 %v4187
        %v4232 = vpop.f32.mrf.mxu0
        %v4233 = vadd.f32 0.0, %v4232
        %v4234 = vpop.f32.mrf.mxu0
        %v4235 = vpop.f32.mrf.mxu0
        %v4236 = vadd.f32 0.0, %v4235
        %v4237 = vpop.f32.mrf.mxu0
        %4238 = vmatprep.mubr.bf16.mxu0 0
        %4239 = vmatmul.mubr.bf16.gmra.mxu0 %v4190
        %v4240 = vpop.f32.mrf.mxu0
        %v4241 = vadd.f32 0.0, %v4240
        %v4242 = vpop.f32.mrf.mxu0
        %v4243 = vpop.f32.mrf.mxu0
        %v4244 = vadd.f32 0.0, %v4243
        %v4245 = vpop.f32.mrf.mxu0
        %4246 = vmatprep.mubr.bf16.mxu0 0
        %4247 = vmatmul.mubr.bf16.gmra.mxu0 %v4193
        %v4248 = vpop.f32.mrf.mxu0
        %v4249 = vadd.f32 0.0, %v4248
        %v4250 = vpop.f32.mrf.mxu0
        %v4251 = vpop.f32.mrf.mxu0
        %v4252 = vadd.f32 0.0, %v4251
        %v4253 = vpop.f32.mrf.mxu0
        %4254 = vmatprep.mubr.bf16.mxu0 0
        %4255 = vmatmul.mubr.bf16.gmra.mxu0 %v4196
        %v4256 = vpop.f32.mrf.mxu0
        %v4257 = vadd.f32 0.0, %v4256
        %v4258 = vpop.f32.mrf.mxu0
        %v4259 = vpop.f32.mrf.mxu0
        %v4260 = vadd.f32 0.0, %v4259
        %v4261 = vpop.f32.mrf.mxu0
        %4262 = vdwg.mxu0
        %v4263 = vadd.f32 %v4133, %v4233
        %v4264 = vadd.f32 %v4134, %v4236
        %v4265 = vadd.f32 %v4135, %v4241
        %v4266 = vadd.f32 %v4136, %v4244
        %v4267 = vadd.f32 %v4137, %v4249
        %v4268 = vadd.f32 %v4138, %v4252
        %v4269 = vadd.f32 %v4139, %v4257
        %v4270 = vadd.f32 %v4140, %v4260
        %v4271 = vld [vmem:[%s1764 + $0x1] sm:$0xff]
        %v4272 = vld [vmem:[%s1764 + $0x11] sm:$0xff]
        %v4273 = vld [vmem:[%s1764 + $0x21] sm:$0xff]
        %v4274 = vld [vmem:[%s1764 + $0x31] sm:$0xff]
        %v4275 = vld [vmem:[%s1764 + $0x41] sm:$0xff]
        %v4276 = vld [vmem:[%s1764 + $0x51] sm:$0xff]
        %v4277 = vld [vmem:[%s1764 + $0x61] sm:$0xff]
        %v4278 = vld [vmem:[%s1764 + $0x71] sm:$0xff]
        %v4279 = vpack.c.bf16 %v4272, %v4271
        %v4280 = vpack.c.bf16 %v4274, %v4273
        %v4281 = vpack.c.bf16 %v4276, %v4275
        %v4282 = vpack.c.bf16 %v4278, %v4277
        %s4283 = scalar_lea.vmem %s2, 800
        %v4284 = vld [vmem:[%s4283] sm:$0xf]
        %v4285 = vld [vmem:[%s4283 + $0x4] sm:$0xf]
        %v4286 = vld [vmem:[%s4283 + $0x8] sm:$0xf]
        %v4287 = vld [vmem:[%s4283 + $0xc] sm:$0xf]
        %v4288 = vld [vmem:[%s4283 + $0x10] sm:$0xf]
        %v4289 = vld [vmem:[%s4283 + $0x14] sm:$0xf]
        %v4290 = vld [vmem:[%s4283 + $0x18] sm:$0xf]
        %v4291 = vld [vmem:[%s4283 + $0x1c] sm:$0xf]
        %v4300 = vunpack.c.l.b16 %v4284
        %v4301 = vunpack.c.l.b16 %v4285
        %v4302 = vunpack.c.l.b16 %v4286
        %v4303 = vunpack.c.l.b16 %v4287
        %v4304 = vunpack.c.l.b16 %v4288
        %v4305 = vunpack.c.l.b16 %v4289
        %v4306 = vunpack.c.l.b16 %v4290
        %v4307 = vunpack.c.l.b16 %v4291
        %v4308 = vpack.c.b16 %v4301, %v4300
        %v4309 = vpack.c.b16 %v4303, %v4302
        %v4310 = vpack.c.b16 %v4305, %v4304
        %v4311 = vpack.c.b16 %v4307, %v4306
        %v4317 = vsel %vm703, %v4279, 0
        %v4320 = vsel %vm703, %v4280, 0
        %v4323 = vsel %vm703, %v4281, 0
        %v4326 = vsel %vm703, %v4282, 0
        %4328 = vmatprep.subr.bf16.mxu0 0
        %4329 = vmatpush1.bf16.msra.mxu0 0
        %4330 = vmatprep.subr.bf16.mxu0 0
        %4331 = vmatpush1.bf16.msra.mxu0 0
        %4332 = vmatprep.subr.bf16.mxu0 0
        %4333 = vmatpush1.bf16.msra.mxu0 0
        %4334 = vmatprep.subr.bf16.mxu0 0
        %4335 = vmatpush1.bf16.msra.mxu0 0
        %4336 = vmatprep.subr.bf16.mxu0 0
        %4337 = vmatpush1.bf16.msra.mxu0 %v4311
        %4338 = vmatprep.subr.bf16.mxu0 0
        %4339 = vmatpush1.bf16.msra.mxu0 %v4310
        %4340 = vmatprep.subr.bf16.mxu0 0
        %4341 = vmatpush1.bf16.msra.mxu0 %v4309
        %4342 = vmatprep.subr.bf16.mxu0 0
        %4343 = vmatpush1.bf16.msra.mxu0 %v4308
        %4344 = vmatprep.subr.bf16.mxu0 0
        %4345 = vmatpush2.bf16.msra.mxu0 0
        %4346 = vmatprep.subr.bf16.mxu0 0
        %4347 = vmatpush2.bf16.msra.mxu0 0
        %4348 = vmatprep.subr.bf16.mxu0 0
        %4349 = vmatpush2.bf16.msra.mxu0 0
        %4350 = vmatprep.subr.bf16.mxu0 0
        %4351 = vmatpush2.bf16.msra.mxu0 0
        %4352 = vmatprep.subr.bf16.mxu0 0
        %4353 = vmatpush2.bf16.msra.mxu0 0
        %4354 = vmatprep.subr.bf16.mxu0 0
        %4355 = vmatpush2.bf16.msra.mxu0 0
        %4356 = vmatprep.subr.bf16.mxu0 0
        %4357 = vmatpush2.bf16.msra.mxu0 0
        %4358 = vmatprep.subr.bf16.mxu0 0
        %4359 = vmatpush2.bf16.msra.mxu0 0
        %4360 = vmatprep.mubr.bf16.mxu0 0
        %4361 = vmatmul.mubr.bf16.gmra.mxu0 %v4317
        %v4362 = vpop.f32.mrf.mxu0
        %v4363 = vadd.f32 0.0, %v4362
        %v4364 = vpop.f32.mrf.mxu0
        %v4365 = vpop.f32.mrf.mxu0
        %v4366 = vadd.f32 0.0, %v4365
        %v4367 = vpop.f32.mrf.mxu0
        %4368 = vmatprep.mubr.bf16.mxu0 0
        %4369 = vmatmul.mubr.bf16.gmra.mxu0 %v4320
        %v4370 = vpop.f32.mrf.mxu0
        %v4371 = vadd.f32 0.0, %v4370
        %v4372 = vpop.f32.mrf.mxu0
        %v4373 = vpop.f32.mrf.mxu0
        %v4374 = vadd.f32 0.0, %v4373
        %v4375 = vpop.f32.mrf.mxu0
        %4376 = vmatprep.mubr.bf16.mxu0 0
        %4377 = vmatmul.mubr.bf16.gmra.mxu0 %v4323
        %v4378 = vpop.f32.mrf.mxu0
        %v4379 = vadd.f32 0.0, %v4378
        %v4380 = vpop.f32.mrf.mxu0
        %v4381 = vpop.f32.mrf.mxu0
        %v4382 = vadd.f32 0.0, %v4381
        %v4383 = vpop.f32.mrf.mxu0
        %4384 = vmatprep.mubr.bf16.mxu0 0
        %4385 = vmatmul.mubr.bf16.gmra.mxu0 %v4326
        %v4386 = vpop.f32.mrf.mxu0
        %v4387 = vadd.f32 0.0, %v4386
        %v4388 = vpop.f32.mrf.mxu0
        %v4389 = vpop.f32.mrf.mxu0
        %v4390 = vadd.f32 0.0, %v4389
        %v4391 = vpop.f32.mrf.mxu0
        %4392 = vdwg.mxu0
        %v4393 = vadd.f32 %v4263, %v4363
        %v4394 = vadd.f32 %v4264, %v4366
        %v4395 = vadd.f32 %v4265, %v4371
        %v4396 = vadd.f32 %v4266, %v4374
        %v4397 = vadd.f32 %v4267, %v4379
        %v4398 = vadd.f32 %v4268, %v4382
        %v4399 = vadd.f32 %v4269, %v4387
        %v4400 = vadd.f32 %v4270, %v4390
        %v4401 = vld [vmem:[%s1764 + $0x2] sm:$0xff]
        %v4402 = vld [vmem:[%s1764 + $0x12] sm:$0xff]
        %v4403 = vld [vmem:[%s1764 + $0x22] sm:$0xff]
        %v4404 = vld [vmem:[%s1764 + $0x32] sm:$0xff]
        %v4405 = vld [vmem:[%s1764 + $0x42] sm:$0xff]
        %v4406 = vld [vmem:[%s1764 + $0x52] sm:$0xff]
        %v4407 = vld [vmem:[%s1764 + $0x62] sm:$0xff]
        %v4408 = vld [vmem:[%s1764 + $0x72] sm:$0xff]
        %v4409 = vpack.c.bf16 %v4402, %v4401
        %v4410 = vpack.c.bf16 %v4404, %v4403
        %v4411 = vpack.c.bf16 %v4406, %v4405
        %v4412 = vpack.c.bf16 %v4408, %v4407
        %s4413 = scalar_lea.vmem %s2, 832
        %v4414 = vld [vmem:[%s4413] sm:$0xf]
        %v4415 = vld [vmem:[%s4413 + $0x4] sm:$0xf]
        %v4416 = vld [vmem:[%s4413 + $0x8] sm:$0xf]
        %v4417 = vld [vmem:[%s4413 + $0xc] sm:$0xf]
        %v4418 = vld [vmem:[%s4413 + $0x10] sm:$0xf]
        %v4419 = vld [vmem:[%s4413 + $0x14] sm:$0xf]
        %v4420 = vld [vmem:[%s4413 + $0x18] sm:$0xf]
        %v4421 = vld [vmem:[%s4413 + $0x1c] sm:$0xf]
        %v4430 = vunpack.c.l.b16 %v4414
        %v4431 = vunpack.c.l.b16 %v4415
        %v4432 = vunpack.c.l.b16 %v4416
        %v4433 = vunpack.c.l.b16 %v4417
        %v4434 = vunpack.c.l.b16 %v4418
        %v4435 = vunpack.c.l.b16 %v4419
        %v4436 = vunpack.c.l.b16 %v4420
        %v4437 = vunpack.c.l.b16 %v4421
        %v4438 = vpack.c.b16 %v4431, %v4430
        %v4439 = vpack.c.b16 %v4433, %v4432
        %v4440 = vpack.c.b16 %v4435, %v4434
        %v4441 = vpack.c.b16 %v4437, %v4436
        %v4447 = vsel %vm703, %v4409, 0
        %v4450 = vsel %vm703, %v4410, 0
        %v4453 = vsel %vm703, %v4411, 0
        %v4456 = vsel %vm703, %v4412, 0
        %4458 = vmatprep.subr.bf16.mxu0 0
        %4459 = vmatpush1.bf16.msra.mxu0 0
        %4460 = vmatprep.subr.bf16.mxu0 0
        %4461 = vmatpush1.bf16.msra.mxu0 0
        %4462 = vmatprep.subr.bf16.mxu0 0
        %4463 = vmatpush1.bf16.msra.mxu0 0
        %4464 = vmatprep.subr.bf16.mxu0 0
        %4465 = vmatpush1.bf16.msra.mxu0 0
        %4466 = vmatprep.subr.bf16.mxu0 0
        %4467 = vmatpush1.bf16.msra.mxu0 %v4441
        %4468 = vmatprep.subr.bf16.mxu0 0
        %4469 = vmatpush1.bf16.msra.mxu0 %v4440
        %4470 = vmatprep.subr.bf16.mxu0 0
        %4471 = vmatpush1.bf16.msra.mxu0 %v4439
        %4472 = vmatprep.subr.bf16.mxu0 0
        %4473 = vmatpush1.bf16.msra.mxu0 %v4438
        %4474 = vmatprep.subr.bf16.mxu0 0
        %4475 = vmatpush2.bf16.msra.mxu0 0
        %4476 = vmatprep.subr.bf16.mxu0 0
        %4477 = vmatpush2.bf16.msra.mxu0 0
        %4478 = vmatprep.subr.bf16.mxu0 0
        %4479 = vmatpush2.bf16.msra.mxu0 0
        %4480 = vmatprep.subr.bf16.mxu0 0
        %4481 = vmatpush2.bf16.msra.mxu0 0
        %4482 = vmatprep.subr.bf16.mxu0 0
        %4483 = vmatpush2.bf16.msra.mxu0 0
        %4484 = vmatprep.subr.bf16.mxu0 0
        %4485 = vmatpush2.bf16.msra.mxu0 0
        %4486 = vmatprep.subr.bf16.mxu0 0
        %4487 = vmatpush2.bf16.msra.mxu0 0
        %4488 = vmatprep.subr.bf16.mxu0 0
        %4489 = vmatpush2.bf16.msra.mxu0 0
        %4490 = vmatprep.mubr.bf16.mxu0 0
        %4491 = vmatmul.mubr.bf16.gmra.mxu0 %v4447
        %v4492 = vpop.f32.mrf.mxu0
        %v4493 = vadd.f32 0.0, %v4492
        %v4494 = vpop.f32.mrf.mxu0
        %v4495 = vpop.f32.mrf.mxu0
        %v4496 = vadd.f32 0.0, %v4495
        %v4497 = vpop.f32.mrf.mxu0
        %4498 = vmatprep.mubr.bf16.mxu0 0
        %4499 = vmatmul.mubr.bf16.gmra.mxu0 %v4450
        %v4500 = vpop.f32.mrf.mxu0
        %v4501 = vadd.f32 0.0, %v4500
        %v4502 = vpop.f32.mrf.mxu0
        %v4503 = vpop.f32.mrf.mxu0
        %v4504 = vadd.f32 0.0, %v4503
        %v4505 = vpop.f32.mrf.mxu0
        %4506 = vmatprep.mubr.bf16.mxu0 0
        %4507 = vmatmul.mubr.bf16.gmra.mxu0 %v4453
        %v4508 = vpop.f32.mrf.mxu0
        %v4509 = vadd.f32 0.0, %v4508
        %v4510 = vpop.f32.mrf.mxu0
        %v4511 = vpop.f32.mrf.mxu0
        %v4512 = vadd.f32 0.0, %v4511
        %v4513 = vpop.f32.mrf.mxu0
        %4514 = vmatprep.mubr.bf16.mxu0 0
        %4515 = vmatmul.mubr.bf16.gmra.mxu0 %v4456
        %v4516 = vpop.f32.mrf.mxu0
        %v4517 = vadd.f32 0.0, %v4516
        %v4518 = vpop.f32.mrf.mxu0
        %v4519 = vpop.f32.mrf.mxu0
        %v4520 = vadd.f32 0.0, %v4519
        %v4521 = vpop.f32.mrf.mxu0
        %4522 = vdwg.mxu0
        %v4523 = vadd.f32 %v4393, %v4493
        %v4524 = vadd.f32 %v4394, %v4496
        %v4525 = vadd.f32 %v4395, %v4501
        %v4526 = vadd.f32 %v4396, %v4504
        %v4527 = vadd.f32 %v4397, %v4509
        %v4528 = vadd.f32 %v4398, %v4512
        %v4529 = vadd.f32 %v4399, %v4517
        %v4530 = vadd.f32 %v4400, %v4520
        %v4531 = vld [vmem:[%s3 + $0x3] sm:$0x1]
        %v4532 = vlaneseq
        %v4533 = vshrl.u32 %v4532, 7
        %v4534 = vsub.s32 0, %v4533
        %v4535 = vrot.slane %v4531, %v4534
        %v4536 = vadd.f32 %v4523, %v4535
        %v4537 = vadd.f32 %v4524, %v4535
        %v4538 = vadd.f32 %v4525, %v4535
        %v4539 = vadd.f32 %v4526, %v4535
        %v4540 = vadd.f32 %v4527, %v4535
        %v4541 = vadd.f32 %v4528, %v4535
        %v4542 = vadd.f32 %v4529, %v4535
        %v4543 = vadd.f32 %v4530, %v4535
        %v4544 = vmax.f32 %v4536, 0.0
        %v4545 = vmax.f32 %v4537, 0.0
        %v4546 = vmax.f32 %v4538, 0.0
        %v4547 = vmax.f32 %v4539, 0.0
        %v4548 = vmax.f32 %v4540, 0.0
        %v4549 = vmax.f32 %v4541, 0.0
        %v4550 = vmax.f32 %v4542, 0.0
        %v4551 = vmax.f32 %v4543, 0.0
        %4552 = vst.msk [vmem:[%s2176 + $0x1] sm:$0xff] %vm703, %v4544
        %4553 = vst.msk [vmem:[%s2176 + $0x11] sm:$0xff] %vm703, %v4545
        %4554 = vst.msk [vmem:[%s2176 + $0x21] sm:$0xff] %vm703, %v4546
        %4555 = vst.msk [vmem:[%s2176 + $0x31] sm:$0xff] %vm703, %v4547
        %4556 = vst.msk [vmem:[%s2176 + $0x41] sm:$0xff] %vm703, %v4548
        %4557 = vst.msk [vmem:[%s2176 + $0x51] sm:$0xff] %vm703, %v4549
        %4558 = vst.msk [vmem:[%s2176 + $0x61] sm:$0xff] %vm703, %v4550
        %4559 = vst.msk [vmem:[%s2176 + $0x71] sm:$0xff] %vm703, %v4551
        %v4560 = vld [vmem:[#allocation4] sm:$0xff]
        %v4561 = vld [vmem:[#allocation4 + $0x10] sm:$0xff]
        %v4562 = vld [vmem:[#allocation4 + $0x20] sm:$0xff]
        %v4563 = vld [vmem:[#allocation4 + $0x30] sm:$0xff]
        %v4564 = vld [vmem:[#allocation4 + $0x40] sm:$0xff]
        %v4565 = vld [vmem:[#allocation4 + $0x50] sm:$0xff]
        %v4566 = vld [vmem:[#allocation4 + $0x60] sm:$0xff]
        %v4567 = vld [vmem:[#allocation4 + $0x70] sm:$0xff]
        %v4568 = vpack.c.bf16 %v4561, %v4560
        %v4569 = vpack.c.bf16 %v4563, %v4562
        %v4570 = vpack.c.bf16 %v4565, %v4564
        %v4571 = vpack.c.bf16 %v4567, %v4566
        %s4572 = scalar_lea.vmem %s2, 864
        %v4573 = vld [vmem:[%s4572] sm:$0xf]
        %v4574 = vld [vmem:[%s4572 + $0x4] sm:$0xf]
        %v4575 = vld [vmem:[%s4572 + $0x8] sm:$0xf]
        %v4576 = vld [vmem:[%s4572 + $0xc] sm:$0xf]
        %v4577 = vld [vmem:[%s4572 + $0x10] sm:$0xf]
        %v4578 = vld [vmem:[%s4572 + $0x14] sm:$0xf]
        %v4579 = vld [vmem:[%s4572 + $0x18] sm:$0xf]
        %v4580 = vld [vmem:[%s4572 + $0x1c] sm:$0xf]
        %v4581 = vld [vmem:[#allocation4 + $0x1] sm:$0xff]
        %v4582 = vld [vmem:[#allocation4 + $0x11] sm:$0xff]
        %v4583 = vld [vmem:[#allocation4 + $0x21] sm:$0xff]
        %v4584 = vld [vmem:[#allocation4 + $0x31] sm:$0xff]
        %v4585 = vld [vmem:[#allocation4 + $0x41] sm:$0xff]
        %v4586 = vld [vmem:[#allocation4 + $0x51] sm:$0xff]
        %v4587 = vld [vmem:[#allocation4 + $0x61] sm:$0xff]
        %v4588 = vld [vmem:[#allocation4 + $0x71] sm:$0xff]
        %v4589 = vpack.c.bf16 %v4582, %v4581
        %v4590 = vpack.c.bf16 %v4584, %v4583
        %v4591 = vpack.c.bf16 %v4586, %v4585
        %v4592 = vpack.c.bf16 %v4588, %v4587
        %s4593 = scalar_lea.vmem %s2, 896
        %v4594 = vld [vmem:[%s4593] sm:$0xf]
        %v4595 = vld [vmem:[%s4593 + $0x4] sm:$0xf]
        %v4596 = vld [vmem:[%s4593 + $0x8] sm:$0xf]
        %v4597 = vld [vmem:[%s4593 + $0xc] sm:$0xf]
        %v4598 = vld [vmem:[%s4593 + $0x10] sm:$0xf]
        %v4599 = vld [vmem:[%s4593 + $0x14] sm:$0xf]
        %v4600 = vld [vmem:[%s4593 + $0x18] sm:$0xf]
        %v4601 = vld [vmem:[%s4593 + $0x1c] sm:$0xf]
        %v4610 = vunpack.c.l.b16 %v4594
        %v4611 = vunpack.c.l.b16 %v4595
        %v4612 = vunpack.c.l.b16 %v4596
        %v4613 = vunpack.c.l.b16 %v4597
        %v4614 = vunpack.c.l.b16 %v4598
        %v4615 = vunpack.c.l.b16 %v4599
        %v4616 = vunpack.c.l.b16 %v4600
        %v4617 = vunpack.c.l.b16 %v4601
        %v4618 = vpack.c.b16 %v4611, %v4610
        %v4619 = vpack.c.b16 %v4613, %v4612
        %v4620 = vpack.c.b16 %v4615, %v4614
        %v4621 = vpack.c.b16 %v4617, %v4616
        %v4627 = vsel %vm703, %v4589, 0
        %v4630 = vsel %vm703, %v4590, 0
        %v4633 = vsel %vm703, %v4591, 0
        %v4636 = vsel %vm703, %v4592, 0
        %4638 = vmatprep.subr.bf16.mxu0 0
        %4639 = vmatpush1.bf16.msra.mxu0 0
        %4640 = vmatprep.subr.bf16.mxu0 0
        %4641 = vmatpush1.bf16.msra.mxu0 0
        %4642 = vmatprep.subr.bf16.mxu0 0
        %4643 = vmatpush1.bf16.msra.mxu0 0
        %4644 = vmatprep.subr.bf16.mxu0 0
        %4645 = vmatpush1.bf16.msra.mxu0 0
        %4646 = vmatprep.subr.bf16.mxu0 0
        %4647 = vmatpush1.bf16.msra.mxu0 %v4621
        %4648 = vmatprep.subr.bf16.mxu0 0
        %4649 = vmatpush1.bf16.msra.mxu0 %v4620
        %4650 = vmatprep.subr.bf16.mxu0 0
        %4651 = vmatpush1.bf16.msra.mxu0 %v4619
        %4652 = vmatprep.subr.bf16.mxu0 0
        %4653 = vmatpush1.bf16.msra.mxu0 %v4618
        %4654 = vmatprep.subr.bf16.mxu0 0
        %4655 = vmatpush2.bf16.msra.mxu0 0
        %4656 = vmatprep.subr.bf16.mxu0 0
        %4657 = vmatpush2.bf16.msra.mxu0 0
        %4658 = vmatprep.subr.bf16.mxu0 0
        %4659 = vmatpush2.bf16.msra.mxu0 0
        %4660 = vmatprep.subr.bf16.mxu0 0
        %4661 = vmatpush2.bf16.msra.mxu0 0
        %4662 = vmatprep.subr.bf16.mxu0 0
        %4663 = vmatpush2.bf16.msra.mxu0 0
        %4664 = vmatprep.subr.bf16.mxu0 0
        %4665 = vmatpush2.bf16.msra.mxu0 0
        %4666 = vmatprep.subr.bf16.mxu0 0
        %4667 = vmatpush2.bf16.msra.mxu0 0
        %4668 = vmatprep.subr.bf16.mxu0 0
        %4669 = vmatpush2.bf16.msra.mxu0 0
        %4670 = vmatprep.mubr.bf16.mxu0 0
        %4671 = vmatmul.mubr.bf16.gmra.mxu0 %v4627
        %v4672 = vpop.f32.mrf.mxu0
        %v4673 = vadd.f32 0.0, %v4672
        %v4674 = vpop.f32.mrf.mxu0
        %v4675 = vpop.f32.mrf.mxu0
        %v4676 = vadd.f32 0.0, %v4675
        %v4677 = vpop.f32.mrf.mxu0
        %4678 = vmatprep.mubr.bf16.mxu0 0
        %4679 = vmatmul.mubr.bf16.gmra.mxu0 %v4630
        %v4680 = vpop.f32.mrf.mxu0
        %v4681 = vadd.f32 0.0, %v4680
        %v4682 = vpop.f32.mrf.mxu0
        %v4683 = vpop.f32.mrf.mxu0
        %v4684 = vadd.f32 0.0, %v4683
        %v4685 = vpop.f32.mrf.mxu0
        %4686 = vmatprep.mubr.bf16.mxu0 0
        %4687 = vmatmul.mubr.bf16.gmra.mxu0 %v4633
        %v4688 = vpop.f32.mrf.mxu0
        %v4689 = vadd.f32 0.0, %v4688
        %v4690 = vpop.f32.mrf.mxu0
        %v4691 = vpop.f32.mrf.mxu0
        %v4692 = vadd.f32 0.0, %v4691
        %v4693 = vpop.f32.mrf.mxu0
        %4694 = vmatprep.mubr.bf16.mxu0 0
        %4695 = vmatmul.mubr.bf16.gmra.mxu0 %v4636
        %v4696 = vpop.f32.mrf.mxu0
        %v4697 = vadd.f32 0.0, %v4696
        %v4698 = vpop.f32.mrf.mxu0
        %v4699 = vpop.f32.mrf.mxu0
        %v4700 = vadd.f32 0.0, %v4699
        %v4701 = vpop.f32.mrf.mxu0
        %4702 = vdwg.mxu0
        %v4711 = vunpack.c.l.b16 %v4573
        %v4712 = vunpack.c.l.b16 %v4574
        %v4713 = vunpack.c.l.b16 %v4575
        %v4714 = vunpack.c.l.b16 %v4576
        %v4715 = vunpack.c.l.b16 %v4577
        %v4716 = vunpack.c.l.b16 %v4578
        %v4717 = vunpack.c.l.b16 %v4579
        %v4718 = vunpack.c.l.b16 %v4580
        %v4719 = vpack.c.b16 %v4712, %v4711
        %v4720 = vpack.c.b16 %v4714, %v4713
        %v4721 = vpack.c.b16 %v4716, %v4715
        %v4722 = vpack.c.b16 %v4718, %v4717
        %v4728 = vsel %vm703, %v4568, 0
        %v4731 = vsel %vm703, %v4569, 0
        %v4734 = vsel %vm703, %v4570, 0
        %v4737 = vsel %vm703, %v4571, 0
        %4739 = vmatprep.subr.bf16.mxu0 0
        %4740 = vmatpush1.bf16.msra.mxu0 0
        %4741 = vmatprep.subr.bf16.mxu0 0
        %4742 = vmatpush1.bf16.msra.mxu0 0
        %4743 = vmatprep.subr.bf16.mxu0 0
        %4744 = vmatpush1.bf16.msra.mxu0 0
        %4745 = vmatprep.subr.bf16.mxu0 0
        %4746 = vmatpush1.bf16.msra.mxu0 0
        %4747 = vmatprep.subr.bf16.mxu0 0
        %4748 = vmatpush1.bf16.msra.mxu0 %v4722
        %4749 = vmatprep.subr.bf16.mxu0 0
        %4750 = vmatpush1.bf16.msra.mxu0 %v4721
        %4751 = vmatprep.subr.bf16.mxu0 0
        %4752 = vmatpush1.bf16.msra.mxu0 %v4720
        %4753 = vmatprep.subr.bf16.mxu0 0
        %4754 = vmatpush1.bf16.msra.mxu0 %v4719
        %4755 = vmatprep.subr.bf16.mxu0 0
        %4756 = vmatpush2.bf16.msra.mxu0 0
        %4757 = vmatprep.subr.bf16.mxu0 0
        %4758 = vmatpush2.bf16.msra.mxu0 0
        %4759 = vmatprep.subr.bf16.mxu0 0
        %4760 = vmatpush2.bf16.msra.mxu0 0
        %4761 = vmatprep.subr.bf16.mxu0 0
        %4762 = vmatpush2.bf16.msra.mxu0 0
        %4763 = vmatprep.subr.bf16.mxu0 0
        %4764 = vmatpush2.bf16.msra.mxu0 0
        %4765 = vmatprep.subr.bf16.mxu0 0
        %4766 = vmatpush2.bf16.msra.mxu0 0
        %4767 = vmatprep.subr.bf16.mxu0 0
        %4768 = vmatpush2.bf16.msra.mxu0 0
        %4769 = vmatprep.subr.bf16.mxu0 0
        %4770 = vmatpush2.bf16.msra.mxu0 0
        %4771 = vmatprep.mubr.bf16.mxu0 0
        %4772 = vmatmul.mubr.bf16.gmra.mxu0 %v4728
        %v4773 = vpop.f32.mrf.mxu0
        %v4774 = vadd.f32 %v4673, %v4773
        %v4775 = vpop.f32.mrf.mxu0
        %v4776 = vpop.f32.mrf.mxu0
        %v4777 = vadd.f32 %v4676, %v4776
        %v4778 = vpop.f32.mrf.mxu0
        %4779 = vmatprep.mubr.bf16.mxu0 0
        %4780 = vmatmul.mubr.bf16.gmra.mxu0 %v4731
        %v4781 = vpop.f32.mrf.mxu0
        %v4782 = vadd.f32 %v4681, %v4781
        %v4783 = vpop.f32.mrf.mxu0
        %v4784 = vpop.f32.mrf.mxu0
        %v4785 = vadd.f32 %v4684, %v4784
        %v4786 = vpop.f32.mrf.mxu0
        %4787 = vmatprep.mubr.bf16.mxu0 0
        %4788 = vmatmul.mubr.bf16.gmra.mxu0 %v4734
        %v4789 = vpop.f32.mrf.mxu0
        %v4790 = vadd.f32 %v4689, %v4789
        %v4791 = vpop.f32.mrf.mxu0
        %v4792 = vpop.f32.mrf.mxu0
        %v4793 = vadd.f32 %v4692, %v4792
        %v4794 = vpop.f32.mrf.mxu0
        %4795 = vmatprep.mubr.bf16.mxu0 0
        %4796 = vmatmul.mubr.bf16.gmra.mxu0 %v4737
        %v4797 = vpop.f32.mrf.mxu0
        %v4798 = vadd.f32 %v4697, %v4797
        %v4799 = vpop.f32.mrf.mxu0
        %v4800 = vpop.f32.mrf.mxu0
        %v4801 = vadd.f32 %v4700, %v4800
        %v4802 = vpop.f32.mrf.mxu0
        %4803 = vdwg.mxu0
        %v4804 = vld [vmem:[#allocation4 + $0x2] sm:$0xff]
        %v4805 = vld [vmem:[#allocation4 + $0x12] sm:$0xff]
        %v4806 = vld [vmem:[#allocation4 + $0x22] sm:$0xff]
        %v4807 = vld [vmem:[#allocation4 + $0x32] sm:$0xff]
        %v4808 = vld [vmem:[#allocation4 + $0x42] sm:$0xff]
        %v4809 = vld [vmem:[#allocation4 + $0x52] sm:$0xff]
        %v4810 = vld [vmem:[#allocation4 + $0x62] sm:$0xff]
        %v4811 = vld [vmem:[#allocation4 + $0x72] sm:$0xff]
        %v4812 = vpack.c.bf16 %v4805, %v4804
        %v4813 = vpack.c.bf16 %v4807, %v4806
        %v4814 = vpack.c.bf16 %v4809, %v4808
        %v4815 = vpack.c.bf16 %v4811, %v4810
        %s4816 = scalar_lea.vmem %s2, 928
        %v4817 = vld [vmem:[%s4816] sm:$0xf]
        %v4818 = vld [vmem:[%s4816 + $0x4] sm:$0xf]
        %v4819 = vld [vmem:[%s4816 + $0x8] sm:$0xf]
        %v4820 = vld [vmem:[%s4816 + $0xc] sm:$0xf]
        %v4821 = vld [vmem:[%s4816 + $0x10] sm:$0xf]
        %v4822 = vld [vmem:[%s4816 + $0x14] sm:$0xf]
        %v4823 = vld [vmem:[%s4816 + $0x18] sm:$0xf]
        %v4824 = vld [vmem:[%s4816 + $0x1c] sm:$0xf]
        %v4833 = vunpack.c.l.b16 %v4817
        %v4834 = vunpack.c.l.b16 %v4818
        %v4835 = vunpack.c.l.b16 %v4819
        %v4836 = vunpack.c.l.b16 %v4820
        %v4837 = vunpack.c.l.b16 %v4821
        %v4838 = vunpack.c.l.b16 %v4822
        %v4839 = vunpack.c.l.b16 %v4823
        %v4840 = vunpack.c.l.b16 %v4824
        %v4841 = vpack.c.b16 %v4834, %v4833
        %v4842 = vpack.c.b16 %v4836, %v4835
        %v4843 = vpack.c.b16 %v4838, %v4837
        %v4844 = vpack.c.b16 %v4840, %v4839
        %v4850 = vsel %vm703, %v4812, 0
        %v4853 = vsel %vm703, %v4813, 0
        %v4856 = vsel %vm703, %v4814, 0
        %v4859 = vsel %vm703, %v4815, 0
        %4861 = vmatprep.subr.bf16.mxu0 0
        %4862 = vmatpush1.bf16.msra.mxu0 0
        %4863 = vmatprep.subr.bf16.mxu0 0
        %4864 = vmatpush1.bf16.msra.mxu0 0
        %4865 = vmatprep.subr.bf16.mxu0 0
        %4866 = vmatpush1.bf16.msra.mxu0 0
        %4867 = vmatprep.subr.bf16.mxu0 0
        %4868 = vmatpush1.bf16.msra.mxu0 0
        %4869 = vmatprep.subr.bf16.mxu0 0
        %4870 = vmatpush1.bf16.msra.mxu0 %v4844
        %4871 = vmatprep.subr.bf16.mxu0 0
        %4872 = vmatpush1.bf16.msra.mxu0 %v4843
        %4873 = vmatprep.subr.bf16.mxu0 0
        %4874 = vmatpush1.bf16.msra.mxu0 %v4842
        %4875 = vmatprep.subr.bf16.mxu0 0
        %4876 = vmatpush1.bf16.msra.mxu0 %v4841
        %4877 = vmatprep.subr.bf16.mxu0 0
        %4878 = vmatpush2.bf16.msra.mxu0 0
        %4879 = vmatprep.subr.bf16.mxu0 0
        %4880 = vmatpush2.bf16.msra.mxu0 0
        %4881 = vmatprep.subr.bf16.mxu0 0
        %4882 = vmatpush2.bf16.msra.mxu0 0
        %4883 = vmatprep.subr.bf16.mxu0 0
        %4884 = vmatpush2.bf16.msra.mxu0 0
        %4885 = vmatprep.subr.bf16.mxu0 0
        %4886 = vmatpush2.bf16.msra.mxu0 0
        %4887 = vmatprep.subr.bf16.mxu0 0
        %4888 = vmatpush2.bf16.msra.mxu0 0
        %4889 = vmatprep.subr.bf16.mxu0 0
        %4890 = vmatpush2.bf16.msra.mxu0 0
        %4891 = vmatprep.subr.bf16.mxu0 0
        %4892 = vmatpush2.bf16.msra.mxu0 0
        %4893 = vmatprep.mubr.bf16.mxu0 0
        %4894 = vmatmul.mubr.bf16.gmra.mxu0 %v4850
        %v4895 = vpop.f32.mrf.mxu0
        %v4896 = vadd.f32 0.0, %v4895
        %v4897 = vpop.f32.mrf.mxu0
        %v4898 = vpop.f32.mrf.mxu0
        %v4899 = vadd.f32 0.0, %v4898
        %v4900 = vpop.f32.mrf.mxu0
        %4901 = vmatprep.mubr.bf16.mxu0 0
        %4902 = vmatmul.mubr.bf16.gmra.mxu0 %v4853
        %v4903 = vpop.f32.mrf.mxu0
        %v4904 = vadd.f32 0.0, %v4903
        %v4905 = vpop.f32.mrf.mxu0
        %v4906 = vpop.f32.mrf.mxu0
        %v4907 = vadd.f32 0.0, %v4906
        %v4908 = vpop.f32.mrf.mxu0
        %4909 = vmatprep.mubr.bf16.mxu0 0
        %4910 = vmatmul.mubr.bf16.gmra.mxu0 %v4856
        %v4911 = vpop.f32.mrf.mxu0
        %v4912 = vadd.f32 0.0, %v4911
        %v4913 = vpop.f32.mrf.mxu0
        %v4914 = vpop.f32.mrf.mxu0
        %v4915 = vadd.f32 0.0, %v4914
        %v4916 = vpop.f32.mrf.mxu0
        %4917 = vmatprep.mubr.bf16.mxu0 0
        %4918 = vmatmul.mubr.bf16.gmra.mxu0 %v4859
        %v4919 = vpop.f32.mrf.mxu0
        %v4920 = vadd.f32 0.0, %v4919
        %v4921 = vpop.f32.mrf.mxu0
        %v4922 = vpop.f32.mrf.mxu0
        %v4923 = vadd.f32 0.0, %v4922
        %v4924 = vpop.f32.mrf.mxu0
        %4925 = vdwg.mxu0
        %v4926 = vadd.f32 %v4774, %v4896
        %v4927 = vadd.f32 %v4777, %v4899
        %v4928 = vadd.f32 %v4782, %v4904
        %v4929 = vadd.f32 %v4785, %v4907
        %v4930 = vadd.f32 %v4790, %v4912
        %v4931 = vadd.f32 %v4793, %v4915
        %v4932 = vadd.f32 %v4798, %v4920
        %v4933 = vadd.f32 %v4801, %v4923
        %v4934 = vld [vmem:[%s2176] sm:$0xff]
        %v4935 = vld [vmem:[%s2176 + $0x10] sm:$0xff]
        %v4936 = vld [vmem:[%s2176 + $0x20] sm:$0xff]
        %v4937 = vld [vmem:[%s2176 + $0x30] sm:$0xff]
        %v4938 = vld [vmem:[%s2176 + $0x40] sm:$0xff]
        %v4939 = vld [vmem:[%s2176 + $0x50] sm:$0xff]
        %v4940 = vld [vmem:[%s2176 + $0x60] sm:$0xff]
        %v4941 = vld [vmem:[%s2176 + $0x70] sm:$0xff]
        %v4942 = vpack.c.bf16 %v4935, %v4934
        %v4943 = vpack.c.bf16 %v4937, %v4936
        %v4944 = vpack.c.bf16 %v4939, %v4938
        %v4945 = vpack.c.bf16 %v4941, %v4940
        %s4946 = scalar_lea.vmem %s2, 960
        %v4947 = vld [vmem:[%s4946] sm:$0xf]
        %v4948 = vld [vmem:[%s4946 + $0x4] sm:$0xf]
        %v4949 = vld [vmem:[%s4946 + $0x8] sm:$0xf]
        %v4950 = vld [vmem:[%s4946 + $0xc] sm:$0xf]
        %v4951 = vld [vmem:[%s4946 + $0x10] sm:$0xf]
        %v4952 = vld [vmem:[%s4946 + $0x14] sm:$0xf]
        %v4953 = vld [vmem:[%s4946 + $0x18] sm:$0xf]
        %v4954 = vld [vmem:[%s4946 + $0x1c] sm:$0xf]
        %v4963 = vunpack.c.l.b16 %v4947
        %v4964 = vunpack.c.l.b16 %v4948
        %v4965 = vunpack.c.l.b16 %v4949
        %v4966 = vunpack.c.l.b16 %v4950
        %v4967 = vunpack.c.l.b16 %v4951
        %v4968 = vunpack.c.l.b16 %v4952
        %v4969 = vunpack.c.l.b16 %v4953
        %v4970 = vunpack.c.l.b16 %v4954
        %v4971 = vpack.c.b16 %v4964, %v4963
        %v4972 = vpack.c.b16 %v4966, %v4965
        %v4973 = vpack.c.b16 %v4968, %v4967
        %v4974 = vpack.c.b16 %v4970, %v4969
        %v4980 = vsel %vm703, %v4942, 0
        %v4983 = vsel %vm703, %v4943, 0
        %v4986 = vsel %vm703, %v4944, 0
        %v4989 = vsel %vm703, %v4945, 0
        %4991 = vmatprep.subr.bf16.mxu0 0
        %4992 = vmatpush1.bf16.msra.mxu0 0
        %4993 = vmatprep.subr.bf16.mxu0 0
        %4994 = vmatpush1.bf16.msra.mxu0 0
        %4995 = vmatprep.subr.bf16.mxu0 0
        %4996 = vmatpush1.bf16.msra.mxu0 0
        %4997 = vmatprep.subr.bf16.mxu0 0
        %4998 = vmatpush1.bf16.msra.mxu0 0
        %4999 = vmatprep.subr.bf16.mxu0 0
        %5000 = vmatpush1.bf16.msra.mxu0 %v4974
        %5001 = vmatprep.subr.bf16.mxu0 0
        %5002 = vmatpush1.bf16.msra.mxu0 %v4973
        %5003 = vmatprep.subr.bf16.mxu0 0
        %5004 = vmatpush1.bf16.msra.mxu0 %v4972
        %5005 = vmatprep.subr.bf16.mxu0 0
        %5006 = vmatpush1.bf16.msra.mxu0 %v4971
        %5007 = vmatprep.subr.bf16.mxu0 0
        %5008 = vmatpush2.bf16.msra.mxu0 0
        %5009 = vmatprep.subr.bf16.mxu0 0
        %5010 = vmatpush2.bf16.msra.mxu0 0
        %5011 = vmatprep.subr.bf16.mxu0 0
        %5012 = vmatpush2.bf16.msra.mxu0 0
        %5013 = vmatprep.subr.bf16.mxu0 0
        %5014 = vmatpush2.bf16.msra.mxu0 0
        %5015 = vmatprep.subr.bf16.mxu0 0
        %5016 = vmatpush2.bf16.msra.mxu0 0
        %5017 = vmatprep.subr.bf16.mxu0 0
        %5018 = vmatpush2.bf16.msra.mxu0 0
        %5019 = vmatprep.subr.bf16.mxu0 0
        %5020 = vmatpush2.bf16.msra.mxu0 0
        %5021 = vmatprep.subr.bf16.mxu0 0
        %5022 = vmatpush2.bf16.msra.mxu0 0
        %5023 = vmatprep.mubr.bf16.mxu0 0
        %5024 = vmatmul.mubr.bf16.gmra.mxu0 %v4980
        %v5025 = vpop.f32.mrf.mxu0
        %v5026 = vadd.f32 0.0, %v5025
        %v5027 = vpop.f32.mrf.mxu0
        %v5028 = vpop.f32.mrf.mxu0
        %v5029 = vadd.f32 0.0, %v5028
        %v5030 = vpop.f32.mrf.mxu0
        %5031 = vmatprep.mubr.bf16.mxu0 0
        %5032 = vmatmul.mubr.bf16.gmra.mxu0 %v4983
        %v5033 = vpop.f32.mrf.mxu0
        %v5034 = vadd.f32 0.0, %v5033
        %v5035 = vpop.f32.mrf.mxu0
        %v5036 = vpop.f32.mrf.mxu0
        %v5037 = vadd.f32 0.0, %v5036
        %v5038 = vpop.f32.mrf.mxu0
        %5039 = vmatprep.mubr.bf16.mxu0 0
        %5040 = vmatmul.mubr.bf16.gmra.mxu0 %v4986
        %v5041 = vpop.f32.mrf.mxu0
        %v5042 = vadd.f32 0.0, %v5041
        %v5043 = vpop.f32.mrf.mxu0
        %v5044 = vpop.f32.mrf.mxu0
        %v5045 = vadd.f32 0.0, %v5044
        %v5046 = vpop.f32.mrf.mxu0
        %5047 = vmatprep.mubr.bf16.mxu0 0
        %5048 = vmatmul.mubr.bf16.gmra.mxu0 %v4989
        %v5049 = vpop.f32.mrf.mxu0
        %v5050 = vadd.f32 0.0, %v5049
        %v5051 = vpop.f32.mrf.mxu0
        %v5052 = vpop.f32.mrf.mxu0
        %v5053 = vadd.f32 0.0, %v5052
        %v5054 = vpop.f32.mrf.mxu0
        %5055 = vdwg.mxu0
        %v5056 = vadd.f32 %v4926, %v5026
        %v5057 = vadd.f32 %v4927, %v5029
        %v5058 = vadd.f32 %v4928, %v5034
        %v5059 = vadd.f32 %v4929, %v5037
        %v5060 = vadd.f32 %v4930, %v5042
        %v5061 = vadd.f32 %v4931, %v5045
        %v5062 = vadd.f32 %v4932, %v5050
        %v5063 = vadd.f32 %v4933, %v5053
        %v5064 = vld [vmem:[%s2176 + $0x1] sm:$0xff]
        %v5065 = vld [vmem:[%s2176 + $0x11] sm:$0xff]
        %v5066 = vld [vmem:[%s2176 + $0x21] sm:$0xff]
        %v5067 = vld [vmem:[%s2176 + $0x31] sm:$0xff]
        %v5068 = vld [vmem:[%s2176 + $0x41] sm:$0xff]
        %v5069 = vld [vmem:[%s2176 + $0x51] sm:$0xff]
        %v5070 = vld [vmem:[%s2176 + $0x61] sm:$0xff]
        %v5071 = vld [vmem:[%s2176 + $0x71] sm:$0xff]
        %v5072 = vpack.c.bf16 %v5065, %v5064
        %v5073 = vpack.c.bf16 %v5067, %v5066
        %v5074 = vpack.c.bf16 %v5069, %v5068
        %v5075 = vpack.c.bf16 %v5071, %v5070
        %s5076 = scalar_lea.vmem %s2, 992
        %v5077 = vld [vmem:[%s5076] sm:$0xf]
        %v5078 = vld [vmem:[%s5076 + $0x4] sm:$0xf]
        %v5079 = vld [vmem:[%s5076 + $0x8] sm:$0xf]
        %v5080 = vld [vmem:[%s5076 + $0xc] sm:$0xf]
        %v5081 = vld [vmem:[%s5076 + $0x10] sm:$0xf]
        %v5082 = vld [vmem:[%s5076 + $0x14] sm:$0xf]
        %v5083 = vld [vmem:[%s5076 + $0x18] sm:$0xf]
        %v5084 = vld [vmem:[%s5076 + $0x1c] sm:$0xf]
        %v5093 = vunpack.c.l.b16 %v5077
        %v5094 = vunpack.c.l.b16 %v5078
        %v5095 = vunpack.c.l.b16 %v5079
        %v5096 = vunpack.c.l.b16 %v5080
        %v5097 = vunpack.c.l.b16 %v5081
        %v5098 = vunpack.c.l.b16 %v5082
        %v5099 = vunpack.c.l.b16 %v5083
        %v5100 = vunpack.c.l.b16 %v5084
        %v5101 = vpack.c.b16 %v5094, %v5093
        %v5102 = vpack.c.b16 %v5096, %v5095
        %v5103 = vpack.c.b16 %v5098, %v5097
        %v5104 = vpack.c.b16 %v5100, %v5099
        %v5110 = vsel %vm703, %v5072, 0
        %v5113 = vsel %vm703, %v5073, 0
        %v5116 = vsel %vm703, %v5074, 0
        %v5119 = vsel %vm703, %v5075, 0
        %5121 = vmatprep.subr.bf16.mxu0 0
        %5122 = vmatpush1.bf16.msra.mxu0 0
        %5123 = vmatprep.subr.bf16.mxu0 0
        %5124 = vmatpush1.bf16.msra.mxu0 0
        %5125 = vmatprep.subr.bf16.mxu0 0
        %5126 = vmatpush1.bf16.msra.mxu0 0
        %5127 = vmatprep.subr.bf16.mxu0 0
        %5128 = vmatpush1.bf16.msra.mxu0 0
        %5129 = vmatprep.subr.bf16.mxu0 0
        %5130 = vmatpush1.bf16.msra.mxu0 %v5104
        %5131 = vmatprep.subr.bf16.mxu0 0
        %5132 = vmatpush1.bf16.msra.mxu0 %v5103
        %5133 = vmatprep.subr.bf16.mxu0 0
        %5134 = vmatpush1.bf16.msra.mxu0 %v5102
        %5135 = vmatprep.subr.bf16.mxu0 0
        %5136 = vmatpush1.bf16.msra.mxu0 %v5101
        %5137 = vmatprep.subr.bf16.mxu0 0
        %5138 = vmatpush2.bf16.msra.mxu0 0
        %5139 = vmatprep.subr.bf16.mxu0 0
        %5140 = vmatpush2.bf16.msra.mxu0 0
        %5141 = vmatprep.subr.bf16.mxu0 0
        %5142 = vmatpush2.bf16.msra.mxu0 0
        %5143 = vmatprep.subr.bf16.mxu0 0
        %5144 = vmatpush2.bf16.msra.mxu0 0
        %5145 = vmatprep.subr.bf16.mxu0 0
        %5146 = vmatpush2.bf16.msra.mxu0 0
        %5147 = vmatprep.subr.bf16.mxu0 0
        %5148 = vmatpush2.bf16.msra.mxu0 0
        %5149 = vmatprep.subr.bf16.mxu0 0
        %5150 = vmatpush2.bf16.msra.mxu0 0
        %5151 = vmatprep.subr.bf16.mxu0 0
        %5152 = vmatpush2.bf16.msra.mxu0 0
        %5153 = vmatprep.mubr.bf16.mxu0 0
        %5154 = vmatmul.mubr.bf16.gmra.mxu0 %v5110
        %v5155 = vpop.f32.mrf.mxu0
        %v5156 = vadd.f32 0.0, %v5155
        %v5157 = vpop.f32.mrf.mxu0
        %v5158 = vpop.f32.mrf.mxu0
        %v5159 = vadd.f32 0.0, %v5158
        %v5160 = vpop.f32.mrf.mxu0
        %5161 = vmatprep.mubr.bf16.mxu0 0
        %5162 = vmatmul.mubr.bf16.gmra.mxu0 %v5113
        %v5163 = vpop.f32.mrf.mxu0
        %v5164 = vadd.f32 0.0, %v5163
        %v5165 = vpop.f32.mrf.mxu0
        %v5166 = vpop.f32.mrf.mxu0
        %v5167 = vadd.f32 0.0, %v5166
        %v5168 = vpop.f32.mrf.mxu0
        %5169 = vmatprep.mubr.bf16.mxu0 0
        %5170 = vmatmul.mubr.bf16.gmra.mxu0 %v5116
        %v5171 = vpop.f32.mrf.mxu0
        %v5172 = vadd.f32 0.0, %v5171
        %v5173 = vpop.f32.mrf.mxu0
        %v5174 = vpop.f32.mrf.mxu0
        %v5175 = vadd.f32 0.0, %v5174
        %v5176 = vpop.f32.mrf.mxu0
        %5177 = vmatprep.mubr.bf16.mxu0 0
        %5178 = vmatmul.mubr.bf16.gmra.mxu0 %v5119
        %v5179 = vpop.f32.mrf.mxu0
        %v5180 = vadd.f32 0.0, %v5179
        %v5181 = vpop.f32.mrf.mxu0
        %v5182 = vpop.f32.mrf.mxu0
        %v5183 = vadd.f32 0.0, %v5182
        %v5184 = vpop.f32.mrf.mxu0
        %5185 = vdwg.mxu0
        %v5186 = vadd.f32 %v5056, %v5156
        %v5187 = vadd.f32 %v5057, %v5159
        %v5188 = vadd.f32 %v5058, %v5164
        %v5189 = vadd.f32 %v5059, %v5167
        %v5190 = vadd.f32 %v5060, %v5172
        %v5191 = vadd.f32 %v5061, %v5175
        %v5192 = vadd.f32 %v5062, %v5180
        %v5193 = vadd.f32 %v5063, %v5183
        %v5194 = vld [vmem:[%s2176 + $0x2] sm:$0xff]
        %v5195 = vld [vmem:[%s2176 + $0x12] sm:$0xff]
        %v5196 = vld [vmem:[%s2176 + $0x22] sm:$0xff]
        %v5197 = vld [vmem:[%s2176 + $0x32] sm:$0xff]
        %v5198 = vld [vmem:[%s2176 + $0x42] sm:$0xff]
        %v5199 = vld [vmem:[%s2176 + $0x52] sm:$0xff]
        %v5200 = vld [vmem:[%s2176 + $0x62] sm:$0xff]
        %v5201 = vld [vmem:[%s2176 + $0x72] sm:$0xff]
        %v5202 = vpack.c.bf16 %v5195, %v5194
        %v5203 = vpack.c.bf16 %v5197, %v5196
        %v5204 = vpack.c.bf16 %v5199, %v5198
        %v5205 = vpack.c.bf16 %v5201, %v5200
        %s5206 = scalar_lea.vmem %s2, 1024
        %v5207 = vld [vmem:[%s5206] sm:$0xf]
        %v5208 = vld [vmem:[%s5206 + $0x4] sm:$0xf]
        %v5209 = vld [vmem:[%s5206 + $0x8] sm:$0xf]
        %v5210 = vld [vmem:[%s5206 + $0xc] sm:$0xf]
        %v5211 = vld [vmem:[%s5206 + $0x10] sm:$0xf]
        %v5212 = vld [vmem:[%s5206 + $0x14] sm:$0xf]
        %v5213 = vld [vmem:[%s5206 + $0x18] sm:$0xf]
        %v5214 = vld [vmem:[%s5206 + $0x1c] sm:$0xf]
        %v5223 = vunpack.c.l.b16 %v5207
        %v5224 = vunpack.c.l.b16 %v5208
        %v5225 = vunpack.c.l.b16 %v5209
        %v5226 = vunpack.c.l.b16 %v5210
        %v5227 = vunpack.c.l.b16 %v5211
        %v5228 = vunpack.c.l.b16 %v5212
        %v5229 = vunpack.c.l.b16 %v5213
        %v5230 = vunpack.c.l.b16 %v5214
        %v5231 = vpack.c.b16 %v5224, %v5223
        %v5232 = vpack.c.b16 %v5226, %v5225
        %v5233 = vpack.c.b16 %v5228, %v5227
        %v5234 = vpack.c.b16 %v5230, %v5229
        %v5240 = vsel %vm703, %v5202, 0
        %v5243 = vsel %vm703, %v5203, 0
        %v5246 = vsel %vm703, %v5204, 0
        %v5249 = vsel %vm703, %v5205, 0
        %5251 = vmatprep.subr.bf16.mxu0 0
        %5252 = vmatpush1.bf16.msra.mxu0 0
        %5253 = vmatprep.subr.bf16.mxu0 0
        %5254 = vmatpush1.bf16.msra.mxu0 0
        %5255 = vmatprep.subr.bf16.mxu0 0
        %5256 = vmatpush1.bf16.msra.mxu0 0
        %5257 = vmatprep.subr.bf16.mxu0 0
        %5258 = vmatpush1.bf16.msra.mxu0 0
        %5259 = vmatprep.subr.bf16.mxu0 0
        %5260 = vmatpush1.bf16.msra.mxu0 %v5234
        %5261 = vmatprep.subr.bf16.mxu0 0
        %5262 = vmatpush1.bf16.msra.mxu0 %v5233
        %5263 = vmatprep.subr.bf16.mxu0 0
        %5264 = vmatpush1.bf16.msra.mxu0 %v5232
        %5265 = vmatprep.subr.bf16.mxu0 0
        %5266 = vmatpush1.bf16.msra.mxu0 %v5231
        %5267 = vmatprep.subr.bf16.mxu0 0
        %5268 = vmatpush2.bf16.msra.mxu0 0
        %5269 = vmatprep.subr.bf16.mxu0 0
        %5270 = vmatpush2.bf16.msra.mxu0 0
        %5271 = vmatprep.subr.bf16.mxu0 0
        %5272 = vmatpush2.bf16.msra.mxu0 0
        %5273 = vmatprep.subr.bf16.mxu0 0
        %5274 = vmatpush2.bf16.msra.mxu0 0
        %5275 = vmatprep.subr.bf16.mxu0 0
        %5276 = vmatpush2.bf16.msra.mxu0 0
        %5277 = vmatprep.subr.bf16.mxu0 0
        %5278 = vmatpush2.bf16.msra.mxu0 0
        %5279 = vmatprep.subr.bf16.mxu0 0
        %5280 = vmatpush2.bf16.msra.mxu0 0
        %5281 = vmatprep.subr.bf16.mxu0 0
        %5282 = vmatpush2.bf16.msra.mxu0 0
        %5283 = vmatprep.mubr.bf16.mxu0 0
        %5284 = vmatmul.mubr.bf16.gmra.mxu0 %v5240
        %v5285 = vpop.f32.mrf.mxu0
        %v5286 = vadd.f32 0.0, %v5285
        %v5287 = vpop.f32.mrf.mxu0
        %v5288 = vpop.f32.mrf.mxu0
        %v5289 = vadd.f32 0.0, %v5288
        %v5290 = vpop.f32.mrf.mxu0
        %5291 = vmatprep.mubr.bf16.mxu0 0
        %5292 = vmatmul.mubr.bf16.gmra.mxu0 %v5243
        %v5293 = vpop.f32.mrf.mxu0
        %v5294 = vadd.f32 0.0, %v5293
        %v5295 = vpop.f32.mrf.mxu0
        %v5296 = vpop.f32.mrf.mxu0
        %v5297 = vadd.f32 0.0, %v5296
        %v5298 = vpop.f32.mrf.mxu0
        %5299 = vmatprep.mubr.bf16.mxu0 0
        %5300 = vmatmul.mubr.bf16.gmra.mxu0 %v5246
        %v5301 = vpop.f32.mrf.mxu0
        %v5302 = vadd.f32 0.0, %v5301
        %v5303 = vpop.f32.mrf.mxu0
        %v5304 = vpop.f32.mrf.mxu0
        %v5305 = vadd.f32 0.0, %v5304
        %v5306 = vpop.f32.mrf.mxu0
        %5307 = vmatprep.mubr.bf16.mxu0 0
        %5308 = vmatmul.mubr.bf16.gmra.mxu0 %v5249
        %v5309 = vpop.f32.mrf.mxu0
        %v5310 = vadd.f32 0.0, %v5309
        %v5311 = vpop.f32.mrf.mxu0
        %v5312 = vpop.f32.mrf.mxu0
        %v5313 = vadd.f32 0.0, %v5312
        %v5314 = vpop.f32.mrf.mxu0
        %5315 = vdwg.mxu0
        %v5316 = vadd.f32 %v5186, %v5286
        %v5317 = vadd.f32 %v5187, %v5289
        %v5318 = vadd.f32 %v5188, %v5294
        %v5319 = vadd.f32 %v5189, %v5297
        %v5320 = vadd.f32 %v5190, %v5302
        %v5321 = vadd.f32 %v5191, %v5305
        %v5322 = vadd.f32 %v5192, %v5310
        %v5323 = vadd.f32 %v5193, %v5313
        %v5324 = vld [vmem:[%s2949] sm:$0xff]
        %v5325 = vld [vmem:[%s2949 + $0x10] sm:$0xff]
        %v5326 = vld [vmem:[%s2949 + $0x20] sm:$0xff]
        %v5327 = vld [vmem:[%s2949 + $0x30] sm:$0xff]
        %v5328 = vld [vmem:[%s2949 + $0x40] sm:$0xff]
        %v5329 = vld [vmem:[%s2949 + $0x50] sm:$0xff]
        %v5330 = vld [vmem:[%s2949 + $0x60] sm:$0xff]
        %v5331 = vld [vmem:[%s2949 + $0x70] sm:$0xff]
        %v5332 = vpack.c.bf16 %v5325, %v5324
        %v5333 = vpack.c.bf16 %v5327, %v5326
        %v5334 = vpack.c.bf16 %v5329, %v5328
        %v5335 = vpack.c.bf16 %v5331, %v5330
        %s5336 = scalar_lea.vmem %s2, 1056
        %v5337 = vld [vmem:[%s5336] sm:$0xf]
        %v5338 = vld [vmem:[%s5336 + $0x4] sm:$0xf]
        %v5339 = vld [vmem:[%s5336 + $0x8] sm:$0xf]
        %v5340 = vld [vmem:[%s5336 + $0xc] sm:$0xf]
        %v5341 = vld [vmem:[%s5336 + $0x10] sm:$0xf]
        %v5342 = vld [vmem:[%s5336 + $0x14] sm:$0xf]
        %v5343 = vld [vmem:[%s5336 + $0x18] sm:$0xf]
        %v5344 = vld [vmem:[%s5336 + $0x1c] sm:$0xf]
        %v5353 = vunpack.c.l.b16 %v5337
        %v5354 = vunpack.c.l.b16 %v5338
        %v5355 = vunpack.c.l.b16 %v5339
        %v5356 = vunpack.c.l.b16 %v5340
        %v5357 = vunpack.c.l.b16 %v5341
        %v5358 = vunpack.c.l.b16 %v5342
        %v5359 = vunpack.c.l.b16 %v5343
        %v5360 = vunpack.c.l.b16 %v5344
        %v5361 = vpack.c.b16 %v5354, %v5353
        %v5362 = vpack.c.b16 %v5356, %v5355
        %v5363 = vpack.c.b16 %v5358, %v5357
        %v5364 = vpack.c.b16 %v5360, %v5359
        %v5370 = vsel %vm703, %v5332, 0
        %v5373 = vsel %vm703, %v5333, 0
        %v5376 = vsel %vm703, %v5334, 0
        %v5379 = vsel %vm703, %v5335, 0
        %5381 = vmatprep.subr.bf16.mxu0 0
        %5382 = vmatpush1.bf16.msra.mxu0 0
        %5383 = vmatprep.subr.bf16.mxu0 0
        %5384 = vmatpush1.bf16.msra.mxu0 0
        %5385 = vmatprep.subr.bf16.mxu0 0
        %5386 = vmatpush1.bf16.msra.mxu0 0
        %5387 = vmatprep.subr.bf16.mxu0 0
        %5388 = vmatpush1.bf16.msra.mxu0 0
        %5389 = vmatprep.subr.bf16.mxu0 0
        %5390 = vmatpush1.bf16.msra.mxu0 %v5364
        %5391 = vmatprep.subr.bf16.mxu0 0
        %5392 = vmatpush1.bf16.msra.mxu0 %v5363
        %5393 = vmatprep.subr.bf16.mxu0 0
        %5394 = vmatpush1.bf16.msra.mxu0 %v5362
        %5395 = vmatprep.subr.bf16.mxu0 0
        %5396 = vmatpush1.bf16.msra.mxu0 %v5361
        %5397 = vmatprep.subr.bf16.mxu0 0
        %5398 = vmatpush2.bf16.msra.mxu0 0
        %5399 = vmatprep.subr.bf16.mxu0 0
        %5400 = vmatpush2.bf16.msra.mxu0 0
        %5401 = vmatprep.subr.bf16.mxu0 0
        %5402 = vmatpush2.bf16.msra.mxu0 0
        %5403 = vmatprep.subr.bf16.mxu0 0
        %5404 = vmatpush2.bf16.msra.mxu0 0
        %5405 = vmatprep.subr.bf16.mxu0 0
        %5406 = vmatpush2.bf16.msra.mxu0 0
        %5407 = vmatprep.subr.bf16.mxu0 0
        %5408 = vmatpush2.bf16.msra.mxu0 0
        %5409 = vmatprep.subr.bf16.mxu0 0
        %5410 = vmatpush2.bf16.msra.mxu0 0
        %5411 = vmatprep.subr.bf16.mxu0 0
        %5412 = vmatpush2.bf16.msra.mxu0 0
        %5413 = vmatprep.mubr.bf16.mxu0 0
        %5414 = vmatmul.mubr.bf16.gmra.mxu0 %v5370
        %v5415 = vpop.f32.mrf.mxu0
        %v5416 = vadd.f32 0.0, %v5415
        %v5417 = vpop.f32.mrf.mxu0
        %v5418 = vpop.f32.mrf.mxu0
        %v5419 = vadd.f32 0.0, %v5418
        %v5420 = vpop.f32.mrf.mxu0
        %5421 = vmatprep.mubr.bf16.mxu0 0
        %5422 = vmatmul.mubr.bf16.gmra.mxu0 %v5373
        %v5423 = vpop.f32.mrf.mxu0
        %v5424 = vadd.f32 0.0, %v5423
        %v5425 = vpop.f32.mrf.mxu0
        %v5426 = vpop.f32.mrf.mxu0
        %v5427 = vadd.f32 0.0, %v5426
        %v5428 = vpop.f32.mrf.mxu0
        %5429 = vmatprep.mubr.bf16.mxu0 0
        %5430 = vmatmul.mubr.bf16.gmra.mxu0 %v5376
        %v5431 = vpop.f32.mrf.mxu0
        %v5432 = vadd.f32 0.0, %v5431
        %v5433 = vpop.f32.mrf.mxu0
        %v5434 = vpop.f32.mrf.mxu0
        %v5435 = vadd.f32 0.0, %v5434
        %v5436 = vpop.f32.mrf.mxu0
        %5437 = vmatprep.mubr.bf16.mxu0 0
        %5438 = vmatmul.mubr.bf16.gmra.mxu0 %v5379
        %v5439 = vpop.f32.mrf.mxu0
        %v5440 = vadd.f32 0.0, %v5439
        %v5441 = vpop.f32.mrf.mxu0
        %v5442 = vpop.f32.mrf.mxu0
        %v5443 = vadd.f32 0.0, %v5442
        %v5444 = vpop.f32.mrf.mxu0
        %5445 = vdwg.mxu0
        %v5446 = vadd.f32 %v5316, %v5416
        %v5447 = vadd.f32 %v5317, %v5419
        %v5448 = vadd.f32 %v5318, %v5424
        %v5449 = vadd.f32 %v5319, %v5427
        %v5450 = vadd.f32 %v5320, %v5432
        %v5451 = vadd.f32 %v5321, %v5435
        %v5452 = vadd.f32 %v5322, %v5440
        %v5453 = vadd.f32 %v5323, %v5443
        %v5454 = vld [vmem:[%s2949 + $0x1] sm:$0xff]
        %v5455 = vld [vmem:[%s2949 + $0x11] sm:$0xff]
        %v5456 = vld [vmem:[%s2949 + $0x21] sm:$0xff]
        %v5457 = vld [vmem:[%s2949 + $0x31] sm:$0xff]
        %v5458 = vld [vmem:[%s2949 + $0x41] sm:$0xff]
        %v5459 = vld [vmem:[%s2949 + $0x51] sm:$0xff]
        %v5460 = vld [vmem:[%s2949 + $0x61] sm:$0xff]
        %v5461 = vld [vmem:[%s2949 + $0x71] sm:$0xff]
        %v5462 = vpack.c.bf16 %v5455, %v5454
        %v5463 = vpack.c.bf16 %v5457, %v5456
        %v5464 = vpack.c.bf16 %v5459, %v5458
        %v5465 = vpack.c.bf16 %v5461, %v5460
        %s5466 = scalar_lea.vmem %s2, 1088
        %v5467 = vld [vmem:[%s5466] sm:$0xf]
        %v5468 = vld [vmem:[%s5466 + $0x4] sm:$0xf]
        %v5469 = vld [vmem:[%s5466 + $0x8] sm:$0xf]
        %v5470 = vld [vmem:[%s5466 + $0xc] sm:$0xf]
        %v5471 = vld [vmem:[%s5466 + $0x10] sm:$0xf]
        %v5472 = vld [vmem:[%s5466 + $0x14] sm:$0xf]
        %v5473 = vld [vmem:[%s5466 + $0x18] sm:$0xf]
        %v5474 = vld [vmem:[%s5466 + $0x1c] sm:$0xf]
        %v5483 = vunpack.c.l.b16 %v5467
        %v5484 = vunpack.c.l.b16 %v5468
        %v5485 = vunpack.c.l.b16 %v5469
        %v5486 = vunpack.c.l.b16 %v5470
        %v5487 = vunpack.c.l.b16 %v5471
        %v5488 = vunpack.c.l.b16 %v5472
        %v5489 = vunpack.c.l.b16 %v5473
        %v5490 = vunpack.c.l.b16 %v5474
        %v5491 = vpack.c.b16 %v5484, %v5483
        %v5492 = vpack.c.b16 %v5486, %v5485
        %v5493 = vpack.c.b16 %v5488, %v5487
        %v5494 = vpack.c.b16 %v5490, %v5489
        %v5500 = vsel %vm703, %v5462, 0
        %v5503 = vsel %vm703, %v5463, 0
        %v5506 = vsel %vm703, %v5464, 0
        %v5509 = vsel %vm703, %v5465, 0
        %5511 = vmatprep.subr.bf16.mxu0 0
        %5512 = vmatpush1.bf16.msra.mxu0 0
        %5513 = vmatprep.subr.bf16.mxu0 0
        %5514 = vmatpush1.bf16.msra.mxu0 0
        %5515 = vmatprep.subr.bf16.mxu0 0
        %5516 = vmatpush1.bf16.msra.mxu0 0
        %5517 = vmatprep.subr.bf16.mxu0 0
        %5518 = vmatpush1.bf16.msra.mxu0 0
        %5519 = vmatprep.subr.bf16.mxu0 0
        %5520 = vmatpush1.bf16.msra.mxu0 %v5494
        %5521 = vmatprep.subr.bf16.mxu0 0
        %5522 = vmatpush1.bf16.msra.mxu0 %v5493
        %5523 = vmatprep.subr.bf16.mxu0 0
        %5524 = vmatpush1.bf16.msra.mxu0 %v5492
        %5525 = vmatprep.subr.bf16.mxu0 0
        %5526 = vmatpush1.bf16.msra.mxu0 %v5491
        %5527 = vmatprep.subr.bf16.mxu0 0
        %5528 = vmatpush2.bf16.msra.mxu0 0
        %5529 = vmatprep.subr.bf16.mxu0 0
        %5530 = vmatpush2.bf16.msra.mxu0 0
        %5531 = vmatprep.subr.bf16.mxu0 0
        %5532 = vmatpush2.bf16.msra.mxu0 0
        %5533 = vmatprep.subr.bf16.mxu0 0
        %5534 = vmatpush2.bf16.msra.mxu0 0
        %5535 = vmatprep.subr.bf16.mxu0 0
        %5536 = vmatpush2.bf16.msra.mxu0 0
        %5537 = vmatprep.subr.bf16.mxu0 0
        %5538 = vmatpush2.bf16.msra.mxu0 0
        %5539 = vmatprep.subr.bf16.mxu0 0
        %5540 = vmatpush2.bf16.msra.mxu0 0
        %5541 = vmatprep.subr.bf16.mxu0 0
        %5542 = vmatpush2.bf16.msra.mxu0 0
        %5543 = vmatprep.mubr.bf16.mxu0 0
        %5544 = vmatmul.mubr.bf16.gmra.mxu0 %v5500
        %v5545 = vpop.f32.mrf.mxu0
        %v5546 = vadd.f32 0.0, %v5545
        %v5547 = vpop.f32.mrf.mxu0
        %v5548 = vpop.f32.mrf.mxu0
        %v5549 = vadd.f32 0.0, %v5548
        %v5550 = vpop.f32.mrf.mxu0
        %5551 = vmatprep.mubr.bf16.mxu0 0
        %5552 = vmatmul.mubr.bf16.gmra.mxu0 %v5503
        %v5553 = vpop.f32.mrf.mxu0
        %v5554 = vadd.f32 0.0, %v5553
        %v5555 = vpop.f32.mrf.mxu0
        %v5556 = vpop.f32.mrf.mxu0
        %v5557 = vadd.f32 0.0, %v5556
        %v5558 = vpop.f32.mrf.mxu0
        %5559 = vmatprep.mubr.bf16.mxu0 0
        %5560 = vmatmul.mubr.bf16.gmra.mxu0 %v5506
        %v5561 = vpop.f32.mrf.mxu0
        %v5562 = vadd.f32 0.0, %v5561
        %v5563 = vpop.f32.mrf.mxu0
        %v5564 = vpop.f32.mrf.mxu0
        %v5565 = vadd.f32 0.0, %v5564
        %v5566 = vpop.f32.mrf.mxu0
        %5567 = vmatprep.mubr.bf16.mxu0 0
        %5568 = vmatmul.mubr.bf16.gmra.mxu0 %v5509
        %v5569 = vpop.f32.mrf.mxu0
        %v5570 = vadd.f32 0.0, %v5569
        %v5571 = vpop.f32.mrf.mxu0
        %v5572 = vpop.f32.mrf.mxu0
        %v5573 = vadd.f32 0.0, %v5572
        %v5574 = vpop.f32.mrf.mxu0
        %5575 = vdwg.mxu0
        %v5576 = vadd.f32 %v5446, %v5546
        %v5577 = vadd.f32 %v5447, %v5549
        %v5578 = vadd.f32 %v5448, %v5554
        %v5579 = vadd.f32 %v5449, %v5557
        %v5580 = vadd.f32 %v5450, %v5562
        %v5581 = vadd.f32 %v5451, %v5565
        %v5582 = vadd.f32 %v5452, %v5570
        %v5583 = vadd.f32 %v5453, %v5573
        %v5584 = vld [vmem:[%s2949 + $0x2] sm:$0xff]
        %v5585 = vld [vmem:[%s2949 + $0x12] sm:$0xff]
        %v5586 = vld [vmem:[%s2949 + $0x22] sm:$0xff]
        %v5587 = vld [vmem:[%s2949 + $0x32] sm:$0xff]
        %v5588 = vld [vmem:[%s2949 + $0x42] sm:$0xff]
        %v5589 = vld [vmem:[%s2949 + $0x52] sm:$0xff]
        %v5590 = vld [vmem:[%s2949 + $0x62] sm:$0xff]
        %v5591 = vld [vmem:[%s2949 + $0x72] sm:$0xff]
        %v5592 = vpack.c.bf16 %v5585, %v5584
        %v5593 = vpack.c.bf16 %v5587, %v5586
        %v5594 = vpack.c.bf16 %v5589, %v5588
        %v5595 = vpack.c.bf16 %v5591, %v5590
        %s5596 = scalar_lea.vmem %s2, 1120
        %v5597 = vld [vmem:[%s5596] sm:$0xf]
        %v5598 = vld [vmem:[%s5596 + $0x4] sm:$0xf]
        %v5599 = vld [vmem:[%s5596 + $0x8] sm:$0xf]
        %v5600 = vld [vmem:[%s5596 + $0xc] sm:$0xf]
        %v5601 = vld [vmem:[%s5596 + $0x10] sm:$0xf]
        %v5602 = vld [vmem:[%s5596 + $0x14] sm:$0xf]
        %v5603 = vld [vmem:[%s5596 + $0x18] sm:$0xf]
        %v5604 = vld [vmem:[%s5596 + $0x1c] sm:$0xf]
        %v5613 = vunpack.c.l.b16 %v5597
        %v5614 = vunpack.c.l.b16 %v5598
        %v5615 = vunpack.c.l.b16 %v5599
        %v5616 = vunpack.c.l.b16 %v5600
        %v5617 = vunpack.c.l.b16 %v5601
        %v5618 = vunpack.c.l.b16 %v5602
        %v5619 = vunpack.c.l.b16 %v5603
        %v5620 = vunpack.c.l.b16 %v5604
        %v5621 = vpack.c.b16 %v5614, %v5613
        %v5622 = vpack.c.b16 %v5616, %v5615
        %v5623 = vpack.c.b16 %v5618, %v5617
        %v5624 = vpack.c.b16 %v5620, %v5619
        %v5630 = vsel %vm703, %v5592, 0
        %v5633 = vsel %vm703, %v5593, 0
        %v5636 = vsel %vm703, %v5594, 0
        %v5639 = vsel %vm703, %v5595, 0
        %5641 = vmatprep.subr.bf16.mxu0 0
        %5642 = vmatpush1.bf16.msra.mxu0 0
        %5643 = vmatprep.subr.bf16.mxu0 0
        %5644 = vmatpush1.bf16.msra.mxu0 0
        %5645 = vmatprep.subr.bf16.mxu0 0
        %5646 = vmatpush1.bf16.msra.mxu0 0
        %5647 = vmatprep.subr.bf16.mxu0 0
        %5648 = vmatpush1.bf16.msra.mxu0 0
        %5649 = vmatprep.subr.bf16.mxu0 0
        %5650 = vmatpush1.bf16.msra.mxu0 %v5624
        %5651 = vmatprep.subr.bf16.mxu0 0
        %5652 = vmatpush1.bf16.msra.mxu0 %v5623
        %5653 = vmatprep.subr.bf16.mxu0 0
        %5654 = vmatpush1.bf16.msra.mxu0 %v5622
        %5655 = vmatprep.subr.bf16.mxu0 0
        %5656 = vmatpush1.bf16.msra.mxu0 %v5621
        %5657 = vmatprep.subr.bf16.mxu0 0
        %5658 = vmatpush2.bf16.msra.mxu0 0
        %5659 = vmatprep.subr.bf16.mxu0 0
        %5660 = vmatpush2.bf16.msra.mxu0 0
        %5661 = vmatprep.subr.bf16.mxu0 0
        %5662 = vmatpush2.bf16.msra.mxu0 0
        %5663 = vmatprep.subr.bf16.mxu0 0
        %5664 = vmatpush2.bf16.msra.mxu0 0
        %5665 = vmatprep.subr.bf16.mxu0 0
        %5666 = vmatpush2.bf16.msra.mxu0 0
        %5667 = vmatprep.subr.bf16.mxu0 0
        %5668 = vmatpush2.bf16.msra.mxu0 0
        %5669 = vmatprep.subr.bf16.mxu0 0
        %5670 = vmatpush2.bf16.msra.mxu0 0
        %5671 = vmatprep.subr.bf16.mxu0 0
        %5672 = vmatpush2.bf16.msra.mxu0 0
        %5673 = vmatprep.mubr.bf16.mxu0 0
        %5674 = vmatmul.mubr.bf16.gmra.mxu0 %v5630
        %v5675 = vpop.f32.mrf.mxu0
        %v5676 = vadd.f32 0.0, %v5675
        %v5677 = vpop.f32.mrf.mxu0
        %v5678 = vpop.f32.mrf.mxu0
        %v5679 = vadd.f32 0.0, %v5678
        %v5680 = vpop.f32.mrf.mxu0
        %5681 = vmatprep.mubr.bf16.mxu0 0
        %5682 = vmatmul.mubr.bf16.gmra.mxu0 %v5633
        %v5683 = vpop.f32.mrf.mxu0
        %v5684 = vadd.f32 0.0, %v5683
        %v5685 = vpop.f32.mrf.mxu0
        %v5686 = vpop.f32.mrf.mxu0
        %v5687 = vadd.f32 0.0, %v5686
        %v5688 = vpop.f32.mrf.mxu0
        %5689 = vmatprep.mubr.bf16.mxu0 0
        %5690 = vmatmul.mubr.bf16.gmra.mxu0 %v5636
        %v5691 = vpop.f32.mrf.mxu0
        %v5692 = vadd.f32 0.0, %v5691
        %v5693 = vpop.f32.mrf.mxu0
        %v5694 = vpop.f32.mrf.mxu0
        %v5695 = vadd.f32 0.0, %v5694
        %v5696 = vpop.f32.mrf.mxu0
        %5697 = vmatprep.mubr.bf16.mxu0 0
        %5698 = vmatmul.mubr.bf16.gmra.mxu0 %v5639
        %v5699 = vpop.f32.mrf.mxu0
        %v5700 = vadd.f32 0.0, %v5699
        %v5701 = vpop.f32.mrf.mxu0
        %v5702 = vpop.f32.mrf.mxu0
        %v5703 = vadd.f32 0.0, %v5702
        %v5704 = vpop.f32.mrf.mxu0
        %5705 = vdwg.mxu0
        %v5706 = vadd.f32 %v5576, %v5676
        %v5707 = vadd.f32 %v5577, %v5679
        %v5708 = vadd.f32 %v5578, %v5684
        %v5709 = vadd.f32 %v5579, %v5687
        %v5710 = vadd.f32 %v5580, %v5692
        %v5711 = vadd.f32 %v5581, %v5695
        %v5712 = vadd.f32 %v5582, %v5700
        %v5713 = vadd.f32 %v5583, %v5703
        %v5714 = vld [vmem:[%s3 + $0x4] sm:$0x1]
        %v5715 = vlaneseq
        %v5716 = vshrl.u32 %v5715, 7
        %v5717 = vsub.s32 0, %v5716
        %v5718 = vrot.slane %v5714, %v5717
        %v5719 = vadd.f32 %v5706, %v5718
        %v5720 = vadd.f32 %v5707, %v5718
        %v5721 = vadd.f32 %v5708, %v5718
        %v5722 = vadd.f32 %v5709, %v5718
        %v5723 = vadd.f32 %v5710, %v5718
        %v5724 = vadd.f32 %v5711, %v5718
        %v5725 = vadd.f32 %v5712, %v5718
        %v5726 = vadd.f32 %v5713, %v5718
        %v5727 = vadd.f32 %v5719, %v3361
        %v5728 = vadd.f32 %v5720, %v3362
        %v5729 = vadd.f32 %v5721, %v3363
        %v5730 = vadd.f32 %v5722, %v3364
        %v5731 = vadd.f32 %v5723, %v3365
        %v5732 = vadd.f32 %v5724, %v3366
        %v5733 = vadd.f32 %v5725, %v3367
        %v5734 = vadd.f32 %v5726, %v3368
        %v5735 = vmax.f32 %v5727, 0.0
        %v5736 = vmax.f32 %v5728, 0.0
        %v5737 = vmax.f32 %v5729, 0.0
        %v5738 = vmax.f32 %v5730, 0.0
        %v5739 = vmax.f32 %v5731, 0.0
        %v5740 = vmax.f32 %v5732, 0.0
        %v5741 = vmax.f32 %v5733, 0.0
        %v5742 = vmax.f32 %v5734, 0.0
        %5743 = vst.msk [vmem:[%s190] sm:$0xff] %vm703, %v5735
        %5744 = vst.msk [vmem:[%s190 + $0x8] sm:$0xff] %vm703, %v5736
        %5745 = vst.msk [vmem:[%s190 + $0x10] sm:$0xff] %vm703, %v5737
        %5746 = vst.msk [vmem:[%s190 + $0x18] sm:$0xff] %vm703, %v5738
        %5747 = vst.msk [vmem:[%s190 + $0x20] sm:$0xff] %vm703, %v5739
        %5748 = vst.msk [vmem:[%s190 + $0x28] sm:$0xff] %vm703, %v5740
        %5749 = vst.msk [vmem:[%s190 + $0x30] sm:$0xff] %vm703, %v5741
        %5750 = vst.msk [vmem:[%s190 + $0x38] sm:$0xff] %vm703, %v5742
        %s5751 = sand.u32 %s115, 1
        %s5752 = scalar_lea.sflag [#allocation6], %s5751
        %s5753 = sand.u32 %s115, 1
        %s5754 = smul.addr %s5753, 64
        %s5755 = scalar_lea.vmem [#allocation5], %s5754
        // Predicated region
        $region37: #{tiny_resnet18_forward.1} parent=35 // pred_check
          %p5756 = pneg %p125
        $region38: #{tiny_resnet18_forward.1} parent=35 // pred_check_branch
          %5758 = sbr.rel (%p5756) target = $region40
        $region39: #{tiny_resnet18_forward.1} parent=35 // pred_region
          %s5760 = ssub.s32 1024, 1024
          %5761 = vsyncadd %s5752, %s5760
          %s5762 = smul.addr %s18, 8
          %s5763 = smul.addr %s5762, 128
          %s5764 = scalar_lea.hbm %s4, %s5763
          %s5765 = sshll.u32 %s5755, 4
          %s5766 = int_to_ptr.vmem [resolvable:$true] %s5765
          %5771 = dma.vmem_to_hbm [thread:$0]  %s5766, 1024, %s5764, %s5752, 128, 128, 8
        $region40: #{tiny_resnet18_forward.1} parent=35 // pred_fallthru
          _
      $region36: #{tiny_resnet18_forward.1} parent=5 // pred_fallthru
        _
      %p5772 = scmp.le.s32.totalorder 2, %s13
      // Predicated region
      $region41: #{tiny_resnet18_forward.1} parent=5 // pred_check
        %p5773 = pneg %p5772
      $region42: #{tiny_resnet18_forward.1} parent=5 // pred_check_branch
        %5775 = sbr.rel (%p5773) target = $region44
      $region43: #{tiny_resnet18_forward.1} parent=5 // pred_region
        %s5776 = ssub.s32 %s13, 2
        // Predicated region
        $region45: #{tiny_resnet18_forward.1} parent=43 // pred_check
          %p5777 = pneg %p131
        $region46: #{tiny_resnet18_forward.1} parent=43 // pred_check_branch
          %5779 = sbr.rel (%p5777) target = $region48
        $region47: #{tiny_resnet18_forward.1} parent=43 // pred_region
          %s5780 = sand.u32 %s116, 1
          %s5781 = scalar_lea.sflag [#allocation6], %s5780
          %s5782 = sand.u32 %s116, 1
          %s5783 = smul.addr %s5782, 64
          %s5784 = scalar_lea.vmem [#allocation5], %s5783
          %5785 = dma.done %s5781, 1024
        $region48: #{tiny_resnet18_forward.1} parent=43 // pred_fallthru
          _
      $region44: #{tiny_resnet18_forward.1} parent=5 // pred_fallthru
        _
    $region6: #{tiny_resnet18_forward.1} parent=1 // loop_footer
      %s17 = sadd.s32 1, %s13
    $region7: #{tiny_resnet18_forward.1} parent=1 // loop_footer_branch
      %12 = sbr.rel target = $region3
    $region8: #{tiny_resnet18_forward.1} parent=1 // loop_exit
      _
    %5786 = vsyncpa [#allocation6], 1
    %s5787 = scalar_lea.sflag [#allocation6], 1
    %5788 = vsyncpa %s5787, 1

</llo_original>
